<compile_context>
chip_gen: v7x
topology: tpu7x:2x2x1
jax: 0.10.0
libtpu: 0.0.40
codegen_flags: <defaults>
</compile_context>

<pallas_src>
import numpy as np
import jax
import jax.numpy as jnp
from jax import lax
from jax.experimental import pallas as pl
from jax.experimental.pallas import tpu as pltpu

# -------------------- hyperparameters (config['HYPERPARAMETERS']) -----------
LINK_STATE_DIM = 32        # link_state_dim
PATH_STATE_DIM = 32        # path_state_dim (must equal link_state_dim per forward())
READOUT_UNITS  = 16        # readout_units
T_ITERS        = 3         # t  (message-passing iterations)
OUTPUT_UNITS   = 1
TIME_DIST_DIM  = 12        # 1 (traffic) + 1 (packets) + 12 = 14 first cols of path_state

# G / S entries are exact small integers -> bf16 is lossless for them; their
# co-operands are cast to bf16 at those two matmuls only (f32 accumulation).
# Set to jnp.float32 for bit-strict f32 structural matmuls.
STRUCT_DTYPE = jnp.bfloat16

assert PATH_STATE_DIM == LINK_STATE_DIM, \
    "forward() zero-pads path_state with LINK_STATE_DIM - 14 cols; dims must match"


def _vmem_spec():
    return pl.BlockSpec(memory_space=pltpu.MemorySpace.VMEM)


# -------------------- fully fused forward kernel -----------------------------
def make_fused_forward(n_paths, n_links, max_len, t_iters):
    H = PATH_STATE_DIM
    P, L = n_paths, n_links

    def kernel(ps_ref, ls_ref, g_ref, s_ref, mask_ref,
               gwih_ref, gwhh_ref, gb_ref,
               cwih_ref, cwhh_ref, cb_ref,
               w1_ref, b1_ref, w2_ref, b2_ref, w3_ref, b3_ref,
               o_ref):
        path_state = ps_ref[...]                         # (P, H) f32
        link_state = ls_ref[...]                         # (L, H) f32
        G = g_ref[...]                                   # (max_len*P, L) struct gather
        S = s_ref[...]                                   # (L, P)         struct scatter-add
        sdt = G.dtype                                    # structural matmul dtype

        # pack_padded_sequence emulation mask (host-static): keep while t < len(p)
        step_keep = mask_ref[...] != 0.0                 # (max_len, P, H) bool

        # Per-gate weights (leading-axis index, lane-dense (H,H) / (Din,H) tiles).
        gwih_r, gwih_z, gwih_n = gwih_ref[0], gwih_ref[1], gwih_ref[2]
        gwhh_r, gwhh_z, gwhh_n = gwhh_ref[0], gwhh_ref[1], gwhh_ref[2]
        cwih_r, cwih_z, cwih_n = cwih_ref[0], cwih_ref[1], cwih_ref[2]
        cwhh_r, cwhh_z, cwhh_n = cwhh_ref[0], cwhh_ref[1], cwhh_ref[2]

        # Hoisted bias broadcasts (JAX does not CSE broadcast_in_dim).
        gb_r  = jnp.broadcast_to(gb_ref[0], (max_len * P, H))   # b_ir + b_hr
        gb_z  = jnp.broadcast_to(gb_ref[1], (max_len * P, H))   # b_iz + b_hz
        gb_in = jnp.broadcast_to(gb_ref[2], (max_len * P, H))   # b_in
        gb_hn = jnp.broadcast_to(gb_ref[3], (P, H))              # b_hn
        cb_r  = jnp.broadcast_to(cb_ref[0], (L, H))
        cb_z  = jnp.broadcast_to(cb_ref[1], (L, H))
        cb_in = jnp.broadcast_to(cb_ref[2], (L, H))
        cb_hn = jnp.broadcast_to(cb_ref[3], (L, H))

        def dotf(a, b):
            return jnp.dot(a, b, preferred_element_type=jnp.float32)

        # TODO(synk): convert these unrolled loops to lax.fori_loop(..., unroll=k)
        # if t_iters / max_len / P grow (bound live ranges, avoid vreg spills).
        for _ in range(t_iters):
            # ---- input-side gate projections, OFF the serial recurrence --------
            # (L,H)@(H,H) then one structural map (max_len*P, L)@(L, H) per gate.
            # Reshape to (max_len, P, H): pure leading-dim split (P % 8 == 0 -> free).
            gi_r = (dotf(G, dotf(link_state, gwih_r).astype(sdt)) + gb_r
                    ).reshape(max_len, P, H)
            gi_z = (dotf(G, dotf(link_state, gwih_z).astype(sdt)) + gb_z
                    ).reshape(max_len, P, H)
            gi_n = (dotf(G, dotf(link_state, gwih_n).astype(sdt)) + gb_in
                    ).reshape(max_len, P, H)

            # ---- path GRU over padded link sequences (recurrent matmuls only) --
            h = path_state
            for t in range(max_len):                     # statically unrolled
                r = jax.nn.sigmoid(gi_r[t] + dotf(h, gwhh_r))
                z = jax.nn.sigmoid(gi_z[t] + dotf(h, gwhh_z))
                n = jnp.tanh(gi_n[t] + r * (dotf(h, gwhh_n) + gb_hn))
                h_new = (1.0 - z) * n + z * h
                # freeze h once t >= length of that path (pack_padded_sequence)
                h = jnp.where(step_keep[t], h_new, h)
            path_state = h

            # ---- aggregate path states onto links: scatter_add == S @ path_state
            path_sum = dotf(S, path_state.astype(sdt))   # (L, H) f32 accum
            cr = jax.nn.sigmoid(dotf(path_sum, cwih_r) + cb_r
                                + dotf(link_state, cwhh_r))
            cz = jax.nn.sigmoid(dotf(path_sum, cwih_z) + cb_z
                                + dotf(link_state, cwhh_z))
            cn = jnp.tanh(dotf(path_sum, cwih_n) + cb_in
                          + cr * (dotf(link_state, cwhh_n) + cb_hn))
            link_state = (1.0 - cz) * cn + cz * link_state

        # ---- readout MLP: contract over H (no transpose), lane-dense (1, P) out
        dn = (((1,), (1,)), ((), ()))                    # contract H-with-H
        h1 = jnp.maximum(
            lax.dot_general(w1_ref[...], path_state, dn,
                            preferred_element_type=jnp.float32) + b1_ref[...],
            0.0)                                         # (R, P)
        h2 = jnp.maximum(dotf(w2_ref[...], h1) + b2_ref[...], 0.0)   # (R, P)
        o_ref[...] = dotf(w3_ref[...], h2) + b3_ref[...]             # (1, P)

    return pl.pallas_call(
        kernel,
        out_shape=jax.ShapeDtypeStruct((1, n_paths), jnp.float32),
        in_specs=[_vmem_spec()] * 17,
        out_specs=_vmem_spec(),
    )


# -------------------- parameter init (deterministic, PyTorch-style uniform) --
def _uniform(key, shape, bound):
    return jax.random.uniform(key, shape, jnp.float32, -bound, bound)


def init_params(key):
    ks = jax.random.split(key, 16)
    H = PATH_STATE_DIM
    R = READOUT_UNITS
    bg = 1.0 / np.sqrt(PATH_STATE_DIM)    # GRU bound (1/sqrt(hidden))
    bc = 1.0 / np.sqrt(LINK_STATE_DIM)    # GRUCell bound
    br1 = 1.0 / np.sqrt(PATH_STATE_DIM)
    br2 = 1.0 / np.sqrt(READOUT_UNITS)

    def gru_weights(kwih, kwhh, kbih, kbhh, din, h, bound):
        # PyTorch layout: weight_ih (3H, Din), gate order r,z,n.  We store the
        # transpose, split per gate, stacked:  wih[g] == weight_ih[g*H:(g+1)*H].T
        wih = _uniform(kwih, (3, din, h), bound)
        whh = _uniform(kwhh, (3, h, h), bound)
        bih = _uniform(kbih, (3, h), bound)
        bhh = _uniform(kbhh, (3, h), bound)
        # Fold r/z biases (b_ih + b_hh); the n gate keeps b_in and b_hn separate
        # because b_hn sits inside the reset-gate product.
        b = jnp.stack([bih[0] + bhh[0], bih[1] + bhh[1], bih[2], bhh[2]])  # (4, H)
        return wih, whh, b

    gwih, gwhh, gb = gru_weights(ks[0], ks[1], ks[2], ks[3],
                                 LINK_STATE_DIM, PATH_STATE_DIM, bg)
    cwih, cwhh, cb = gru_weights(ks[4], ks[5], ks[6], ks[7],
                                 PATH_STATE_DIM, LINK_STATE_DIM, bc)

    params = {
        "gru":  {"wih": gwih, "whh": gwhh, "b": gb},   # path_update_gru
        "cell": {"wih": cwih, "whh": cwhh, "b": cb},   # link_update (GRUCell)
        "readout": {                                   # torch Linear weights (out, in)
            "w1": _uniform(ks[8],  (R, H), br1), "b1": _uniform(ks[9],  (R, 1), br1),
            "w2": _uniform(ks[10], (R, R), br2), "b2": _uniform(ks[11], (R, 1), br2),
            "w3": _uniform(ks[12], (OUTPUT_UNITS, R), br2),
            "b3": _uniform(ks[13], (OUTPUT_UNITS, 1), br2),
        },
    }
    return params


# -------------------- forward pass (host builds static structural matrices) --
def gnn_forward(params, inputs):
    n_links = int(inputs["n_links"])
    n_paths = int(inputs["n_paths"])

    traffic = inputs["traffic"].reshape(-1, 1).astype(jnp.float32)    # (P, 1)
    packets = inputs["packets"].reshape(-1, 1).astype(jnp.float32)    # (P, 1)
    tdp = inputs["time_dist_params"].astype(jnp.float32)              # (P, 12)
    capacity = inputs["capacity"].reshape(-1, 1).astype(jnp.float32)  # (L, 1)

    link_to_path = np.asarray(inputs["link_to_path"], np.int64)
    path_to_link = np.asarray(inputs["path_to_link"], np.int64)
    path_ids = np.asarray(inputs["path_ids"], np.int64)
    sequence_path = np.asarray(inputs["sequence_path"], np.int64)
    sequence_links = np.asarray(inputs["sequence_links"], np.int64).reshape(-1)

    max_len = int(np.max(sequence_path)) + 1      # static padding length

    # Structural gather matrix: row (t*P + p) selects the link at position t of path p.
    G = np.zeros((max_len * n_paths, n_links), np.float32)
    G[sequence_path * n_paths + path_ids, link_to_path] = 1.0
    # Structural scatter-add matrix: S[l, p] = multiplicity of path p on link l.
    S = np.zeros((n_links, n_paths), np.float32)
    np.add.at(S, (sequence_links, path_to_link), 1.0)

    # Host-static pack_padded_sequence mask: lens[p] = #links of path p.
    # (Equivalent to the torch nonzero-row count: gathered rows are never all-zero
    #  since capacity > 0 and GRU states are generically nonzero.)
    lens = np.zeros((n_paths,), np.int64)
    np.add.at(lens, path_ids, 1)
    mask = (np.arange(max_len)[:, None] < lens[None, :]).astype(np.float32)  # (T,P)
    mask = np.broadcast_to(mask[:, :, None],
                           (max_len, n_paths, PATH_STATE_DIM)).astype(np.float32)

    link_state0 = jnp.concatenate(
        [capacity, jnp.zeros((n_links, LINK_STATE_DIM - 1), jnp.float32)], axis=1)
    path_state0 = jnp.concatenate(
        [traffic, packets, tdp,
         jnp.zeros((n_paths, LINK_STATE_DIM - 14), jnp.float32)], axis=1)

    fwd = make_fused_forward(n_paths, n_links, max_len, T_ITERS)
    g, c, r = params["gru"], params["cell"], params["readout"]
    out = fwd(path_state0, link_state0,
              jnp.asarray(G, STRUCT_DTYPE), jnp.asarray(S, STRUCT_DTYPE),
              jnp.asarray(mask),
              g["wih"], g["whh"], g["b"],
              c["wih"], c["whh"], c["b"],
              r["w1"], r["b1"], r["w2"], r["b2"], r["w3"], r["b3"])
    return out                                                        # (1, P)


# -------------------- synthetic graph + inputs --------------------------------
def build_inputs(key, n_paths, n_links):
    # each path is a list of link indices
    paths = [[0, 1, 2], [2, 3], [4, 5, 6, 7], [1, 3, 5],
             [0, 7], [6, 2, 4], [3, 4], [5, 0, 1, 7]]
    assert len(paths) == n_paths

    link_to_path, path_ids, sequence_path = [], [], []
    for p, links in enumerate(paths):
        for pos, l in enumerate(links):
            link_to_path.append(l)
            path_ids.append(p)
            sequence_path.append(pos)

    path_to_link, sequence_links = [], []
    for l in range(n_links):
        for p, links in enumerate(paths):
            for ll in links:
                if ll == l:
                    path_to_link.append(p)
                    sequence_links.append(l)

    k1, k2, k3, k4 = jax.random.split(key, 4)
    inputs = {
        "traffic": jax.random.uniform(k1, (n_paths,), jnp.float32, 0.1, 1.0),
        "packets": jax.random.uniform(k2, (n_paths,), jnp.float32, 0.1, 1.0),
        "time_dist_params": jax.random.uniform(k3, (n_paths, TIME_DIST_DIM),
                                               jnp.float32, -1.0, 1.0),
        "capacity": jax.random.uniform(k4, (n_links,), jnp.float32, 1.0, 10.0),
        "link_to_path": jnp.asarray(link_to_path, jnp.int32),
        "path_to_link": jnp.asarray(path_to_link, jnp.int32),
        "path_ids": jnp.asarray(path_ids, jnp.int32),
        "sequence_path": jnp.asarray(sequence_path, jnp.int32),
        "sequence_links": jnp.asarray(sequence_links, jnp.int32),
        "n_links": n_links,
        "n_paths": n_paths,
    }
    return inputs


if __name__ == "__main__":
    key = jax.random.PRNGKey(0)
    pkey, ikey = jax.random.split(key)

    n_paths, n_links = 8, 8
    params = init_params(pkey)
    inputs = build_inputs(ikey, n_paths, n_links)

    out = gnn_forward(params, inputs)
    out = jax.block_until_ready(out)
    assert out.shape == (1, n_paths), out.shape
    assert bool(jnp.all(jnp.isfinite(out)))
    print("KERNEL_OK")
</pallas_src>

<mosaic_0001>
module attributes {stable_mosaic.version = 11 : i64} {
  func.func @kernel(%arg0: memref<8x32xf32, #tpu.memory_space<vmem>>, %arg1: memref<8x32xf32, #tpu.memory_space<vmem>>, %arg2: memref<32x8xbf16, #tpu.memory_space<vmem>>, %arg3: memref<8x8xbf16, #tpu.memory_space<vmem>>, %arg4: memref<4x8x32xf32, #tpu.memory_space<vmem>>, %arg5: memref<3x32x32xf32, #tpu.memory_space<vmem>>, %arg6: memref<3x32x32xf32, #tpu.memory_space<vmem>>, %arg7: memref<4x32xf32, #tpu.memory_space<vmem>>, %arg8: memref<3x32x32xf32, #tpu.memory_space<vmem>>, %arg9: memref<3x32x32xf32, #tpu.memory_space<vmem>>, %arg10: memref<4x32xf32, #tpu.memory_space<vmem>>, %arg11: memref<16x32xf32, #tpu.memory_space<vmem>>, %arg12: memref<16x1xf32, #tpu.memory_space<vmem>>, %arg13: memref<16x16xf32, #tpu.memory_space<vmem>>, %arg14: memref<16x1xf32, #tpu.memory_space<vmem>>, %arg15: memref<1x16xf32, #tpu.memory_space<vmem>>, %arg16: memref<1x1xf32, #tpu.memory_space<vmem>>, %arg17: memref<1x8xf32, #tpu.memory_space<vmem>>) attributes {dimension_semantics = [], scalar_prefetch = 0 : i64, scratch_operands = 0 : i64, tpu.core_type = #tpu.core_type<tc>} {
    %c0 = arith.constant 0 : index
    %c0_0 = arith.constant 0 : index
    %0 = vector.load %arg0[%c0, %c0_0] : memref<8x32xf32, #tpu.memory_space<vmem>>, vector<8x32xf32>
    %c0_1 = arith.constant 0 : index
    %c0_2 = arith.constant 0 : index
    %1 = vector.load %arg1[%c0_1, %c0_2] : memref<8x32xf32, #tpu.memory_space<vmem>>, vector<8x32xf32>
    %c0_3 = arith.constant 0 : index
    %c0_4 = arith.constant 0 : index
    %2 = vector.load %arg2[%c0_3, %c0_4] : memref<32x8xbf16, #tpu.memory_space<vmem>>, vector<32x8xbf16>
    %c0_5 = arith.constant 0 : index
    %c0_6 = arith.constant 0 : index
    %3 = vector.load %arg3[%c0_5, %c0_6] : memref<8x8xbf16, #tpu.memory_space<vmem>>, vector<8x8xbf16>
    %c0_7 = arith.constant 0 : index
    %c0_8 = arith.constant 0 : index
    %c0_9 = arith.constant 0 : index
    %4 = vector.load %arg4[%c0_7, %c0_8, %c0_9] : memref<4x8x32xf32, #tpu.memory_space<vmem>>, vector<4x8x32xf32>
    %cst = arith.constant 0.000000e+00 : f32
    %5 = vector.broadcast %cst : f32 to vector<4x8x32xf32>
    %6 = arith.cmpf one, %4, %5 : vector<4x8x32xf32>
    %c0_10 = arith.constant 0 : index
    %c0_11 = arith.constant 0 : index
    %c0_12 = arith.constant 0 : index
    %7 = vector.load %arg5[%c0_10, %c0_11, %c0_12] : memref<3x32x32xf32, #tpu.memory_space<vmem>>, vector<1x32x32xf32>
    %8 = vector.shape_cast %7 : vector<1x32x32xf32> to vector<32x32xf32>
    %c1 = arith.constant 1 : index
    %c0_13 = arith.constant 0 : index
    %c0_14 = arith.constant 0 : index
    %9 = vector.load %arg5[%c1, %c0_13, %c0_14] : memref<3x32x32xf32, #tpu.memory_space<vmem>>, vector<1x32x32xf32>
    %10 = vector.shape_cast %9 : vector<1x32x32xf32> to vector<32x32xf32>
    %c2 = arith.constant 2 : index
    %c0_15 = arith.constant 0 : index
    %c0_16 = arith.constant 0 : index
    %11 = vector.load %arg5[%c2, %c0_15, %c0_16] : memref<3x32x32xf32, #tpu.memory_space<vmem>>, vector<1x32x32xf32>
    %12 = vector.shape_cast %11 : vector<1x32x32xf32> to vector<32x32xf32>
    %c0_17 = arith.constant 0 : index
    %c0_18 = arith.constant 0 : index
    %c0_19 = arith.constant 0 : index
    %13 = vector.load %arg6[%c0_17, %c0_18, %c0_19] : memref<3x32x32xf32, #tpu.memory_space<vmem>>, vector<1x32x32xf32>
    %14 = vector.shape_cast %13 : vector<1x32x32xf32> to vector<32x32xf32>
    %c1_20 = arith.constant 1 : index
    %c0_21 = arith.constant 0 : index
    %c0_22 = arith.constant 0 : index
    %15 = vector.load %arg6[%c1_20, %c0_21, %c0_22] : memref<3x32x32xf32, #tpu.memory_space<vmem>>, vector<1x32x32xf32>
    %16 = vector.shape_cast %15 : vector<1x32x32xf32> to vector<32x32xf32>
    %c2_23 = arith.constant 2 : index
    %c0_24 = arith.constant 0 : index
    %c0_25 = arith.constant 0 : index
    %17 = vector.load %arg6[%c2_23, %c0_24, %c0_25] : memref<3x32x32xf32, #tpu.memory_space<vmem>>, vector<1x32x32xf32>
    %18 = vector.shape_cast %17 : vector<1x32x32xf32> to vector<32x32xf32>
    %c0_26 = arith.constant 0 : index
    %c0_27 = arith.constant 0 : index
    %c0_28 = arith.constant 0 : index
    %19 = vector.load %arg8[%c0_26, %c0_27, %c0_28] : memref<3x32x32xf32, #tpu.memory_space<vmem>>, vector<1x32x32xf32>
    %20 = vector.shape_cast %19 : vector<1x32x32xf32> to vector<32x32xf32>
    %c1_29 = arith.constant 1 : index
    %c0_30 = arith.constant 0 : index
    %c0_31 = arith.constant 0 : index
    %21 = vector.load %arg8[%c1_29, %c0_30, %c0_31] : memref<3x32x32xf32, #tpu.memory_space<vmem>>, vector<1x32x32xf32>
    %22 = vector.shape_cast %21 : vector<1x32x32xf32> to vector<32x32xf32>
    %c2_32 = arith.constant 2 : index
    %c0_33 = arith.constant 0 : index
    %c0_34 = arith.constant 0 : index
    %23 = vector.load %arg8[%c2_32, %c0_33, %c0_34] : memref<3x32x32xf32, #tpu.memory_space<vmem>>, vector<1x32x32xf32>
    %24 = vector.shape_cast %23 : vector<1x32x32xf32> to vector<32x32xf32>
    %c0_35 = arith.constant 0 : index
    %c0_36 = arith.constant 0 : index
    %c0_37 = arith.constant 0 : index
    %25 = vector.load %arg9[%c0_35, %c0_36, %c0_37] : memref<3x32x32xf32, #tpu.memory_space<vmem>>, vector<1x32x32xf32>
    %26 = vector.shape_cast %25 : vector<1x32x32xf32> to vector<32x32xf32>
    %c1_38 = arith.constant 1 : index
    %c0_39 = arith.constant 0 : index
    %c0_40 = arith.constant 0 : index
    %27 = vector.load %arg9[%c1_38, %c0_39, %c0_40] : memref<3x32x32xf32, #tpu.memory_space<vmem>>, vector<1x32x32xf32>
    %28 = vector.shape_cast %27 : vector<1x32x32xf32> to vector<32x32xf32>
    %c2_41 = arith.constant 2 : index
    %c0_42 = arith.constant 0 : index
    %c0_43 = arith.constant 0 : index
    %29 = vector.load %arg9[%c2_41, %c0_42, %c0_43] : memref<3x32x32xf32, #tpu.memory_space<vmem>>, vector<1x32x32xf32>
    %30 = vector.shape_cast %29 : vector<1x32x32xf32> to vector<32x32xf32>
    %c0_44 = arith.constant 0 : index
    %c0_45 = arith.constant 0 : index
    %31 = vector.load %arg7[%c0_44, %c0_45] : memref<4x32xf32, #tpu.memory_space<vmem>>, vector<1x32xf32>
    %32 = vector.shape_cast %31 : vector<1x32xf32> to vector<32xf32>
    %33 = vector.shape_cast %32 : vector<32xf32> to vector<1x32xf32>
    %34 = vector.broadcast %33 : vector<1x32xf32> to vector<32x32xf32>
    %c1_46 = arith.constant 1 : index
    %c0_47 = arith.constant 0 : index
    %35 = vector.load %arg7[%c1_46, %c0_47] : memref<4x32xf32, #tpu.memory_space<vmem>>, vector<1x32xf32>
    %36 = vector.shape_cast %35 : vector<1x32xf32> to vector<32xf32>
    %37 = vector.shape_cast %36 : vector<32xf32> to vector<1x32xf32>
    %38 = vector.broadcast %37 : vector<1x32xf32> to vector<32x32xf32>
    %c2_48 = arith.constant 2 : index
    %c0_49 = arith.constant 0 : index
    %39 = vector.load %arg7[%c2_48, %c0_49] : memref<4x32xf32, #tpu.memory_space<vmem>>, vector<1x32xf32>
    %40 = vector.shape_cast %39 : vector<1x32xf32> to vector<32xf32>
    %41 = vector.shape_cast %40 : vector<32xf32> to vector<1x32xf32>
    %42 = vector.broadcast %41 : vector<1x32xf32> to vector<32x32xf32>
    %c3 = arith.constant 3 : index
    %c0_50 = arith.constant 0 : index
    %43 = vector.load %arg7[%c3, %c0_50] : memref<4x32xf32, #tpu.memory_space<vmem>>, vector<1x32xf32>
    %44 = vector.shape_cast %43 : vector<1x32xf32> to vector<32xf32>
    %45 = vector.shape_cast %44 : vector<32xf32> to vector<1x32xf32>
    %46 = vector.broadcast %45 : vector<1x32xf32> to vector<8x32xf32>
    %c0_51 = arith.constant 0 : index
    %c0_52 = arith.constant 0 : index
    %47 = vector.load %arg10[%c0_51, %c0_52] : memref<4x32xf32, #tpu.memory_space<vmem>>, vector<1x32xf32>
    %48 = vector.shape_cast %47 : vector<1x32xf32> to vector<32xf32>
    %49 = vector.shape_cast %48 : vector<32xf32> to vector<1x32xf32>
    %50 = vector.broadcast %49 : vector<1x32xf32> to vector<8x32xf32>
    %c1_53 = arith.constant 1 : index
    %c0_54 = arith.constant 0 : index
    %51 = vector.load %arg10[%c1_53, %c0_54] : memref<4x32xf32, #tpu.memory_space<vmem>>, vector<1x32xf32>
    %52 = vector.shape_cast %51 : vector<1x32xf32> to vector<32xf32>
    %53 = vector.shape_cast %52 : vector<32xf32> to vector<1x32xf32>
    %54 = vector.broadcast %53 : vector<1x32xf32> to vector<8x32xf32>
    %c2_55 = arith.constant 2 : index
    %c0_56 = arith.constant 0 : index
    %55 = vector.load %arg10[%c2_55, %c0_56] : memref<4x32xf32, #tpu.memory_space<vmem>>, vector<1x32xf32>
    %56 = vector.shape_cast %55 : vector<1x32xf32> to vector<32xf32>
    %57 = vector.shape_cast %56 : vector<32xf32> to vector<1x32xf32>
    %58 = vector.broadcast %57 : vector<1x32xf32> to vector<8x32xf32>
    %c3_57 = arith.constant 3 : index
    %c0_58 = arith.constant 0 : index
    %59 = vector.load %arg10[%c3_57, %c0_58] : memref<4x32xf32, #tpu.memory_space<vmem>>, vector<1x32xf32>
    %60 = vector.shape_cast %59 : vector<1x32xf32> to vector<32xf32>
    %61 = vector.shape_cast %60 : vector<32xf32> to vector<1x32xf32>
    %62 = vector.broadcast %61 : vector<1x32xf32> to vector<8x32xf32>
    %cst_59 = arith.constant dense<0.000000e+00> : vector<8x32xf32>
    %63 = tpu.matmul %1, %8, %cst_59 {dimension_numbers = #tpu.dot_dimension_numbers<[1], [0], [0], [1], [0, 0, 1, 1], [], []>} : vector<8x32xf32>, vector<32x32xf32>, vector<8x32xf32> -> vector<8x32xf32>
    %64 = arith.truncf %63 : vector<8x32xf32> to vector<8x32xbf16>
    %cst_60 = arith.constant dense<0.000000e+00> : vector<32x32xf32>
    %65 = tpu.matmul %2, %64, %cst_60 {dimension_numbers = #tpu.dot_dimension_numbers<[1], [0], [0], [1], [0, 0, 1, 1], [], []>} : vector<32x8xbf16>, vector<8x32xbf16>, vector<32x32xf32> -> vector<32x32xf32>
    %66 = arith.addf %65, %34 : vector<32x32xf32>
    %67 = vector.shape_cast %66 : vector<32x32xf32> to vector<4x8x32xf32>
    %cst_61 = arith.constant dense<0.000000e+00> : vector<8x32xf32>
    %68 = tpu.matmul %1, %10, %cst_61 {dimension_numbers = #tpu.dot_dimension_numbers<[1], [0], [0], [1], [0, 0, 1, 1], [], []>} : vector<8x32xf32>, vector<32x32xf32>, vector<8x32xf32> -> vector<8x32xf32>
    %69 = arith.truncf %68 : vector<8x32xf32> to vector<8x32xbf16>
    %cst_62 = arith.constant dense<0.000000e+00> : vector<32x32xf32>
    %70 = tpu.matmul %2, %69, %cst_62 {dimension_numbers = #tpu.dot_dimension_numbers<[1], [0], [0], [1], [0, 0, 1, 1], [], []>} : vector<32x8xbf16>, vector<8x32xbf16>, vector<32x32xf32> -> vector<32x32xf32>
    %71 = arith.addf %70, %38 : vector<32x32xf32>
    %72 = vector.shape_cast %71 : vector<32x32xf32> to vector<4x8x32xf32>
    %cst_63 = arith.constant dense<0.000000e+00> : vector<8x32xf32>
    %73 = tpu.matmul %1, %12, %cst_63 {dimension_numbers = #tpu.dot_dimension_numbers<[1], [0], [0], [1], [0, 0, 1, 1], [], []>} : vector<8x32xf32>, vector<32x32xf32>, vector<8x32xf32> -> vector<8x32xf32>
    %74 = arith.truncf %73 : vector<8x32xf32> to vector<8x32xbf16>
    %cst_64 = arith.constant dense<0.000000e+00> : vector<32x32xf32>
    %75 = tpu.matmul %2, %74, %cst_64 {dimension_numbers = #tpu.dot_dimension_numbers<[1], [0], [0], [1], [0, 0, 1, 1], [], []>} : vector<32x8xbf16>, vector<8x32xbf16>, vector<32x32xf32> -> vector<32x32xf32>
    %76 = arith.addf %75, %42 : vector<32x32xf32>
    %77 = vector.shape_cast %76 : vector<32x32xf32> to vector<4x8x32xf32>
    %78 = vector.extract_strided_slice %67 {offsets = [0, 0, 0], sizes = [1, 8, 32], strides = [1, 1, 1]} : vector<4x8x32xf32> to vector<1x8x32xf32>
    %79 = vector.shape_cast %78 : vector<1x8x32xf32> to vector<8x32xf32>
    %cst_65 = arith.constant dense<0.000000e+00> : vector<8x32xf32>
    %80 = tpu.matmul %0, %14, %cst_65 {dimension_numbers = #tpu.dot_dimension_numbers<[1], [0], [0], [1], [0, 0, 1, 1], [], []>} : vector<8x32xf32>, vector<32x32xf32>, vector<8x32xf32> -> vector<8x32xf32>
    %81 = arith.addf %79, %80 : vector<8x32xf32>
    %82 = arith.negf %81 : vector<8x32xf32>
    %83 = math.exp %82 : vector<8x32xf32>
    %cst_66 = arith.constant 1.000000e+00 : f32
    %84 = vector.broadcast %cst_66 : f32 to vector<8x32xf32>
    %85 = arith.addf %84, %83 : vector<8x32xf32>
    %86 = arith.divf %84, %85 : vector<8x32xf32>
    %87 = vector.extract_strided_slice %72 {offsets = [0, 0, 0], sizes = [1, 8, 32], strides = [1, 1, 1]} : vector<4x8x32xf32> to vector<1x8x32xf32>
    %88 = vector.shape_cast %87 : vector<1x8x32xf32> to vector<8x32xf32>
    %cst_67 = arith.constant dense<0.000000e+00> : vector<8x32xf32>
    %89 = tpu.matmul %0, %16, %cst_67 {dimension_numbers = #tpu.dot_dimension_numbers<[1], [0], [0], [1], [0, 0, 1, 1], [], []>} : vector<8x32xf32>, vector<32x32xf32>, vector<8x32xf32> -> vector<8x32xf32>
    %90 = arith.addf %88, %89 : vector<8x32xf32>
    %91 = arith.negf %90 : vector<8x32xf32>
    %92 = math.exp %91 : vector<8x32xf32>
    %cst_68 = arith.constant 1.000000e+00 : f32
    %93 = vector.broadcast %cst_68 : f32 to vector<8x32xf32>
    %94 = arith.addf %93, %92 : vector<8x32xf32>
    %95 = arith.divf %93, %94 : vector<8x32xf32>
    %96 = vector.extract_strided_slice %77 {offsets = [0, 0, 0], sizes = [1, 8, 32], strides = [1, 1, 1]} : vector<4x8x32xf32> to vector<1x8x32xf32>
    %97 = vector.shape_cast %96 : vector<1x8x32xf32> to vector<8x32xf32>
    %cst_69 = arith.constant dense<0.000000e+00> : vector<8x32xf32>
    %98 = tpu.matmul %0, %18, %cst_69 {dimension_numbers = #tpu.dot_dimension_numbers<[1], [0], [0], [1], [0, 0, 1, 1], [], []>} : vector<8x32xf32>, vector<32x32xf32>, vector<8x32xf32> -> vector<8x32xf32>
    %99 = arith.addf %98, %46 : vector<8x32xf32>
    %100 = arith.mulf %86, %99 : vector<8x32xf32>
    %101 = arith.addf %97, %100 : vector<8x32xf32>
    %102 = math.tanh %101 : vector<8x32xf32>
    %cst_70 = arith.constant 1.000000e+00 : f32
    %103 = vector.broadcast %cst_70 : f32 to vector<8x32xf32>
    %104 = arith.subf %103, %95 : vector<8x32xf32>
    %105 = arith.mulf %104, %102 : vector<8x32xf32>
    %106 = arith.mulf %95, %0 : vector<8x32xf32>
    %107 = arith.addf %105, %106 : vector<8x32xf32>
    %108 = vector.extract_strided_slice %6 {offsets = [0, 0, 0], sizes = [1, 8, 32], strides = [1, 1, 1]} : vector<4x8x32xi1> to vector<1x8x32xi1>
    %109 = vector.shape_cast %108 : vector<1x8x32xi1> to vector<8x32xi1>
    %110 = arith.select %109, %107, %0 : vector<8x32xi1>, vector<8x32xf32>
    %111 = vector.extract_strided_slice %67 {offsets = [1, 0, 0], sizes = [1, 8, 32], strides = [1, 1, 1]} : vector<4x8x32xf32> to vector<1x8x32xf32>
    %112 = vector.shape_cast %111 : vector<1x8x32xf32> to vector<8x32xf32>
    %cst_71 = arith.constant dense<0.000000e+00> : vector<8x32xf32>
    %113 = tpu.matmul %110, %14, %cst_71 {dimension_numbers = #tpu.dot_dimension_numbers<[1], [0], [0], [1], [0, 0, 1, 1], [], []>} : vector<8x32xf32>, vector<32x32xf32>, vector<8x32xf32> -> vector<8x32xf32>
    %114 = arith.addf %112, %113 : vector<8x32xf32>
    %115 = arith.negf %114 : vector<8x32xf32>
    %116 = math.exp %115 : vector<8x32xf32>
    %cst_72 = arith.constant 1.000000e+00 : f32
    %117 = vector.broadcast %cst_72 : f32 to vector<8x32xf32>
    %118 = arith.addf %117, %116 : vector<8x32xf32>
    %119 = arith.divf %117, %118 : vector<8x32xf32>
    %120 = vector.extract_strided_slice %72 {offsets = [1, 0, 0], sizes = [1, 8, 32], strides = [1, 1, 1]} : vector<4x8x32xf32> to vector<1x8x32xf32>
    %121 = vector.shape_cast %120 : vector<1x8x32xf32> to vector<8x32xf32>
    %cst_73 = arith.constant dense<0.000000e+00> : vector<8x32xf32>
    %122 = tpu.matmul %110, %16, %cst_73 {dimension_numbers = #tpu.dot_dimension_numbers<[1], [0], [0], [1], [0, 0, 1, 1], [], []>} : vector<8x32xf32>, vector<32x32xf32>, vector<8x32xf32> -> vector<8x32xf32>
    %123 = arith.addf %121, %122 : vector<8x32xf32>
    %124 = arith.negf %123 : vector<8x32xf32>
    %125 = math.exp %124 : vector<8x32xf32>
    %cst_74 = arith.constant 1.000000e+00 : f32
    %126 = vector.broadcast %cst_74 : f32 to vector<8x32xf32>
    %127 = arith.addf %126, %125 : vector<8x32xf32>
    %128 = arith.divf %126, %127 : vector<8x32xf32>
    %129 = vector.extract_strided_slice %77 {offsets = [1, 0, 0], sizes = [1, 8, 32], strides = [1, 1, 1]} : vector<4x8x32xf32> to vector<1x8x32xf32>
    %130 = vector.shape_cast %129 : vector<1x8x32xf32> to vector<8x32xf32>
    %cst_75 = arith.constant dense<0.000000e+00> : vector<8x32xf32>
    %131 = tpu.matmul %110, %18, %cst_75 {dimension_numbers = #tpu.dot_dimension_numbers<[1], [0], [0], [1], [0, 0, 1, 1], [], []>} : vector<8x32xf32>, vector<32x32xf32>, vector<8x32xf32> -> vector<8x32xf32>
    %132 = arith.addf %131, %46 : vector<8x32xf32>
    %133 = arith.mulf %119, %132 : vector<8x32xf32>
    %134 = arith.addf %130, %133 : vector<8x32xf32>
    %135 = math.tanh %134 : vector<8x32xf32>
    %cst_76 = arith.constant 1.000000e+00 : f32
    %136 = vector.broadcast %cst_76 : f32 to vector<8x32xf32>
    %137 = arith.subf %136, %128 : vector<8x32xf32>
    %138 = arith.mulf %137, %135 : vector<8x32xf32>
    %139 = arith.mulf %128, %110 : vector<8x32xf32>
    %140 = arith.addf %138, %139 : vector<8x32xf32>
    %141 = vector.extract_strided_slice %6 {offsets = [1, 0, 0], sizes = [1, 8, 32], strides = [1, 1, 1]} : vector<4x8x32xi1> to vector<1x8x32xi1>
    %142 = vector.shape_cast %141 : vector<1x8x32xi1> to vector<8x32xi1>
    %143 = arith.select %142, %140, %110 : vector<8x32xi1>, vector<8x32xf32>
    %144 = vector.extract_strided_slice %67 {offsets = [2, 0, 0], sizes = [1, 8, 32], strides = [1, 1, 1]} : vector<4x8x32xf32> to vector<1x8x32xf32>
    %145 = vector.shape_cast %144 : vector<1x8x32xf32> to vector<8x32xf32>
    %cst_77 = arith.constant dense<0.000000e+00> : vector<8x32xf32>
    %146 = tpu.matmul %143, %14, %cst_77 {dimension_numbers = #tpu.dot_dimension_numbers<[1], [0], [0], [1], [0, 0, 1, 1], [], []>} : vector<8x32xf32>, vector<32x32xf32>, vector<8x32xf32> -> vector<8x32xf32>
    %147 = arith.addf %145, %146 : vector<8x32xf32>
    %148 = arith.negf %147 : vector<8x32xf32>
    %149 = math.exp %148 : vector<8x32xf32>
    %cst_78 = arith.constant 1.000000e+00 : f32
    %150 = vector.broadcast %cst_78 : f32 to vector<8x32xf32>
    %151 = arith.addf %150, %149 : vector<8x32xf32>
    %152 = arith.divf %150, %151 : vector<8x32xf32>
    %153 = vector.extract_strided_slice %72 {offsets = [2, 0, 0], sizes = [1, 8, 32], strides = [1, 1, 1]} : vector<4x8x32xf32> to vector<1x8x32xf32>
    %154 = vector.shape_cast %153 : vector<1x8x32xf32> to vector<8x32xf32>
    %cst_79 = arith.constant dense<0.000000e+00> : vector<8x32xf32>
    %155 = tpu.matmul %143, %16, %cst_79 {dimension_numbers = #tpu.dot_dimension_numbers<[1], [0], [0], [1], [0, 0, 1, 1], [], []>} : vector<8x32xf32>, vector<32x32xf32>, vector<8x32xf32> -> vector<8x32xf32>
    %156 = arith.addf %154, %155 : vector<8x32xf32>
    %157 = arith.negf %156 : vector<8x32xf32>
    %158 = math.exp %157 : vector<8x32xf32>
    %cst_80 = arith.constant 1.000000e+00 : f32
    %159 = vector.broadcast %cst_80 : f32 to vector<8x32xf32>
    %160 = arith.addf %159, %158 : vector<8x32xf32>
    %161 = arith.divf %159, %160 : vector<8x32xf32>
    %162 = vector.extract_strided_slice %77 {offsets = [2, 0, 0], sizes = [1, 8, 32], strides = [1, 1, 1]} : vector<4x8x32xf32> to vector<1x8x32xf32>
    %163 = vector.shape_cast %162 : vector<1x8x32xf32> to vector<8x32xf32>
    %cst_81 = arith.constant dense<0.000000e+00> : vector<8x32xf32>
    %164 = tpu.matmul %143, %18, %cst_81 {dimension_numbers = #tpu.dot_dimension_numbers<[1], [0], [0], [1], [0, 0, 1, 1], [], []>} : vector<8x32xf32>, vector<32x32xf32>, vector<8x32xf32> -> vector<8x32xf32>
    %165 = arith.addf %164, %46 : vector<8x32xf32>
    %166 = arith.mulf %152, %165 : vector<8x32xf32>
    %167 = arith.addf %163, %166 : vector<8x32xf32>
    %168 = math.tanh %167 : vector<8x32xf32>
    %cst_82 = arith.constant 1.000000e+00 : f32
    %169 = vector.broadcast %cst_82 : f32 to vector<8x32xf32>
    %170 = arith.subf %169, %161 : vector<8x32xf32>
    %171 = arith.mulf %170, %168 : vector<8x32xf32>
    %172 = arith.mulf %161, %143 : vector<8x32xf32>
    %173 = arith.addf %171, %172 : vector<8x32xf32>
    %174 = vector.extract_strided_slice %6 {offsets = [2, 0, 0], sizes = [1, 8, 32], strides = [1, 1, 1]} : vector<4x8x32xi1> to vector<1x8x32xi1>
    %175 = vector.shape_cast %174 : vector<1x8x32xi1> to vector<8x32xi1>
    %176 = arith.select %175, %173, %143 : vector<8x32xi1>, vector<8x32xf32>
    %177 = vector.extract_strided_slice %67 {offsets = [3, 0, 0], sizes = [1, 8, 32], strides = [1, 1, 1]} : vector<4x8x32xf32> to vector<1x8x32xf32>
    %178 = vector.shape_cast %177 : vector<1x8x32xf32> to vector<8x32xf32>
    %cst_83 = arith.constant dense<0.000000e+00> : vector<8x32xf32>
    %179 = tpu.matmul %176, %14, %cst_83 {dimension_numbers = #tpu.dot_dimension_numbers<[1], [0], [0], [1], [0, 0, 1, 1], [], []>} : vector<8x32xf32>, vector<32x32xf32>, vector<8x32xf32> -> vector<8x32xf32>
    %180 = arith.addf %178, %179 : vector<8x32xf32>
    %181 = arith.negf %180 : vector<8x32xf32>
    %182 = math.exp %181 : vector<8x32xf32>
    %cst_84 = arith.constant 1.000000e+00 : f32
    %183 = vector.broadcast %cst_84 : f32 to vector<8x32xf32>
    %184 = arith.addf %183, %182 : vector<8x32xf32>
    %185 = arith.divf %183, %184 : vector<8x32xf32>
    %186 = vector.extract_strided_slice %72 {offsets = [3, 0, 0], sizes = [1, 8, 32], strides = [1, 1, 1]} : vector<4x8x32xf32> to vector<1x8x32xf32>
    %187 = vector.shape_cast %186 : vector<1x8x32xf32> to vector<8x32xf32>
    %cst_85 = arith.constant dense<0.000000e+00> : vector<8x32xf32>
    %188 = tpu.matmul %176, %16, %cst_85 {dimension_numbers = #tpu.dot_dimension_numbers<[1], [0], [0], [1], [0, 0, 1, 1], [], []>} : vector<8x32xf32>, vector<32x32xf32>, vector<8x32xf32> -> vector<8x32xf32>
    %189 = arith.addf %187, %188 : vector<8x32xf32>
    %190 = arith.negf %189 : vector<8x32xf32>
    %191 = math.exp %190 : vector<8x32xf32>
    %cst_86 = arith.constant 1.000000e+00 : f32
    %192 = vector.broadcast %cst_86 : f32 to vector<8x32xf32>
    %193 = arith.addf %192, %191 : vector<8x32xf32>
    %194 = arith.divf %192, %193 : vector<8x32xf32>
    %195 = vector.extract_strided_slice %77 {offsets = [3, 0, 0], sizes = [1, 8, 32], strides = [1, 1, 1]} : vector<4x8x32xf32> to vector<1x8x32xf32>
    %196 = vector.shape_cast %195 : vector<1x8x32xf32> to vector<8x32xf32>
    %cst_87 = arith.constant dense<0.000000e+00> : vector<8x32xf32>
    %197 = tpu.matmul %176, %18, %cst_87 {dimension_numbers = #tpu.dot_dimension_numbers<[1], [0], [0], [1], [0, 0, 1, 1], [], []>} : vector<8x32xf32>, vector<32x32xf32>, vector<8x32xf32> -> vector<8x32xf32>
    %198 = arith.addf %197, %46 : vector<8x32xf32>
    %199 = arith.mulf %185, %198 : vector<8x32xf32>
    %200 = arith.addf %196, %199 : vector<8x32xf32>
    %201 = math.tanh %200 : vector<8x32xf32>
    %cst_88 = arith.constant 1.000000e+00 : f32
    %202 = vector.broadcast %cst_88 : f32 to vector<8x32xf32>
    %203 = arith.subf %202, %194 : vector<8x32xf32>
    %204 = arith.mulf %203, %201 : vector<8x32xf32>
    %205 = arith.mulf %194, %176 : vector<8x32xf32>
    %206 = arith.addf %204, %205 : vector<8x32xf32>
    %207 = vector.extract_strided_slice %6 {offsets = [3, 0, 0], sizes = [1, 8, 32], strides = [1, 1, 1]} : vector<4x8x32xi1> to vector<1x8x32xi1>
    %208 = vector.shape_cast %207 : vector<1x8x32xi1> to vector<8x32xi1>
    %209 = arith.select %208, %206, %176 : vector<8x32xi1>, vector<8x32xf32>
    %210 = arith.truncf %209 : vector<8x32xf32> to vector<8x32xbf16>
    %cst_89 = arith.constant dense<0.000000e+00> : vector<8x32xf32>
    %211 = tpu.matmul %3, %210, %cst_89 {dimension_numbers = #tpu.dot_dimension_numbers<[1], [0], [0], [1], [0, 0, 1, 1], [], []>} : vector<8x8xbf16>, vector<8x32xbf16>, vector<8x32xf32> -> vector<8x32xf32>
    %cst_90 = arith.constant dense<0.000000e+00> : vector<8x32xf32>
    %212 = tpu.matmul %211, %20, %cst_90 {dimension_numbers = #tpu.dot_dimension_numbers<[1], [0], [0], [1], [0, 0, 1, 1], [], []>} : vector<8x32xf32>, vector<32x32xf32>, vector<8x32xf32> -> vector<8x32xf32>
    %213 = arith.addf %212, %50 : vector<8x32xf32>
    %cst_91 = arith.constant dense<0.000000e+00> : vector<8x32xf32>
    %214 = tpu.matmul %1, %26, %cst_91 {dimension_numbers = #tpu.dot_dimension_numbers<[1], [0], [0], [1], [0, 0, 1, 1], [], []>} : vector<8x32xf32>, vector<32x32xf32>, vector<8x32xf32> -> vector<8x32xf32>
    %215 = arith.addf %213, %214 : vector<8x32xf32>
    %216 = arith.negf %215 : vector<8x32xf32>
    %217 = math.exp %216 : vector<8x32xf32>
    %cst_92 = arith.constant 1.000000e+00 : f32
    %218 = vector.broadcast %cst_92 : f32 to vector<8x32xf32>
    %219 = arith.addf %218, %217 : vector<8x32xf32>
    %220 = arith.divf %218, %219 : vector<8x32xf32>
    %cst_93 = arith.constant dense<0.000000e+00> : vector<8x32xf32>
    %221 = tpu.matmul %211, %22, %cst_93 {dimension_numbers = #tpu.dot_dimension_numbers<[1], [0], [0], [1], [0, 0, 1, 1], [], []>} : vector<8x32xf32>, vector<32x32xf32>, vector<8x32xf32> -> vector<8x32xf32>
    %222 = arith.addf %221, %54 : vector<8x32xf32>
    %cst_94 = arith.constant dense<0.000000e+00> : vector<8x32xf32>
    %223 = tpu.matmul %1, %28, %cst_94 {dimension_numbers = #tpu.dot_dimension_numbers<[1], [0], [0], [1], [0, 0, 1, 1], [], []>} : vector<8x32xf32>, vector<32x32xf32>, vector<8x32xf32> -> vector<8x32xf32>
    %224 = arith.addf %222, %223 : vector<8x32xf32>
    %225 = arith.negf %224 : vector<8x32xf32>
    %226 = math.exp %225 : vector<8x32xf32>
    %cst_95 = arith.constant 1.000000e+00 : f32
    %227 = vector.broadcast %cst_95 : f32 to vector<8x32xf32>
    %228 = arith.addf %227, %226 : vector<8x32xf32>
    %229 = arith.divf %227, %228 : vector<8x32xf32>
    %cst_96 = arith.constant dense<0.000000e+00> : vector<8x32xf32>
    %230 = tpu.matmul %211, %24, %cst_96 {dimension_numbers = #tpu.dot_dimension_numbers<[1], [0], [0], [1], [0, 0, 1, 1], [], []>} : vector<8x32xf32>, vector<32x32xf32>, vector<8x32xf32> -> vector<8x32xf32>
    %231 = arith.addf %230, %58 : vector<8x32xf32>
    %cst_97 = arith.constant dense<0.000000e+00> : vector<8x32xf32>
    %232 = tpu.matmul %1, %30, %cst_97 {dimension_numbers = #tpu.dot_dimension_numbers<[1], [0], [0], [1], [0, 0, 1, 1], [], []>} : vector<8x32xf32>, vector<32x32xf32>, vector<8x32xf32> -> vector<8x32xf32>
    %233 = arith.addf %232, %62 : vector<8x32xf32>
    %234 = arith.mulf %220, %233 : vector<8x32xf32>
    %235 = arith.addf %231, %234 : vector<8x32xf32>
    %236 = math.tanh %235 : vector<8x32xf32>
    %cst_98 = arith.constant 1.000000e+00 : f32
    %237 = vector.broadcast %cst_98 : f32 to vector<8x32xf32>
    %238 = arith.subf %237, %229 : vector<8x32xf32>
    %239 = arith.mulf %238, %236 : vector<8x32xf32>
    %240 = arith.mulf %229, %1 : vector<8x32xf32>
    %241 = arith.addf %239, %240 : vector<8x32xf32>
    %cst_99 = arith.constant dense<0.000000e+00> : vector<8x32xf32>
    %242 = tpu.matmul %241, %8, %cst_99 {dimension_numbers = #tpu.dot_dimension_numbers<[1], [0], [0], [1], [0, 0, 1, 1], [], []>} : vector<8x32xf32>, vector<32x32xf32>, vector<8x32xf32> -> vector<8x32xf32>
    %243 = arith.truncf %242 : vector<8x32xf32> to vector<8x32xbf16>
    %cst_100 = arith.constant dense<0.000000e+00> : vector<32x32xf32>
    %244 = tpu.matmul %2, %243, %cst_100 {dimension_numbers = #tpu.dot_dimension_numbers<[1], [0], [0], [1], [0, 0, 1, 1], [], []>} : vector<32x8xbf16>, vector<8x32xbf16>, vector<32x32xf32> -> vector<32x32xf32>
    %245 = arith.addf %244, %34 : vector<32x32xf32>
    %246 = vector.shape_cast %245 : vector<32x32xf32> to vector<4x8x32xf32>
    %cst_101 = arith.constant dense<0.000000e+00> : vector<8x32xf32>
    %247 = tpu.matmul %241, %10, %cst_101 {dimension_numbers = #tpu.dot_dimension_numbers<[1], [0], [0], [1], [0, 0, 1, 1], [], []>} : vector<8x32xf32>, vector<32x32xf32>, vector<8x32xf32> -> vector<8x32xf32>
    %248 = arith.truncf %247 : vector<8x32xf32> to vector<8x32xbf16>
    %cst_102 = arith.constant dense<0.000000e+00> : vector<32x32xf32>
    %249 = tpu.matmul %2, %248, %cst_102 {dimension_numbers = #tpu.dot_dimension_numbers<[1], [0], [0], [1], [0, 0, 1, 1], [], []>} : vector<32x8xbf16>, vector<8x32xbf16>, vector<32x32xf32> -> vector<32x32xf32>
    %250 = arith.addf %249, %38 : vector<32x32xf32>
    %251 = vector.shape_cast %250 : vector<32x32xf32> to vector<4x8x32xf32>
    %cst_103 = arith.constant dense<0.000000e+00> : vector<8x32xf32>
    %252 = tpu.matmul %241, %12, %cst_103 {dimension_numbers = #tpu.dot_dimension_numbers<[1], [0], [0], [1], [0, 0, 1, 1], [], []>} : vector<8x32xf32>, vector<32x32xf32>, vector<8x32xf32> -> vector<8x32xf32>
    %253 = arith.truncf %252 : vector<8x32xf32> to vector<8x32xbf16>
    %cst_104 = arith.constant dense<0.000000e+00> : vector<32x32xf32>
    %254 = tpu.matmul %2, %253, %cst_104 {dimension_numbers = #tpu.dot_dimension_numbers<[1], [0], [0], [1], [0, 0, 1, 1], [], []>} : vector<32x8xbf16>, vector<8x32xbf16>, vector<32x32xf32> -> vector<32x32xf32>
    %255 = arith.addf %254, %42 : vector<32x32xf32>
    %256 = vector.shape_cast %255 : vector<32x32xf32> to vector<4x8x32xf32>
    %257 = vector.extract_strided_slice %246 {offsets = [0, 0, 0], sizes = [1, 8, 32], strides = [1, 1, 1]} : vector<4x8x32xf32> to vector<1x8x32xf32>
    %258 = vector.shape_cast %257 : vector<1x8x32xf32> to vector<8x32xf32>
    %cst_105 = arith.constant dense<0.000000e+00> : vector<8x32xf32>
    %259 = tpu.matmul %209, %14, %cst_105 {dimension_numbers = #tpu.dot_dimension_numbers<[1], [0], [0], [1], [0, 0, 1, 1], [], []>} : vector<8x32xf32>, vector<32x32xf32>, vector<8x32xf32> -> vector<8x32xf32>
    %260 = arith.addf %258, %259 : vector<8x32xf32>
    %261 = arith.negf %260 : vector<8x32xf32>
    %262 = math.exp %261 : vector<8x32xf32>
    %cst_106 = arith.constant 1.000000e+00 : f32
    %263 = vector.broadcast %cst_106 : f32 to vector<8x32xf32>
    %264 = arith.addf %263, %262 : vector<8x32xf32>
    %265 = arith.divf %263, %264 : vector<8x32xf32>
    %266 = vector.extract_strided_slice %251 {offsets = [0, 0, 0], sizes = [1, 8, 32], strides = [1, 1, 1]} : vector<4x8x32xf32> to vector<1x8x32xf32>
    %267 = vector.shape_cast %266 : vector<1x8x32xf32> to vector<8x32xf32>
    %cst_107 = arith.constant dense<0.000000e+00> : vector<8x32xf32>
    %268 = tpu.matmul %209, %16, %cst_107 {dimension_numbers = #tpu.dot_dimension_numbers<[1], [0], [0], [1], [0, 0, 1, 1], [], []>} : vector<8x32xf32>, vector<32x32xf32>, vector<8x32xf32> -> vector<8x32xf32>
    %269 = arith.addf %267, %268 : vector<8x32xf32>
    %270 = arith.negf %269 : vector<8x32xf32>
    %271 = math.exp %270 : vector<8x32xf32>
    %cst_108 = arith.constant 1.000000e+00 : f32
    %272 = vector.broadcast %cst_108 : f32 to vector<8x32xf32>
    %273 = arith.addf %272, %271 : vector<8x32xf32>
    %274 = arith.divf %272, %273 : vector<8x32xf32>
    %275 = vector.extract_strided_slice %256 {offsets = [0, 0, 0], sizes = [1, 8, 32], strides = [1, 1, 1]} : vector<4x8x32xf32> to vector<1x8x32xf32>
    %276 = vector.shape_cast %275 : vector<1x8x32xf32> to vector<8x32xf32>
    %cst_109 = arith.constant dense<0.000000e+00> : vector<8x32xf32>
    %277 = tpu.matmul %209, %18, %cst_109 {dimension_numbers = #tpu.dot_dimension_numbers<[1], [0], [0], [1], [0, 0, 1, 1], [], []>} : vector<8x32xf32>, vector<32x32xf32>, vector<8x32xf32> -> vector<8x32xf32>
    %278 = arith.addf %277, %46 : vector<8x32xf32>
    %279 = arith.mulf %265, %278 : vector<8x32xf32>
    %280 = arith.addf %276, %279 : vector<8x32xf32>
    %281 = math.tanh %280 : vector<8x32xf32>
    %cst_110 = arith.constant 1.000000e+00 : f32
    %282 = vector.broadcast %cst_110 : f32 to vector<8x32xf32>
    %283 = arith.subf %282, %274 : vector<8x32xf32>
    %284 = arith.mulf %283, %281 : vector<8x32xf32>
    %285 = arith.mulf %274, %209 : vector<8x32xf32>
    %286 = arith.addf %284, %285 : vector<8x32xf32>
    %287 = vector.extract_strided_slice %6 {offsets = [0, 0, 0], sizes = [1, 8, 32], strides = [1, 1, 1]} : vector<4x8x32xi1> to vector<1x8x32xi1>
    %288 = vector.shape_cast %287 : vector<1x8x32xi1> to vector<8x32xi1>
    %289 = arith.select %288, %286, %209 : vector<8x32xi1>, vector<8x32xf32>
    %290 = vector.extract_strided_slice %246 {offsets = [1, 0, 0], sizes = [1, 8, 32], strides = [1, 1, 1]} : vector<4x8x32xf32> to vector<1x8x32xf32>
    %291 = vector.shape_cast %290 : vector<1x8x32xf32> to vector<8x32xf32>
    %cst_111 = arith.constant dense<0.000000e+00> : vector<8x32xf32>
    %292 = tpu.matmul %289, %14, %cst_111 {dimension_numbers = #tpu.dot_dimension_numbers<[1], [0], [0], [1], [0, 0, 1, 1], [], []>} : vector<8x32xf32>, vector<32x32xf32>, vector<8x32xf32> -> vector<8x32xf32>
    %293 = arith.addf %291, %292 : vector<8x32xf32>
    %294 = arith.negf %293 : vector<8x32xf32>
    %295 = math.exp %294 : vector<8x32xf32>
    %cst_112 = arith.constant 1.000000e+00 : f32
    %296 = vector.broadcast %cst_112 : f32 to vector<8x32xf32>
    %297 = arith.addf %296, %295 : vector<8x32xf32>
    %298 = arith.divf %296, %297 : vector<8x32xf32>
    %299 = vector.extract_strided_slice %251 {offsets = [1, 0, 0], sizes = [1, 8, 32], strides = [1, 1, 1]} : vector<4x8x32xf32> to vector<1x8x32xf32>
    %300 = vector.shape_cast %299 : vector<1x8x32xf32> to vector<8x32xf32>
    %cst_113 = arith.constant dense<0.000000e+00> : vector<8x32xf32>
    %301 = tpu.matmul %289, %16, %cst_113 {dimension_numbers = #tpu.dot_dimension_numbers<[1], [0], [0], [1], [0, 0, 1, 1], [], []>} : vector<8x32xf32>, vector<32x32xf32>, vector<8x32xf32> -> vector<8x32xf32>
    %302 = arith.addf %300, %301 : vector<8x32xf32>
    %303 = arith.negf %302 : vector<8x32xf32>
    %304 = math.exp %303 : vector<8x32xf32>
    %cst_114 = arith.constant 1.000000e+00 : f32
    %305 = vector.broadcast %cst_114 : f32 to vector<8x32xf32>
    %306 = arith.addf %305, %304 : vector<8x32xf32>
    %307 = arith.divf %305, %306 : vector<8x32xf32>
    %308 = vector.extract_strided_slice %256 {offsets = [1, 0, 0], sizes = [1, 8, 32], strides = [1, 1, 1]} : vector<4x8x32xf32> to vector<1x8x32xf32>
    %309 = vector.shape_cast %308 : vector<1x8x32xf32> to vector<8x32xf32>
    %cst_115 = arith.constant dense<0.000000e+00> : vector<8x32xf32>
    %310 = tpu.matmul %289, %18, %cst_115 {dimension_numbers = #tpu.dot_dimension_numbers<[1], [0], [0], [1], [0, 0, 1, 1], [], []>} : vector<8x32xf32>, vector<32x32xf32>, vector<8x32xf32> -> vector<8x32xf32>
    %311 = arith.addf %310, %46 : vector<8x32xf32>
    %312 = arith.mulf %298, %311 : vector<8x32xf32>
    %313 = arith.addf %309, %312 : vector<8x32xf32>
    %314 = math.tanh %313 : vector<8x32xf32>
    %cst_116 = arith.constant 1.000000e+00 : f32
    %315 = vector.broadcast %cst_116 : f32 to vector<8x32xf32>
    %316 = arith.subf %315, %307 : vector<8x32xf32>
    %317 = arith.mulf %316, %314 : vector<8x32xf32>
    %318 = arith.mulf %307, %289 : vector<8x32xf32>
    %319 = arith.addf %317, %318 : vector<8x32xf32>
    %320 = vector.extract_strided_slice %6 {offsets = [1, 0, 0], sizes = [1, 8, 32], strides = [1, 1, 1]} : vector<4x8x32xi1> to vector<1x8x32xi1>
    %321 = vector.shape_cast %320 : vector<1x8x32xi1> to vector<8x32xi1>
    %322 = arith.select %321, %319, %289 : vector<8x32xi1>, vector<8x32xf32>
    %323 = vector.extract_strided_slice %246 {offsets = [2, 0, 0], sizes = [1, 8, 32], strides = [1, 1, 1]} : vector<4x8x32xf32> to vector<1x8x32xf32>
    %324 = vector.shape_cast %323 : vector<1x8x32xf32> to vector<8x32xf32>
    %cst_117 = arith.constant dense<0.000000e+00> : vector<8x32xf32>
    %325 = tpu.matmul %322, %14, %cst_117 {dimension_numbers = #tpu.dot_dimension_numbers<[1], [0], [0], [1], [0, 0, 1, 1], [], []>} : vector<8x32xf32>, vector<32x32xf32>, vector<8x32xf32> -> vector<8x32xf32>
    %326 = arith.addf %324, %325 : vector<8x32xf32>
    %327 = arith.negf %326 : vector<8x32xf32>
    %328 = math.exp %327 : vector<8x32xf32>
    %cst_118 = arith.constant 1.000000e+00 : f32
    %329 = vector.broadcast %cst_118 : f32 to vector<8x32xf32>
    %330 = arith.addf %329, %328 : vector<8x32xf32>
    %331 = arith.divf %329, %330 : vector<8x32xf32>
    %332 = vector.extract_strided_slice %251 {offsets = [2, 0, 0], sizes = [1, 8, 32], strides = [1, 1, 1]} : vector<4x8x32xf32> to vector<1x8x32xf32>
    %333 = vector.shape_cast %332 : vector<1x8x32xf32> to vector<8x32xf32>
    %cst_119 = arith.constant dense<0.000000e+00> : vector<8x32xf32>
    %334 = tpu.matmul %322, %16, %cst_119 {dimension_numbers = #tpu.dot_dimension_numbers<[1], [0], [0], [1], [0, 0, 1, 1], [], []>} : vector<8x32xf32>, vector<32x32xf32>, vector<8x32xf32> -> vector<8x32xf32>
    %335 = arith.addf %333, %334 : vector<8x32xf32>
    %336 = arith.negf %335 : vector<8x32xf32>
    %337 = math.exp %336 : vector<8x32xf32>
    %cst_120 = arith.constant 1.000000e+00 : f32
    %338 = vector.broadcast %cst_120 : f32 to vector<8x32xf32>
    %339 = arith.addf %338, %337 : vector<8x32xf32>
    %340 = arith.divf %338, %339 : vector<8x32xf32>
    %341 = vector.extract_strided_slice %256 {offsets = [2, 0, 0], sizes = [1, 8, 32], strides = [1, 1, 1]} : vector<4x8x32xf32> to vector<1x8x32xf32>
    %342 = vector.shape_cast %341 : vector<1x8x32xf32> to vector<8x32xf32>
    %cst_121 = arith.constant dense<0.000000e+00> : vector<8x32xf32>
    %343 = tpu.matmul %322, %18, %cst_121 {dimension_numbers = #tpu.dot_dimension_numbers<[1], [0], [0], [1], [0, 0, 1, 1], [], []>} : vector<8x32xf32>, vector<32x32xf32>, vector<8x32xf32> -> vector<8x32xf32>
    %344 = arith.addf %343, %46 : vector<8x32xf32>
    %345 = arith.mulf %331, %344 : vector<8x32xf32>
    %346 = arith.addf %342, %345 : vector<8x32xf32>
    %347 = math.tanh %346 : vector<8x32xf32>
    %cst_122 = arith.constant 1.000000e+00 : f32
    %348 = vector.broadcast %cst_122 : f32 to vector<8x32xf32>
    %349 = arith.subf %348, %340 : vector<8x32xf32>
    %350 = arith.mulf %349, %347 : vector<8x32xf32>
    %351 = arith.mulf %340, %322 : vector<8x32xf32>
    %352 = arith.addf %350, %351 : vector<8x32xf32>
    %353 = vector.extract_strided_slice %6 {offsets = [2, 0, 0], sizes = [1, 8, 32], strides = [1, 1, 1]} : vector<4x8x32xi1> to vector<1x8x32xi1>
    %354 = vector.shape_cast %353 : vector<1x8x32xi1> to vector<8x32xi1>
    %355 = arith.select %354, %352, %322 : vector<8x32xi1>, vector<8x32xf32>
    %356 = vector.extract_strided_slice %246 {offsets = [3, 0, 0], sizes = [1, 8, 32], strides = [1, 1, 1]} : vector<4x8x32xf32> to vector<1x8x32xf32>
    %357 = vector.shape_cast %356 : vector<1x8x32xf32> to vector<8x32xf32>
    %cst_123 = arith.constant dense<0.000000e+00> : vector<8x32xf32>
    %358 = tpu.matmul %355, %14, %cst_123 {dimension_numbers = #tpu.dot_dimension_numbers<[1], [0], [0], [1], [0, 0, 1, 1], [], []>} : vector<8x32xf32>, vector<32x32xf32>, vector<8x32xf32> -> vector<8x32xf32>
    %359 = arith.addf %357, %358 : vector<8x32xf32>
    %360 = arith.negf %359 : vector<8x32xf32>
    %361 = math.exp %360 : vector<8x32xf32>
    %cst_124 = arith.constant 1.000000e+00 : f32
    %362 = vector.broadcast %cst_124 : f32 to vector<8x32xf32>
    %363 = arith.addf %362, %361 : vector<8x32xf32>
    %364 = arith.divf %362, %363 : vector<8x32xf32>
    %365 = vector.extract_strided_slice %251 {offsets = [3, 0, 0], sizes = [1, 8, 32], strides = [1, 1, 1]} : vector<4x8x32xf32> to vector<1x8x32xf32>
    %366 = vector.shape_cast %365 : vector<1x8x32xf32> to vector<8x32xf32>
    %cst_125 = arith.constant dense<0.000000e+00> : vector<8x32xf32>
    %367 = tpu.matmul %355, %16, %cst_125 {dimension_numbers = #tpu.dot_dimension_numbers<[1], [0], [0], [1], [0, 0, 1, 1], [], []>} : vector<8x32xf32>, vector<32x32xf32>, vector<8x32xf32> -> vector<8x32xf32>
    %368 = arith.addf %366, %367 : vector<8x32xf32>
    %369 = arith.negf %368 : vector<8x32xf32>
    %370 = math.exp %369 : vector<8x32xf32>
    %cst_126 = arith.constant 1.000000e+00 : f32
    %371 = vector.broadcast %cst_126 : f32 to vector<8x32xf32>
    %372 = arith.addf %371, %370 : vector<8x32xf32>
    %373 = arith.divf %371, %372 : vector<8x32xf32>
    %374 = vector.extract_strided_slice %256 {offsets = [3, 0, 0], sizes = [1, 8, 32], strides = [1, 1, 1]} : vector<4x8x32xf32> to vector<1x8x32xf32>
    %375 = vector.shape_cast %374 : vector<1x8x32xf32> to vector<8x32xf32>
    %cst_127 = arith.constant dense<0.000000e+00> : vector<8x32xf32>
    %376 = tpu.matmul %355, %18, %cst_127 {dimension_numbers = #tpu.dot_dimension_numbers<[1], [0], [0], [1], [0, 0, 1, 1], [], []>} : vector<8x32xf32>, vector<32x32xf32>, vector<8x32xf32> -> vector<8x32xf32>
    %377 = arith.addf %376, %46 : vector<8x32xf32>
    %378 = arith.mulf %364, %377 : vector<8x32xf32>
    %379 = arith.addf %375, %378 : vector<8x32xf32>
    %380 = math.tanh %379 : vector<8x32xf32>
    %cst_128 = arith.constant 1.000000e+00 : f32
    %381 = vector.broadcast %cst_128 : f32 to vector<8x32xf32>
    %382 = arith.subf %381, %373 : vector<8x32xf32>
    %383 = arith.mulf %382, %380 : vector<8x32xf32>
    %384 = arith.mulf %373, %355 : vector<8x32xf32>
    %385 = arith.addf %383, %384 : vector<8x32xf32>
    %386 = vector.extract_strided_slice %6 {offsets = [3, 0, 0], sizes = [1, 8, 32], strides = [1, 1, 1]} : vector<4x8x32xi1> to vector<1x8x32xi1>
    %387 = vector.shape_cast %386 : vector<1x8x32xi1> to vector<8x32xi1>
    %388 = arith.select %387, %385, %355 : vector<8x32xi1>, vector<8x32xf32>
    %389 = arith.truncf %388 : vector<8x32xf32> to vector<8x32xbf16>
    %cst_129 = arith.constant dense<0.000000e+00> : vector<8x32xf32>
    %390 = tpu.matmul %3, %389, %cst_129 {dimension_numbers = #tpu.dot_dimension_numbers<[1], [0], [0], [1], [0, 0, 1, 1], [], []>} : vector<8x8xbf16>, vector<8x32xbf16>, vector<8x32xf32> -> vector<8x32xf32>
    %cst_130 = arith.constant dense<0.000000e+00> : vector<8x32xf32>
    %391 = tpu.matmul %390, %20, %cst_130 {dimension_numbers = #tpu.dot_dimension_numbers<[1], [0], [0], [1], [0, 0, 1, 1], [], []>} : vector<8x32xf32>, vector<32x32xf32>, vector<8x32xf32> -> vector<8x32xf32>
    %392 = arith.addf %391, %50 : vector<8x32xf32>
    %cst_131 = arith.constant dense<0.000000e+00> : vector<8x32xf32>
    %393 = tpu.matmul %241, %26, %cst_131 {dimension_numbers = #tpu.dot_dimension_numbers<[1], [0], [0], [1], [0, 0, 1, 1], [], []>} : vector<8x32xf32>, vector<32x32xf32>, vector<8x32xf32> -> vector<8x32xf32>
    %394 = arith.addf %392, %393 : vector<8x32xf32>
    %395 = arith.negf %394 : vector<8x32xf32>
    %396 = math.exp %395 : vector<8x32xf32>
    %cst_132 = arith.constant 1.000000e+00 : f32
    %397 = vector.broadcast %cst_132 : f32 to vector<8x32xf32>
    %398 = arith.addf %397, %396 : vector<8x32xf32>
    %399 = arith.divf %397, %398 : vector<8x32xf32>
    %cst_133 = arith.constant dense<0.000000e+00> : vector<8x32xf32>
    %400 = tpu.matmul %390, %22, %cst_133 {dimension_numbers = #tpu.dot_dimension_numbers<[1], [0], [0], [1], [0, 0, 1, 1], [], []>} : vector<8x32xf32>, vector<32x32xf32>, vector<8x32xf32> -> vector<8x32xf32>
    %401 = arith.addf %400, %54 : vector<8x32xf32>
    %cst_134 = arith.constant dense<0.000000e+00> : vector<8x32xf32>
    %402 = tpu.matmul %241, %28, %cst_134 {dimension_numbers = #tpu.dot_dimension_numbers<[1], [0], [0], [1], [0, 0, 1, 1], [], []>} : vector<8x32xf32>, vector<32x32xf32>, vector<8x32xf32> -> vector<8x32xf32>
    %403 = arith.addf %401, %402 : vector<8x32xf32>
    %404 = arith.negf %403 : vector<8x32xf32>
    %405 = math.exp %404 : vector<8x32xf32>
    %cst_135 = arith.constant 1.000000e+00 : f32
    %406 = vector.broadcast %cst_135 : f32 to vector<8x32xf32>
    %407 = arith.addf %406, %405 : vector<8x32xf32>
    %408 = arith.divf %406, %407 : vector<8x32xf32>
    %cst_136 = arith.constant dense<0.000000e+00> : vector<8x32xf32>
    %409 = tpu.matmul %390, %24, %cst_136 {dimension_numbers = #tpu.dot_dimension_numbers<[1], [0], [0], [1], [0, 0, 1, 1], [], []>} : vector<8x32xf32>, vector<32x32xf32>, vector<8x32xf32> -> vector<8x32xf32>
    %410 = arith.addf %409, %58 : vector<8x32xf32>
    %cst_137 = arith.constant dense<0.000000e+00> : vector<8x32xf32>
    %411 = tpu.matmul %241, %30, %cst_137 {dimension_numbers = #tpu.dot_dimension_numbers<[1], [0], [0], [1], [0, 0, 1, 1], [], []>} : vector<8x32xf32>, vector<32x32xf32>, vector<8x32xf32> -> vector<8x32xf32>
    %412 = arith.addf %411, %62 : vector<8x32xf32>
    %413 = arith.mulf %399, %412 : vector<8x32xf32>
    %414 = arith.addf %410, %413 : vector<8x32xf32>
    %415 = math.tanh %414 : vector<8x32xf32>
    %cst_138 = arith.constant 1.000000e+00 : f32
    %416 = vector.broadcast %cst_138 : f32 to vector<8x32xf32>
    %417 = arith.subf %416, %408 : vector<8x32xf32>
    %418 = arith.mulf %417, %415 : vector<8x32xf32>
    %419 = arith.mulf %408, %241 : vector<8x32xf32>
    %420 = arith.addf %418, %419 : vector<8x32xf32>
    %cst_139 = arith.constant dense<0.000000e+00> : vector<8x32xf32>
    %421 = tpu.matmul %420, %8, %cst_139 {dimension_numbers = #tpu.dot_dimension_numbers<[1], [0], [0], [1], [0, 0, 1, 1], [], []>} : vector<8x32xf32>, vector<32x32xf32>, vector<8x32xf32> -> vector<8x32xf32>
    %422 = arith.truncf %421 : vector<8x32xf32> to vector<8x32xbf16>
    %cst_140 = arith.constant dense<0.000000e+00> : vector<32x32xf32>
    %423 = tpu.matmul %2, %422, %cst_140 {dimension_numbers = #tpu.dot_dimension_numbers<[1], [0], [0], [1], [0, 0, 1, 1], [], []>} : vector<32x8xbf16>, vector<8x32xbf16>, vector<32x32xf32> -> vector<32x32xf32>
    %424 = arith.addf %423, %34 : vector<32x32xf32>
    %425 = vector.shape_cast %424 : vector<32x32xf32> to vector<4x8x32xf32>
    %cst_141 = arith.constant dense<0.000000e+00> : vector<8x32xf32>
    %426 = tpu.matmul %420, %10, %cst_141 {dimension_numbers = #tpu.dot_dimension_numbers<[1], [0], [0], [1], [0, 0, 1, 1], [], []>} : vector<8x32xf32>, vector<32x32xf32>, vector<8x32xf32> -> vector<8x32xf32>
    %427 = arith.truncf %426 : vector<8x32xf32> to vector<8x32xbf16>
    %cst_142 = arith.constant dense<0.000000e+00> : vector<32x32xf32>
    %428 = tpu.matmul %2, %427, %cst_142 {dimension_numbers = #tpu.dot_dimension_numbers<[1], [0], [0], [1], [0, 0, 1, 1], [], []>} : vector<32x8xbf16>, vector<8x32xbf16>, vector<32x32xf32> -> vector<32x32xf32>
    %429 = arith.addf %428, %38 : vector<32x32xf32>
    %430 = vector.shape_cast %429 : vector<32x32xf32> to vector<4x8x32xf32>
    %cst_143 = arith.constant dense<0.000000e+00> : vector<8x32xf32>
    %431 = tpu.matmul %420, %12, %cst_143 {dimension_numbers = #tpu.dot_dimension_numbers<[1], [0], [0], [1], [0, 0, 1, 1], [], []>} : vector<8x32xf32>, vector<32x32xf32>, vector<8x32xf32> -> vector<8x32xf32>
    %432 = arith.truncf %431 : vector<8x32xf32> to vector<8x32xbf16>
    %cst_144 = arith.constant dense<0.000000e+00> : vector<32x32xf32>
    %433 = tpu.matmul %2, %432, %cst_144 {dimension_numbers = #tpu.dot_dimension_numbers<[1], [0], [0], [1], [0, 0, 1, 1], [], []>} : vector<32x8xbf16>, vector<8x32xbf16>, vector<32x32xf32> -> vector<32x32xf32>
    %434 = arith.addf %433, %42 : vector<32x32xf32>
    %435 = vector.shape_cast %434 : vector<32x32xf32> to vector<4x8x32xf32>
    %436 = vector.extract_strided_slice %425 {offsets = [0, 0, 0], sizes = [1, 8, 32], strides = [1, 1, 1]} : vector<4x8x32xf32> to vector<1x8x32xf32>
    %437 = vector.shape_cast %436 : vector<1x8x32xf32> to vector<8x32xf32>
    %cst_145 = arith.constant dense<0.000000e+00> : vector<8x32xf32>
    %438 = tpu.matmul %388, %14, %cst_145 {dimension_numbers = #tpu.dot_dimension_numbers<[1], [0], [0], [1], [0, 0, 1, 1], [], []>} : vector<8x32xf32>, vector<32x32xf32>, vector<8x32xf32> -> vector<8x32xf32>
    %439 = arith.addf %437, %438 : vector<8x32xf32>
    %440 = arith.negf %439 : vector<8x32xf32>
    %441 = math.exp %440 : vector<8x32xf32>
    %cst_146 = arith.constant 1.000000e+00 : f32
    %442 = vector.broadcast %cst_146 : f32 to vector<8x32xf32>
    %443 = arith.addf %442, %441 : vector<8x32xf32>
    %444 = arith.divf %442, %443 : vector<8x32xf32>
    %445 = vector.extract_strided_slice %430 {offsets = [0, 0, 0], sizes = [1, 8, 32], strides = [1, 1, 1]} : vector<4x8x32xf32> to vector<1x8x32xf32>
    %446 = vector.shape_cast %445 : vector<1x8x32xf32> to vector<8x32xf32>
    %cst_147 = arith.constant dense<0.000000e+00> : vector<8x32xf32>
    %447 = tpu.matmul %388, %16, %cst_147 {dimension_numbers = #tpu.dot_dimension_numbers<[1], [0], [0], [1], [0, 0, 1, 1], [], []>} : vector<8x32xf32>, vector<32x32xf32>, vector<8x32xf32> -> vector<8x32xf32>
    %448 = arith.addf %446, %447 : vector<8x32xf32>
    %449 = arith.negf %448 : vector<8x32xf32>
    %450 = math.exp %449 : vector<8x32xf32>
    %cst_148 = arith.constant 1.000000e+00 : f32
    %451 = vector.broadcast %cst_148 : f32 to vector<8x32xf32>
    %452 = arith.addf %451, %450 : vector<8x32xf32>
    %453 = arith.divf %451, %452 : vector<8x32xf32>
    %454 = vector.extract_strided_slice %435 {offsets = [0, 0, 0], sizes = [1, 8, 32], strides = [1, 1, 1]} : vector<4x8x32xf32> to vector<1x8x32xf32>
    %455 = vector.shape_cast %454 : vector<1x8x32xf32> to vector<8x32xf32>
    %cst_149 = arith.constant dense<0.000000e+00> : vector<8x32xf32>
    %456 = tpu.matmul %388, %18, %cst_149 {dimension_numbers = #tpu.dot_dimension_numbers<[1], [0], [0], [1], [0, 0, 1, 1], [], []>} : vector<8x32xf32>, vector<32x32xf32>, vector<8x32xf32> -> vector<8x32xf32>
    %457 = arith.addf %456, %46 : vector<8x32xf32>
    %458 = arith.mulf %444, %457 : vector<8x32xf32>
    %459 = arith.addf %455, %458 : vector<8x32xf32>
    %460 = math.tanh %459 : vector<8x32xf32>
    %cst_150 = arith.constant 1.000000e+00 : f32
    %461 = vector.broadcast %cst_150 : f32 to vector<8x32xf32>
    %462 = arith.subf %461, %453 : vector<8x32xf32>
    %463 = arith.mulf %462, %460 : vector<8x32xf32>
    %464 = arith.mulf %453, %388 : vector<8x32xf32>
    %465 = arith.addf %463, %464 : vector<8x32xf32>
    %466 = vector.extract_strided_slice %6 {offsets = [0, 0, 0], sizes = [1, 8, 32], strides = [1, 1, 1]} : vector<4x8x32xi1> to vector<1x8x32xi1>
    %467 = vector.shape_cast %466 : vector<1x8x32xi1> to vector<8x32xi1>
    %468 = arith.select %467, %465, %388 : vector<8x32xi1>, vector<8x32xf32>
    %469 = vector.extract_strided_slice %425 {offsets = [1, 0, 0], sizes = [1, 8, 32], strides = [1, 1, 1]} : vector<4x8x32xf32> to vector<1x8x32xf32>
    %470 = vector.shape_cast %469 : vector<1x8x32xf32> to vector<8x32xf32>
    %cst_151 = arith.constant dense<0.000000e+00> : vector<8x32xf32>
    %471 = tpu.matmul %468, %14, %cst_151 {dimension_numbers = #tpu.dot_dimension_numbers<[1], [0], [0], [1], [0, 0, 1, 1], [], []>} : vector<8x32xf32>, vector<32x32xf32>, vector<8x32xf32> -> vector<8x32xf32>
    %472 = arith.addf %470, %471 : vector<8x32xf32>
    %473 = arith.negf %472 : vector<8x32xf32>
    %474 = math.exp %473 : vector<8x32xf32>
    %cst_152 = arith.constant 1.000000e+00 : f32
    %475 = vector.broadcast %cst_152 : f32 to vector<8x32xf32>
    %476 = arith.addf %475, %474 : vector<8x32xf32>
    %477 = arith.divf %475, %476 : vector<8x32xf32>
    %478 = vector.extract_strided_slice %430 {offsets = [1, 0, 0], sizes = [1, 8, 32], strides = [1, 1, 1]} : vector<4x8x32xf32> to vector<1x8x32xf32>
    %479 = vector.shape_cast %478 : vector<1x8x32xf32> to vector<8x32xf32>
    %cst_153 = arith.constant dense<0.000000e+00> : vector<8x32xf32>
    %480 = tpu.matmul %468, %16, %cst_153 {dimension_numbers = #tpu.dot_dimension_numbers<[1], [0], [0], [1], [0, 0, 1, 1], [], []>} : vector<8x32xf32>, vector<32x32xf32>, vector<8x32xf32> -> vector<8x32xf32>
    %481 = arith.addf %479, %480 : vector<8x32xf32>
    %482 = arith.negf %481 : vector<8x32xf32>
    %483 = math.exp %482 : vector<8x32xf32>
    %cst_154 = arith.constant 1.000000e+00 : f32
    %484 = vector.broadcast %cst_154 : f32 to vector<8x32xf32>
    %485 = arith.addf %484, %483 : vector<8x32xf32>
    %486 = arith.divf %484, %485 : vector<8x32xf32>
    %487 = vector.extract_strided_slice %435 {offsets = [1, 0, 0], sizes = [1, 8, 32], strides = [1, 1, 1]} : vector<4x8x32xf32> to vector<1x8x32xf32>
    %488 = vector.shape_cast %487 : vector<1x8x32xf32> to vector<8x32xf32>
    %cst_155 = arith.constant dense<0.000000e+00> : vector<8x32xf32>
    %489 = tpu.matmul %468, %18, %cst_155 {dimension_numbers = #tpu.dot_dimension_numbers<[1], [0], [0], [1], [0, 0, 1, 1], [], []>} : vector<8x32xf32>, vector<32x32xf32>, vector<8x32xf32> -> vector<8x32xf32>
    %490 = arith.addf %489, %46 : vector<8x32xf32>
    %491 = arith.mulf %477, %490 : vector<8x32xf32>
    %492 = arith.addf %488, %491 : vector<8x32xf32>
    %493 = math.tanh %492 : vector<8x32xf32>
    %cst_156 = arith.constant 1.000000e+00 : f32
    %494 = vector.broadcast %cst_156 : f32 to vector<8x32xf32>
    %495 = arith.subf %494, %486 : vector<8x32xf32>
    %496 = arith.mulf %495, %493 : vector<8x32xf32>
    %497 = arith.mulf %486, %468 : vector<8x32xf32>
    %498 = arith.addf %496, %497 : vector<8x32xf32>
    %499 = vector.extract_strided_slice %6 {offsets = [1, 0, 0], sizes = [1, 8, 32], strides = [1, 1, 1]} : vector<4x8x32xi1> to vector<1x8x32xi1>
    %500 = vector.shape_cast %499 : vector<1x8x32xi1> to vector<8x32xi1>
    %501 = arith.select %500, %498, %468 : vector<8x32xi1>, vector<8x32xf32>
    %502 = vector.extract_strided_slice %425 {offsets = [2, 0, 0], sizes = [1, 8, 32], strides = [1, 1, 1]} : vector<4x8x32xf32> to vector<1x8x32xf32>
    %503 = vector.shape_cast %502 : vector<1x8x32xf32> to vector<8x32xf32>
    %cst_157 = arith.constant dense<0.000000e+00> : vector<8x32xf32>
    %504 = tpu.matmul %501, %14, %cst_157 {dimension_numbers = #tpu.dot_dimension_numbers<[1], [0], [0], [1], [0, 0, 1, 1], [], []>} : vector<8x32xf32>, vector<32x32xf32>, vector<8x32xf32> -> vector<8x32xf32>
    %505 = arith.addf %503, %504 : vector<8x32xf32>
    %506 = arith.negf %505 : vector<8x32xf32>
    %507 = math.exp %506 : vector<8x32xf32>
    %cst_158 = arith.constant 1.000000e+00 : f32
    %508 = vector.broadcast %cst_158 : f32 to vector<8x32xf32>
    %509 = arith.addf %508, %507 : vector<8x32xf32>
    %510 = arith.divf %508, %509 : vector<8x32xf32>
    %511 = vector.extract_strided_slice %430 {offsets = [2, 0, 0], sizes = [1, 8, 32], strides = [1, 1, 1]} : vector<4x8x32xf32> to vector<1x8x32xf32>
    %512 = vector.shape_cast %511 : vector<1x8x32xf32> to vector<8x32xf32>
    %cst_159 = arith.constant dense<0.000000e+00> : vector<8x32xf32>
    %513 = tpu.matmul %501, %16, %cst_159 {dimension_numbers = #tpu.dot_dimension_numbers<[1], [0], [0], [1], [0, 0, 1, 1], [], []>} : vector<8x32xf32>, vector<32x32xf32>, vector<8x32xf32> -> vector<8x32xf32>
    %514 = arith.addf %512, %513 : vector<8x32xf32>
    %515 = arith.negf %514 : vector<8x32xf32>
    %516 = math.exp %515 : vector<8x32xf32>
    %cst_160 = arith.constant 1.000000e+00 : f32
    %517 = vector.broadcast %cst_160 : f32 to vector<8x32xf32>
    %518 = arith.addf %517, %516 : vector<8x32xf32>
    %519 = arith.divf %517, %518 : vector<8x32xf32>
    %520 = vector.extract_strided_slice %435 {offsets = [2, 0, 0], sizes = [1, 8, 32], strides = [1, 1, 1]} : vector<4x8x32xf32> to vector<1x8x32xf32>
    %521 = vector.shape_cast %520 : vector<1x8x32xf32> to vector<8x32xf32>
    %cst_161 = arith.constant dense<0.000000e+00> : vector<8x32xf32>
    %522 = tpu.matmul %501, %18, %cst_161 {dimension_numbers = #tpu.dot_dimension_numbers<[1], [0], [0], [1], [0, 0, 1, 1], [], []>} : vector<8x32xf32>, vector<32x32xf32>, vector<8x32xf32> -> vector<8x32xf32>
    %523 = arith.addf %522, %46 : vector<8x32xf32>
    %524 = arith.mulf %510, %523 : vector<8x32xf32>
    %525 = arith.addf %521, %524 : vector<8x32xf32>
    %526 = math.tanh %525 : vector<8x32xf32>
    %cst_162 = arith.constant 1.000000e+00 : f32
    %527 = vector.broadcast %cst_162 : f32 to vector<8x32xf32>
    %528 = arith.subf %527, %519 : vector<8x32xf32>
    %529 = arith.mulf %528, %526 : vector<8x32xf32>
    %530 = arith.mulf %519, %501 : vector<8x32xf32>
    %531 = arith.addf %529, %530 : vector<8x32xf32>
    %532 = vector.extract_strided_slice %6 {offsets = [2, 0, 0], sizes = [1, 8, 32], strides = [1, 1, 1]} : vector<4x8x32xi1> to vector<1x8x32xi1>
    %533 = vector.shape_cast %532 : vector<1x8x32xi1> to vector<8x32xi1>
    %534 = arith.select %533, %531, %501 : vector<8x32xi1>, vector<8x32xf32>
    %535 = vector.extract_strided_slice %425 {offsets = [3, 0, 0], sizes = [1, 8, 32], strides = [1, 1, 1]} : vector<4x8x32xf32> to vector<1x8x32xf32>
    %536 = vector.shape_cast %535 : vector<1x8x32xf32> to vector<8x32xf32>
    %cst_163 = arith.constant dense<0.000000e+00> : vector<8x32xf32>
    %537 = tpu.matmul %534, %14, %cst_163 {dimension_numbers = #tpu.dot_dimension_numbers<[1], [0], [0], [1], [0, 0, 1, 1], [], []>} : vector<8x32xf32>, vector<32x32xf32>, vector<8x32xf32> -> vector<8x32xf32>
    %538 = arith.addf %536, %537 : vector<8x32xf32>
    %539 = arith.negf %538 : vector<8x32xf32>
    %540 = math.exp %539 : vector<8x32xf32>
    %cst_164 = arith.constant 1.000000e+00 : f32
    %541 = vector.broadcast %cst_164 : f32 to vector<8x32xf32>
    %542 = arith.addf %541, %540 : vector<8x32xf32>
    %543 = arith.divf %541, %542 : vector<8x32xf32>
    %544 = vector.extract_strided_slice %430 {offsets = [3, 0, 0], sizes = [1, 8, 32], strides = [1, 1, 1]} : vector<4x8x32xf32> to vector<1x8x32xf32>
    %545 = vector.shape_cast %544 : vector<1x8x32xf32> to vector<8x32xf32>
    %cst_165 = arith.constant dense<0.000000e+00> : vector<8x32xf32>
    %546 = tpu.matmul %534, %16, %cst_165 {dimension_numbers = #tpu.dot_dimension_numbers<[1], [0], [0], [1], [0, 0, 1, 1], [], []>} : vector<8x32xf32>, vector<32x32xf32>, vector<8x32xf32> -> vector<8x32xf32>
    %547 = arith.addf %545, %546 : vector<8x32xf32>
    %548 = arith.negf %547 : vector<8x32xf32>
    %549 = math.exp %548 : vector<8x32xf32>
    %cst_166 = arith.constant 1.000000e+00 : f32
    %550 = vector.broadcast %cst_166 : f32 to vector<8x32xf32>
    %551 = arith.addf %550, %549 : vector<8x32xf32>
    %552 = arith.divf %550, %551 : vector<8x32xf32>
    %553 = vector.extract_strided_slice %435 {offsets = [3, 0, 0], sizes = [1, 8, 32], strides = [1, 1, 1]} : vector<4x8x32xf32> to vector<1x8x32xf32>
    %554 = vector.shape_cast %553 : vector<1x8x32xf32> to vector<8x32xf32>
    %cst_167 = arith.constant dense<0.000000e+00> : vector<8x32xf32>
    %555 = tpu.matmul %534, %18, %cst_167 {dimension_numbers = #tpu.dot_dimension_numbers<[1], [0], [0], [1], [0, 0, 1, 1], [], []>} : vector<8x32xf32>, vector<32x32xf32>, vector<8x32xf32> -> vector<8x32xf32>
    %556 = arith.addf %555, %46 : vector<8x32xf32>
    %557 = arith.mulf %543, %556 : vector<8x32xf32>
    %558 = arith.addf %554, %557 : vector<8x32xf32>
    %559 = math.tanh %558 : vector<8x32xf32>
    %cst_168 = arith.constant 1.000000e+00 : f32
    %560 = vector.broadcast %cst_168 : f32 to vector<8x32xf32>
    %561 = arith.subf %560, %552 : vector<8x32xf32>
    %562 = arith.mulf %561, %559 : vector<8x32xf32>
    %563 = arith.mulf %552, %534 : vector<8x32xf32>
    %564 = arith.addf %562, %563 : vector<8x32xf32>
    %565 = vector.extract_strided_slice %6 {offsets = [3, 0, 0], sizes = [1, 8, 32], strides = [1, 1, 1]} : vector<4x8x32xi1> to vector<1x8x32xi1>
    %566 = vector.shape_cast %565 : vector<1x8x32xi1> to vector<8x32xi1>
    %567 = arith.select %566, %564, %534 : vector<8x32xi1>, vector<8x32xf32>
    %c0_169 = arith.constant 0 : index
    %c0_170 = arith.constant 0 : index
    %568 = vector.load %arg11[%c0_169, %c0_170] : memref<16x32xf32, #tpu.memory_space<vmem>>, vector<16x32xf32>
    %cst_171 = arith.constant dense<0.000000e+00> : vector<16x8xf32>
    %569 = tpu.matmul %568, %567, %cst_171 {dimension_numbers = #tpu.dot_dimension_numbers<[1], [1], [0], [0], [0, 0, 1, 0], [], []>} : vector<16x32xf32>, vector<8x32xf32>, vector<16x8xf32> -> vector<16x8xf32>
    %c0_172 = arith.constant 0 : index
    %c0_173 = arith.constant 0 : index
    %570 = vector.load %arg12[%c0_172, %c0_173] : memref<16x1xf32, #tpu.memory_space<vmem>>, vector<16x1xf32>
    %571 = vector.broadcast %570 : vector<16x1xf32> to vector<16x8xf32>
    %572 = arith.addf %569, %571 : vector<16x8xf32>
    %cst_174 = arith.constant 0.000000e+00 : f32
    %573 = vector.broadcast %cst_174 : f32 to vector<16x8xf32>
    %574 = arith.maximumf %572, %573 : vector<16x8xf32>
    %c0_175 = arith.constant 0 : index
    %c0_176 = arith.constant 0 : index
    %575 = vector.load %arg13[%c0_175, %c0_176] : memref<16x16xf32, #tpu.memory_space<vmem>>, vector<16x16xf32>
    %cst_177 = arith.constant dense<0.000000e+00> : vector<16x8xf32>
    %576 = tpu.matmul %575, %574, %cst_177 {dimension_numbers = #tpu.dot_dimension_numbers<[1], [0], [0], [1], [0, 0, 1, 1], [], []>} : vector<16x16xf32>, vector<16x8xf32>, vector<16x8xf32> -> vector<16x8xf32>
    %c0_178 = arith.constant 0 : index
    %c0_179 = arith.constant 0 : index
    %577 = vector.load %arg14[%c0_178, %c0_179] : memref<16x1xf32, #tpu.memory_space<vmem>>, vector<16x1xf32>
    %578 = vector.broadcast %577 : vector<16x1xf32> to vector<16x8xf32>
    %579 = arith.addf %576, %578 : vector<16x8xf32>
    %cst_180 = arith.constant 0.000000e+00 : f32
    %580 = vector.broadcast %cst_180 : f32 to vector<16x8xf32>
    %581 = arith.maximumf %579, %580 : vector<16x8xf32>
    %c0_181 = arith.constant 0 : index
    %c0_182 = arith.constant 0 : index
    %582 = vector.load %arg15[%c0_181, %c0_182] : memref<1x16xf32, #tpu.memory_space<vmem>>, vector<1x16xf32>
    %cst_183 = arith.constant dense<0.000000e+00> : vector<1x8xf32>
    %583 = tpu.matmul %582, %581, %cst_183 {dimension_numbers = #tpu.dot_dimension_numbers<[1], [0], [0], [1], [0, 0, 1, 1], [], []>} : vector<1x16xf32>, vector<16x8xf32>, vector<1x8xf32> -> vector<1x8xf32>
    %c0_184 = arith.constant 0 : index
    %c0_185 = arith.constant 0 : index
    %584 = vector.load %arg16[%c0_184, %c0_185] : memref<1x1xf32, #tpu.memory_space<vmem>>, vector<1x1xf32>
    %585 = vector.broadcast %584 : vector<1x1xf32> to vector<1x8xf32>
    %586 = arith.addf %583, %585 : vector<1x8xf32>
    %c0_186 = arith.constant 0 : index
    %c0_187 = arith.constant 0 : index
    %587 = vector.load %arg17[%c0_186, %c0_187] : memref<1x8xf32, #tpu.memory_space<vmem>>, vector<1x8xf32>
    tpu.vector_store %arg17[%c0_186, %c0_187], %586 {strides = array<i32>} : memref<1x8xf32, #tpu.memory_space<vmem>>, vector<1x8xf32>,
    return
  }
}

</mosaic_0001>

<llo_original>
// kernel: tpu_custom_call.1
$region0: #{tpu_custom_call.1}
  #allocation0 [shape = 'u32[]', space=smem, size = 0x4, offset = 0x4, fixed_abs, tag = 'smem constant byte address 0x4 - core index']
  #allocation1 [shape = 'u32[144,128]{1,0:T(1,128)}', space=vmem, size = 0x12000, scoped, tag = 'internal scratch']
  #allocation2 [shape = 'f32[1,1]{1,0:T(1,128)S(1)}', space=vmem, size = 0x200, scoped, tag = 'scoped memory for tpu_custom_call.1']
  %s0 = inlined_call_operand.hbm [shape: f32[8,32], index: 0, kind: input, shape index: {}]
  %s1 = inlined_call_operand.hbm [shape: f32[8,32], index: 1, kind: input, shape index: {}]
  %s2 = inlined_call_operand.vmem [shape: bf16[32,8], index: 2, kind: input, shape index: {}]
  %s3 = inlined_call_operand.vmem [shape: bf16[8,8], index: 3, kind: input, shape index: {}]
  %s4 = inlined_call_operand.vmem [shape: f32[4,8,32], index: 4, kind: input, shape index: {}]
  %s5 = inlined_call_operand.hbm [shape: f32[3,32,32], index: 5, kind: input, shape index: {}]
  %s6 = inlined_call_operand.hbm [shape: f32[3,32,32], index: 6, kind: input, shape index: {}]
  %s7 = inlined_call_operand.vmem [shape: f32[4,32], index: 7, kind: input, shape index: {}]
  %s8 = inlined_call_operand.hbm [shape: f32[3,32,32], index: 8, kind: input, shape index: {}]
  %s9 = inlined_call_operand.hbm [shape: f32[3,32,32], index: 9, kind: input, shape index: {}]
  %s10 = inlined_call_operand.vmem [shape: f32[4,32], index: 10, kind: input, shape index: {}]
  %s11 = inlined_call_operand.vmem [shape: f32[16,32], index: 11, kind: input, shape index: {}]
  %s12 = inlined_call_operand.vmem [shape: f32[16,1], index: 12, kind: input, shape index: {}]
  %s13 = inlined_call_operand.vmem [shape: f32[16,16], index: 13, kind: input, shape index: {}]
  %s14 = inlined_call_operand.vmem [shape: f32[16,1], index: 14, kind: input, shape index: {}]
  %s15 = inlined_call_operand.vmem [shape: f32[1,16], index: 15, kind: input, shape index: {}]
  %s16 = inlined_call_operand.<no memory space> [shape: f32[1,1], index: 16, kind: input, shape index: {}]
  %s17 = inlined_call_operand.hbm [shape: f32[1,8], index: 17, kind: output, shape index: {}]
  %s18 = sld [smem:[#allocation0]]
  $region102: #{tpu_custom_call.1} parent=0
    _
  %s20 = ssub.s32 1, %s18
  %s21 = scalar_select 0, %s20, %s18
  %v22 = vstv %s16
  %23 = vst [vmem:[#allocation2] sm:$0x1] %v22
  $region1: #{tpu_custom_call.1} parent=0
    #allocation3 [shape = 'u8[4096]{0}', space=vmem, size = 0x1000, scoped, tag = 'input window, operand 0, single buffered']
    #allocation4 [shape = 's32[1]{0}', space=sflag, size = 0x4, scoped, tag = 'scoped memory for tpu_custom_call.1']
    #allocation5 [shape = 's32[1]{0}', space=sflag, size = 0x4, scoped, tag = 'scoped memory for tpu_custom_call.1']
    #allocation6 [shape = 'u8[4096]{0}', space=vmem, size = 0x1000, scoped, tag = 'input window, operand 1, single buffered']
    #allocation7 [shape = 's32[1]{0}', space=sflag, size = 0x4, scoped, tag = 'scoped memory for tpu_custom_call.1']
    #allocation8 [shape = 'u8[49152]{0}', space=vmem, size = 0xc000, scoped, tag = 'input window, operand 5, single buffered']
    #allocation9 [shape = 'u8[49152]{0}', space=vmem, size = 0xc000, scoped, tag = 'input window, operand 6, single buffered']
    #allocation10 [shape = 's32[1]{0}', space=sflag, size = 0x4, scoped, tag = 'scoped memory for tpu_custom_call.1']
    #allocation11 [shape = 'u8[49152]{0}', space=vmem, size = 0xc000, scoped, tag = 'input window, operand 8, single buffered']
    #allocation12 [shape = 'u8[49152]{0}', space=vmem, size = 0xc000, scoped, tag = 'input window, operand 9, single buffered']
    #allocation13 [shape = 's32[1]{0}', space=sflag, size = 0x4, scoped, tag = 'scoped memory for tpu_custom_call.1']
    #allocation14 [shape = 'u8[512]{0}', space=vmem, size = 0x400, scoped, tag = 'output window, operand 0, single buffered']
    %24 = vsyncpa [#allocation4], 0
    %25 = vsyncpa [#allocation7], 0
    %26 = vsyncpa [#allocation10], 0
    %27 = vsyncpa [#allocation13], 0
    %28 = vsyncpa [#allocation5], 0
    // Predicated region
    $region2: #{tpu_custom_call.1} parent=1 // pred_check
      _
    $region3: #{tpu_custom_call.1} parent=1 // pred_check_branch
      %30 = sbr.rel (0) target = $region5
    $region4: #{tpu_custom_call.1} parent=1 // pred_region
      %s32 = ssub.s32 128, 128
      %33 = vsyncadd [#allocation4], %s32
      %s35 = sshll.u32 [#allocation3], 4
      %s36 = int_to_ptr.vmem [resolvable:$true] %s35
      %38 = dma.hbm_to_vmem [thread:$0]  %s0, 128, %s36, [#allocation4]
    $region5: #{tpu_custom_call.1} parent=1 // pred_fallthru
      _
    // Predicated region
    $region6: #{tpu_custom_call.1} parent=1 // pred_check
      _
    $region7: #{tpu_custom_call.1} parent=1 // pred_check_branch
      %40 = sbr.rel (0) target = $region9
    $region8: #{tpu_custom_call.1} parent=1 // pred_region
      %s42 = ssub.s32 128, 128
      %43 = vsyncadd [#allocation7], %s42
      %s45 = sshll.u32 [#allocation6], 4
      %s46 = int_to_ptr.vmem [resolvable:$true] %s45
      %48 = dma.hbm_to_vmem [thread:$0]  %s1, 128, %s46, [#allocation7]
    $region9: #{tpu_custom_call.1} parent=1 // pred_fallthru
      _
    // Predicated region
    $region10: #{tpu_custom_call.1} parent=1 // pred_check
      _
    $region11: #{tpu_custom_call.1} parent=1 // pred_check_branch
      %50 = sbr.rel (0) target = $region13
    $region12: #{tpu_custom_call.1} parent=1 // pred_region
      _
    $region13: #{tpu_custom_call.1} parent=1 // pred_fallthru
      _
    // Predicated region
    $region14: #{tpu_custom_call.1} parent=1 // pred_check
      _
    $region15: #{tpu_custom_call.1} parent=1 // pred_check_branch
      %52 = sbr.rel (0) target = $region17
    $region16: #{tpu_custom_call.1} parent=1 // pred_region
      _
    $region17: #{tpu_custom_call.1} parent=1 // pred_fallthru
      _
    // Predicated region
    $region18: #{tpu_custom_call.1} parent=1 // pred_check
      _
    $region19: #{tpu_custom_call.1} parent=1 // pred_check_branch
      %54 = sbr.rel (0) target = $region21
    $region20: #{tpu_custom_call.1} parent=1 // pred_region
      _
    $region21: #{tpu_custom_call.1} parent=1 // pred_fallthru
      _
    // Predicated region
    $region22: #{tpu_custom_call.1} parent=1 // pred_check
      _
    $region23: #{tpu_custom_call.1} parent=1 // pred_check_branch
      %56 = sbr.rel (0) target = $region25
    $region24: #{tpu_custom_call.1} parent=1 // pred_region
      %s58 = ssub.s32 1536, 1536
      %59 = vsyncadd [#allocation7], %s58
      %s60 = sshll.u32 [#allocation8], 4
      %s61 = int_to_ptr.vmem [resolvable:$true] %s60
      %66 = dma.hbm_to_vmem [thread:$0]  %s5, 1536, %s61, [#allocation7], 128, 128, 8
    $region25: #{tpu_custom_call.1} parent=1 // pred_fallthru
      _
    // Predicated region
    $region26: #{tpu_custom_call.1} parent=1 // pred_check
      _
    $region27: #{tpu_custom_call.1} parent=1 // pred_check_branch
      %68 = sbr.rel (0) target = $region29
    $region28: #{tpu_custom_call.1} parent=1 // pred_region
      %s70 = ssub.s32 1536, 1536
      %71 = vsyncadd [#allocation10], %s70
      %s72 = sshll.u32 [#allocation9], 4
      %s73 = int_to_ptr.vmem [resolvable:$true] %s72
      %78 = dma.hbm_to_vmem [thread:$0]  %s6, 1536, %s73, [#allocation10], 128, 128, 8
    $region29: #{tpu_custom_call.1} parent=1 // pred_fallthru
      _
    // Predicated region
    $region30: #{tpu_custom_call.1} parent=1 // pred_check
      _
    $region31: #{tpu_custom_call.1} parent=1 // pred_check_branch
      %80 = sbr.rel (0) target = $region33
    $region32: #{tpu_custom_call.1} parent=1 // pred_region
      _
    $region33: #{tpu_custom_call.1} parent=1 // pred_fallthru
      _
    // Predicated region
    $region34: #{tpu_custom_call.1} parent=1 // pred_check
      _
    $region35: #{tpu_custom_call.1} parent=1 // pred_check_branch
      %82 = sbr.rel (0) target = $region37
    $region36: #{tpu_custom_call.1} parent=1 // pred_region
      %s84 = ssub.s32 1536, 1536
      %85 = vsyncadd [#allocation10], %s84
      %s86 = sshll.u32 [#allocation11], 4
      %s87 = int_to_ptr.vmem [resolvable:$true] %s86
      %92 = dma.hbm_to_vmem [thread:$0]  %s8, 1536, %s87, [#allocation10], 128, 128, 8
    $region37: #{tpu_custom_call.1} parent=1 // pred_fallthru
      _
    // Predicated region
    $region38: #{tpu_custom_call.1} parent=1 // pred_check
      _
    $region39: #{tpu_custom_call.1} parent=1 // pred_check_branch
      %94 = sbr.rel (0) target = $region41
    $region40: #{tpu_custom_call.1} parent=1 // pred_region
      %s96 = ssub.s32 1536, 1536
      %97 = vsyncadd [#allocation13], %s96
      %s98 = sshll.u32 [#allocation12], 4
      %s99 = int_to_ptr.vmem [resolvable:$true] %s98
      %104 = dma.hbm_to_vmem [thread:$0]  %s9, 1536, %s99, [#allocation13], 128, 128, 8
    $region41: #{tpu_custom_call.1} parent=1 // pred_fallthru
      _
    // Predicated region
    $region42: #{tpu_custom_call.1} parent=1 // pred_check
      _
    $region43: #{tpu_custom_call.1} parent=1 // pred_check_branch
      %106 = sbr.rel (0) target = $region45
    $region44: #{tpu_custom_call.1} parent=1 // pred_region
      _
    $region45: #{tpu_custom_call.1} parent=1 // pred_fallthru
      _
    // Predicated region
    $region46: #{tpu_custom_call.1} parent=1 // pred_check
      _
    $region47: #{tpu_custom_call.1} parent=1 // pred_check_branch
      %108 = sbr.rel (0) target = $region49
    $region48: #{tpu_custom_call.1} parent=1 // pred_region
      _
    $region49: #{tpu_custom_call.1} parent=1 // pred_fallthru
      _
    // Predicated region
    $region50: #{tpu_custom_call.1} parent=1 // pred_check
      _
    $region51: #{tpu_custom_call.1} parent=1 // pred_check_branch
      %110 = sbr.rel (0) target = $region53
    $region52: #{tpu_custom_call.1} parent=1 // pred_region
      _
    $region53: #{tpu_custom_call.1} parent=1 // pred_fallthru
      _
    // Predicated region
    $region54: #{tpu_custom_call.1} parent=1 // pred_check
      _
    $region55: #{tpu_custom_call.1} parent=1 // pred_check_branch
      %112 = sbr.rel (0) target = $region57
    $region56: #{tpu_custom_call.1} parent=1 // pred_region
      _
    $region57: #{tpu_custom_call.1} parent=1 // pred_fallthru
      _
    // Predicated region
    $region58: #{tpu_custom_call.1} parent=1 // pred_check
      _
    $region59: #{tpu_custom_call.1} parent=1 // pred_check_branch
      %114 = sbr.rel (0) target = $region61
    $region60: #{tpu_custom_call.1} parent=1 // pred_region
      _
    $region61: #{tpu_custom_call.1} parent=1 // pred_fallthru
      _
    // Predicated region
    $region62: #{tpu_custom_call.1} parent=1 // pred_check
      _
    $region63: #{tpu_custom_call.1} parent=1 // pred_check_branch
      %116 = sbr.rel (0) target = $region65
    $region64: #{tpu_custom_call.1} parent=1 // pred_region
      _
    $region65: #{tpu_custom_call.1} parent=1 // pred_fallthru
      _
    // Predicated region
    $region66: #{tpu_custom_call.1} parent=1 // pred_check
      _
    $region67: #{tpu_custom_call.1} parent=1 // pred_check_branch
      %118 = sbr.rel (0) target = $region69
    $region68: #{tpu_custom_call.1} parent=1 // pred_region
      _
    $region69: #{tpu_custom_call.1} parent=1 // pred_fallthru
      _
    // Predicated region
    $region70: #{tpu_custom_call.1} parent=1 // pred_check
      _
    $region71: #{tpu_custom_call.1} parent=1 // pred_check_branch
      %120 = sbr.rel (0) target = $region73
    $region72: #{tpu_custom_call.1} parent=1 // pred_region
      %121 = dma.done [#allocation4], 128
    $region73: #{tpu_custom_call.1} parent=1 // pred_fallthru
      _
    // Predicated region
    $region74: #{tpu_custom_call.1} parent=1 // pred_check
      _
    $region75: #{tpu_custom_call.1} parent=1 // pred_check_branch
      %123 = sbr.rel (0) target = $region77
    $region76: #{tpu_custom_call.1} parent=1 // pred_region
      %124 = dma.done [#allocation7], 128
    $region77: #{tpu_custom_call.1} parent=1 // pred_fallthru
      _
    // Predicated region
    $region78: #{tpu_custom_call.1} parent=1 // pred_check
      _
    $region79: #{tpu_custom_call.1} parent=1 // pred_check_branch
      %126 = sbr.rel (0) target = $region81
    $region80: #{tpu_custom_call.1} parent=1 // pred_region
      %127 = dma.done [#allocation7], 1536
    $region81: #{tpu_custom_call.1} parent=1 // pred_fallthru
      _
    // Predicated region
    $region82: #{tpu_custom_call.1} parent=1 // pred_check
      _
    $region83: #{tpu_custom_call.1} parent=1 // pred_check_branch
      %129 = sbr.rel (0) target = $region85
    $region84: #{tpu_custom_call.1} parent=1 // pred_region
      %130 = dma.done [#allocation10], 1536
    $region85: #{tpu_custom_call.1} parent=1 // pred_fallthru
      _
    // Predicated region
    $region86: #{tpu_custom_call.1} parent=1 // pred_check
      _
    $region87: #{tpu_custom_call.1} parent=1 // pred_check_branch
      %132 = sbr.rel (0) target = $region89
    $region88: #{tpu_custom_call.1} parent=1 // pred_region
      %133 = dma.done [#allocation10], 1536
    $region89: #{tpu_custom_call.1} parent=1 // pred_fallthru
      _
    // Predicated region
    $region90: #{tpu_custom_call.1} parent=1 // pred_check
      _
    $region91: #{tpu_custom_call.1} parent=1 // pred_check_branch
      %135 = sbr.rel (0) target = $region93
    $region92: #{tpu_custom_call.1} parent=1 // pred_region
      %136 = dma.done [#allocation13], 1536
    $region93: #{tpu_custom_call.1} parent=1 // pred_fallthru
      _
    %v138 = vld [vmem:[#allocation3] sm:$0xff]
    %v139 = vld [vmem:[#allocation6] sm:$0xff]
    %v140 = vld [vmem:[%s2] sm:$0xf]
    %v141 = vld [vmem:[%s2 + $0x4] sm:$0xf]
    %v142 = vld [vmem:[%s2 + $0x8] sm:$0xf]
    %v143 = vld [vmem:[%s2 + $0xc] sm:$0xf]
    %v144 = vld [vmem:[%s3] sm:$0xf]
    %v145 = vld [vmem:[%s4] sm:$0xff]
    %v146 = vld [vmem:[%s4 + $0x8] sm:$0xff]
    %v147 = vld [vmem:[%s4 + $0x10] sm:$0xff]
    %v148 = vld [vmem:[%s4 + $0x18] sm:$0xff]
    %vm149 = vcmp.ne.f32.partialorder %v145, 0.0
    %vm150 = vcmp.ne.f32.partialorder %v146, 0.0
    %vm151 = vcmp.ne.f32.partialorder %v147, 0.0
    %vm152 = vcmp.ne.f32.partialorder %v148, 0.0
    %v153 = vld [vmem:[#allocation8] sm:$0xff]
    %v154 = vld [vmem:[#allocation8 + $0x8] sm:$0xff]
    %v155 = vld [vmem:[#allocation8 + $0x10] sm:$0xff]
    %v156 = vld [vmem:[#allocation8 + $0x18] sm:$0xff]
    %s157 = scalar_lea.vmem [#allocation8], 32
    %v158 = vld [vmem:[%s157] sm:$0xff]
    %v159 = vld [vmem:[%s157 + $0x8] sm:$0xff]
    %v160 = vld [vmem:[%s157 + $0x10] sm:$0xff]
    %v161 = vld [vmem:[%s157 + $0x18] sm:$0xff]
    %s162 = scalar_lea.vmem [#allocation8], 64
    %v163 = vld [vmem:[%s162] sm:$0xff]
    %v164 = vld [vmem:[%s162 + $0x8] sm:$0xff]
    %v165 = vld [vmem:[%s162 + $0x10] sm:$0xff]
    %v166 = vld [vmem:[%s162 + $0x18] sm:$0xff]
    %v167 = vld [vmem:[#allocation9] sm:$0xff]
    %v168 = vld [vmem:[#allocation9 + $0x8] sm:$0xff]
    %v169 = vld [vmem:[#allocation9 + $0x10] sm:$0xff]
    %v170 = vld [vmem:[#allocation9 + $0x18] sm:$0xff]
    %s171 = scalar_lea.vmem [#allocation9], 32
    %v172 = vld [vmem:[%s171] sm:$0xff]
    %v173 = vld [vmem:[%s171 + $0x8] sm:$0xff]
    %v174 = vld [vmem:[%s171 + $0x10] sm:$0xff]
    %v175 = vld [vmem:[%s171 + $0x18] sm:$0xff]
    %s176 = scalar_lea.vmem [#allocation9], 64
    %v177 = vld [vmem:[%s176] sm:$0xff]
    %v178 = vld [vmem:[%s176 + $0x8] sm:$0xff]
    %v179 = vld [vmem:[%s176 + $0x10] sm:$0xff]
    %v180 = vld [vmem:[%s176 + $0x18] sm:$0xff]
    %v181 = vld [vmem:[#allocation11] sm:$0xff]
    %v182 = vld [vmem:[#allocation11 + $0x8] sm:$0xff]
    %v183 = vld [vmem:[#allocation11 + $0x10] sm:$0xff]
    %v184 = vld [vmem:[#allocation11 + $0x18] sm:$0xff]
    %s185 = scalar_lea.vmem [#allocation11], 32
    %v186 = vld [vmem:[%s185] sm:$0xff]
    %v187 = vld [vmem:[%s185 + $0x8] sm:$0xff]
    %v188 = vld [vmem:[%s185 + $0x10] sm:$0xff]
    %v189 = vld [vmem:[%s185 + $0x18] sm:$0xff]
    %s190 = scalar_lea.vmem [#allocation11], 64
    %v191 = vld [vmem:[%s190] sm:$0xff]
    %v192 = vld [vmem:[%s190 + $0x8] sm:$0xff]
    %v193 = vld [vmem:[%s190 + $0x10] sm:$0xff]
    %v194 = vld [vmem:[%s190 + $0x18] sm:$0xff]
    %v195 = vld [vmem:[#allocation12] sm:$0xff]
    %v196 = vld [vmem:[#allocation12 + $0x8] sm:$0xff]
    %v197 = vld [vmem:[#allocation12 + $0x10] sm:$0xff]
    %v198 = vld [vmem:[#allocation12 + $0x18] sm:$0xff]
    %s199 = scalar_lea.vmem [#allocation12], 32
    %v200 = vld [vmem:[%s199] sm:$0xff]
    %v201 = vld [vmem:[%s199 + $0x8] sm:$0xff]
    %v202 = vld [vmem:[%s199 + $0x10] sm:$0xff]
    %v203 = vld [vmem:[%s199 + $0x18] sm:$0xff]
    %s204 = scalar_lea.vmem [#allocation12], 64
    %v205 = vld [vmem:[%s204] sm:$0xff]
    %v206 = vld [vmem:[%s204 + $0x8] sm:$0xff]
    %v207 = vld [vmem:[%s204 + $0x10] sm:$0xff]
    %v208 = vld [vmem:[%s204 + $0x18] sm:$0xff]
    %v209 = vld [vmem:[%s7] sm:$0x1]
    %v210 = vlaneseq
    %v211 = vshrl.u32 %v210, 7
    %v212 = vsub.s32 0, %v211
    %v213 = vrot.slane %v209, %v212
    %v214 = vld [vmem:[%s7 + $0x1] sm:$0x1]
    %v215 = vlaneseq
    %v216 = vshrl.u32 %v215, 7
    %v217 = vsub.s32 0, %v216
    %v218 = vrot.slane %v214, %v217
    %v219 = vld [vmem:[%s7 + $0x2] sm:$0x1]
    %v220 = vlaneseq
    %v221 = vshrl.u32 %v220, 7
    %v222 = vsub.s32 0, %v221
    %v223 = vrot.slane %v219, %v222
    %v224 = vld [vmem:[%s7 + $0x3] sm:$0x1]
    %v225 = vlaneseq
    %v226 = vshrl.u32 %v225, 7
    %v227 = vsub.s32 0, %v226
    %v228 = vrot.slane %v224, %v227
    %v229 = vld [vmem:[%s10] sm:$0x1]
    %v230 = vlaneseq
    %v231 = vshrl.u32 %v230, 7
    %v232 = vsub.s32 0, %v231
    %v233 = vrot.slane %v229, %v232
    %v234 = vld [vmem:[%s10 + $0x1] sm:$0x1]
    %v235 = vlaneseq
    %v236 = vshrl.u32 %v235, 7
    %v237 = vsub.s32 0, %v236
    %v238 = vrot.slane %v234, %v237
    %v239 = vld [vmem:[%s10 + $0x2] sm:$0x1]
    %v240 = vlaneseq
    %v241 = vshrl.u32 %v240, 7
    %v242 = vsub.s32 0, %v241
    %v243 = vrot.slane %v239, %v242
    %v244 = vld [vmem:[%s10 + $0x3] sm:$0x1]
    %v245 = vlaneseq
    %v246 = vshrl.u32 %v245, 7
    %v247 = vsub.s32 0, %v246
    %v248 = vrot.slane %v244, %v247
    %vm249 = vcmask 261120
    %v251 = vsel %vm249, %v139, 0
    %253 = vmatprep.subr.mxu0 0.0
    %254 = vmatpush1.msra.mxu0 %v153
    %255 = vmatprep.subr.mxu0 0.0
    %256 = vmatpush1.msra.mxu0 %v154
    %257 = vmatprep.subr.mxu0 0.0
    %258 = vmatpush1.msra.mxu0 %v155
    %259 = vmatprep.subr.mxu0 0.0
    %260 = vmatpush1.msra.mxu0 %v156
    %261 = vmatprep.subr.mxu0 0.0
    %262 = vmatpush1.msra.mxu0 0.0
    %263 = vmatprep.subr.mxu0 0.0
    %264 = vmatpush1.msra.mxu0 0.0
    %265 = vmatprep.subr.mxu0 0.0
    %266 = vmatpush1.msra.mxu0 0.0
    %267 = vmatprep.subr.mxu0 0.0
    %268 = vmatpush1.msra.mxu0 0.0
    %269 = vmatprep.subr.mxu0 0.0
    %270 = vmatpush1.msra.mxu0 0.0
    %271 = vmatprep.subr.mxu0 0.0
    %272 = vmatpush1.msra.mxu0 0.0
    %273 = vmatprep.subr.mxu0 0.0
    %274 = vmatpush1.msra.mxu0 0.0
    %275 = vmatprep.subr.mxu0 0.0
    %276 = vmatpush1.msra.mxu0 0.0
    %277 = vmatprep.subr.mxu0 0.0
    %278 = vmatpush1.msra.mxu0 0.0
    %279 = vmatprep.subr.mxu0 0.0
    %280 = vmatpush1.msra.mxu0 0.0
    %281 = vmatprep.subr.mxu0 0.0
    %282 = vmatpush1.msra.mxu0 0.0
    %283 = vmatprep.subr.mxu0 0.0
    %284 = vmatpush1.msra.mxu0 0.0
    %285 = vmatprep.subr.mxu0 0.0
    %286 = vmatpush1.msra.mxu0 0.0
    %287 = vmatprep.subr.mxu0 0.0
    %288 = vmatpush1.msra.mxu0 0.0
    %289 = vmatprep.subr.mxu0 0.0
    %290 = vmatpush1.msra.mxu0 0.0
    %291 = vmatprep.subr.mxu0 0.0
    %292 = vmatpush1.msra.mxu0 0.0
    %293 = vmatprep.subr.mxu0 0.0
    %294 = vmatpush1.msra.mxu0 0.0
    %295 = vmatprep.subr.mxu0 0.0
    %296 = vmatpush1.msra.mxu0 0.0
    %297 = vmatprep.subr.mxu0 0.0
    %298 = vmatpush1.msra.mxu0 0.0
    %299 = vmatprep.subr.mxu0 0.0
    %300 = vmatpush1.msra.mxu0 0.0
    %301 = vmatprep.subr.mxu0 0.0
    %302 = vmatpush1.msra.mxu0 0.0
    %303 = vmatprep.subr.mxu0 0.0
    %304 = vmatpush1.msra.mxu0 0.0
    %305 = vmatprep.subr.mxu0 0.0
    %306 = vmatpush1.msra.mxu0 0.0
    %307 = vmatprep.subr.mxu0 0.0
    %308 = vmatpush1.msra.mxu0 0.0
    %309 = vmatprep.subr.mxu0 0.0
    %310 = vmatpush1.msra.mxu0 0.0
    %311 = vmatprep.subr.mxu0 0.0
    %312 = vmatpush1.msra.mxu0 0.0
    %313 = vmatprep.subr.mxu0 0.0
    %314 = vmatpush1.msra.mxu0 0.0
    %315 = vmatprep.subr.mxu0 0.0
    %316 = vmatpush1.msra.mxu0 0.0
    %317 = vmatprep.mubr.f32.mxu0 0.0
    %318 = vmatmul.mubr.f32.gmra.mrb[0].mxu0 %v251
    %v319 = vpop.f32.mrb[0].mxu0
    %v320 = vadd.f32 0.0, %v319
    %v321 = vpop.f32.mrb[0].mxu0
    %322 = vdwg.mxu0
    %v323 = vpack.c.bf16 %v320, %v320
    %v328 = vunpack.c.l.b16 %v140
    %v329 = vunpack.c.l.b16 %v141
    %v330 = vunpack.c.l.b16 %v142
    %v331 = vunpack.c.l.b16 %v143
    %v332 = vpack.c.b16 %v329, %v328
    %v333 = vpack.c.b16 %v331, %v330
    %vm334 = vcmask 64512
    %v336 = vsel %vm334, %v332, 0
    %v339 = vsel %vm334, %v333, 0
    %vm341 = vcmask 1043456
    %v343 = vsel %vm341, %v323, 0
    %345 = vmatprep.subr.bf16.mxu0 0
    %346 = vmatpush1.bf16.msra.mxu0 %v343
    %347 = vmatprep.subr.bf16.mxu0 0
    %348 = vmatpush1.bf16.msra.mxu0 0
    %349 = vmatprep.subr.bf16.mxu0 0
    %350 = vmatpush1.bf16.msra.mxu0 0
    %351 = vmatprep.subr.bf16.mxu0 0
    %352 = vmatpush1.bf16.msra.mxu0 0
    %353 = vmatprep.subr.bf16.mxu0 0
    %354 = vmatpush1.bf16.msra.mxu0 0
    %355 = vmatprep.subr.bf16.mxu0 0
    %356 = vmatpush1.bf16.msra.mxu0 0
    %357 = vmatprep.subr.bf16.mxu0 0
    %358 = vmatpush1.bf16.msra.mxu0 0
    %359 = vmatprep.subr.bf16.mxu0 0
    %360 = vmatpush1.bf16.msra.mxu0 0
    %361 = vmatprep.subr.bf16.mxu0 0
    %362 = vmatpush1.bf16.msra.mxu0 0
    %363 = vmatprep.subr.bf16.mxu0 0
    %364 = vmatpush1.bf16.msra.mxu0 0
    %365 = vmatprep.subr.bf16.mxu0 0
    %366 = vmatpush1.bf16.msra.mxu0 0
    %367 = vmatprep.subr.bf16.mxu0 0
    %368 = vmatpush1.bf16.msra.mxu0 0
    %369 = vmatprep.subr.bf16.mxu0 0
    %370 = vmatpush1.bf16.msra.mxu0 0
    %371 = vmatprep.subr.bf16.mxu0 0
    %372 = vmatpush1.bf16.msra.mxu0 0
    %373 = vmatprep.subr.bf16.mxu0 0
    %374 = vmatpush1.bf16.msra.mxu0 0
    %375 = vmatprep.subr.bf16.mxu0 0
    %376 = vmatpush1.bf16.msra.mxu0 0
    %377 = vmatprep.mubr.bf16.mxu0 0
    %378 = vmatmul.mubr.bf16.gmra.mrb[0].mxu0 %v336
    %v379 = vpop.f32.mrb[0].mxu0
    %v380 = vadd.f32 %v213, %v379
    %v381 = vpop.f32.mrb[0].mxu0
    %v382 = vpop.f32.mrb[0].mxu0
    %v383 = vadd.f32 %v213, %v382
    %v384 = vpop.f32.mrb[0].mxu0
    %385 = vmatprep.mubr.bf16.mxu0 0
    %386 = vmatmul.mubr.bf16.gmra.mrb[0].mxu0 %v339
    %v387 = vpop.f32.mrb[0].mxu0
    %v388 = vadd.f32 %v213, %v387
    %v389 = vpop.f32.mrb[0].mxu0
    %v390 = vpop.f32.mrb[0].mxu0
    %v391 = vadd.f32 %v213, %v390
    %v392 = vpop.f32.mrb[0].mxu0
    %393 = vdwg.mxu0
    %394 = vmatprep.subr.mxu0 0.0
    %395 = vmatpush1.msra.mxu0 %v158
    %396 = vmatprep.subr.mxu0 0.0
    %397 = vmatpush1.msra.mxu0 %v159
    %398 = vmatprep.subr.mxu0 0.0
    %399 = vmatpush1.msra.mxu0 %v160
    %400 = vmatprep.subr.mxu0 0.0
    %401 = vmatpush1.msra.mxu0 %v161
    %402 = vmatprep.subr.mxu0 0.0
    %403 = vmatpush1.msra.mxu0 0.0
    %404 = vmatprep.subr.mxu0 0.0
    %405 = vmatpush1.msra.mxu0 0.0
    %406 = vmatprep.subr.mxu0 0.0
    %407 = vmatpush1.msra.mxu0 0.0
    %408 = vmatprep.subr.mxu0 0.0
    %409 = vmatpush1.msra.mxu0 0.0
    %410 = vmatprep.subr.mxu0 0.0
    %411 = vmatpush1.msra.mxu0 0.0
    %412 = vmatprep.subr.mxu0 0.0
    %413 = vmatpush1.msra.mxu0 0.0
    %414 = vmatprep.subr.mxu0 0.0
    %415 = vmatpush1.msra.mxu0 0.0
    %416 = vmatprep.subr.mxu0 0.0
    %417 = vmatpush1.msra.mxu0 0.0
    %418 = vmatprep.subr.mxu0 0.0
    %419 = vmatpush1.msra.mxu0 0.0
    %420 = vmatprep.subr.mxu0 0.0
    %421 = vmatpush1.msra.mxu0 0.0
    %422 = vmatprep.subr.mxu0 0.0
    %423 = vmatpush1.msra.mxu0 0.0
    %424 = vmatprep.subr.mxu0 0.0
    %425 = vmatpush1.msra.mxu0 0.0
    %426 = vmatprep.subr.mxu0 0.0
    %427 = vmatpush1.msra.mxu0 0.0
    %428 = vmatprep.subr.mxu0 0.0
    %429 = vmatpush1.msra.mxu0 0.0
    %430 = vmatprep.subr.mxu0 0.0
    %431 = vmatpush1.msra.mxu0 0.0
    %432 = vmatprep.subr.mxu0 0.0
    %433 = vmatpush1.msra.mxu0 0.0
    %434 = vmatprep.subr.mxu0 0.0
    %435 = vmatpush1.msra.mxu0 0.0
    %436 = vmatprep.subr.mxu0 0.0
    %437 = vmatpush1.msra.mxu0 0.0
    %438 = vmatprep.subr.mxu0 0.0
    %439 = vmatpush1.msra.mxu0 0.0
    %440 = vmatprep.subr.mxu0 0.0
    %441 = vmatpush1.msra.mxu0 0.0
    %442 = vmatprep.subr.mxu0 0.0
    %443 = vmatpush1.msra.mxu0 0.0
    %444 = vmatprep.subr.mxu0 0.0
    %445 = vmatpush1.msra.mxu0 0.0
    %446 = vmatprep.subr.mxu0 0.0
    %447 = vmatpush1.msra.mxu0 0.0
    %448 = vmatprep.subr.mxu0 0.0
    %449 = vmatpush1.msra.mxu0 0.0
    %450 = vmatprep.subr.mxu0 0.0
    %451 = vmatpush1.msra.mxu0 0.0
    %452 = vmatprep.subr.mxu0 0.0
    %453 = vmatpush1.msra.mxu0 0.0
    %454 = vmatprep.subr.mxu0 0.0
    %455 = vmatpush1.msra.mxu0 0.0
    %456 = vmatprep.subr.mxu0 0.0
    %457 = vmatpush1.msra.mxu0 0.0
    %458 = vmatprep.mubr.f32.mxu0 0.0
    %459 = vmatmul.mubr.f32.gmra.mrb[0].mxu0 %v251
    %v460 = vpop.f32.mrb[0].mxu0
    %v461 = vadd.f32 0.0, %v460
    %v462 = vpop.f32.mrb[0].mxu0
    %463 = vdwg.mxu0
    %v464 = vpack.c.bf16 %v461, %v461
    %v466 = vsel %vm341, %v464, 0
    %468 = vmatprep.subr.bf16.mxu0 0
    %469 = vmatpush1.bf16.msra.mxu0 %v466
    %470 = vmatprep.subr.bf16.mxu0 0
    %471 = vmatpush1.bf16.msra.mxu0 0
    %472 = vmatprep.subr.bf16.mxu0 0
    %473 = vmatpush1.bf16.msra.mxu0 0
    %474 = vmatprep.subr.bf16.mxu0 0
    %475 = vmatpush1.bf16.msra.mxu0 0
    %476 = vmatprep.subr.bf16.mxu0 0
    %477 = vmatpush1.bf16.msra.mxu0 0
    %478 = vmatprep.subr.bf16.mxu0 0
    %479 = vmatpush1.bf16.msra.mxu0 0
    %480 = vmatprep.subr.bf16.mxu0 0
    %481 = vmatpush1.bf16.msra.mxu0 0
    %482 = vmatprep.subr.bf16.mxu0 0
    %483 = vmatpush1.bf16.msra.mxu0 0
    %484 = vmatprep.subr.bf16.mxu0 0
    %485 = vmatpush1.bf16.msra.mxu0 0
    %486 = vmatprep.subr.bf16.mxu0 0
    %487 = vmatpush1.bf16.msra.mxu0 0
    %488 = vmatprep.subr.bf16.mxu0 0
    %489 = vmatpush1.bf16.msra.mxu0 0
    %490 = vmatprep.subr.bf16.mxu0 0
    %491 = vmatpush1.bf16.msra.mxu0 0
    %492 = vmatprep.subr.bf16.mxu0 0
    %493 = vmatpush1.bf16.msra.mxu0 0
    %494 = vmatprep.subr.bf16.mxu0 0
    %495 = vmatpush1.bf16.msra.mxu0 0
    %496 = vmatprep.subr.bf16.mxu0 0
    %497 = vmatpush1.bf16.msra.mxu0 0
    %498 = vmatprep.subr.bf16.mxu0 0
    %499 = vmatpush1.bf16.msra.mxu0 0
    %500 = vmatprep.mubr.bf16.mxu0 0
    %501 = vmatmul.mubr.bf16.gmra.mrb[0].mxu0 %v336
    %v502 = vpop.f32.mrb[0].mxu0
    %v503 = vadd.f32 %v218, %v502
    %v504 = vpop.f32.mrb[0].mxu0
    %v505 = vpop.f32.mrb[0].mxu0
    %v506 = vadd.f32 %v218, %v505
    %v507 = vpop.f32.mrb[0].mxu0
    %508 = vmatprep.mubr.bf16.mxu0 0
    %509 = vmatmul.mubr.bf16.gmra.mrb[0].mxu0 %v339
    %v510 = vpop.f32.mrb[0].mxu0
    %v511 = vadd.f32 %v218, %v510
    %v512 = vpop.f32.mrb[0].mxu0
    %v513 = vpop.f32.mrb[0].mxu0
    %v514 = vadd.f32 %v218, %v513
    %v515 = vpop.f32.mrb[0].mxu0
    %516 = vdwg.mxu0
    %517 = vmatprep.subr.mxu0 0.0
    %518 = vmatpush1.msra.mxu0 %v163
    %519 = vmatprep.subr.mxu0 0.0
    %520 = vmatpush1.msra.mxu0 %v164
    %521 = vmatprep.subr.mxu0 0.0
    %522 = vmatpush1.msra.mxu0 %v165
    %523 = vmatprep.subr.mxu0 0.0
    %524 = vmatpush1.msra.mxu0 %v166
    %525 = vmatprep.subr.mxu0 0.0
    %526 = vmatpush1.msra.mxu0 0.0
    %527 = vmatprep.subr.mxu0 0.0
    %528 = vmatpush1.msra.mxu0 0.0
    %529 = vmatprep.subr.mxu0 0.0
    %530 = vmatpush1.msra.mxu0 0.0
    %531 = vmatprep.subr.mxu0 0.0
    %532 = vmatpush1.msra.mxu0 0.0
    %533 = vmatprep.subr.mxu0 0.0
    %534 = vmatpush1.msra.mxu0 0.0
    %535 = vmatprep.subr.mxu0 0.0
    %536 = vmatpush1.msra.mxu0 0.0
    %537 = vmatprep.subr.mxu0 0.0
    %538 = vmatpush1.msra.mxu0 0.0
    %539 = vmatprep.subr.mxu0 0.0
    %540 = vmatpush1.msra.mxu0 0.0
    %541 = vmatprep.subr.mxu0 0.0
    %542 = vmatpush1.msra.mxu0 0.0
    %543 = vmatprep.subr.mxu0 0.0
    %544 = vmatpush1.msra.mxu0 0.0
    %545 = vmatprep.subr.mxu0 0.0
    %546 = vmatpush1.msra.mxu0 0.0
    %547 = vmatprep.subr.mxu0 0.0
    %548 = vmatpush1.msra.mxu0 0.0
    %549 = vmatprep.subr.mxu0 0.0
    %550 = vmatpush1.msra.mxu0 0.0
    %551 = vmatprep.subr.mxu0 0.0
    %552 = vmatpush1.msra.mxu0 0.0
    %553 = vmatprep.subr.mxu0 0.0
    %554 = vmatpush1.msra.mxu0 0.0
    %555 = vmatprep.subr.mxu0 0.0
    %556 = vmatpush1.msra.mxu0 0.0
    %557 = vmatprep.subr.mxu0 0.0
    %558 = vmatpush1.msra.mxu0 0.0
    %559 = vmatprep.subr.mxu0 0.0
    %560 = vmatpush1.msra.mxu0 0.0
    %561 = vmatprep.subr.mxu0 0.0
    %562 = vmatpush1.msra.mxu0 0.0
    %563 = vmatprep.subr.mxu0 0.0
    %564 = vmatpush1.msra.mxu0 0.0
    %565 = vmatprep.subr.mxu0 0.0
    %566 = vmatpush1.msra.mxu0 0.0
    %567 = vmatprep.subr.mxu0 0.0
    %568 = vmatpush1.msra.mxu0 0.0
    %569 = vmatprep.subr.mxu0 0.0
    %570 = vmatpush1.msra.mxu0 0.0
    %571 = vmatprep.subr.mxu0 0.0
    %572 = vmatpush1.msra.mxu0 0.0
    %573 = vmatprep.subr.mxu0 0.0
    %574 = vmatpush1.msra.mxu0 0.0
    %575 = vmatprep.subr.mxu0 0.0
    %576 = vmatpush1.msra.mxu0 0.0
    %577 = vmatprep.subr.mxu0 0.0
    %578 = vmatpush1.msra.mxu0 0.0
    %579 = vmatprep.subr.mxu0 0.0
    %580 = vmatpush1.msra.mxu0 0.0
    %581 = vmatprep.mubr.f32.mxu0 0.0
    %582 = vmatmul.mubr.f32.gmra.mrb[0].mxu0 %v251
    %v583 = vpop.f32.mrb[0].mxu0
    %v584 = vadd.f32 0.0, %v583
    %v585 = vpop.f32.mrb[0].mxu0
    %586 = vdwg.mxu0
    %v587 = vpack.c.bf16 %v584, %v584
    %v589 = vsel %vm341, %v587, 0
    %591 = vmatprep.subr.bf16.mxu0 0
    %592 = vmatpush1.bf16.msra.mxu0 %v589
    %593 = vmatprep.subr.bf16.mxu0 0
    %594 = vmatpush1.bf16.msra.mxu0 0
    %595 = vmatprep.subr.bf16.mxu0 0
    %596 = vmatpush1.bf16.msra.mxu0 0
    %597 = vmatprep.subr.bf16.mxu0 0
    %598 = vmatpush1.bf16.msra.mxu0 0
    %599 = vmatprep.subr.bf16.mxu0 0
    %600 = vmatpush1.bf16.msra.mxu0 0
    %601 = vmatprep.subr.bf16.mxu0 0
    %602 = vmatpush1.bf16.msra.mxu0 0
    %603 = vmatprep.subr.bf16.mxu0 0
    %604 = vmatpush1.bf16.msra.mxu0 0
    %605 = vmatprep.subr.bf16.mxu0 0
    %606 = vmatpush1.bf16.msra.mxu0 0
    %607 = vmatprep.subr.bf16.mxu0 0
    %608 = vmatpush1.bf16.msra.mxu0 0
    %609 = vmatprep.subr.bf16.mxu0 0
    %610 = vmatpush1.bf16.msra.mxu0 0
    %611 = vmatprep.subr.bf16.mxu0 0
    %612 = vmatpush1.bf16.msra.mxu0 0
    %613 = vmatprep.subr.bf16.mxu0 0
    %614 = vmatpush1.bf16.msra.mxu0 0
    %615 = vmatprep.subr.bf16.mxu0 0
    %616 = vmatpush1.bf16.msra.mxu0 0
    %617 = vmatprep.subr.bf16.mxu0 0
    %618 = vmatpush1.bf16.msra.mxu0 0
    %619 = vmatprep.subr.bf16.mxu0 0
    %620 = vmatpush1.bf16.msra.mxu0 0
    %621 = vmatprep.subr.bf16.mxu0 0
    %622 = vmatpush1.bf16.msra.mxu0 0
    %623 = vmatprep.mubr.bf16.mxu0 0
    %624 = vmatmul.mubr.bf16.gmra.mrb[0].mxu0 %v336
    %v625 = vpop.f32.mrb[0].mxu0
    %v626 = vadd.f32 %v223, %v625
    %v627 = vpop.f32.mrb[0].mxu0
    %v628 = vpop.f32.mrb[0].mxu0
    %v629 = vadd.f32 %v223, %v628
    %v630 = vpop.f32.mrb[0].mxu0
    %631 = vmatprep.mubr.bf16.mxu0 0
    %632 = vmatmul.mubr.bf16.gmra.mrb[0].mxu0 %v339
    %v633 = vpop.f32.mrb[0].mxu0
    %v634 = vadd.f32 %v223, %v633
    %v635 = vpop.f32.mrb[0].mxu0
    %v636 = vpop.f32.mrb[0].mxu0
    %v637 = vadd.f32 %v223, %v636
    %v638 = vpop.f32.mrb[0].mxu0
    %639 = vdwg.mxu0
    %v641 = vsel %vm249, %v138, 0
    %643 = vmatprep.subr.mxu0 0.0
    %644 = vmatpush1.msra.mxu0 %v167
    %645 = vmatprep.subr.mxu0 0.0
    %646 = vmatpush1.msra.mxu0 %v168
    %647 = vmatprep.subr.mxu0 0.0
    %648 = vmatpush1.msra.mxu0 %v169
    %649 = vmatprep.subr.mxu0 0.0
    %650 = vmatpush1.msra.mxu0 %v170
    %651 = vmatprep.subr.mxu0 0.0
    %652 = vmatpush1.msra.mxu0 0.0
    %653 = vmatprep.subr.mxu0 0.0
    %654 = vmatpush1.msra.mxu0 0.0
    %655 = vmatprep.subr.mxu0 0.0
    %656 = vmatpush1.msra.mxu0 0.0
    %657 = vmatprep.subr.mxu0 0.0
    %658 = vmatpush1.msra.mxu0 0.0
    %659 = vmatprep.subr.mxu0 0.0
    %660 = vmatpush1.msra.mxu0 0.0
    %661 = vmatprep.subr.mxu0 0.0
    %662 = vmatpush1.msra.mxu0 0.0
    %663 = vmatprep.subr.mxu0 0.0
    %664 = vmatpush1.msra.mxu0 0.0
    %665 = vmatprep.subr.mxu0 0.0
    %666 = vmatpush1.msra.mxu0 0.0
    %667 = vmatprep.subr.mxu0 0.0
    %668 = vmatpush1.msra.mxu0 0.0
    %669 = vmatprep.subr.mxu0 0.0
    %670 = vmatpush1.msra.mxu0 0.0
    %671 = vmatprep.subr.mxu0 0.0
    %672 = vmatpush1.msra.mxu0 0.0
    %673 = vmatprep.subr.mxu0 0.0
    %674 = vmatpush1.msra.mxu0 0.0
    %675 = vmatprep.subr.mxu0 0.0
    %676 = vmatpush1.msra.mxu0 0.0
    %677 = vmatprep.subr.mxu0 0.0
    %678 = vmatpush1.msra.mxu0 0.0
    %679 = vmatprep.subr.mxu0 0.0
    %680 = vmatpush1.msra.mxu0 0.0
    %681 = vmatprep.subr.mxu0 0.0
    %682 = vmatpush1.msra.mxu0 0.0
    %683 = vmatprep.subr.mxu0 0.0
    %684 = vmatpush1.msra.mxu0 0.0
    %685 = vmatprep.subr.mxu0 0.0
    %686 = vmatpush1.msra.mxu0 0.0
    %687 = vmatprep.subr.mxu0 0.0
    %688 = vmatpush1.msra.mxu0 0.0
    %689 = vmatprep.subr.mxu0 0.0
    %690 = vmatpush1.msra.mxu0 0.0
    %691 = vmatprep.subr.mxu0 0.0
    %692 = vmatpush1.msra.mxu0 0.0
    %693 = vmatprep.subr.mxu0 0.0
    %694 = vmatpush1.msra.mxu0 0.0
    %695 = vmatprep.subr.mxu0 0.0
    %696 = vmatpush1.msra.mxu0 0.0
    %697 = vmatprep.subr.mxu0 0.0
    %698 = vmatpush1.msra.mxu0 0.0
    %699 = vmatprep.subr.mxu0 0.0
    %700 = vmatpush1.msra.mxu0 0.0
    %701 = vmatprep.subr.mxu0 0.0
    %702 = vmatpush1.msra.mxu0 0.0
    %703 = vmatprep.subr.mxu0 0.0
    %704 = vmatpush1.msra.mxu0 0.0
    %705 = vmatprep.subr.mxu0 0.0
    %706 = vmatpush1.msra.mxu0 0.0
    %707 = vmatprep.mubr.f32.mxu0 0.0
    %708 = vmatmul.mubr.f32.gmra.mrb[0].mxu0 %v641
    %v709 = vpop.f32.mrb[0].mxu0
    %v710 = vadd.f32 0.0, %v709
    %v711 = vpop.f32.mrb[0].mxu0
    %712 = vdwg.mxu0
    %v713 = vadd.f32 %v380, %v710
    %v714 = vxor.u32 %v713, 2147483648
    %v715 = vmul.f32 %v714, 1.442695
    %v716 = vpow.pop %v715
    %v717 = vadd.f32 %v716, 1.0
    %v718 = vrcp.pop %v717
    %v719 = vmul.f32 1.0, %v718
    %720 = vmatprep.subr.mxu0 0.0
    %721 = vmatpush1.msra.mxu0 %v172
    %722 = vmatprep.subr.mxu0 0.0
    %723 = vmatpush1.msra.mxu0 %v173
    %724 = vmatprep.subr.mxu0 0.0
    %725 = vmatpush1.msra.mxu0 %v174
    %726 = vmatprep.subr.mxu0 0.0
    %727 = vmatpush1.msra.mxu0 %v175
    %728 = vmatprep.subr.mxu0 0.0
    %729 = vmatpush1.msra.mxu0 0.0
    %730 = vmatprep.subr.mxu0 0.0
    %731 = vmatpush1.msra.mxu0 0.0
    %732 = vmatprep.subr.mxu0 0.0
    %733 = vmatpush1.msra.mxu0 0.0
    %734 = vmatprep.subr.mxu0 0.0
    %735 = vmatpush1.msra.mxu0 0.0
    %736 = vmatprep.subr.mxu0 0.0
    %737 = vmatpush1.msra.mxu0 0.0
    %738 = vmatprep.subr.mxu0 0.0
    %739 = vmatpush1.msra.mxu0 0.0
    %740 = vmatprep.subr.mxu0 0.0
    %741 = vmatpush1.msra.mxu0 0.0
    %742 = vmatprep.subr.mxu0 0.0
    %743 = vmatpush1.msra.mxu0 0.0
    %744 = vmatprep.subr.mxu0 0.0
    %745 = vmatpush1.msra.mxu0 0.0
    %746 = vmatprep.subr.mxu0 0.0
    %747 = vmatpush1.msra.mxu0 0.0
    %748 = vmatprep.subr.mxu0 0.0
    %749 = vmatpush1.msra.mxu0 0.0
    %750 = vmatprep.subr.mxu0 0.0
    %751 = vmatpush1.msra.mxu0 0.0
    %752 = vmatprep.subr.mxu0 0.0
    %753 = vmatpush1.msra.mxu0 0.0
    %754 = vmatprep.subr.mxu0 0.0
    %755 = vmatpush1.msra.mxu0 0.0
    %756 = vmatprep.subr.mxu0 0.0
    %757 = vmatpush1.msra.mxu0 0.0
    %758 = vmatprep.subr.mxu0 0.0
    %759 = vmatpush1.msra.mxu0 0.0
    %760 = vmatprep.subr.mxu0 0.0
    %761 = vmatpush1.msra.mxu0 0.0
    %762 = vmatprep.subr.mxu0 0.0
    %763 = vmatpush1.msra.mxu0 0.0
    %764 = vmatprep.subr.mxu0 0.0
    %765 = vmatpush1.msra.mxu0 0.0
    %766 = vmatprep.subr.mxu0 0.0
    %767 = vmatpush1.msra.mxu0 0.0
    %768 = vmatprep.subr.mxu0 0.0
    %769 = vmatpush1.msra.mxu0 0.0
    %770 = vmatprep.subr.mxu0 0.0
    %771 = vmatpush1.msra.mxu0 0.0
    %772 = vmatprep.subr.mxu0 0.0
    %773 = vmatpush1.msra.mxu0 0.0
    %774 = vmatprep.subr.mxu0 0.0
    %775 = vmatpush1.msra.mxu0 0.0
    %776 = vmatprep.subr.mxu0 0.0
    %777 = vmatpush1.msra.mxu0 0.0
    %778 = vmatprep.subr.mxu0 0.0
    %779 = vmatpush1.msra.mxu0 0.0
    %780 = vmatprep.subr.mxu0 0.0
    %781 = vmatpush1.msra.mxu0 0.0
    %782 = vmatprep.subr.mxu0 0.0
    %783 = vmatpush1.msra.mxu0 0.0
    %784 = vmatprep.mubr.f32.mxu0 0.0
    %785 = vmatmul.mubr.f32.gmra.mrb[0].mxu0 %v641
    %v786 = vpop.f32.mrb[0].mxu0
    %v787 = vadd.f32 0.0, %v786
    %v788 = vpop.f32.mrb[0].mxu0
    %789 = vdwg.mxu0
    %v790 = vadd.f32 %v503, %v787
    %v791 = vxor.u32 %v790, 2147483648
    %v792 = vmul.f32 %v791, 1.442695
    %v793 = vpow.pop %v792
    %v794 = vadd.f32 %v793, 1.0
    %v795 = vrcp.pop %v794
    %v796 = vmul.f32 1.0, %v795
    %797 = vmatprep.subr.mxu0 0.0
    %798 = vmatpush1.msra.mxu0 %v177
    %799 = vmatprep.subr.mxu0 0.0
    %800 = vmatpush1.msra.mxu0 %v178
    %801 = vmatprep.subr.mxu0 0.0
    %802 = vmatpush1.msra.mxu0 %v179
    %803 = vmatprep.subr.mxu0 0.0
    %804 = vmatpush1.msra.mxu0 %v180
    %805 = vmatprep.subr.mxu0 0.0
    %806 = vmatpush1.msra.mxu0 0.0
    %807 = vmatprep.subr.mxu0 0.0
    %808 = vmatpush1.msra.mxu0 0.0
    %809 = vmatprep.subr.mxu0 0.0
    %810 = vmatpush1.msra.mxu0 0.0
    %811 = vmatprep.subr.mxu0 0.0
    %812 = vmatpush1.msra.mxu0 0.0
    %813 = vmatprep.subr.mxu0 0.0
    %814 = vmatpush1.msra.mxu0 0.0
    %815 = vmatprep.subr.mxu0 0.0
    %816 = vmatpush1.msra.mxu0 0.0
    %817 = vmatprep.subr.mxu0 0.0
    %818 = vmatpush1.msra.mxu0 0.0
    %819 = vmatprep.subr.mxu0 0.0
    %820 = vmatpush1.msra.mxu0 0.0
    %821 = vmatprep.subr.mxu0 0.0
    %822 = vmatpush1.msra.mxu0 0.0
    %823 = vmatprep.subr.mxu0 0.0
    %824 = vmatpush1.msra.mxu0 0.0
    %825 = vmatprep.subr.mxu0 0.0
    %826 = vmatpush1.msra.mxu0 0.0
    %827 = vmatprep.subr.mxu0 0.0
    %828 = vmatpush1.msra.mxu0 0.0
    %829 = vmatprep.subr.mxu0 0.0
    %830 = vmatpush1.msra.mxu0 0.0
    %831 = vmatprep.subr.mxu0 0.0
    %832 = vmatpush1.msra.mxu0 0.0
    %833 = vmatprep.subr.mxu0 0.0
    %834 = vmatpush1.msra.mxu0 0.0
    %835 = vmatprep.subr.mxu0 0.0
    %836 = vmatpush1.msra.mxu0 0.0
    %837 = vmatprep.subr.mxu0 0.0
    %838 = vmatpush1.msra.mxu0 0.0
    %839 = vmatprep.subr.mxu0 0.0
    %840 = vmatpush1.msra.mxu0 0.0
    %841 = vmatprep.subr.mxu0 0.0
    %842 = vmatpush1.msra.mxu0 0.0
    %843 = vmatprep.subr.mxu0 0.0
    %844 = vmatpush1.msra.mxu0 0.0
    %845 = vmatprep.subr.mxu0 0.0
    %846 = vmatpush1.msra.mxu0 0.0
    %847 = vmatprep.subr.mxu0 0.0
    %848 = vmatpush1.msra.mxu0 0.0
    %849 = vmatprep.subr.mxu0 0.0
    %850 = vmatpush1.msra.mxu0 0.0
    %851 = vmatprep.subr.mxu0 0.0
    %852 = vmatpush1.msra.mxu0 0.0
    %853 = vmatprep.subr.mxu0 0.0
    %854 = vmatpush1.msra.mxu0 0.0
    %855 = vmatprep.subr.mxu0 0.0
    %856 = vmatpush1.msra.mxu0 0.0
    %857 = vmatprep.subr.mxu0 0.0
    %858 = vmatpush1.msra.mxu0 0.0
    %859 = vmatprep.subr.mxu0 0.0
    %860 = vmatpush1.msra.mxu0 0.0
    %861 = vmatprep.mubr.f32.mxu0 0.0
    %862 = vmatmul.mubr.f32.gmra.mrb[0].mxu0 %v641
    %v863 = vpop.f32.mrb[0].mxu0
    %v864 = vadd.f32 %v228, %v863
    %v865 = vpop.f32.mrb[0].mxu0
    %866 = vdwg.mxu0
    %v867 = vmul.f32 %v719, %v864
    %v868 = vadd.f32 %v626, %v867
    %v869 = vtanh.pop %v868
    %v870 = vsub.f32 1.0, %v796
    %v871 = vmul.f32 %v870, %v869
    %v872 = vmul.f32 %v796, %v138
    %v873 = vadd.f32 %v871, %v872
    %v874 = vsel %vm149, %v873, %v138
    %v876 = vsel %vm249, %v874, 0
    %878 = vmatprep.subr.mxu0 0.0
    %879 = vmatpush1.msra.mxu0 %v167
    %880 = vmatprep.subr.mxu0 0.0
    %881 = vmatpush1.msra.mxu0 %v168
    %882 = vmatprep.subr.mxu0 0.0
    %883 = vmatpush1.msra.mxu0 %v169
    %884 = vmatprep.subr.mxu0 0.0
    %885 = vmatpush1.msra.mxu0 %v170
    %886 = vmatprep.subr.mxu0 0.0
    %887 = vmatpush1.msra.mxu0 0.0
    %888 = vmatprep.subr.mxu0 0.0
    %889 = vmatpush1.msra.mxu0 0.0
    %890 = vmatprep.subr.mxu0 0.0
    %891 = vmatpush1.msra.mxu0 0.0
    %892 = vmatprep.subr.mxu0 0.0
    %893 = vmatpush1.msra.mxu0 0.0
    %894 = vmatprep.subr.mxu0 0.0
    %895 = vmatpush1.msra.mxu0 0.0
    %896 = vmatprep.subr.mxu0 0.0
    %897 = vmatpush1.msra.mxu0 0.0
    %898 = vmatprep.subr.mxu0 0.0
    %899 = vmatpush1.msra.mxu0 0.0
    %900 = vmatprep.subr.mxu0 0.0
    %901 = vmatpush1.msra.mxu0 0.0
    %902 = vmatprep.subr.mxu0 0.0
    %903 = vmatpush1.msra.mxu0 0.0
    %904 = vmatprep.subr.mxu0 0.0
    %905 = vmatpush1.msra.mxu0 0.0
    %906 = vmatprep.subr.mxu0 0.0
    %907 = vmatpush1.msra.mxu0 0.0
    %908 = vmatprep.subr.mxu0 0.0
    %909 = vmatpush1.msra.mxu0 0.0
    %910 = vmatprep.subr.mxu0 0.0
    %911 = vmatpush1.msra.mxu0 0.0
    %912 = vmatprep.subr.mxu0 0.0
    %913 = vmatpush1.msra.mxu0 0.0
    %914 = vmatprep.subr.mxu0 0.0
    %915 = vmatpush1.msra.mxu0 0.0
    %916 = vmatprep.subr.mxu0 0.0
    %917 = vmatpush1.msra.mxu0 0.0
    %918 = vmatprep.subr.mxu0 0.0
    %919 = vmatpush1.msra.mxu0 0.0
    %920 = vmatprep.subr.mxu0 0.0
    %921 = vmatpush1.msra.mxu0 0.0
    %922 = vmatprep.subr.mxu0 0.0
    %923 = vmatpush1.msra.mxu0 0.0
    %924 = vmatprep.subr.mxu0 0.0
    %925 = vmatpush1.msra.mxu0 0.0
    %926 = vmatprep.subr.mxu0 0.0
    %927 = vmatpush1.msra.mxu0 0.0
    %928 = vmatprep.subr.mxu0 0.0
    %929 = vmatpush1.msra.mxu0 0.0
    %930 = vmatprep.subr.mxu0 0.0
    %931 = vmatpush1.msra.mxu0 0.0
    %932 = vmatprep.subr.mxu0 0.0
    %933 = vmatpush1.msra.mxu0 0.0
    %934 = vmatprep.subr.mxu0 0.0
    %935 = vmatpush1.msra.mxu0 0.0
    %936 = vmatprep.subr.mxu0 0.0
    %937 = vmatpush1.msra.mxu0 0.0
    %938 = vmatprep.subr.mxu0 0.0
    %939 = vmatpush1.msra.mxu0 0.0
    %940 = vmatprep.subr.mxu0 0.0
    %941 = vmatpush1.msra.mxu0 0.0
    %942 = vmatprep.mubr.f32.mxu0 0.0
    %943 = vmatmul.mubr.f32.gmra.mrb[0].mxu0 %v876
    %v944 = vpop.f32.mrb[0].mxu0
    %v945 = vadd.f32 0.0, %v944
    %v946 = vpop.f32.mrb[0].mxu0
    %947 = vdwg.mxu0
    %v948 = vadd.f32 %v383, %v945
    %v949 = vxor.u32 %v948, 2147483648
    %v950 = vmul.f32 %v949, 1.442695
    %v951 = vpow.pop %v950
    %v952 = vadd.f32 %v951, 1.0
    %v953 = vrcp.pop %v952
    %v954 = vmul.f32 1.0, %v953
    %955 = vmatprep.subr.mxu0 0.0
    %956 = vmatpush1.msra.mxu0 %v172
    %957 = vmatprep.subr.mxu0 0.0
    %958 = vmatpush1.msra.mxu0 %v173
    %959 = vmatprep.subr.mxu0 0.0
    %960 = vmatpush1.msra.mxu0 %v174
    %961 = vmatprep.subr.mxu0 0.0
    %962 = vmatpush1.msra.mxu0 %v175
    %963 = vmatprep.subr.mxu0 0.0
    %964 = vmatpush1.msra.mxu0 0.0
    %965 = vmatprep.subr.mxu0 0.0
    %966 = vmatpush1.msra.mxu0 0.0
    %967 = vmatprep.subr.mxu0 0.0
    %968 = vmatpush1.msra.mxu0 0.0
    %969 = vmatprep.subr.mxu0 0.0
    %970 = vmatpush1.msra.mxu0 0.0
    %971 = vmatprep.subr.mxu0 0.0
    %972 = vmatpush1.msra.mxu0 0.0
    %973 = vmatprep.subr.mxu0 0.0
    %974 = vmatpush1.msra.mxu0 0.0
    %975 = vmatprep.subr.mxu0 0.0
    %976 = vmatpush1.msra.mxu0 0.0
    %977 = vmatprep.subr.mxu0 0.0
    %978 = vmatpush1.msra.mxu0 0.0
    %979 = vmatprep.subr.mxu0 0.0
    %980 = vmatpush1.msra.mxu0 0.0
    %981 = vmatprep.subr.mxu0 0.0
    %982 = vmatpush1.msra.mxu0 0.0
    %983 = vmatprep.subr.mxu0 0.0
    %984 = vmatpush1.msra.mxu0 0.0
    %985 = vmatprep.subr.mxu0 0.0
    %986 = vmatpush1.msra.mxu0 0.0
    %987 = vmatprep.subr.mxu0 0.0
    %988 = vmatpush1.msra.mxu0 0.0
    %989 = vmatprep.subr.mxu0 0.0
    %990 = vmatpush1.msra.mxu0 0.0
    %991 = vmatprep.subr.mxu0 0.0
    %992 = vmatpush1.msra.mxu0 0.0
    %993 = vmatprep.subr.mxu0 0.0
    %994 = vmatpush1.msra.mxu0 0.0
    %995 = vmatprep.subr.mxu0 0.0
    %996 = vmatpush1.msra.mxu0 0.0
    %997 = vmatprep.subr.mxu0 0.0
    %998 = vmatpush1.msra.mxu0 0.0
    %999 = vmatprep.subr.mxu0 0.0
    %1000 = vmatpush1.msra.mxu0 0.0
    %1001 = vmatprep.subr.mxu0 0.0
    %1002 = vmatpush1.msra.mxu0 0.0
    %1003 = vmatprep.subr.mxu0 0.0
    %1004 = vmatpush1.msra.mxu0 0.0
    %1005 = vmatprep.subr.mxu0 0.0
    %1006 = vmatpush1.msra.mxu0 0.0
    %1007 = vmatprep.subr.mxu0 0.0
    %1008 = vmatpush1.msra.mxu0 0.0
    %1009 = vmatprep.subr.mxu0 0.0
    %1010 = vmatpush1.msra.mxu0 0.0
    %1011 = vmatprep.subr.mxu0 0.0
    %1012 = vmatpush1.msra.mxu0 0.0
    %1013 = vmatprep.subr.mxu0 0.0
    %1014 = vmatpush1.msra.mxu0 0.0
    %1015 = vmatprep.subr.mxu0 0.0
    %1016 = vmatpush1.msra.mxu0 0.0
    %1017 = vmatprep.subr.mxu0 0.0
    %1018 = vmatpush1.msra.mxu0 0.0
    %1019 = vmatprep.mubr.f32.mxu0 0.0
    %1020 = vmatmul.mubr.f32.gmra.mrb[0].mxu0 %v876
    %v1021 = vpop.f32.mrb[0].mxu0
    %v1022 = vadd.f32 0.0, %v1021
    %v1023 = vpop.f32.mrb[0].mxu0
    %1024 = vdwg.mxu0
    %v1025 = vadd.f32 %v506, %v1022
    %v1026 = vxor.u32 %v1025, 2147483648
    %v1027 = vmul.f32 %v1026, 1.442695
    %v1028 = vpow.pop %v1027
    %v1029 = vadd.f32 %v1028, 1.0
    %v1030 = vrcp.pop %v1029
    %v1031 = vmul.f32 1.0, %v1030
    %1032 = vmatprep.subr.mxu0 0.0
    %1033 = vmatpush1.msra.mxu0 %v177
    %1034 = vmatprep.subr.mxu0 0.0
    %1035 = vmatpush1.msra.mxu0 %v178
    %1036 = vmatprep.subr.mxu0 0.0
    %1037 = vmatpush1.msra.mxu0 %v179
    %1038 = vmatprep.subr.mxu0 0.0
    %1039 = vmatpush1.msra.mxu0 %v180
    %1040 = vmatprep.subr.mxu0 0.0
    %1041 = vmatpush1.msra.mxu0 0.0
    %1042 = vmatprep.subr.mxu0 0.0
    %1043 = vmatpush1.msra.mxu0 0.0
    %1044 = vmatprep.subr.mxu0 0.0
    %1045 = vmatpush1.msra.mxu0 0.0
    %1046 = vmatprep.subr.mxu0 0.0
    %1047 = vmatpush1.msra.mxu0 0.0
    %1048 = vmatprep.subr.mxu0 0.0
    %1049 = vmatpush1.msra.mxu0 0.0
    %1050 = vmatprep.subr.mxu0 0.0
    %1051 = vmatpush1.msra.mxu0 0.0
    %1052 = vmatprep.subr.mxu0 0.0
    %1053 = vmatpush1.msra.mxu0 0.0
    %1054 = vmatprep.subr.mxu0 0.0
    %1055 = vmatpush1.msra.mxu0 0.0
    %1056 = vmatprep.subr.mxu0 0.0
    %1057 = vmatpush1.msra.mxu0 0.0
    %1058 = vmatprep.subr.mxu0 0.0
    %1059 = vmatpush1.msra.mxu0 0.0
    %1060 = vmatprep.subr.mxu0 0.0
    %1061 = vmatpush1.msra.mxu0 0.0
    %1062 = vmatprep.subr.mxu0 0.0
    %1063 = vmatpush1.msra.mxu0 0.0
    %1064 = vmatprep.subr.mxu0 0.0
    %1065 = vmatpush1.msra.mxu0 0.0
    %1066 = vmatprep.subr.mxu0 0.0
    %1067 = vmatpush1.msra.mxu0 0.0
    %1068 = vmatprep.subr.mxu0 0.0
    %1069 = vmatpush1.msra.mxu0 0.0
    %1070 = vmatprep.subr.mxu0 0.0
    %1071 = vmatpush1.msra.mxu0 0.0
    %1072 = vmatprep.subr.mxu0 0.0
    %1073 = vmatpush1.msra.mxu0 0.0
    %1074 = vmatprep.subr.mxu0 0.0
    %1075 = vmatpush1.msra.mxu0 0.0
    %1076 = vmatprep.subr.mxu0 0.0
    %1077 = vmatpush1.msra.mxu0 0.0
    %1078 = vmatprep.subr.mxu0 0.0
    %1079 = vmatpush1.msra.mxu0 0.0
    %1080 = vmatprep.subr.mxu0 0.0
    %1081 = vmatpush1.msra.mxu0 0.0
    %1082 = vmatprep.subr.mxu0 0.0
    %1083 = vmatpush1.msra.mxu0 0.0
    %1084 = vmatprep.subr.mxu0 0.0
    %1085 = vmatpush1.msra.mxu0 0.0
    %1086 = vmatprep.subr.mxu0 0.0
    %1087 = vmatpush1.msra.mxu0 0.0
    %1088 = vmatprep.subr.mxu0 0.0
    %1089 = vmatpush1.msra.mxu0 0.0
    %1090 = vmatprep.subr.mxu0 0.0
    %1091 = vmatpush1.msra.mxu0 0.0
    %1092 = vmatprep.subr.mxu0 0.0
    %1093 = vmatpush1.msra.mxu0 0.0
    %1094 = vmatprep.subr.mxu0 0.0
    %1095 = vmatpush1.msra.mxu0 0.0
    %1096 = vmatprep.mubr.f32.mxu0 0.0
    %1097 = vmatmul.mubr.f32.gmra.mrb[0].mxu0 %v876
    %v1098 = vpop.f32.mrb[0].mxu0
    %v1099 = vadd.f32 %v228, %v1098
    %v1100 = vpop.f32.mrb[0].mxu0
    %1101 = vdwg.mxu0
    %v1102 = vmul.f32 %v954, %v1099
    %v1103 = vadd.f32 %v629, %v1102
    %v1104 = vtanh.pop %v1103
    %v1105 = vsub.f32 1.0, %v1031
    %v1106 = vmul.f32 %v1105, %v1104
    %v1107 = vmul.f32 %v1031, %v874
    %v1108 = vadd.f32 %v1106, %v1107
    %v1109 = vsel %vm150, %v1108, %v874
    %v1111 = vsel %vm249, %v1109, 0
    %1113 = vmatprep.subr.mxu0 0.0
    %1114 = vmatpush1.msra.mxu0 %v167
    %1115 = vmatprep.subr.mxu0 0.0
    %1116 = vmatpush1.msra.mxu0 %v168
    %1117 = vmatprep.subr.mxu0 0.0
    %1118 = vmatpush1.msra.mxu0 %v169
    %1119 = vmatprep.subr.mxu0 0.0
    %1120 = vmatpush1.msra.mxu0 %v170
    %1121 = vmatprep.subr.mxu0 0.0
    %1122 = vmatpush1.msra.mxu0 0.0
    %1123 = vmatprep.subr.mxu0 0.0
    %1124 = vmatpush1.msra.mxu0 0.0
    %1125 = vmatprep.subr.mxu0 0.0
    %1126 = vmatpush1.msra.mxu0 0.0
    %1127 = vmatprep.subr.mxu0 0.0
    %1128 = vmatpush1.msra.mxu0 0.0
    %1129 = vmatprep.subr.mxu0 0.0
    %1130 = vmatpush1.msra.mxu0 0.0
    %1131 = vmatprep.subr.mxu0 0.0
    %1132 = vmatpush1.msra.mxu0 0.0
    %1133 = vmatprep.subr.mxu0 0.0
    %1134 = vmatpush1.msra.mxu0 0.0
    %1135 = vmatprep.subr.mxu0 0.0
    %1136 = vmatpush1.msra.mxu0 0.0
    %1137 = vmatprep.subr.mxu0 0.0
    %1138 = vmatpush1.msra.mxu0 0.0
    %1139 = vmatprep.subr.mxu0 0.0
    %1140 = vmatpush1.msra.mxu0 0.0
    %1141 = vmatprep.subr.mxu0 0.0
    %1142 = vmatpush1.msra.mxu0 0.0
    %1143 = vmatprep.subr.mxu0 0.0
    %1144 = vmatpush1.msra.mxu0 0.0
    %1145 = vmatprep.subr.mxu0 0.0
    %1146 = vmatpush1.msra.mxu0 0.0
    %1147 = vmatprep.subr.mxu0 0.0
    %1148 = vmatpush1.msra.mxu0 0.0
    %1149 = vmatprep.subr.mxu0 0.0
    %1150 = vmatpush1.msra.mxu0 0.0
    %1151 = vmatprep.subr.mxu0 0.0
    %1152 = vmatpush1.msra.mxu0 0.0
    %1153 = vmatprep.subr.mxu0 0.0
    %1154 = vmatpush1.msra.mxu0 0.0
    %1155 = vmatprep.subr.mxu0 0.0
    %1156 = vmatpush1.msra.mxu0 0.0
    %1157 = vmatprep.subr.mxu0 0.0
    %1158 = vmatpush1.msra.mxu0 0.0
    %1159 = vmatprep.subr.mxu0 0.0
    %1160 = vmatpush1.msra.mxu0 0.0
    %1161 = vmatprep.subr.mxu0 0.0
    %1162 = vmatpush1.msra.mxu0 0.0
    %1163 = vmatprep.subr.mxu0 0.0
    %1164 = vmatpush1.msra.mxu0 0.0
    %1165 = vmatprep.subr.mxu0 0.0
    %1166 = vmatpush1.msra.mxu0 0.0
    %1167 = vmatprep.subr.mxu0 0.0
    %1168 = vmatpush1.msra.mxu0 0.0
    %1169 = vmatprep.subr.mxu0 0.0
    %1170 = vmatpush1.msra.mxu0 0.0
    %1171 = vmatprep.subr.mxu0 0.0
    %1172 = vmatpush1.msra.mxu0 0.0
    %1173 = vmatprep.subr.mxu0 0.0
    %1174 = vmatpush1.msra.mxu0 0.0
    %1175 = vmatprep.subr.mxu0 0.0
    %1176 = vmatpush1.msra.mxu0 0.0
    %1177 = vmatprep.mubr.f32.mxu0 0.0
    %1178 = vmatmul.mubr.f32.gmra.mrb[0].mxu0 %v1111
    %v1179 = vpop.f32.mrb[0].mxu0
    %v1180 = vadd.f32 0.0, %v1179
    %v1181 = vpop.f32.mrb[0].mxu0
    %1182 = vdwg.mxu0
    %v1183 = vadd.f32 %v388, %v1180
    %v1184 = vxor.u32 %v1183, 2147483648
    %v1185 = vmul.f32 %v1184, 1.442695
    %v1186 = vpow.pop %v1185
    %v1187 = vadd.f32 %v1186, 1.0
    %v1188 = vrcp.pop %v1187
    %v1189 = vmul.f32 1.0, %v1188
    %1190 = vmatprep.subr.mxu0 0.0
    %1191 = vmatpush1.msra.mxu0 %v172
    %1192 = vmatprep.subr.mxu0 0.0
    %1193 = vmatpush1.msra.mxu0 %v173
    %1194 = vmatprep.subr.mxu0 0.0
    %1195 = vmatpush1.msra.mxu0 %v174
    %1196 = vmatprep.subr.mxu0 0.0
    %1197 = vmatpush1.msra.mxu0 %v175
    %1198 = vmatprep.subr.mxu0 0.0
    %1199 = vmatpush1.msra.mxu0 0.0
    %1200 = vmatprep.subr.mxu0 0.0
    %1201 = vmatpush1.msra.mxu0 0.0
    %1202 = vmatprep.subr.mxu0 0.0
    %1203 = vmatpush1.msra.mxu0 0.0
    %1204 = vmatprep.subr.mxu0 0.0
    %1205 = vmatpush1.msra.mxu0 0.0
    %1206 = vmatprep.subr.mxu0 0.0
    %1207 = vmatpush1.msra.mxu0 0.0
    %1208 = vmatprep.subr.mxu0 0.0
    %1209 = vmatpush1.msra.mxu0 0.0
    %1210 = vmatprep.subr.mxu0 0.0
    %1211 = vmatpush1.msra.mxu0 0.0
    %1212 = vmatprep.subr.mxu0 0.0
    %1213 = vmatpush1.msra.mxu0 0.0
    %1214 = vmatprep.subr.mxu0 0.0
    %1215 = vmatpush1.msra.mxu0 0.0
    %1216 = vmatprep.subr.mxu0 0.0
    %1217 = vmatpush1.msra.mxu0 0.0
    %1218 = vmatprep.subr.mxu0 0.0
    %1219 = vmatpush1.msra.mxu0 0.0
    %1220 = vmatprep.subr.mxu0 0.0
    %1221 = vmatpush1.msra.mxu0 0.0
    %1222 = vmatprep.subr.mxu0 0.0
    %1223 = vmatpush1.msra.mxu0 0.0
    %1224 = vmatprep.subr.mxu0 0.0
    %1225 = vmatpush1.msra.mxu0 0.0
    %1226 = vmatprep.subr.mxu0 0.0
    %1227 = vmatpush1.msra.mxu0 0.0
    %1228 = vmatprep.subr.mxu0 0.0
    %1229 = vmatpush1.msra.mxu0 0.0
    %1230 = vmatprep.subr.mxu0 0.0
    %1231 = vmatpush1.msra.mxu0 0.0
    %1232 = vmatprep.subr.mxu0 0.0
    %1233 = vmatpush1.msra.mxu0 0.0
    %1234 = vmatprep.subr.mxu0 0.0
    %1235 = vmatpush1.msra.mxu0 0.0
    %1236 = vmatprep.subr.mxu0 0.0
    %1237 = vmatpush1.msra.mxu0 0.0
    %1238 = vmatprep.subr.mxu0 0.0
    %1239 = vmatpush1.msra.mxu0 0.0
    %1240 = vmatprep.subr.mxu0 0.0
    %1241 = vmatpush1.msra.mxu0 0.0
    %1242 = vmatprep.subr.mxu0 0.0
    %1243 = vmatpush1.msra.mxu0 0.0
    %1244 = vmatprep.subr.mxu0 0.0
    %1245 = vmatpush1.msra.mxu0 0.0
    %1246 = vmatprep.subr.mxu0 0.0
    %1247 = vmatpush1.msra.mxu0 0.0
    %1248 = vmatprep.subr.mxu0 0.0
    %1249 = vmatpush1.msra.mxu0 0.0
    %1250 = vmatprep.subr.mxu0 0.0
    %1251 = vmatpush1.msra.mxu0 0.0
    %1252 = vmatprep.subr.mxu0 0.0
    %1253 = vmatpush1.msra.mxu0 0.0
    %1254 = vmatprep.mubr.f32.mxu0 0.0
    %1255 = vmatmul.mubr.f32.gmra.mrb[0].mxu0 %v1111
    %v1256 = vpop.f32.mrb[0].mxu0
    %v1257 = vadd.f32 0.0, %v1256
    %v1258 = vpop.f32.mrb[0].mxu0
    %1259 = vdwg.mxu0
    %v1260 = vadd.f32 %v511, %v1257
    %v1261 = vxor.u32 %v1260, 2147483648
    %v1262 = vmul.f32 %v1261, 1.442695
    %v1263 = vpow.pop %v1262
    %v1264 = vadd.f32 %v1263, 1.0
    %v1265 = vrcp.pop %v1264
    %v1266 = vmul.f32 1.0, %v1265
    %1267 = vmatprep.subr.mxu0 0.0
    %1268 = vmatpush1.msra.mxu0 %v177
    %1269 = vmatprep.subr.mxu0 0.0
    %1270 = vmatpush1.msra.mxu0 %v178
    %1271 = vmatprep.subr.mxu0 0.0
    %1272 = vmatpush1.msra.mxu0 %v179
    %1273 = vmatprep.subr.mxu0 0.0
    %1274 = vmatpush1.msra.mxu0 %v180
    %1275 = vmatprep.subr.mxu0 0.0
    %1276 = vmatpush1.msra.mxu0 0.0
    %1277 = vmatprep.subr.mxu0 0.0
    %1278 = vmatpush1.msra.mxu0 0.0
    %1279 = vmatprep.subr.mxu0 0.0
    %1280 = vmatpush1.msra.mxu0 0.0
    %1281 = vmatprep.subr.mxu0 0.0
    %1282 = vmatpush1.msra.mxu0 0.0
    %1283 = vmatprep.subr.mxu0 0.0
    %1284 = vmatpush1.msra.mxu0 0.0
    %1285 = vmatprep.subr.mxu0 0.0
    %1286 = vmatpush1.msra.mxu0 0.0
    %1287 = vmatprep.subr.mxu0 0.0
    %1288 = vmatpush1.msra.mxu0 0.0
    %1289 = vmatprep.subr.mxu0 0.0
    %1290 = vmatpush1.msra.mxu0 0.0
    %1291 = vmatprep.subr.mxu0 0.0
    %1292 = vmatpush1.msra.mxu0 0.0
    %1293 = vmatprep.subr.mxu0 0.0
    %1294 = vmatpush1.msra.mxu0 0.0
    %1295 = vmatprep.subr.mxu0 0.0
    %1296 = vmatpush1.msra.mxu0 0.0
    %1297 = vmatprep.subr.mxu0 0.0
    %1298 = vmatpush1.msra.mxu0 0.0
    %1299 = vmatprep.subr.mxu0 0.0
    %1300 = vmatpush1.msra.mxu0 0.0
    %1301 = vmatprep.subr.mxu0 0.0
    %1302 = vmatpush1.msra.mxu0 0.0
    %1303 = vmatprep.subr.mxu0 0.0
    %1304 = vmatpush1.msra.mxu0 0.0
    %1305 = vmatprep.subr.mxu0 0.0
    %1306 = vmatpush1.msra.mxu0 0.0
    %1307 = vmatprep.subr.mxu0 0.0
    %1308 = vmatpush1.msra.mxu0 0.0
    %1309 = vmatprep.subr.mxu0 0.0
    %1310 = vmatpush1.msra.mxu0 0.0
    %1311 = vmatprep.subr.mxu0 0.0
    %1312 = vmatpush1.msra.mxu0 0.0
    %1313 = vmatprep.subr.mxu0 0.0
    %1314 = vmatpush1.msra.mxu0 0.0
    %1315 = vmatprep.subr.mxu0 0.0
    %1316 = vmatpush1.msra.mxu0 0.0
    %1317 = vmatprep.subr.mxu0 0.0
    %1318 = vmatpush1.msra.mxu0 0.0
    %1319 = vmatprep.subr.mxu0 0.0
    %1320 = vmatpush1.msra.mxu0 0.0
    %1321 = vmatprep.subr.mxu0 0.0
    %1322 = vmatpush1.msra.mxu0 0.0
    %1323 = vmatprep.subr.mxu0 0.0
    %1324 = vmatpush1.msra.mxu0 0.0
    %1325 = vmatprep.subr.mxu0 0.0
    %1326 = vmatpush1.msra.mxu0 0.0
    %1327 = vmatprep.subr.mxu0 0.0
    %1328 = vmatpush1.msra.mxu0 0.0
    %1329 = vmatprep.subr.mxu0 0.0
    %1330 = vmatpush1.msra.mxu0 0.0
    %1331 = vmatprep.mubr.f32.mxu0 0.0
    %1332 = vmatmul.mubr.f32.gmra.mrb[0].mxu0 %v1111
    %v1333 = vpop.f32.mrb[0].mxu0
    %v1334 = vadd.f32 %v228, %v1333
    %v1335 = vpop.f32.mrb[0].mxu0
    %1336 = vdwg.mxu0
    %v1337 = vmul.f32 %v1189, %v1334
    %v1338 = vadd.f32 %v634, %v1337
    %v1339 = vtanh.pop %v1338
    %v1340 = vsub.f32 1.0, %v1266
    %v1341 = vmul.f32 %v1340, %v1339
    %v1342 = vmul.f32 %v1266, %v1109
    %v1343 = vadd.f32 %v1341, %v1342
    %v1344 = vsel %vm151, %v1343, %v1109
    %v1346 = vsel %vm249, %v1344, 0
    %1348 = vmatprep.subr.mxu0 0.0
    %1349 = vmatpush1.msra.mxu0 %v167
    %1350 = vmatprep.subr.mxu0 0.0
    %1351 = vmatpush1.msra.mxu0 %v168
    %1352 = vmatprep.subr.mxu0 0.0
    %1353 = vmatpush1.msra.mxu0 %v169
    %1354 = vmatprep.subr.mxu0 0.0
    %1355 = vmatpush1.msra.mxu0 %v170
    %1356 = vmatprep.subr.mxu0 0.0
    %1357 = vmatpush1.msra.mxu0 0.0
    %1358 = vmatprep.subr.mxu0 0.0
    %1359 = vmatpush1.msra.mxu0 0.0
    %1360 = vmatprep.subr.mxu0 0.0
    %1361 = vmatpush1.msra.mxu0 0.0
    %1362 = vmatprep.subr.mxu0 0.0
    %1363 = vmatpush1.msra.mxu0 0.0
    %1364 = vmatprep.subr.mxu0 0.0
    %1365 = vmatpush1.msra.mxu0 0.0
    %1366 = vmatprep.subr.mxu0 0.0
    %1367 = vmatpush1.msra.mxu0 0.0
    %1368 = vmatprep.subr.mxu0 0.0
    %1369 = vmatpush1.msra.mxu0 0.0
    %1370 = vmatprep.subr.mxu0 0.0
    %1371 = vmatpush1.msra.mxu0 0.0
    %1372 = vmatprep.subr.mxu0 0.0
    %1373 = vmatpush1.msra.mxu0 0.0
    %1374 = vmatprep.subr.mxu0 0.0
    %1375 = vmatpush1.msra.mxu0 0.0
    %1376 = vmatprep.subr.mxu0 0.0
    %1377 = vmatpush1.msra.mxu0 0.0
    %1378 = vmatprep.subr.mxu0 0.0
    %1379 = vmatpush1.msra.mxu0 0.0
    %1380 = vmatprep.subr.mxu0 0.0
    %1381 = vmatpush1.msra.mxu0 0.0
    %1382 = vmatprep.subr.mxu0 0.0
    %1383 = vmatpush1.msra.mxu0 0.0
    %1384 = vmatprep.subr.mxu0 0.0
    %1385 = vmatpush1.msra.mxu0 0.0
    %1386 = vmatprep.subr.mxu0 0.0
    %1387 = vmatpush1.msra.mxu0 0.0
    %1388 = vmatprep.subr.mxu0 0.0
    %1389 = vmatpush1.msra.mxu0 0.0
    %1390 = vmatprep.subr.mxu0 0.0
    %1391 = vmatpush1.msra.mxu0 0.0
    %1392 = vmatprep.subr.mxu0 0.0
    %1393 = vmatpush1.msra.mxu0 0.0
    %1394 = vmatprep.subr.mxu0 0.0
    %1395 = vmatpush1.msra.mxu0 0.0
    %1396 = vmatprep.subr.mxu0 0.0
    %1397 = vmatpush1.msra.mxu0 0.0
    %1398 = vmatprep.subr.mxu0 0.0
    %1399 = vmatpush1.msra.mxu0 0.0
    %1400 = vmatprep.subr.mxu0 0.0
    %1401 = vmatpush1.msra.mxu0 0.0
    %1402 = vmatprep.subr.mxu0 0.0
    %1403 = vmatpush1.msra.mxu0 0.0
    %1404 = vmatprep.subr.mxu0 0.0
    %1405 = vmatpush1.msra.mxu0 0.0
    %1406 = vmatprep.subr.mxu0 0.0
    %1407 = vmatpush1.msra.mxu0 0.0
    %1408 = vmatprep.subr.mxu0 0.0
    %1409 = vmatpush1.msra.mxu0 0.0
    %1410 = vmatprep.subr.mxu0 0.0
    %1411 = vmatpush1.msra.mxu0 0.0
    %1412 = vmatprep.mubr.f32.mxu0 0.0
    %1413 = vmatmul.mubr.f32.gmra.mrb[0].mxu0 %v1346
    %v1414 = vpop.f32.mrb[0].mxu0
    %v1415 = vadd.f32 0.0, %v1414
    %v1416 = vpop.f32.mrb[0].mxu0
    %1417 = vdwg.mxu0
    %v1418 = vadd.f32 %v391, %v1415
    %v1419 = vxor.u32 %v1418, 2147483648
    %v1420 = vmul.f32 %v1419, 1.442695
    %v1421 = vpow.pop %v1420
    %v1422 = vadd.f32 %v1421, 1.0
    %v1423 = vrcp.pop %v1422
    %v1424 = vmul.f32 1.0, %v1423
    %1425 = vmatprep.subr.mxu0 0.0
    %1426 = vmatpush1.msra.mxu0 %v172
    %1427 = vmatprep.subr.mxu0 0.0
    %1428 = vmatpush1.msra.mxu0 %v173
    %1429 = vmatprep.subr.mxu0 0.0
    %1430 = vmatpush1.msra.mxu0 %v174
    %1431 = vmatprep.subr.mxu0 0.0
    %1432 = vmatpush1.msra.mxu0 %v175
    %1433 = vmatprep.subr.mxu0 0.0
    %1434 = vmatpush1.msra.mxu0 0.0
    %1435 = vmatprep.subr.mxu0 0.0
    %1436 = vmatpush1.msra.mxu0 0.0
    %1437 = vmatprep.subr.mxu0 0.0
    %1438 = vmatpush1.msra.mxu0 0.0
    %1439 = vmatprep.subr.mxu0 0.0
    %1440 = vmatpush1.msra.mxu0 0.0
    %1441 = vmatprep.subr.mxu0 0.0
    %1442 = vmatpush1.msra.mxu0 0.0
    %1443 = vmatprep.subr.mxu0 0.0
    %1444 = vmatpush1.msra.mxu0 0.0
    %1445 = vmatprep.subr.mxu0 0.0
    %1446 = vmatpush1.msra.mxu0 0.0
    %1447 = vmatprep.subr.mxu0 0.0
    %1448 = vmatpush1.msra.mxu0 0.0
    %1449 = vmatprep.subr.mxu0 0.0
    %1450 = vmatpush1.msra.mxu0 0.0
    %1451 = vmatprep.subr.mxu0 0.0
    %1452 = vmatpush1.msra.mxu0 0.0
    %1453 = vmatprep.subr.mxu0 0.0
    %1454 = vmatpush1.msra.mxu0 0.0
    %1455 = vmatprep.subr.mxu0 0.0
    %1456 = vmatpush1.msra.mxu0 0.0
    %1457 = vmatprep.subr.mxu0 0.0
    %1458 = vmatpush1.msra.mxu0 0.0
    %1459 = vmatprep.subr.mxu0 0.0
    %1460 = vmatpush1.msra.mxu0 0.0
    %1461 = vmatprep.subr.mxu0 0.0
    %1462 = vmatpush1.msra.mxu0 0.0
    %1463 = vmatprep.subr.mxu0 0.0
    %1464 = vmatpush1.msra.mxu0 0.0
    %1465 = vmatprep.subr.mxu0 0.0
    %1466 = vmatpush1.msra.mxu0 0.0
    %1467 = vmatprep.subr.mxu0 0.0
    %1468 = vmatpush1.msra.mxu0 0.0
    %1469 = vmatprep.subr.mxu0 0.0
    %1470 = vmatpush1.msra.mxu0 0.0
    %1471 = vmatprep.subr.mxu0 0.0
    %1472 = vmatpush1.msra.mxu0 0.0
    %1473 = vmatprep.subr.mxu0 0.0
    %1474 = vmatpush1.msra.mxu0 0.0
    %1475 = vmatprep.subr.mxu0 0.0
    %1476 = vmatpush1.msra.mxu0 0.0
    %1477 = vmatprep.subr.mxu0 0.0
    %1478 = vmatpush1.msra.mxu0 0.0
    %1479 = vmatprep.subr.mxu0 0.0
    %1480 = vmatpush1.msra.mxu0 0.0
    %1481 = vmatprep.subr.mxu0 0.0
    %1482 = vmatpush1.msra.mxu0 0.0
    %1483 = vmatprep.subr.mxu0 0.0
    %1484 = vmatpush1.msra.mxu0 0.0
    %1485 = vmatprep.subr.mxu0 0.0
    %1486 = vmatpush1.msra.mxu0 0.0
    %1487 = vmatprep.subr.mxu0 0.0
    %1488 = vmatpush1.msra.mxu0 0.0
    %1489 = vmatprep.mubr.f32.mxu0 0.0
    %1490 = vmatmul.mubr.f32.gmra.mrb[0].mxu0 %v1346
    %v1491 = vpop.f32.mrb[0].mxu0
    %v1492 = vadd.f32 0.0, %v1491
    %v1493 = vpop.f32.mrb[0].mxu0
    %1494 = vdwg.mxu0
    %v1495 = vadd.f32 %v514, %v1492
    %v1496 = vxor.u32 %v1495, 2147483648
    %v1497 = vmul.f32 %v1496, 1.442695
    %v1498 = vpow.pop %v1497
    %v1499 = vadd.f32 %v1498, 1.0
    %v1500 = vrcp.pop %v1499
    %v1501 = vmul.f32 1.0, %v1500
    %1502 = vmatprep.subr.mxu0 0.0
    %1503 = vmatpush1.msra.mxu0 %v177
    %1504 = vmatprep.subr.mxu0 0.0
    %1505 = vmatpush1.msra.mxu0 %v178
    %1506 = vmatprep.subr.mxu0 0.0
    %1507 = vmatpush1.msra.mxu0 %v179
    %1508 = vmatprep.subr.mxu0 0.0
    %1509 = vmatpush1.msra.mxu0 %v180
    %1510 = vmatprep.subr.mxu0 0.0
    %1511 = vmatpush1.msra.mxu0 0.0
    %1512 = vmatprep.subr.mxu0 0.0
    %1513 = vmatpush1.msra.mxu0 0.0
    %1514 = vmatprep.subr.mxu0 0.0
    %1515 = vmatpush1.msra.mxu0 0.0
    %1516 = vmatprep.subr.mxu0 0.0
    %1517 = vmatpush1.msra.mxu0 0.0
    %1518 = vmatprep.subr.mxu0 0.0
    %1519 = vmatpush1.msra.mxu0 0.0
    %1520 = vmatprep.subr.mxu0 0.0
    %1521 = vmatpush1.msra.mxu0 0.0
    %1522 = vmatprep.subr.mxu0 0.0
    %1523 = vmatpush1.msra.mxu0 0.0
    %1524 = vmatprep.subr.mxu0 0.0
    %1525 = vmatpush1.msra.mxu0 0.0
    %1526 = vmatprep.subr.mxu0 0.0
    %1527 = vmatpush1.msra.mxu0 0.0
    %1528 = vmatprep.subr.mxu0 0.0
    %1529 = vmatpush1.msra.mxu0 0.0
    %1530 = vmatprep.subr.mxu0 0.0
    %1531 = vmatpush1.msra.mxu0 0.0
    %1532 = vmatprep.subr.mxu0 0.0
    %1533 = vmatpush1.msra.mxu0 0.0
    %1534 = vmatprep.subr.mxu0 0.0
    %1535 = vmatpush1.msra.mxu0 0.0
    %1536 = vmatprep.subr.mxu0 0.0
    %1537 = vmatpush1.msra.mxu0 0.0
    %1538 = vmatprep.subr.mxu0 0.0
    %1539 = vmatpush1.msra.mxu0 0.0
    %1540 = vmatprep.subr.mxu0 0.0
    %1541 = vmatpush1.msra.mxu0 0.0
    %1542 = vmatprep.subr.mxu0 0.0
    %1543 = vmatpush1.msra.mxu0 0.0
    %1544 = vmatprep.subr.mxu0 0.0
    %1545 = vmatpush1.msra.mxu0 0.0
    %1546 = vmatprep.subr.mxu0 0.0
    %1547 = vmatpush1.msra.mxu0 0.0
    %1548 = vmatprep.subr.mxu0 0.0
    %1549 = vmatpush1.msra.mxu0 0.0
    %1550 = vmatprep.subr.mxu0 0.0
    %1551 = vmatpush1.msra.mxu0 0.0
    %1552 = vmatprep.subr.mxu0 0.0
    %1553 = vmatpush1.msra.mxu0 0.0
    %1554 = vmatprep.subr.mxu0 0.0
    %1555 = vmatpush1.msra.mxu0 0.0
    %1556 = vmatprep.subr.mxu0 0.0
    %1557 = vmatpush1.msra.mxu0 0.0
    %1558 = vmatprep.subr.mxu0 0.0
    %1559 = vmatpush1.msra.mxu0 0.0
    %1560 = vmatprep.subr.mxu0 0.0
    %1561 = vmatpush1.msra.mxu0 0.0
    %1562 = vmatprep.subr.mxu0 0.0
    %1563 = vmatpush1.msra.mxu0 0.0
    %1564 = vmatprep.subr.mxu0 0.0
    %1565 = vmatpush1.msra.mxu0 0.0
    %1566 = vmatprep.mubr.f32.mxu0 0.0
    %1567 = vmatmul.mubr.f32.gmra.mrb[0].mxu0 %v1346
    %v1568 = vpop.f32.mrb[0].mxu0
    %v1569 = vadd.f32 %v228, %v1568
    %v1570 = vpop.f32.mrb[0].mxu0
    %1571 = vdwg.mxu0
    %v1572 = vmul.f32 %v1424, %v1569
    %v1573 = vadd.f32 %v637, %v1572
    %v1574 = vtanh.pop %v1573
    %v1575 = vsub.f32 1.0, %v1501
    %v1576 = vmul.f32 %v1575, %v1574
    %v1577 = vmul.f32 %v1501, %v1344
    %v1578 = vadd.f32 %v1576, %v1577
    %v1579 = vsel %vm152, %v1578, %v1344
    %v1580 = vpack.c.bf16 %v1579, %v1579
    %v1582 = vsel %vm334, %v144, 0
    %v1585 = vsel %vm341, %v1580, 0
    %1587 = vmatprep.subr.bf16.mxu0 0
    %1588 = vmatpush1.bf16.msra.mxu0 %v1585
    %1589 = vmatprep.subr.bf16.mxu0 0
    %1590 = vmatpush1.bf16.msra.mxu0 0
    %1591 = vmatprep.subr.bf16.mxu0 0
    %1592 = vmatpush1.bf16.msra.mxu0 0
    %1593 = vmatprep.subr.bf16.mxu0 0
    %1594 = vmatpush1.bf16.msra.mxu0 0
    %1595 = vmatprep.subr.bf16.mxu0 0
    %1596 = vmatpush1.bf16.msra.mxu0 0
    %1597 = vmatprep.subr.bf16.mxu0 0
    %1598 = vmatpush1.bf16.msra.mxu0 0
    %1599 = vmatprep.subr.bf16.mxu0 0
    %1600 = vmatpush1.bf16.msra.mxu0 0
    %1601 = vmatprep.subr.bf16.mxu0 0
    %1602 = vmatpush1.bf16.msra.mxu0 0
    %1603 = vmatprep.subr.bf16.mxu0 0
    %1604 = vmatpush1.bf16.msra.mxu0 0
    %1605 = vmatprep.subr.bf16.mxu0 0
    %1606 = vmatpush1.bf16.msra.mxu0 0
    %1607 = vmatprep.subr.bf16.mxu0 0
    %1608 = vmatpush1.bf16.msra.mxu0 0
    %1609 = vmatprep.subr.bf16.mxu0 0
    %1610 = vmatpush1.bf16.msra.mxu0 0
    %1611 = vmatprep.subr.bf16.mxu0 0
    %1612 = vmatpush1.bf16.msra.mxu0 0
    %1613 = vmatprep.subr.bf16.mxu0 0
    %1614 = vmatpush1.bf16.msra.mxu0 0
    %1615 = vmatprep.subr.bf16.mxu0 0
    %1616 = vmatpush1.bf16.msra.mxu0 0
    %1617 = vmatprep.subr.bf16.mxu0 0
    %1618 = vmatpush1.bf16.msra.mxu0 0
    %1619 = vmatprep.mubr.bf16.mxu0 0
    %1620 = vmatmul.mubr.bf16.gmra.mrb[0].mxu0 %v1582
    %v1621 = vpop.f32.mrb[0].mxu0
    %v1622 = vadd.f32 0.0, %v1621
    %v1623 = vpop.f32.mrb[0].mxu0
    %v1624 = vpop.f32.mrb[0].mxu0
    %v1625 = vpop.f32.mrb[0].mxu0
    %1626 = vdwg.mxu0
    %v1628 = vsel %vm249, %v1622, 0
    %1630 = vmatprep.subr.mxu0 0.0
    %1631 = vmatpush1.msra.mxu0 %v181
    %1632 = vmatprep.subr.mxu0 0.0
    %1633 = vmatpush1.msra.mxu0 %v182
    %1634 = vmatprep.subr.mxu0 0.0
    %1635 = vmatpush1.msra.mxu0 %v183
    %1636 = vmatprep.subr.mxu0 0.0
    %1637 = vmatpush1.msra.mxu0 %v184
    %1638 = vmatprep.subr.mxu0 0.0
    %1639 = vmatpush1.msra.mxu0 0.0
    %1640 = vmatprep.subr.mxu0 0.0
    %1641 = vmatpush1.msra.mxu0 0.0
    %1642 = vmatprep.subr.mxu0 0.0
    %1643 = vmatpush1.msra.mxu0 0.0
    %1644 = vmatprep.subr.mxu0 0.0
    %1645 = vmatpush1.msra.mxu0 0.0
    %1646 = vmatprep.subr.mxu0 0.0
    %1647 = vmatpush1.msra.mxu0 0.0
    %1648 = vmatprep.subr.mxu0 0.0
    %1649 = vmatpush1.msra.mxu0 0.0
    %1650 = vmatprep.subr.mxu0 0.0
    %1651 = vmatpush1.msra.mxu0 0.0
    %1652 = vmatprep.subr.mxu0 0.0
    %1653 = vmatpush1.msra.mxu0 0.0
    %1654 = vmatprep.subr.mxu0 0.0
    %1655 = vmatpush1.msra.mxu0 0.0
    %1656 = vmatprep.subr.mxu0 0.0
    %1657 = vmatpush1.msra.mxu0 0.0
    %1658 = vmatprep.subr.mxu0 0.0
    %1659 = vmatpush1.msra.mxu0 0.0
    %1660 = vmatprep.subr.mxu0 0.0
    %1661 = vmatpush1.msra.mxu0 0.0
    %1662 = vmatprep.subr.mxu0 0.0
    %1663 = vmatpush1.msra.mxu0 0.0
    %1664 = vmatprep.subr.mxu0 0.0
    %1665 = vmatpush1.msra.mxu0 0.0
    %1666 = vmatprep.subr.mxu0 0.0
    %1667 = vmatpush1.msra.mxu0 0.0
    %1668 = vmatprep.subr.mxu0 0.0
    %1669 = vmatpush1.msra.mxu0 0.0
    %1670 = vmatprep.subr.mxu0 0.0
    %1671 = vmatpush1.msra.mxu0 0.0
    %1672 = vmatprep.subr.mxu0 0.0
    %1673 = vmatpush1.msra.mxu0 0.0
    %1674 = vmatprep.subr.mxu0 0.0
    %1675 = vmatpush1.msra.mxu0 0.0
    %1676 = vmatprep.subr.mxu0 0.0
    %1677 = vmatpush1.msra.mxu0 0.0
    %1678 = vmatprep.subr.mxu0 0.0
    %1679 = vmatpush1.msra.mxu0 0.0
    %1680 = vmatprep.subr.mxu0 0.0
    %1681 = vmatpush1.msra.mxu0 0.0
    %1682 = vmatprep.subr.mxu0 0.0
    %1683 = vmatpush1.msra.mxu0 0.0
    %1684 = vmatprep.subr.mxu0 0.0
    %1685 = vmatpush1.msra.mxu0 0.0
    %1686 = vmatprep.subr.mxu0 0.0
    %1687 = vmatpush1.msra.mxu0 0.0
    %1688 = vmatprep.subr.mxu0 0.0
    %1689 = vmatpush1.msra.mxu0 0.0
    %1690 = vmatprep.subr.mxu0 0.0
    %1691 = vmatpush1.msra.mxu0 0.0
    %1692 = vmatprep.subr.mxu0 0.0
    %1693 = vmatpush1.msra.mxu0 0.0
    %1694 = vmatprep.mubr.f32.mxu0 0.0
    %1695 = vmatmul.mubr.f32.gmra.mrb[0].mxu0 %v1628
    %v1696 = vpop.f32.mrb[0].mxu0
    %v1697 = vadd.f32 %v233, %v1696
    %v1698 = vpop.f32.mrb[0].mxu0
    %1699 = vdwg.mxu0
    %1700 = vmatprep.subr.mxu0 0.0
    %1701 = vmatpush1.msra.mxu0 %v195
    %1702 = vmatprep.subr.mxu0 0.0
    %1703 = vmatpush1.msra.mxu0 %v196
    %1704 = vmatprep.subr.mxu0 0.0
    %1705 = vmatpush1.msra.mxu0 %v197
    %1706 = vmatprep.subr.mxu0 0.0
    %1707 = vmatpush1.msra.mxu0 %v198
    %1708 = vmatprep.subr.mxu0 0.0
    %1709 = vmatpush1.msra.mxu0 0.0
    %1710 = vmatprep.subr.mxu0 0.0
    %1711 = vmatpush1.msra.mxu0 0.0
    %1712 = vmatprep.subr.mxu0 0.0
    %1713 = vmatpush1.msra.mxu0 0.0
    %1714 = vmatprep.subr.mxu0 0.0
    %1715 = vmatpush1.msra.mxu0 0.0
    %1716 = vmatprep.subr.mxu0 0.0
    %1717 = vmatpush1.msra.mxu0 0.0
    %1718 = vmatprep.subr.mxu0 0.0
    %1719 = vmatpush1.msra.mxu0 0.0
    %1720 = vmatprep.subr.mxu0 0.0
    %1721 = vmatpush1.msra.mxu0 0.0
    %1722 = vmatprep.subr.mxu0 0.0
    %1723 = vmatpush1.msra.mxu0 0.0
    %1724 = vmatprep.subr.mxu0 0.0
    %1725 = vmatpush1.msra.mxu0 0.0
    %1726 = vmatprep.subr.mxu0 0.0
    %1727 = vmatpush1.msra.mxu0 0.0
    %1728 = vmatprep.subr.mxu0 0.0
    %1729 = vmatpush1.msra.mxu0 0.0
    %1730 = vmatprep.subr.mxu0 0.0
    %1731 = vmatpush1.msra.mxu0 0.0
    %1732 = vmatprep.subr.mxu0 0.0
    %1733 = vmatpush1.msra.mxu0 0.0
    %1734 = vmatprep.subr.mxu0 0.0
    %1735 = vmatpush1.msra.mxu0 0.0
    %1736 = vmatprep.subr.mxu0 0.0
    %1737 = vmatpush1.msra.mxu0 0.0
    %1738 = vmatprep.subr.mxu0 0.0
    %1739 = vmatpush1.msra.mxu0 0.0
    %1740 = vmatprep.subr.mxu0 0.0
    %1741 = vmatpush1.msra.mxu0 0.0
    %1742 = vmatprep.subr.mxu0 0.0
    %1743 = vmatpush1.msra.mxu0 0.0
    %1744 = vmatprep.subr.mxu0 0.0
    %1745 = vmatpush1.msra.mxu0 0.0
    %1746 = vmatprep.subr.mxu0 0.0
    %1747 = vmatpush1.msra.mxu0 0.0
    %1748 = vmatprep.subr.mxu0 0.0
    %1749 = vmatpush1.msra.mxu0 0.0
    %1750 = vmatprep.subr.mxu0 0.0
    %1751 = vmatpush1.msra.mxu0 0.0
    %1752 = vmatprep.subr.mxu0 0.0
    %1753 = vmatpush1.msra.mxu0 0.0
    %1754 = vmatprep.subr.mxu0 0.0
    %1755 = vmatpush1.msra.mxu0 0.0
    %1756 = vmatprep.subr.mxu0 0.0
    %1757 = vmatpush1.msra.mxu0 0.0
    %1758 = vmatprep.subr.mxu0 0.0
    %1759 = vmatpush1.msra.mxu0 0.0
    %1760 = vmatprep.subr.mxu0 0.0
    %1761 = vmatpush1.msra.mxu0 0.0
    %1762 = vmatprep.subr.mxu0 0.0
    %1763 = vmatpush1.msra.mxu0 0.0
    %1764 = vmatprep.mubr.f32.mxu0 0.0
    %1765 = vmatmul.mubr.f32.gmra.mrb[0].mxu0 %v251
    %v1766 = vpop.f32.mrb[0].mxu0
    %v1767 = vadd.f32 0.0, %v1766
    %v1768 = vpop.f32.mrb[0].mxu0
    %1769 = vdwg.mxu0
    %v1770 = vadd.f32 %v1697, %v1767
    %v1771 = vxor.u32 %v1770, 2147483648
    %v1772 = vmul.f32 %v1771, 1.442695
    %v1773 = vpow.pop %v1772
    %v1774 = vadd.f32 %v1773, 1.0
    %v1775 = vrcp.pop %v1774
    %v1776 = vmul.f32 1.0, %v1775
    %1777 = vmatprep.subr.mxu0 0.0
    %1778 = vmatpush1.msra.mxu0 %v186
    %1779 = vmatprep.subr.mxu0 0.0
    %1780 = vmatpush1.msra.mxu0 %v187
    %1781 = vmatprep.subr.mxu0 0.0
    %1782 = vmatpush1.msra.mxu0 %v188
    %1783 = vmatprep.subr.mxu0 0.0
    %1784 = vmatpush1.msra.mxu0 %v189
    %1785 = vmatprep.subr.mxu0 0.0
    %1786 = vmatpush1.msra.mxu0 0.0
    %1787 = vmatprep.subr.mxu0 0.0
    %1788 = vmatpush1.msra.mxu0 0.0
    %1789 = vmatprep.subr.mxu0 0.0
    %1790 = vmatpush1.msra.mxu0 0.0
    %1791 = vmatprep.subr.mxu0 0.0
    %1792 = vmatpush1.msra.mxu0 0.0
    %1793 = vmatprep.subr.mxu0 0.0
    %1794 = vmatpush1.msra.mxu0 0.0
    %1795 = vmatprep.subr.mxu0 0.0
    %1796 = vmatpush1.msra.mxu0 0.0
    %1797 = vmatprep.subr.mxu0 0.0
    %1798 = vmatpush1.msra.mxu0 0.0
    %1799 = vmatprep.subr.mxu0 0.0
    %1800 = vmatpush1.msra.mxu0 0.0
    %1801 = vmatprep.subr.mxu0 0.0
    %1802 = vmatpush1.msra.mxu0 0.0
    %1803 = vmatprep.subr.mxu0 0.0
    %1804 = vmatpush1.msra.mxu0 0.0
    %1805 = vmatprep.subr.mxu0 0.0
    %1806 = vmatpush1.msra.mxu0 0.0
    %1807 = vmatprep.subr.mxu0 0.0
    %1808 = vmatpush1.msra.mxu0 0.0
    %1809 = vmatprep.subr.mxu0 0.0
    %1810 = vmatpush1.msra.mxu0 0.0
    %1811 = vmatprep.subr.mxu0 0.0
    %1812 = vmatpush1.msra.mxu0 0.0
    %1813 = vmatprep.subr.mxu0 0.0
    %1814 = vmatpush1.msra.mxu0 0.0
    %1815 = vmatprep.subr.mxu0 0.0
    %1816 = vmatpush1.msra.mxu0 0.0
    %1817 = vmatprep.subr.mxu0 0.0
    %1818 = vmatpush1.msra.mxu0 0.0
    %1819 = vmatprep.subr.mxu0 0.0
    %1820 = vmatpush1.msra.mxu0 0.0
    %1821 = vmatprep.subr.mxu0 0.0
    %1822 = vmatpush1.msra.mxu0 0.0
    %1823 = vmatprep.subr.mxu0 0.0
    %1824 = vmatpush1.msra.mxu0 0.0
    %1825 = vmatprep.subr.mxu0 0.0
    %1826 = vmatpush1.msra.mxu0 0.0
    %1827 = vmatprep.subr.mxu0 0.0
    %1828 = vmatpush1.msra.mxu0 0.0
    %1829 = vmatprep.subr.mxu0 0.0
    %1830 = vmatpush1.msra.mxu0 0.0
    %1831 = vmatprep.subr.mxu0 0.0
    %1832 = vmatpush1.msra.mxu0 0.0
    %1833 = vmatprep.subr.mxu0 0.0
    %1834 = vmatpush1.msra.mxu0 0.0
    %1835 = vmatprep.subr.mxu0 0.0
    %1836 = vmatpush1.msra.mxu0 0.0
    %1837 = vmatprep.subr.mxu0 0.0
    %1838 = vmatpush1.msra.mxu0 0.0
    %1839 = vmatprep.subr.mxu0 0.0
    %1840 = vmatpush1.msra.mxu0 0.0
    %1841 = vmatprep.mubr.f32.mxu0 0.0
    %1842 = vmatmul.mubr.f32.gmra.mrb[0].mxu0 %v1628
    %v1843 = vpop.f32.mrb[0].mxu0
    %v1844 = vadd.f32 %v238, %v1843
    %v1845 = vpop.f32.mrb[0].mxu0
    %1846 = vdwg.mxu0
    %1847 = vmatprep.subr.mxu0 0.0
    %1848 = vmatpush1.msra.mxu0 %v200
    %1849 = vmatprep.subr.mxu0 0.0
    %1850 = vmatpush1.msra.mxu0 %v201
    %1851 = vmatprep.subr.mxu0 0.0
    %1852 = vmatpush1.msra.mxu0 %v202
    %1853 = vmatprep.subr.mxu0 0.0
    %1854 = vmatpush1.msra.mxu0 %v203
    %1855 = vmatprep.subr.mxu0 0.0
    %1856 = vmatpush1.msra.mxu0 0.0
    %1857 = vmatprep.subr.mxu0 0.0
    %1858 = vmatpush1.msra.mxu0 0.0
    %1859 = vmatprep.subr.mxu0 0.0
    %1860 = vmatpush1.msra.mxu0 0.0
    %1861 = vmatprep.subr.mxu0 0.0
    %1862 = vmatpush1.msra.mxu0 0.0
    %1863 = vmatprep.subr.mxu0 0.0
    %1864 = vmatpush1.msra.mxu0 0.0
    %1865 = vmatprep.subr.mxu0 0.0
    %1866 = vmatpush1.msra.mxu0 0.0
    %1867 = vmatprep.subr.mxu0 0.0
    %1868 = vmatpush1.msra.mxu0 0.0
    %1869 = vmatprep.subr.mxu0 0.0
    %1870 = vmatpush1.msra.mxu0 0.0
    %1871 = vmatprep.subr.mxu0 0.0
    %1872 = vmatpush1.msra.mxu0 0.0
    %1873 = vmatprep.subr.mxu0 0.0
    %1874 = vmatpush1.msra.mxu0 0.0
    %1875 = vmatprep.subr.mxu0 0.0
    %1876 = vmatpush1.msra.mxu0 0.0
    %1877 = vmatprep.subr.mxu0 0.0
    %1878 = vmatpush1.msra.mxu0 0.0
    %1879 = vmatprep.subr.mxu0 0.0
    %1880 = vmatpush1.msra.mxu0 0.0
    %1881 = vmatprep.subr.mxu0 0.0
    %1882 = vmatpush1.msra.mxu0 0.0
    %1883 = vmatprep.subr.mxu0 0.0
    %1884 = vmatpush1.msra.mxu0 0.0
    %1885 = vmatprep.subr.mxu0 0.0
    %1886 = vmatpush1.msra.mxu0 0.0
    %1887 = vmatprep.subr.mxu0 0.0
    %1888 = vmatpush1.msra.mxu0 0.0
    %1889 = vmatprep.subr.mxu0 0.0
    %1890 = vmatpush1.msra.mxu0 0.0
    %1891 = vmatprep.subr.mxu0 0.0
    %1892 = vmatpush1.msra.mxu0 0.0
    %1893 = vmatprep.subr.mxu0 0.0
    %1894 = vmatpush1.msra.mxu0 0.0
    %1895 = vmatprep.subr.mxu0 0.0
    %1896 = vmatpush1.msra.mxu0 0.0
    %1897 = vmatprep.subr.mxu0 0.0
    %1898 = vmatpush1.msra.mxu0 0.0
    %1899 = vmatprep.subr.mxu0 0.0
    %1900 = vmatpush1.msra.mxu0 0.0
    %1901 = vmatprep.subr.mxu0 0.0
    %1902 = vmatpush1.msra.mxu0 0.0
    %1903 = vmatprep.subr.mxu0 0.0
    %1904 = vmatpush1.msra.mxu0 0.0
    %1905 = vmatprep.subr.mxu0 0.0
    %1906 = vmatpush1.msra.mxu0 0.0
    %1907 = vmatprep.subr.mxu0 0.0
    %1908 = vmatpush1.msra.mxu0 0.0
    %1909 = vmatprep.subr.mxu0 0.0
    %1910 = vmatpush1.msra.mxu0 0.0
    %1911 = vmatprep.mubr.f32.mxu0 0.0
    %1912 = vmatmul.mubr.f32.gmra.mrb[0].mxu0 %v251
    %v1913 = vpop.f32.mrb[0].mxu0
    %v1914 = vadd.f32 0.0, %v1913
    %v1915 = vpop.f32.mrb[0].mxu0
    %1916 = vdwg.mxu0
    %v1917 = vadd.f32 %v1844, %v1914
    %v1918 = vxor.u32 %v1917, 2147483648
    %v1919 = vmul.f32 %v1918, 1.442695
    %v1920 = vpow.pop %v1919
    %v1921 = vadd.f32 %v1920, 1.0
    %v1922 = vrcp.pop %v1921
    %v1923 = vmul.f32 1.0, %v1922
    %1924 = vmatprep.subr.mxu0 0.0
    %1925 = vmatpush1.msra.mxu0 %v191
    %1926 = vmatprep.subr.mxu0 0.0
    %1927 = vmatpush1.msra.mxu0 %v192
    %1928 = vmatprep.subr.mxu0 0.0
    %1929 = vmatpush1.msra.mxu0 %v193
    %1930 = vmatprep.subr.mxu0 0.0
    %1931 = vmatpush1.msra.mxu0 %v194
    %1932 = vmatprep.subr.mxu0 0.0
    %1933 = vmatpush1.msra.mxu0 0.0
    %1934 = vmatprep.subr.mxu0 0.0
    %1935 = vmatpush1.msra.mxu0 0.0
    %1936 = vmatprep.subr.mxu0 0.0
    %1937 = vmatpush1.msra.mxu0 0.0
    %1938 = vmatprep.subr.mxu0 0.0
    %1939 = vmatpush1.msra.mxu0 0.0
    %1940 = vmatprep.subr.mxu0 0.0
    %1941 = vmatpush1.msra.mxu0 0.0
    %1942 = vmatprep.subr.mxu0 0.0
    %1943 = vmatpush1.msra.mxu0 0.0
    %1944 = vmatprep.subr.mxu0 0.0
    %1945 = vmatpush1.msra.mxu0 0.0
    %1946 = vmatprep.subr.mxu0 0.0
    %1947 = vmatpush1.msra.mxu0 0.0
    %1948 = vmatprep.subr.mxu0 0.0
    %1949 = vmatpush1.msra.mxu0 0.0
    %1950 = vmatprep.subr.mxu0 0.0
    %1951 = vmatpush1.msra.mxu0 0.0
    %1952 = vmatprep.subr.mxu0 0.0
    %1953 = vmatpush1.msra.mxu0 0.0
    %1954 = vmatprep.subr.mxu0 0.0
    %1955 = vmatpush1.msra.mxu0 0.0
    %1956 = vmatprep.subr.mxu0 0.0
    %1957 = vmatpush1.msra.mxu0 0.0
    %1958 = vmatprep.subr.mxu0 0.0
    %1959 = vmatpush1.msra.mxu0 0.0
    %1960 = vmatprep.subr.mxu0 0.0
    %1961 = vmatpush1.msra.mxu0 0.0
    %1962 = vmatprep.subr.mxu0 0.0
    %1963 = vmatpush1.msra.mxu0 0.0
    %1964 = vmatprep.subr.mxu0 0.0
    %1965 = vmatpush1.msra.mxu0 0.0
    %1966 = vmatprep.subr.mxu0 0.0
    %1967 = vmatpush1.msra.mxu0 0.0
    %1968 = vmatprep.subr.mxu0 0.0
    %1969 = vmatpush1.msra.mxu0 0.0
    %1970 = vmatprep.subr.mxu0 0.0
    %1971 = vmatpush1.msra.mxu0 0.0
    %1972 = vmatprep.subr.mxu0 0.0
    %1973 = vmatpush1.msra.mxu0 0.0
    %1974 = vmatprep.subr.mxu0 0.0
    %1975 = vmatpush1.msra.mxu0 0.0
    %1976 = vmatprep.subr.mxu0 0.0
    %1977 = vmatpush1.msra.mxu0 0.0
    %1978 = vmatprep.subr.mxu0 0.0
    %1979 = vmatpush1.msra.mxu0 0.0
    %1980 = vmatprep.subr.mxu0 0.0
    %1981 = vmatpush1.msra.mxu0 0.0
    %1982 = vmatprep.subr.mxu0 0.0
    %1983 = vmatpush1.msra.mxu0 0.0
    %1984 = vmatprep.subr.mxu0 0.0
    %1985 = vmatpush1.msra.mxu0 0.0
    %1986 = vmatprep.subr.mxu0 0.0
    %1987 = vmatpush1.msra.mxu0 0.0
    %1988 = vmatprep.mubr.f32.mxu0 0.0
    %1989 = vmatmul.mubr.f32.gmra.mrb[0].mxu0 %v1628
    %v1990 = vpop.f32.mrb[0].mxu0
    %v1991 = vadd.f32 %v243, %v1990
    %v1992 = vpop.f32.mrb[0].mxu0
    %1993 = vdwg.mxu0
    %1994 = vmatprep.subr.mxu0 0.0
    %1995 = vmatpush1.msra.mxu0 %v205
    %1996 = vmatprep.subr.mxu0 0.0
    %1997 = vmatpush1.msra.mxu0 %v206
    %1998 = vmatprep.subr.mxu0 0.0
    %1999 = vmatpush1.msra.mxu0 %v207
    %2000 = vmatprep.subr.mxu0 0.0
    %2001 = vmatpush1.msra.mxu0 %v208
    %2002 = vmatprep.subr.mxu0 0.0
    %2003 = vmatpush1.msra.mxu0 0.0
    %2004 = vmatprep.subr.mxu0 0.0
    %2005 = vmatpush1.msra.mxu0 0.0
    %2006 = vmatprep.subr.mxu0 0.0
    %2007 = vmatpush1.msra.mxu0 0.0
    %2008 = vmatprep.subr.mxu0 0.0
    %2009 = vmatpush1.msra.mxu0 0.0
    %2010 = vmatprep.subr.mxu0 0.0
    %2011 = vmatpush1.msra.mxu0 0.0
    %2012 = vmatprep.subr.mxu0 0.0
    %2013 = vmatpush1.msra.mxu0 0.0
    %2014 = vmatprep.subr.mxu0 0.0
    %2015 = vmatpush1.msra.mxu0 0.0
    %2016 = vmatprep.subr.mxu0 0.0
    %2017 = vmatpush1.msra.mxu0 0.0
    %2018 = vmatprep.subr.mxu0 0.0
    %2019 = vmatpush1.msra.mxu0 0.0
    %2020 = vmatprep.subr.mxu0 0.0
    %2021 = vmatpush1.msra.mxu0 0.0
    %2022 = vmatprep.subr.mxu0 0.0
    %2023 = vmatpush1.msra.mxu0 0.0
    %2024 = vmatprep.subr.mxu0 0.0
    %2025 = vmatpush1.msra.mxu0 0.0
    %2026 = vmatprep.subr.mxu0 0.0
    %2027 = vmatpush1.msra.mxu0 0.0
    %2028 = vmatprep.subr.mxu0 0.0
    %2029 = vmatpush1.msra.mxu0 0.0
    %2030 = vmatprep.subr.mxu0 0.0
    %2031 = vmatpush1.msra.mxu0 0.0
    %2032 = vmatprep.subr.mxu0 0.0
    %2033 = vmatpush1.msra.mxu0 0.0
    %2034 = vmatprep.subr.mxu0 0.0
    %2035 = vmatpush1.msra.mxu0 0.0
    %2036 = vmatprep.subr.mxu0 0.0
    %2037 = vmatpush1.msra.mxu0 0.0
    %2038 = vmatprep.subr.mxu0 0.0
    %2039 = vmatpush1.msra.mxu0 0.0
    %2040 = vmatprep.subr.mxu0 0.0
    %2041 = vmatpush1.msra.mxu0 0.0
    %2042 = vmatprep.subr.mxu0 0.0
    %2043 = vmatpush1.msra.mxu0 0.0
    %2044 = vmatprep.subr.mxu0 0.0
    %2045 = vmatpush1.msra.mxu0 0.0
    %2046 = vmatprep.subr.mxu0 0.0
    %2047 = vmatpush1.msra.mxu0 0.0
    %2048 = vmatprep.subr.mxu0 0.0
    %2049 = vmatpush1.msra.mxu0 0.0
    %2050 = vmatprep.subr.mxu0 0.0
    %2051 = vmatpush1.msra.mxu0 0.0
    %2052 = vmatprep.subr.mxu0 0.0
    %2053 = vmatpush1.msra.mxu0 0.0
    %2054 = vmatprep.subr.mxu0 0.0
    %2055 = vmatpush1.msra.mxu0 0.0
    %2056 = vmatprep.subr.mxu0 0.0
    %2057 = vmatpush1.msra.mxu0 0.0
    %2058 = vmatprep.mubr.f32.mxu0 0.0
    %2059 = vmatmul.mubr.f32.gmra.mrb[0].mxu0 %v251
    %v2060 = vpop.f32.mrb[0].mxu0
    %v2061 = vadd.f32 %v248, %v2060
    %v2062 = vpop.f32.mrb[0].mxu0
    %2063 = vdwg.mxu0
    %v2064 = vmul.f32 %v1776, %v2061
    %v2065 = vadd.f32 %v1991, %v2064
    %v2066 = vtanh.pop %v2065
    %v2067 = vsub.f32 1.0, %v1923
    %v2068 = vmul.f32 %v2067, %v2066
    %v2069 = vmul.f32 %v1923, %v139
    %v2070 = vadd.f32 %v2068, %v2069
    %v2072 = vsel %vm249, %v2070, 0
    %2074 = vmatprep.subr.mxu0 0.0
    %2075 = vmatpush1.msra.mxu0 %v153
    %2076 = vmatprep.subr.mxu0 0.0
    %2077 = vmatpush1.msra.mxu0 %v154
    %2078 = vmatprep.subr.mxu0 0.0
    %2079 = vmatpush1.msra.mxu0 %v155
    %2080 = vmatprep.subr.mxu0 0.0
    %2081 = vmatpush1.msra.mxu0 %v156
    %2082 = vmatprep.subr.mxu0 0.0
    %2083 = vmatpush1.msra.mxu0 0.0
    %2084 = vmatprep.subr.mxu0 0.0
    %2085 = vmatpush1.msra.mxu0 0.0
    %2086 = vmatprep.subr.mxu0 0.0
    %2087 = vmatpush1.msra.mxu0 0.0
    %2088 = vmatprep.subr.mxu0 0.0
    %2089 = vmatpush1.msra.mxu0 0.0
    %2090 = vmatprep.subr.mxu0 0.0
    %2091 = vmatpush1.msra.mxu0 0.0
    %2092 = vmatprep.subr.mxu0 0.0
    %2093 = vmatpush1.msra.mxu0 0.0
    %2094 = vmatprep.subr.mxu0 0.0
    %2095 = vmatpush1.msra.mxu0 0.0
    %2096 = vmatprep.subr.mxu0 0.0
    %2097 = vmatpush1.msra.mxu0 0.0
    %2098 = vmatprep.subr.mxu0 0.0
    %2099 = vmatpush1.msra.mxu0 0.0
    %2100 = vmatprep.subr.mxu0 0.0
    %2101 = vmatpush1.msra.mxu0 0.0
    %2102 = vmatprep.subr.mxu0 0.0
    %2103 = vmatpush1.msra.mxu0 0.0
    %2104 = vmatprep.subr.mxu0 0.0
    %2105 = vmatpush1.msra.mxu0 0.0
    %2106 = vmatprep.subr.mxu0 0.0
    %2107 = vmatpush1.msra.mxu0 0.0
    %2108 = vmatprep.subr.mxu0 0.0
    %2109 = vmatpush1.msra.mxu0 0.0
    %2110 = vmatprep.subr.mxu0 0.0
    %2111 = vmatpush1.msra.mxu0 0.0
    %2112 = vmatprep.subr.mxu0 0.0
    %2113 = vmatpush1.msra.mxu0 0.0
    %2114 = vmatprep.subr.mxu0 0.0
    %2115 = vmatpush1.msra.mxu0 0.0
    %2116 = vmatprep.subr.mxu0 0.0
    %2117 = vmatpush1.msra.mxu0 0.0
    %2118 = vmatprep.subr.mxu0 0.0
    %2119 = vmatpush1.msra.mxu0 0.0
    %2120 = vmatprep.subr.mxu0 0.0
    %2121 = vmatpush1.msra.mxu0 0.0
    %2122 = vmatprep.subr.mxu0 0.0
    %2123 = vmatpush1.msra.mxu0 0.0
    %2124 = vmatprep.subr.mxu0 0.0
    %2125 = vmatpush1.msra.mxu0 0.0
    %2126 = vmatprep.subr.mxu0 0.0
    %2127 = vmatpush1.msra.mxu0 0.0
    %2128 = vmatprep.subr.mxu0 0.0
    %2129 = vmatpush1.msra.mxu0 0.0
    %2130 = vmatprep.subr.mxu0 0.0
    %2131 = vmatpush1.msra.mxu0 0.0
    %2132 = vmatprep.subr.mxu0 0.0
    %2133 = vmatpush1.msra.mxu0 0.0
    %2134 = vmatprep.subr.mxu0 0.0
    %2135 = vmatpush1.msra.mxu0 0.0
    %2136 = vmatprep.subr.mxu0 0.0
    %2137 = vmatpush1.msra.mxu0 0.0
    %2138 = vmatprep.mubr.f32.mxu0 0.0
    %2139 = vmatmul.mubr.f32.gmra.mrb[0].mxu0 %v2072
    %v2140 = vpop.f32.mrb[0].mxu0
    %v2141 = vadd.f32 0.0, %v2140
    %v2142 = vpop.f32.mrb[0].mxu0
    %2143 = vdwg.mxu0
    %v2144 = vpack.c.bf16 %v2141, %v2141
    %v2146 = vsel %vm341, %v2144, 0
    %2148 = vmatprep.subr.bf16.mxu0 0
    %2149 = vmatpush1.bf16.msra.mxu0 %v2146
    %2150 = vmatprep.subr.bf16.mxu0 0
    %2151 = vmatpush1.bf16.msra.mxu0 0
    %2152 = vmatprep.subr.bf16.mxu0 0
    %2153 = vmatpush1.bf16.msra.mxu0 0
    %2154 = vmatprep.subr.bf16.mxu0 0
    %2155 = vmatpush1.bf16.msra.mxu0 0
    %2156 = vmatprep.subr.bf16.mxu0 0
    %2157 = vmatpush1.bf16.msra.mxu0 0
    %2158 = vmatprep.subr.bf16.mxu0 0
    %2159 = vmatpush1.bf16.msra.mxu0 0
    %2160 = vmatprep.subr.bf16.mxu0 0
    %2161 = vmatpush1.bf16.msra.mxu0 0
    %2162 = vmatprep.subr.bf16.mxu0 0
    %2163 = vmatpush1.bf16.msra.mxu0 0
    %2164 = vmatprep.subr.bf16.mxu0 0
    %2165 = vmatpush1.bf16.msra.mxu0 0
    %2166 = vmatprep.subr.bf16.mxu0 0
    %2167 = vmatpush1.bf16.msra.mxu0 0
    %2168 = vmatprep.subr.bf16.mxu0 0
    %2169 = vmatpush1.bf16.msra.mxu0 0
    %2170 = vmatprep.subr.bf16.mxu0 0
    %2171 = vmatpush1.bf16.msra.mxu0 0
    %2172 = vmatprep.subr.bf16.mxu0 0
    %2173 = vmatpush1.bf16.msra.mxu0 0
    %2174 = vmatprep.subr.bf16.mxu0 0
    %2175 = vmatpush1.bf16.msra.mxu0 0
    %2176 = vmatprep.subr.bf16.mxu0 0
    %2177 = vmatpush1.bf16.msra.mxu0 0
    %2178 = vmatprep.subr.bf16.mxu0 0
    %2179 = vmatpush1.bf16.msra.mxu0 0
    %2180 = vmatprep.mubr.bf16.mxu0 0
    %2181 = vmatmul.mubr.bf16.gmra.mrb[0].mxu0 %v336
    %v2182 = vpop.f32.mrb[0].mxu0
    %v2183 = vadd.f32 %v213, %v2182
    %v2184 = vpop.f32.mrb[0].mxu0
    %v2185 = vpop.f32.mrb[0].mxu0
    %v2186 = vadd.f32 %v213, %v2185
    %v2187 = vpop.f32.mrb[0].mxu0
    %2188 = vmatprep.mubr.bf16.mxu0 0
    %2189 = vmatmul.mubr.bf16.gmra.mrb[0].mxu0 %v339
    %v2190 = vpop.f32.mrb[0].mxu0
    %v2191 = vadd.f32 %v213, %v2190
    %v2192 = vpop.f32.mrb[0].mxu0
    %v2193 = vpop.f32.mrb[0].mxu0
    %v2194 = vadd.f32 %v213, %v2193
    %v2195 = vpop.f32.mrb[0].mxu0
    %2196 = vdwg.mxu0
    %2197 = vmatprep.subr.mxu0 0.0
    %2198 = vmatpush1.msra.mxu0 %v158
    %2199 = vmatprep.subr.mxu0 0.0
    %2200 = vmatpush1.msra.mxu0 %v159
    %2201 = vmatprep.subr.mxu0 0.0
    %2202 = vmatpush1.msra.mxu0 %v160
    %2203 = vmatprep.subr.mxu0 0.0
    %2204 = vmatpush1.msra.mxu0 %v161
    %2205 = vmatprep.subr.mxu0 0.0
    %2206 = vmatpush1.msra.mxu0 0.0
    %2207 = vmatprep.subr.mxu0 0.0
    %2208 = vmatpush1.msra.mxu0 0.0
    %2209 = vmatprep.subr.mxu0 0.0
    %2210 = vmatpush1.msra.mxu0 0.0
    %2211 = vmatprep.subr.mxu0 0.0
    %2212 = vmatpush1.msra.mxu0 0.0
    %2213 = vmatprep.subr.mxu0 0.0
    %2214 = vmatpush1.msra.mxu0 0.0
    %2215 = vmatprep.subr.mxu0 0.0
    %2216 = vmatpush1.msra.mxu0 0.0
    %2217 = vmatprep.subr.mxu0 0.0
    %2218 = vmatpush1.msra.mxu0 0.0
    %2219 = vmatprep.subr.mxu0 0.0
    %2220 = vmatpush1.msra.mxu0 0.0
    %2221 = vmatprep.subr.mxu0 0.0
    %2222 = vmatpush1.msra.mxu0 0.0
    %2223 = vmatprep.subr.mxu0 0.0
    %2224 = vmatpush1.msra.mxu0 0.0
    %2225 = vmatprep.subr.mxu0 0.0
    %2226 = vmatpush1.msra.mxu0 0.0
    %2227 = vmatprep.subr.mxu0 0.0
    %2228 = vmatpush1.msra.mxu0 0.0
    %2229 = vmatprep.subr.mxu0 0.0
    %2230 = vmatpush1.msra.mxu0 0.0
    %2231 = vmatprep.subr.mxu0 0.0
    %2232 = vmatpush1.msra.mxu0 0.0
    %2233 = vmatprep.subr.mxu0 0.0
    %2234 = vmatpush1.msra.mxu0 0.0
    %2235 = vmatprep.subr.mxu0 0.0
    %2236 = vmatpush1.msra.mxu0 0.0
    %2237 = vmatprep.subr.mxu0 0.0
    %2238 = vmatpush1.msra.mxu0 0.0
    %2239 = vmatprep.subr.mxu0 0.0
    %2240 = vmatpush1.msra.mxu0 0.0
    %2241 = vmatprep.subr.mxu0 0.0
    %2242 = vmatpush1.msra.mxu0 0.0
    %2243 = vmatprep.subr.mxu0 0.0
    %2244 = vmatpush1.msra.mxu0 0.0
    %2245 = vmatprep.subr.mxu0 0.0
    %2246 = vmatpush1.msra.mxu0 0.0
    %2247 = vmatprep.subr.mxu0 0.0
    %2248 = vmatpush1.msra.mxu0 0.0
    %2249 = vmatprep.subr.mxu0 0.0
    %2250 = vmatpush1.msra.mxu0 0.0
    %2251 = vmatprep.subr.mxu0 0.0
    %2252 = vmatpush1.msra.mxu0 0.0
    %2253 = vmatprep.subr.mxu0 0.0
    %2254 = vmatpush1.msra.mxu0 0.0
    %2255 = vmatprep.subr.mxu0 0.0
    %2256 = vmatpush1.msra.mxu0 0.0
    %2257 = vmatprep.subr.mxu0 0.0
    %2258 = vmatpush1.msra.mxu0 0.0
    %2259 = vmatprep.subr.mxu0 0.0
    %2260 = vmatpush1.msra.mxu0 0.0
    %2261 = vmatprep.mubr.f32.mxu0 0.0
    %2262 = vmatmul.mubr.f32.gmra.mrb[0].mxu0 %v2072
    %v2263 = vpop.f32.mrb[0].mxu0
    %v2264 = vadd.f32 0.0, %v2263
    %v2265 = vpop.f32.mrb[0].mxu0
    %2266 = vdwg.mxu0
    %v2267 = vpack.c.bf16 %v2264, %v2264
    %v2269 = vsel %vm341, %v2267, 0
    %2271 = vmatprep.subr.bf16.mxu0 0
    %2272 = vmatpush1.bf16.msra.mxu0 %v2269
    %2273 = vmatprep.subr.bf16.mxu0 0
    %2274 = vmatpush1.bf16.msra.mxu0 0
    %2275 = vmatprep.subr.bf16.mxu0 0
    %2276 = vmatpush1.bf16.msra.mxu0 0
    %2277 = vmatprep.subr.bf16.mxu0 0
    %2278 = vmatpush1.bf16.msra.mxu0 0
    %2279 = vmatprep.subr.bf16.mxu0 0
    %2280 = vmatpush1.bf16.msra.mxu0 0
    %2281 = vmatprep.subr.bf16.mxu0 0
    %2282 = vmatpush1.bf16.msra.mxu0 0
    %2283 = vmatprep.subr.bf16.mxu0 0
    %2284 = vmatpush1.bf16.msra.mxu0 0
    %2285 = vmatprep.subr.bf16.mxu0 0
    %2286 = vmatpush1.bf16.msra.mxu0 0
    %2287 = vmatprep.subr.bf16.mxu0 0
    %2288 = vmatpush1.bf16.msra.mxu0 0
    %2289 = vmatprep.subr.bf16.mxu0 0
    %2290 = vmatpush1.bf16.msra.mxu0 0
    %2291 = vmatprep.subr.bf16.mxu0 0
    %2292 = vmatpush1.bf16.msra.mxu0 0
    %2293 = vmatprep.subr.bf16.mxu0 0
    %2294 = vmatpush1.bf16.msra.mxu0 0
    %2295 = vmatprep.subr.bf16.mxu0 0
    %2296 = vmatpush1.bf16.msra.mxu0 0
    %2297 = vmatprep.subr.bf16.mxu0 0
    %2298 = vmatpush1.bf16.msra.mxu0 0
    %2299 = vmatprep.subr.bf16.mxu0 0
    %2300 = vmatpush1.bf16.msra.mxu0 0
    %2301 = vmatprep.subr.bf16.mxu0 0
    %2302 = vmatpush1.bf16.msra.mxu0 0
    %2303 = vmatprep.mubr.bf16.mxu0 0
    %2304 = vmatmul.mubr.bf16.gmra.mrb[0].mxu0 %v336
    %v2305 = vpop.f32.mrb[0].mxu0
    %v2306 = vadd.f32 %v218, %v2305
    %v2307 = vpop.f32.mrb[0].mxu0
    %v2308 = vpop.f32.mrb[0].mxu0
    %v2309 = vadd.f32 %v218, %v2308
    %v2310 = vpop.f32.mrb[0].mxu0
    %2311 = vmatprep.mubr.bf16.mxu0 0
    %2312 = vmatmul.mubr.bf16.gmra.mrb[0].mxu0 %v339
    %v2313 = vpop.f32.mrb[0].mxu0
    %v2314 = vadd.f32 %v218, %v2313
    %v2315 = vpop.f32.mrb[0].mxu0
    %v2316 = vpop.f32.mrb[0].mxu0
    %v2317 = vadd.f32 %v218, %v2316
    %v2318 = vpop.f32.mrb[0].mxu0
    %2319 = vdwg.mxu0
    %2320 = vmatprep.subr.mxu0 0.0
    %2321 = vmatpush1.msra.mxu0 %v163
    %2322 = vmatprep.subr.mxu0 0.0
    %2323 = vmatpush1.msra.mxu0 %v164
    %2324 = vmatprep.subr.mxu0 0.0
    %2325 = vmatpush1.msra.mxu0 %v165
    %2326 = vmatprep.subr.mxu0 0.0
    %2327 = vmatpush1.msra.mxu0 %v166
    %2328 = vmatprep.subr.mxu0 0.0
    %2329 = vmatpush1.msra.mxu0 0.0
    %2330 = vmatprep.subr.mxu0 0.0
    %2331 = vmatpush1.msra.mxu0 0.0
    %2332 = vmatprep.subr.mxu0 0.0
    %2333 = vmatpush1.msra.mxu0 0.0
    %2334 = vmatprep.subr.mxu0 0.0
    %2335 = vmatpush1.msra.mxu0 0.0
    %2336 = vmatprep.subr.mxu0 0.0
    %2337 = vmatpush1.msra.mxu0 0.0
    %2338 = vmatprep.subr.mxu0 0.0
    %2339 = vmatpush1.msra.mxu0 0.0
    %2340 = vmatprep.subr.mxu0 0.0
    %2341 = vmatpush1.msra.mxu0 0.0
    %2342 = vmatprep.subr.mxu0 0.0
    %2343 = vmatpush1.msra.mxu0 0.0
    %2344 = vmatprep.subr.mxu0 0.0
    %2345 = vmatpush1.msra.mxu0 0.0
    %2346 = vmatprep.subr.mxu0 0.0
    %2347 = vmatpush1.msra.mxu0 0.0
    %2348 = vmatprep.subr.mxu0 0.0
    %2349 = vmatpush1.msra.mxu0 0.0
    %2350 = vmatprep.subr.mxu0 0.0
    %2351 = vmatpush1.msra.mxu0 0.0
    %2352 = vmatprep.subr.mxu0 0.0
    %2353 = vmatpush1.msra.mxu0 0.0
    %2354 = vmatprep.subr.mxu0 0.0
    %2355 = vmatpush1.msra.mxu0 0.0
    %2356 = vmatprep.subr.mxu0 0.0
    %2357 = vmatpush1.msra.mxu0 0.0
    %2358 = vmatprep.subr.mxu0 0.0
    %2359 = vmatpush1.msra.mxu0 0.0
    %2360 = vmatprep.subr.mxu0 0.0
    %2361 = vmatpush1.msra.mxu0 0.0
    %2362 = vmatprep.subr.mxu0 0.0
    %2363 = vmatpush1.msra.mxu0 0.0
    %2364 = vmatprep.subr.mxu0 0.0
    %2365 = vmatpush1.msra.mxu0 0.0
    %2366 = vmatprep.subr.mxu0 0.0
    %2367 = vmatpush1.msra.mxu0 0.0
    %2368 = vmatprep.subr.mxu0 0.0
    %2369 = vmatpush1.msra.mxu0 0.0
    %2370 = vmatprep.subr.mxu0 0.0
    %2371 = vmatpush1.msra.mxu0 0.0
    %2372 = vmatprep.subr.mxu0 0.0
    %2373 = vmatpush1.msra.mxu0 0.0
    %2374 = vmatprep.subr.mxu0 0.0
    %2375 = vmatpush1.msra.mxu0 0.0
    %2376 = vmatprep.subr.mxu0 0.0
    %2377 = vmatpush1.msra.mxu0 0.0
    %2378 = vmatprep.subr.mxu0 0.0
    %2379 = vmatpush1.msra.mxu0 0.0
    %2380 = vmatprep.subr.mxu0 0.0
    %2381 = vmatpush1.msra.mxu0 0.0
    %2382 = vmatprep.subr.mxu0 0.0
    %2383 = vmatpush1.msra.mxu0 0.0
    %2384 = vmatprep.mubr.f32.mxu0 0.0
    %2385 = vmatmul.mubr.f32.gmra.mrb[0].mxu0 %v2072
    %v2386 = vpop.f32.mrb[0].mxu0
    %v2387 = vadd.f32 0.0, %v2386
    %v2388 = vpop.f32.mrb[0].mxu0
    %2389 = vdwg.mxu0
    %v2390 = vpack.c.bf16 %v2387, %v2387
    %v2392 = vsel %vm341, %v2390, 0
    %2394 = vmatprep.subr.bf16.mxu0 0
    %2395 = vmatpush1.bf16.msra.mxu0 %v2392
    %2396 = vmatprep.subr.bf16.mxu0 0
    %2397 = vmatpush1.bf16.msra.mxu0 0
    %2398 = vmatprep.subr.bf16.mxu0 0
    %2399 = vmatpush1.bf16.msra.mxu0 0
    %2400 = vmatprep.subr.bf16.mxu0 0
    %2401 = vmatpush1.bf16.msra.mxu0 0
    %2402 = vmatprep.subr.bf16.mxu0 0
    %2403 = vmatpush1.bf16.msra.mxu0 0
    %2404 = vmatprep.subr.bf16.mxu0 0
    %2405 = vmatpush1.bf16.msra.mxu0 0
    %2406 = vmatprep.subr.bf16.mxu0 0
    %2407 = vmatpush1.bf16.msra.mxu0 0
    %2408 = vmatprep.subr.bf16.mxu0 0
    %2409 = vmatpush1.bf16.msra.mxu0 0
    %2410 = vmatprep.subr.bf16.mxu0 0
    %2411 = vmatpush1.bf16.msra.mxu0 0
    %2412 = vmatprep.subr.bf16.mxu0 0
    %2413 = vmatpush1.bf16.msra.mxu0 0
    %2414 = vmatprep.subr.bf16.mxu0 0
    %2415 = vmatpush1.bf16.msra.mxu0 0
    %2416 = vmatprep.subr.bf16.mxu0 0
    %2417 = vmatpush1.bf16.msra.mxu0 0
    %2418 = vmatprep.subr.bf16.mxu0 0
    %2419 = vmatpush1.bf16.msra.mxu0 0
    %2420 = vmatprep.subr.bf16.mxu0 0
    %2421 = vmatpush1.bf16.msra.mxu0 0
    %2422 = vmatprep.subr.bf16.mxu0 0
    %2423 = vmatpush1.bf16.msra.mxu0 0
    %2424 = vmatprep.subr.bf16.mxu0 0
    %2425 = vmatpush1.bf16.msra.mxu0 0
    %2426 = vmatprep.mubr.bf16.mxu0 0
    %2427 = vmatmul.mubr.bf16.gmra.mrb[0].mxu0 %v336
    %v2428 = vpop.f32.mrb[0].mxu0
    %v2429 = vadd.f32 %v223, %v2428
    %v2430 = vpop.f32.mrb[0].mxu0
    %v2431 = vpop.f32.mrb[0].mxu0
    %v2432 = vadd.f32 %v223, %v2431
    %v2433 = vpop.f32.mrb[0].mxu0
    %2434 = vmatprep.mubr.bf16.mxu0 0
    %2435 = vmatmul.mubr.bf16.gmra.mrb[0].mxu0 %v339
    %v2436 = vpop.f32.mrb[0].mxu0
    %v2437 = vadd.f32 %v223, %v2436
    %v2438 = vpop.f32.mrb[0].mxu0
    %v2439 = vpop.f32.mrb[0].mxu0
    %v2440 = vadd.f32 %v223, %v2439
    %v2441 = vpop.f32.mrb[0].mxu0
    %2442 = vdwg.mxu0
    %v2444 = vsel %vm249, %v1579, 0
    %2446 = vmatprep.subr.mxu0 0.0
    %2447 = vmatpush1.msra.mxu0 %v167
    %2448 = vmatprep.subr.mxu0 0.0
    %2449 = vmatpush1.msra.mxu0 %v168
    %2450 = vmatprep.subr.mxu0 0.0
    %2451 = vmatpush1.msra.mxu0 %v169
    %2452 = vmatprep.subr.mxu0 0.0
    %2453 = vmatpush1.msra.mxu0 %v170
    %2454 = vmatprep.subr.mxu0 0.0
    %2455 = vmatpush1.msra.mxu0 0.0
    %2456 = vmatprep.subr.mxu0 0.0
    %2457 = vmatpush1.msra.mxu0 0.0
    %2458 = vmatprep.subr.mxu0 0.0
    %2459 = vmatpush1.msra.mxu0 0.0
    %2460 = vmatprep.subr.mxu0 0.0
    %2461 = vmatpush1.msra.mxu0 0.0
    %2462 = vmatprep.subr.mxu0 0.0
    %2463 = vmatpush1.msra.mxu0 0.0
    %2464 = vmatprep.subr.mxu0 0.0
    %2465 = vmatpush1.msra.mxu0 0.0
    %2466 = vmatprep.subr.mxu0 0.0
    %2467 = vmatpush1.msra.mxu0 0.0
    %2468 = vmatprep.subr.mxu0 0.0
    %2469 = vmatpush1.msra.mxu0 0.0
    %2470 = vmatprep.subr.mxu0 0.0
    %2471 = vmatpush1.msra.mxu0 0.0
    %2472 = vmatprep.subr.mxu0 0.0
    %2473 = vmatpush1.msra.mxu0 0.0
    %2474 = vmatprep.subr.mxu0 0.0
    %2475 = vmatpush1.msra.mxu0 0.0
    %2476 = vmatprep.subr.mxu0 0.0
    %2477 = vmatpush1.msra.mxu0 0.0
    %2478 = vmatprep.subr.mxu0 0.0
    %2479 = vmatpush1.msra.mxu0 0.0
    %2480 = vmatprep.subr.mxu0 0.0
    %2481 = vmatpush1.msra.mxu0 0.0
    %2482 = vmatprep.subr.mxu0 0.0
    %2483 = vmatpush1.msra.mxu0 0.0
    %2484 = vmatprep.subr.mxu0 0.0
    %2485 = vmatpush1.msra.mxu0 0.0
    %2486 = vmatprep.subr.mxu0 0.0
    %2487 = vmatpush1.msra.mxu0 0.0
    %2488 = vmatprep.subr.mxu0 0.0
    %2489 = vmatpush1.msra.mxu0 0.0
    %2490 = vmatprep.subr.mxu0 0.0
    %2491 = vmatpush1.msra.mxu0 0.0
    %2492 = vmatprep.subr.mxu0 0.0
    %2493 = vmatpush1.msra.mxu0 0.0
    %2494 = vmatprep.subr.mxu0 0.0
    %2495 = vmatpush1.msra.mxu0 0.0
    %2496 = vmatprep.subr.mxu0 0.0
    %2497 = vmatpush1.msra.mxu0 0.0
    %2498 = vmatprep.subr.mxu0 0.0
    %2499 = vmatpush1.msra.mxu0 0.0
    %2500 = vmatprep.subr.mxu0 0.0
    %2501 = vmatpush1.msra.mxu0 0.0
    %2502 = vmatprep.subr.mxu0 0.0
    %2503 = vmatpush1.msra.mxu0 0.0
    %2504 = vmatprep.subr.mxu0 0.0
    %2505 = vmatpush1.msra.mxu0 0.0
    %2506 = vmatprep.subr.mxu0 0.0
    %2507 = vmatpush1.msra.mxu0 0.0
    %2508 = vmatprep.subr.mxu0 0.0
    %2509 = vmatpush1.msra.mxu0 0.0
    %2510 = vmatprep.mubr.f32.mxu0 0.0
    %2511 = vmatmul.mubr.f32.gmra.mrb[0].mxu0 %v2444
    %v2512 = vpop.f32.mrb[0].mxu0
    %v2513 = vadd.f32 0.0, %v2512
    %v2514 = vpop.f32.mrb[0].mxu0
    %2515 = vdwg.mxu0
    %v2516 = vadd.f32 %v2183, %v2513
    %v2517 = vxor.u32 %v2516, 2147483648
    %v2518 = vmul.f32 %v2517, 1.442695
    %v2519 = vpow.pop %v2518
    %v2520 = vadd.f32 %v2519, 1.0
    %v2521 = vrcp.pop %v2520
    %v2522 = vmul.f32 1.0, %v2521
    %2523 = vmatprep.subr.mxu0 0.0
    %2524 = vmatpush1.msra.mxu0 %v172
    %2525 = vmatprep.subr.mxu0 0.0
    %2526 = vmatpush1.msra.mxu0 %v173
    %2527 = vmatprep.subr.mxu0 0.0
    %2528 = vmatpush1.msra.mxu0 %v174
    %2529 = vmatprep.subr.mxu0 0.0
    %2530 = vmatpush1.msra.mxu0 %v175
    %2531 = vmatprep.subr.mxu0 0.0
    %2532 = vmatpush1.msra.mxu0 0.0
    %2533 = vmatprep.subr.mxu0 0.0
    %2534 = vmatpush1.msra.mxu0 0.0
    %2535 = vmatprep.subr.mxu0 0.0
    %2536 = vmatpush1.msra.mxu0 0.0
    %2537 = vmatprep.subr.mxu0 0.0
    %2538 = vmatpush1.msra.mxu0 0.0
    %2539 = vmatprep.subr.mxu0 0.0
    %2540 = vmatpush1.msra.mxu0 0.0
    %2541 = vmatprep.subr.mxu0 0.0
    %2542 = vmatpush1.msra.mxu0 0.0
    %2543 = vmatprep.subr.mxu0 0.0
    %2544 = vmatpush1.msra.mxu0 0.0
    %2545 = vmatprep.subr.mxu0 0.0
    %2546 = vmatpush1.msra.mxu0 0.0
    %2547 = vmatprep.subr.mxu0 0.0
    %2548 = vmatpush1.msra.mxu0 0.0
    %2549 = vmatprep.subr.mxu0 0.0
    %2550 = vmatpush1.msra.mxu0 0.0
    %2551 = vmatprep.subr.mxu0 0.0
    %2552 = vmatpush1.msra.mxu0 0.0
    %2553 = vmatprep.subr.mxu0 0.0
    %2554 = vmatpush1.msra.mxu0 0.0
    %2555 = vmatprep.subr.mxu0 0.0
    %2556 = vmatpush1.msra.mxu0 0.0
    %2557 = vmatprep.subr.mxu0 0.0
    %2558 = vmatpush1.msra.mxu0 0.0
    %2559 = vmatprep.subr.mxu0 0.0
    %2560 = vmatpush1.msra.mxu0 0.0
    %2561 = vmatprep.subr.mxu0 0.0
    %2562 = vmatpush1.msra.mxu0 0.0
    %2563 = vmatprep.subr.mxu0 0.0
    %2564 = vmatpush1.msra.mxu0 0.0
    %2565 = vmatprep.subr.mxu0 0.0
    %2566 = vmatpush1.msra.mxu0 0.0
    %2567 = vmatprep.subr.mxu0 0.0
    %2568 = vmatpush1.msra.mxu0 0.0
    %2569 = vmatprep.subr.mxu0 0.0
    %2570 = vmatpush1.msra.mxu0 0.0
    %2571 = vmatprep.subr.mxu0 0.0
    %2572 = vmatpush1.msra.mxu0 0.0
    %2573 = vmatprep.subr.mxu0 0.0
    %2574 = vmatpush1.msra.mxu0 0.0
    %2575 = vmatprep.subr.mxu0 0.0
    %2576 = vmatpush1.msra.mxu0 0.0
    %2577 = vmatprep.subr.mxu0 0.0
    %2578 = vmatpush1.msra.mxu0 0.0
    %2579 = vmatprep.subr.mxu0 0.0
    %2580 = vmatpush1.msra.mxu0 0.0
    %2581 = vmatprep.subr.mxu0 0.0
    %2582 = vmatpush1.msra.mxu0 0.0
    %2583 = vmatprep.subr.mxu0 0.0
    %2584 = vmatpush1.msra.mxu0 0.0
    %2585 = vmatprep.subr.mxu0 0.0
    %2586 = vmatpush1.msra.mxu0 0.0
    %2587 = vmatprep.mubr.f32.mxu0 0.0
    %2588 = vmatmul.mubr.f32.gmra.mrb[0].mxu0 %v2444
    %v2589 = vpop.f32.mrb[0].mxu0
    %v2590 = vadd.f32 0.0, %v2589
    %v2591 = vpop.f32.mrb[0].mxu0
    %2592 = vdwg.mxu0
    %v2593 = vadd.f32 %v2306, %v2590
    %v2594 = vxor.u32 %v2593, 2147483648
    %v2595 = vmul.f32 %v2594, 1.442695
    %v2596 = vpow.pop %v2595
    %v2597 = vadd.f32 %v2596, 1.0
    %v2598 = vrcp.pop %v2597
    %v2599 = vmul.f32 1.0, %v2598
    %2600 = vmatprep.subr.mxu0 0.0
    %2601 = vmatpush1.msra.mxu0 %v177
    %2602 = vmatprep.subr.mxu0 0.0
    %2603 = vmatpush1.msra.mxu0 %v178
    %2604 = vmatprep.subr.mxu0 0.0
    %2605 = vmatpush1.msra.mxu0 %v179
    %2606 = vmatprep.subr.mxu0 0.0
    %2607 = vmatpush1.msra.mxu0 %v180
    %2608 = vmatprep.subr.mxu0 0.0
    %2609 = vmatpush1.msra.mxu0 0.0
    %2610 = vmatprep.subr.mxu0 0.0
    %2611 = vmatpush1.msra.mxu0 0.0
    %2612 = vmatprep.subr.mxu0 0.0
    %2613 = vmatpush1.msra.mxu0 0.0
    %2614 = vmatprep.subr.mxu0 0.0
    %2615 = vmatpush1.msra.mxu0 0.0
    %2616 = vmatprep.subr.mxu0 0.0
    %2617 = vmatpush1.msra.mxu0 0.0
    %2618 = vmatprep.subr.mxu0 0.0
    %2619 = vmatpush1.msra.mxu0 0.0
    %2620 = vmatprep.subr.mxu0 0.0
    %2621 = vmatpush1.msra.mxu0 0.0
    %2622 = vmatprep.subr.mxu0 0.0
    %2623 = vmatpush1.msra.mxu0 0.0
    %2624 = vmatprep.subr.mxu0 0.0
    %2625 = vmatpush1.msra.mxu0 0.0
    %2626 = vmatprep.subr.mxu0 0.0
    %2627 = vmatpush1.msra.mxu0 0.0
    %2628 = vmatprep.subr.mxu0 0.0
    %2629 = vmatpush1.msra.mxu0 0.0
    %2630 = vmatprep.subr.mxu0 0.0
    %2631 = vmatpush1.msra.mxu0 0.0
    %2632 = vmatprep.subr.mxu0 0.0
    %2633 = vmatpush1.msra.mxu0 0.0
    %2634 = vmatprep.subr.mxu0 0.0
    %2635 = vmatpush1.msra.mxu0 0.0
    %2636 = vmatprep.subr.mxu0 0.0
    %2637 = vmatpush1.msra.mxu0 0.0
    %2638 = vmatprep.subr.mxu0 0.0
    %2639 = vmatpush1.msra.mxu0 0.0
    %2640 = vmatprep.subr.mxu0 0.0
    %2641 = vmatpush1.msra.mxu0 0.0
    %2642 = vmatprep.subr.mxu0 0.0
    %2643 = vmatpush1.msra.mxu0 0.0
    %2644 = vmatprep.subr.mxu0 0.0
    %2645 = vmatpush1.msra.mxu0 0.0
    %2646 = vmatprep.subr.mxu0 0.0
    %2647 = vmatpush1.msra.mxu0 0.0
    %2648 = vmatprep.subr.mxu0 0.0
    %2649 = vmatpush1.msra.mxu0 0.0
    %2650 = vmatprep.subr.mxu0 0.0
    %2651 = vmatpush1.msra.mxu0 0.0
    %2652 = vmatprep.subr.mxu0 0.0
    %2653 = vmatpush1.msra.mxu0 0.0
    %2654 = vmatprep.subr.mxu0 0.0
    %2655 = vmatpush1.msra.mxu0 0.0
    %2656 = vmatprep.subr.mxu0 0.0
    %2657 = vmatpush1.msra.mxu0 0.0
    %2658 = vmatprep.subr.mxu0 0.0
    %2659 = vmatpush1.msra.mxu0 0.0
    %2660 = vmatprep.subr.mxu0 0.0
    %2661 = vmatpush1.msra.mxu0 0.0
    %2662 = vmatprep.subr.mxu0 0.0
    %2663 = vmatpush1.msra.mxu0 0.0
    %2664 = vmatprep.mubr.f32.mxu0 0.0
    %2665 = vmatmul.mubr.f32.gmra.mrb[0].mxu0 %v2444
    %v2666 = vpop.f32.mrb[0].mxu0
    %v2667 = vadd.f32 %v228, %v2666
    %v2668 = vpop.f32.mrb[0].mxu0
    %2669 = vdwg.mxu0
    %v2670 = vmul.f32 %v2522, %v2667
    %v2671 = vadd.f32 %v2429, %v2670
    %v2672 = vtanh.pop %v2671
    %v2673 = vsub.f32 1.0, %v2599
    %v2674 = vmul.f32 %v2673, %v2672
    %v2675 = vmul.f32 %v2599, %v1579
    %v2676 = vadd.f32 %v2674, %v2675
    %v2677 = vsel %vm149, %v2676, %v1579
    %v2679 = vsel %vm249, %v2677, 0
    %2681 = vmatprep.subr.mxu0 0.0
    %2682 = vmatpush1.msra.mxu0 %v167
    %2683 = vmatprep.subr.mxu0 0.0
    %2684 = vmatpush1.msra.mxu0 %v168
    %2685 = vmatprep.subr.mxu0 0.0
    %2686 = vmatpush1.msra.mxu0 %v169
    %2687 = vmatprep.subr.mxu0 0.0
    %2688 = vmatpush1.msra.mxu0 %v170
    %2689 = vmatprep.subr.mxu0 0.0
    %2690 = vmatpush1.msra.mxu0 0.0
    %2691 = vmatprep.subr.mxu0 0.0
    %2692 = vmatpush1.msra.mxu0 0.0
    %2693 = vmatprep.subr.mxu0 0.0
    %2694 = vmatpush1.msra.mxu0 0.0
    %2695 = vmatprep.subr.mxu0 0.0
    %2696 = vmatpush1.msra.mxu0 0.0
    %2697 = vmatprep.subr.mxu0 0.0
    %2698 = vmatpush1.msra.mxu0 0.0
    %2699 = vmatprep.subr.mxu0 0.0
    %2700 = vmatpush1.msra.mxu0 0.0
    %2701 = vmatprep.subr.mxu0 0.0
    %2702 = vmatpush1.msra.mxu0 0.0
    %2703 = vmatprep.subr.mxu0 0.0
    %2704 = vmatpush1.msra.mxu0 0.0
    %2705 = vmatprep.subr.mxu0 0.0
    %2706 = vmatpush1.msra.mxu0 0.0
    %2707 = vmatprep.subr.mxu0 0.0
    %2708 = vmatpush1.msra.mxu0 0.0
    %2709 = vmatprep.subr.mxu0 0.0
    %2710 = vmatpush1.msra.mxu0 0.0
    %2711 = vmatprep.subr.mxu0 0.0
    %2712 = vmatpush1.msra.mxu0 0.0
    %2713 = vmatprep.subr.mxu0 0.0
    %2714 = vmatpush1.msra.mxu0 0.0
    %2715 = vmatprep.subr.mxu0 0.0
    %2716 = vmatpush1.msra.mxu0 0.0
    %2717 = vmatprep.subr.mxu0 0.0
    %2718 = vmatpush1.msra.mxu0 0.0
    %2719 = vmatprep.subr.mxu0 0.0
    %2720 = vmatpush1.msra.mxu0 0.0
    %2721 = vmatprep.subr.mxu0 0.0
    %2722 = vmatpush1.msra.mxu0 0.0
    %2723 = vmatprep.subr.mxu0 0.0
    %2724 = vmatpush1.msra.mxu0 0.0
    %2725 = vmatprep.subr.mxu0 0.0
    %2726 = vmatpush1.msra.mxu0 0.0
    %2727 = vmatprep.subr.mxu0 0.0
    %2728 = vmatpush1.msra.mxu0 0.0
    %2729 = vmatprep.subr.mxu0 0.0
    %2730 = vmatpush1.msra.mxu0 0.0
    %2731 = vmatprep.subr.mxu0 0.0
    %2732 = vmatpush1.msra.mxu0 0.0
    %2733 = vmatprep.subr.mxu0 0.0
    %2734 = vmatpush1.msra.mxu0 0.0
    %2735 = vmatprep.subr.mxu0 0.0
    %2736 = vmatpush1.msra.mxu0 0.0
    %2737 = vmatprep.subr.mxu0 0.0
    %2738 = vmatpush1.msra.mxu0 0.0
    %2739 = vmatprep.subr.mxu0 0.0
    %2740 = vmatpush1.msra.mxu0 0.0
    %2741 = vmatprep.subr.mxu0 0.0
    %2742 = vmatpush1.msra.mxu0 0.0
    %2743 = vmatprep.subr.mxu0 0.0
    %2744 = vmatpush1.msra.mxu0 0.0
    %2745 = vmatprep.mubr.f32.mxu0 0.0
    %2746 = vmatmul.mubr.f32.gmra.mrb[0].mxu0 %v2679
    %v2747 = vpop.f32.mrb[0].mxu0
    %v2748 = vadd.f32 0.0, %v2747
    %v2749 = vpop.f32.mrb[0].mxu0
    %2750 = vdwg.mxu0
    %v2751 = vadd.f32 %v2186, %v2748
    %v2752 = vxor.u32 %v2751, 2147483648
    %v2753 = vmul.f32 %v2752, 1.442695
    %v2754 = vpow.pop %v2753
    %v2755 = vadd.f32 %v2754, 1.0
    %v2756 = vrcp.pop %v2755
    %v2757 = vmul.f32 1.0, %v2756
    %2758 = vmatprep.subr.mxu0 0.0
    %2759 = vmatpush1.msra.mxu0 %v172
    %2760 = vmatprep.subr.mxu0 0.0
    %2761 = vmatpush1.msra.mxu0 %v173
    %2762 = vmatprep.subr.mxu0 0.0
    %2763 = vmatpush1.msra.mxu0 %v174
    %2764 = vmatprep.subr.mxu0 0.0
    %2765 = vmatpush1.msra.mxu0 %v175
    %2766 = vmatprep.subr.mxu0 0.0
    %2767 = vmatpush1.msra.mxu0 0.0
    %2768 = vmatprep.subr.mxu0 0.0
    %2769 = vmatpush1.msra.mxu0 0.0
    %2770 = vmatprep.subr.mxu0 0.0
    %2771 = vmatpush1.msra.mxu0 0.0
    %2772 = vmatprep.subr.mxu0 0.0
    %2773 = vmatpush1.msra.mxu0 0.0
    %2774 = vmatprep.subr.mxu0 0.0
    %2775 = vmatpush1.msra.mxu0 0.0
    %2776 = vmatprep.subr.mxu0 0.0
    %2777 = vmatpush1.msra.mxu0 0.0
    %2778 = vmatprep.subr.mxu0 0.0
    %2779 = vmatpush1.msra.mxu0 0.0
    %2780 = vmatprep.subr.mxu0 0.0
    %2781 = vmatpush1.msra.mxu0 0.0
    %2782 = vmatprep.subr.mxu0 0.0
    %2783 = vmatpush1.msra.mxu0 0.0
    %2784 = vmatprep.subr.mxu0 0.0
    %2785 = vmatpush1.msra.mxu0 0.0
    %2786 = vmatprep.subr.mxu0 0.0
    %2787 = vmatpush1.msra.mxu0 0.0
    %2788 = vmatprep.subr.mxu0 0.0
    %2789 = vmatpush1.msra.mxu0 0.0
    %2790 = vmatprep.subr.mxu0 0.0
    %2791 = vmatpush1.msra.mxu0 0.0
    %2792 = vmatprep.subr.mxu0 0.0
    %2793 = vmatpush1.msra.mxu0 0.0
    %2794 = vmatprep.subr.mxu0 0.0
    %2795 = vmatpush1.msra.mxu0 0.0
    %2796 = vmatprep.subr.mxu0 0.0
    %2797 = vmatpush1.msra.mxu0 0.0
    %2798 = vmatprep.subr.mxu0 0.0
    %2799 = vmatpush1.msra.mxu0 0.0
    %2800 = vmatprep.subr.mxu0 0.0
    %2801 = vmatpush1.msra.mxu0 0.0
    %2802 = vmatprep.subr.mxu0 0.0
    %2803 = vmatpush1.msra.mxu0 0.0
    %2804 = vmatprep.subr.mxu0 0.0
    %2805 = vmatpush1.msra.mxu0 0.0
    %2806 = vmatprep.subr.mxu0 0.0
    %2807 = vmatpush1.msra.mxu0 0.0
    %2808 = vmatprep.subr.mxu0 0.0
    %2809 = vmatpush1.msra.mxu0 0.0
    %2810 = vmatprep.subr.mxu0 0.0
    %2811 = vmatpush1.msra.mxu0 0.0
    %2812 = vmatprep.subr.mxu0 0.0
    %2813 = vmatpush1.msra.mxu0 0.0
    %2814 = vmatprep.subr.mxu0 0.0
    %2815 = vmatpush1.msra.mxu0 0.0
    %2816 = vmatprep.subr.mxu0 0.0
    %2817 = vmatpush1.msra.mxu0 0.0
    %2818 = vmatprep.subr.mxu0 0.0
    %2819 = vmatpush1.msra.mxu0 0.0
    %2820 = vmatprep.subr.mxu0 0.0
    %2821 = vmatpush1.msra.mxu0 0.0
    %2822 = vmatprep.mubr.f32.mxu0 0.0
    %2823 = vmatmul.mubr.f32.gmra.mrb[0].mxu0 %v2679
    %v2824 = vpop.f32.mrb[0].mxu0
    %v2825 = vadd.f32 0.0, %v2824
    %v2826 = vpop.f32.mrb[0].mxu0
    %2827 = vdwg.mxu0
    %v2828 = vadd.f32 %v2309, %v2825
    %v2829 = vxor.u32 %v2828, 2147483648
    %v2830 = vmul.f32 %v2829, 1.442695
    %v2831 = vpow.pop %v2830
    %v2832 = vadd.f32 %v2831, 1.0
    %v2833 = vrcp.pop %v2832
    %v2834 = vmul.f32 1.0, %v2833
    %2835 = vmatprep.subr.mxu0 0.0
    %2836 = vmatpush1.msra.mxu0 %v177
    %2837 = vmatprep.subr.mxu0 0.0
    %2838 = vmatpush1.msra.mxu0 %v178
    %2839 = vmatprep.subr.mxu0 0.0
    %2840 = vmatpush1.msra.mxu0 %v179
    %2841 = vmatprep.subr.mxu0 0.0
    %2842 = vmatpush1.msra.mxu0 %v180
    %2843 = vmatprep.subr.mxu0 0.0
    %2844 = vmatpush1.msra.mxu0 0.0
    %2845 = vmatprep.subr.mxu0 0.0
    %2846 = vmatpush1.msra.mxu0 0.0
    %2847 = vmatprep.subr.mxu0 0.0
    %2848 = vmatpush1.msra.mxu0 0.0
    %2849 = vmatprep.subr.mxu0 0.0
    %2850 = vmatpush1.msra.mxu0 0.0
    %2851 = vmatprep.subr.mxu0 0.0
    %2852 = vmatpush1.msra.mxu0 0.0
    %2853 = vmatprep.subr.mxu0 0.0
    %2854 = vmatpush1.msra.mxu0 0.0
    %2855 = vmatprep.subr.mxu0 0.0
    %2856 = vmatpush1.msra.mxu0 0.0
    %2857 = vmatprep.subr.mxu0 0.0
    %2858 = vmatpush1.msra.mxu0 0.0
    %2859 = vmatprep.subr.mxu0 0.0
    %2860 = vmatpush1.msra.mxu0 0.0
    %2861 = vmatprep.subr.mxu0 0.0
    %2862 = vmatpush1.msra.mxu0 0.0
    %2863 = vmatprep.subr.mxu0 0.0
    %2864 = vmatpush1.msra.mxu0 0.0
    %2865 = vmatprep.subr.mxu0 0.0
    %2866 = vmatpush1.msra.mxu0 0.0
    %2867 = vmatprep.subr.mxu0 0.0
    %2868 = vmatpush1.msra.mxu0 0.0
    %2869 = vmatprep.subr.mxu0 0.0
    %2870 = vmatpush1.msra.mxu0 0.0
    %2871 = vmatprep.subr.mxu0 0.0
    %2872 = vmatpush1.msra.mxu0 0.0
    %2873 = vmatprep.subr.mxu0 0.0
    %2874 = vmatpush1.msra.mxu0 0.0
    %2875 = vmatprep.subr.mxu0 0.0
    %2876 = vmatpush1.msra.mxu0 0.0
    %2877 = vmatprep.subr.mxu0 0.0
    %2878 = vmatpush1.msra.mxu0 0.0
    %2879 = vmatprep.subr.mxu0 0.0
    %2880 = vmatpush1.msra.mxu0 0.0
    %2881 = vmatprep.subr.mxu0 0.0
    %2882 = vmatpush1.msra.mxu0 0.0
    %2883 = vmatprep.subr.mxu0 0.0
    %2884 = vmatpush1.msra.mxu0 0.0
    %2885 = vmatprep.subr.mxu0 0.0
    %2886 = vmatpush1.msra.mxu0 0.0
    %2887 = vmatprep.subr.mxu0 0.0
    %2888 = vmatpush1.msra.mxu0 0.0
    %2889 = vmatprep.subr.mxu0 0.0
    %2890 = vmatpush1.msra.mxu0 0.0
    %2891 = vmatprep.subr.mxu0 0.0
    %2892 = vmatpush1.msra.mxu0 0.0
    %2893 = vmatprep.subr.mxu0 0.0
    %2894 = vmatpush1.msra.mxu0 0.0
    %2895 = vmatprep.subr.mxu0 0.0
    %2896 = vmatpush1.msra.mxu0 0.0
    %2897 = vmatprep.subr.mxu0 0.0
    %2898 = vmatpush1.msra.mxu0 0.0
    %2899 = vmatprep.mubr.f32.mxu0 0.0
    %2900 = vmatmul.mubr.f32.gmra.mrb[0].mxu0 %v2679
    %v2901 = vpop.f32.mrb[0].mxu0
    %v2902 = vadd.f32 %v228, %v2901
    %v2903 = vpop.f32.mrb[0].mxu0
    %2904 = vdwg.mxu0
    %v2905 = vmul.f32 %v2757, %v2902
    %v2906 = vadd.f32 %v2432, %v2905
    %v2907 = vtanh.pop %v2906
    %v2908 = vsub.f32 1.0, %v2834
    %v2909 = vmul.f32 %v2908, %v2907
    %v2910 = vmul.f32 %v2834, %v2677
    %v2911 = vadd.f32 %v2909, %v2910
    %v2912 = vsel %vm150, %v2911, %v2677
    %v2914 = vsel %vm249, %v2912, 0
    %2916 = vmatprep.subr.mxu0 0.0
    %2917 = vmatpush1.msra.mxu0 %v167
    %2918 = vmatprep.subr.mxu0 0.0
    %2919 = vmatpush1.msra.mxu0 %v168
    %2920 = vmatprep.subr.mxu0 0.0
    %2921 = vmatpush1.msra.mxu0 %v169
    %2922 = vmatprep.subr.mxu0 0.0
    %2923 = vmatpush1.msra.mxu0 %v170
    %2924 = vmatprep.subr.mxu0 0.0
    %2925 = vmatpush1.msra.mxu0 0.0
    %2926 = vmatprep.subr.mxu0 0.0
    %2927 = vmatpush1.msra.mxu0 0.0
    %2928 = vmatprep.subr.mxu0 0.0
    %2929 = vmatpush1.msra.mxu0 0.0
    %2930 = vmatprep.subr.mxu0 0.0
    %2931 = vmatpush1.msra.mxu0 0.0
    %2932 = vmatprep.subr.mxu0 0.0
    %2933 = vmatpush1.msra.mxu0 0.0
    %2934 = vmatprep.subr.mxu0 0.0
    %2935 = vmatpush1.msra.mxu0 0.0
    %2936 = vmatprep.subr.mxu0 0.0
    %2937 = vmatpush1.msra.mxu0 0.0
    %2938 = vmatprep.subr.mxu0 0.0
    %2939 = vmatpush1.msra.mxu0 0.0
    %2940 = vmatprep.subr.mxu0 0.0
    %2941 = vmatpush1.msra.mxu0 0.0
    %2942 = vmatprep.subr.mxu0 0.0
    %2943 = vmatpush1.msra.mxu0 0.0
    %2944 = vmatprep.subr.mxu0 0.0
    %2945 = vmatpush1.msra.mxu0 0.0
    %2946 = vmatprep.subr.mxu0 0.0
    %2947 = vmatpush1.msra.mxu0 0.0
    %2948 = vmatprep.subr.mxu0 0.0
    %2949 = vmatpush1.msra.mxu0 0.0
    %2950 = vmatprep.subr.mxu0 0.0
    %2951 = vmatpush1.msra.mxu0 0.0
    %2952 = vmatprep.subr.mxu0 0.0
    %2953 = vmatpush1.msra.mxu0 0.0
    %2954 = vmatprep.subr.mxu0 0.0
    %2955 = vmatpush1.msra.mxu0 0.0
    %2956 = vmatprep.subr.mxu0 0.0
    %2957 = vmatpush1.msra.mxu0 0.0
    %2958 = vmatprep.subr.mxu0 0.0
    %2959 = vmatpush1.msra.mxu0 0.0
    %2960 = vmatprep.subr.mxu0 0.0
    %2961 = vmatpush1.msra.mxu0 0.0
    %2962 = vmatprep.subr.mxu0 0.0
    %2963 = vmatpush1.msra.mxu0 0.0
    %2964 = vmatprep.subr.mxu0 0.0
    %2965 = vmatpush1.msra.mxu0 0.0
    %2966 = vmatprep.subr.mxu0 0.0
    %2967 = vmatpush1.msra.mxu0 0.0
    %2968 = vmatprep.subr.mxu0 0.0
    %2969 = vmatpush1.msra.mxu0 0.0
    %2970 = vmatprep.subr.mxu0 0.0
    %2971 = vmatpush1.msra.mxu0 0.0
    %2972 = vmatprep.subr.mxu0 0.0
    %2973 = vmatpush1.msra.mxu0 0.0
    %2974 = vmatprep.subr.mxu0 0.0
    %2975 = vmatpush1.msra.mxu0 0.0
    %2976 = vmatprep.subr.mxu0 0.0
    %2977 = vmatpush1.msra.mxu0 0.0
    %2978 = vmatprep.subr.mxu0 0.0
    %2979 = vmatpush1.msra.mxu0 0.0
    %2980 = vmatprep.mubr.f32.mxu0 0.0
    %2981 = vmatmul.mubr.f32.gmra.mrb[0].mxu0 %v2914
    %v2982 = vpop.f32.mrb[0].mxu0
    %v2983 = vadd.f32 0.0, %v2982
    %v2984 = vpop.f32.mrb[0].mxu0
    %2985 = vdwg.mxu0
    %v2986 = vadd.f32 %v2191, %v2983
    %v2987 = vxor.u32 %v2986, 2147483648
    %v2988 = vmul.f32 %v2987, 1.442695
    %v2989 = vpow.pop %v2988
    %v2990 = vadd.f32 %v2989, 1.0
    %v2991 = vrcp.pop %v2990
    %v2992 = vmul.f32 1.0, %v2991
    %2993 = vmatprep.subr.mxu0 0.0
    %2994 = vmatpush1.msra.mxu0 %v172
    %2995 = vmatprep.subr.mxu0 0.0
    %2996 = vmatpush1.msra.mxu0 %v173
    %2997 = vmatprep.subr.mxu0 0.0
    %2998 = vmatpush1.msra.mxu0 %v174
    %2999 = vmatprep.subr.mxu0 0.0
    %3000 = vmatpush1.msra.mxu0 %v175
    %3001 = vmatprep.subr.mxu0 0.0
    %3002 = vmatpush1.msra.mxu0 0.0
    %3003 = vmatprep.subr.mxu0 0.0
    %3004 = vmatpush1.msra.mxu0 0.0
    %3005 = vmatprep.subr.mxu0 0.0
    %3006 = vmatpush1.msra.mxu0 0.0
    %3007 = vmatprep.subr.mxu0 0.0
    %3008 = vmatpush1.msra.mxu0 0.0
    %3009 = vmatprep.subr.mxu0 0.0
    %3010 = vmatpush1.msra.mxu0 0.0
    %3011 = vmatprep.subr.mxu0 0.0
    %3012 = vmatpush1.msra.mxu0 0.0
    %3013 = vmatprep.subr.mxu0 0.0
    %3014 = vmatpush1.msra.mxu0 0.0
    %3015 = vmatprep.subr.mxu0 0.0
    %3016 = vmatpush1.msra.mxu0 0.0
    %3017 = vmatprep.subr.mxu0 0.0
    %3018 = vmatpush1.msra.mxu0 0.0
    %3019 = vmatprep.subr.mxu0 0.0
    %3020 = vmatpush1.msra.mxu0 0.0
    %3021 = vmatprep.subr.mxu0 0.0
    %3022 = vmatpush1.msra.mxu0 0.0
    %3023 = vmatprep.subr.mxu0 0.0
    %3024 = vmatpush1.msra.mxu0 0.0
    %3025 = vmatprep.subr.mxu0 0.0
    %3026 = vmatpush1.msra.mxu0 0.0
    %3027 = vmatprep.subr.mxu0 0.0
    %3028 = vmatpush1.msra.mxu0 0.0
    %3029 = vmatprep.subr.mxu0 0.0
    %3030 = vmatpush1.msra.mxu0 0.0
    %3031 = vmatprep.subr.mxu0 0.0
    %3032 = vmatpush1.msra.mxu0 0.0
    %3033 = vmatprep.subr.mxu0 0.0
    %3034 = vmatpush1.msra.mxu0 0.0
    %3035 = vmatprep.subr.mxu0 0.0
    %3036 = vmatpush1.msra.mxu0 0.0
    %3037 = vmatprep.subr.mxu0 0.0
    %3038 = vmatpush1.msra.mxu0 0.0
    %3039 = vmatprep.subr.mxu0 0.0
    %3040 = vmatpush1.msra.mxu0 0.0
    %3041 = vmatprep.subr.mxu0 0.0
    %3042 = vmatpush1.msra.mxu0 0.0
    %3043 = vmatprep.subr.mxu0 0.0
    %3044 = vmatpush1.msra.mxu0 0.0
    %3045 = vmatprep.subr.mxu0 0.0
    %3046 = vmatpush1.msra.mxu0 0.0
    %3047 = vmatprep.subr.mxu0 0.0
    %3048 = vmatpush1.msra.mxu0 0.0
    %3049 = vmatprep.subr.mxu0 0.0
    %3050 = vmatpush1.msra.mxu0 0.0
    %3051 = vmatprep.subr.mxu0 0.0
    %3052 = vmatpush1.msra.mxu0 0.0
    %3053 = vmatprep.subr.mxu0 0.0
    %3054 = vmatpush1.msra.mxu0 0.0
    %3055 = vmatprep.subr.mxu0 0.0
    %3056 = vmatpush1.msra.mxu0 0.0
    %3057 = vmatprep.mubr.f32.mxu0 0.0
    %3058 = vmatmul.mubr.f32.gmra.mrb[0].mxu0 %v2914
    %v3059 = vpop.f32.mrb[0].mxu0
    %v3060 = vadd.f32 0.0, %v3059
    %v3061 = vpop.f32.mrb[0].mxu0
    %3062 = vdwg.mxu0
    %v3063 = vadd.f32 %v2314, %v3060
    %v3064 = vxor.u32 %v3063, 2147483648
    %v3065 = vmul.f32 %v3064, 1.442695
    %v3066 = vpow.pop %v3065
    %v3067 = vadd.f32 %v3066, 1.0
    %v3068 = vrcp.pop %v3067
    %v3069 = vmul.f32 1.0, %v3068
    %3070 = vmatprep.subr.mxu0 0.0
    %3071 = vmatpush1.msra.mxu0 %v177
    %3072 = vmatprep.subr.mxu0 0.0
    %3073 = vmatpush1.msra.mxu0 %v178
    %3074 = vmatprep.subr.mxu0 0.0
    %3075 = vmatpush1.msra.mxu0 %v179
    %3076 = vmatprep.subr.mxu0 0.0
    %3077 = vmatpush1.msra.mxu0 %v180
    %3078 = vmatprep.subr.mxu0 0.0
    %3079 = vmatpush1.msra.mxu0 0.0
    %3080 = vmatprep.subr.mxu0 0.0
    %3081 = vmatpush1.msra.mxu0 0.0
    %3082 = vmatprep.subr.mxu0 0.0
    %3083 = vmatpush1.msra.mxu0 0.0
    %3084 = vmatprep.subr.mxu0 0.0
    %3085 = vmatpush1.msra.mxu0 0.0
    %3086 = vmatprep.subr.mxu0 0.0
    %3087 = vmatpush1.msra.mxu0 0.0
    %3088 = vmatprep.subr.mxu0 0.0
    %3089 = vmatpush1.msra.mxu0 0.0
    %3090 = vmatprep.subr.mxu0 0.0
    %3091 = vmatpush1.msra.mxu0 0.0
    %3092 = vmatprep.subr.mxu0 0.0
    %3093 = vmatpush1.msra.mxu0 0.0
    %3094 = vmatprep.subr.mxu0 0.0
    %3095 = vmatpush1.msra.mxu0 0.0
    %3096 = vmatprep.subr.mxu0 0.0
    %3097 = vmatpush1.msra.mxu0 0.0
    %3098 = vmatprep.subr.mxu0 0.0
    %3099 = vmatpush1.msra.mxu0 0.0
    %3100 = vmatprep.subr.mxu0 0.0
    %3101 = vmatpush1.msra.mxu0 0.0
    %3102 = vmatprep.subr.mxu0 0.0
    %3103 = vmatpush1.msra.mxu0 0.0
    %3104 = vmatprep.subr.mxu0 0.0
    %3105 = vmatpush1.msra.mxu0 0.0
    %3106 = vmatprep.subr.mxu0 0.0
    %3107 = vmatpush1.msra.mxu0 0.0
    %3108 = vmatprep.subr.mxu0 0.0
    %3109 = vmatpush1.msra.mxu0 0.0
    %3110 = vmatprep.subr.mxu0 0.0
    %3111 = vmatpush1.msra.mxu0 0.0
    %3112 = vmatprep.subr.mxu0 0.0
    %3113 = vmatpush1.msra.mxu0 0.0
    %3114 = vmatprep.subr.mxu0 0.0
    %3115 = vmatpush1.msra.mxu0 0.0
    %3116 = vmatprep.subr.mxu0 0.0
    %3117 = vmatpush1.msra.mxu0 0.0
    %3118 = vmatprep.subr.mxu0 0.0
    %3119 = vmatpush1.msra.mxu0 0.0
    %3120 = vmatprep.subr.mxu0 0.0
    %3121 = vmatpush1.msra.mxu0 0.0
    %3122 = vmatprep.subr.mxu0 0.0
    %3123 = vmatpush1.msra.mxu0 0.0
    %3124 = vmatprep.subr.mxu0 0.0
    %3125 = vmatpush1.msra.mxu0 0.0
    %3126 = vmatprep.subr.mxu0 0.0
    %3127 = vmatpush1.msra.mxu0 0.0
    %3128 = vmatprep.subr.mxu0 0.0
    %3129 = vmatpush1.msra.mxu0 0.0
    %3130 = vmatprep.subr.mxu0 0.0
    %3131 = vmatpush1.msra.mxu0 0.0
    %3132 = vmatprep.subr.mxu0 0.0
    %3133 = vmatpush1.msra.mxu0 0.0
    %3134 = vmatprep.mubr.f32.mxu0 0.0
    %3135 = vmatmul.mubr.f32.gmra.mrb[0].mxu0 %v2914
    %v3136 = vpop.f32.mrb[0].mxu0
    %v3137 = vadd.f32 %v228, %v3136
    %v3138 = vpop.f32.mrb[0].mxu0
    %3139 = vdwg.mxu0
    %v3140 = vmul.f32 %v2992, %v3137
    %v3141 = vadd.f32 %v2437, %v3140
    %v3142 = vtanh.pop %v3141
    %v3143 = vsub.f32 1.0, %v3069
    %v3144 = vmul.f32 %v3143, %v3142
    %v3145 = vmul.f32 %v3069, %v2912
    %v3146 = vadd.f32 %v3144, %v3145
    %v3147 = vsel %vm151, %v3146, %v2912
    %v3149 = vsel %vm249, %v3147, 0
    %3151 = vmatprep.subr.mxu0 0.0
    %3152 = vmatpush1.msra.mxu0 %v167
    %3153 = vmatprep.subr.mxu0 0.0
    %3154 = vmatpush1.msra.mxu0 %v168
    %3155 = vmatprep.subr.mxu0 0.0
    %3156 = vmatpush1.msra.mxu0 %v169
    %3157 = vmatprep.subr.mxu0 0.0
    %3158 = vmatpush1.msra.mxu0 %v170
    %3159 = vmatprep.subr.mxu0 0.0
    %3160 = vmatpush1.msra.mxu0 0.0
    %3161 = vmatprep.subr.mxu0 0.0
    %3162 = vmatpush1.msra.mxu0 0.0
    %3163 = vmatprep.subr.mxu0 0.0
    %3164 = vmatpush1.msra.mxu0 0.0
    %3165 = vmatprep.subr.mxu0 0.0
    %3166 = vmatpush1.msra.mxu0 0.0
    %3167 = vmatprep.subr.mxu0 0.0
    %3168 = vmatpush1.msra.mxu0 0.0
    %3169 = vmatprep.subr.mxu0 0.0
    %3170 = vmatpush1.msra.mxu0 0.0
    %3171 = vmatprep.subr.mxu0 0.0
    %3172 = vmatpush1.msra.mxu0 0.0
    %3173 = vmatprep.subr.mxu0 0.0
    %3174 = vmatpush1.msra.mxu0 0.0
    %3175 = vmatprep.subr.mxu0 0.0
    %3176 = vmatpush1.msra.mxu0 0.0
    %3177 = vmatprep.subr.mxu0 0.0
    %3178 = vmatpush1.msra.mxu0 0.0
    %3179 = vmatprep.subr.mxu0 0.0
    %3180 = vmatpush1.msra.mxu0 0.0
    %3181 = vmatprep.subr.mxu0 0.0
    %3182 = vmatpush1.msra.mxu0 0.0
    %3183 = vmatprep.subr.mxu0 0.0
    %3184 = vmatpush1.msra.mxu0 0.0
    %3185 = vmatprep.subr.mxu0 0.0
    %3186 = vmatpush1.msra.mxu0 0.0
    %3187 = vmatprep.subr.mxu0 0.0
    %3188 = vmatpush1.msra.mxu0 0.0
    %3189 = vmatprep.subr.mxu0 0.0
    %3190 = vmatpush1.msra.mxu0 0.0
    %3191 = vmatprep.subr.mxu0 0.0
    %3192 = vmatpush1.msra.mxu0 0.0
    %3193 = vmatprep.subr.mxu0 0.0
    %3194 = vmatpush1.msra.mxu0 0.0
    %3195 = vmatprep.subr.mxu0 0.0
    %3196 = vmatpush1.msra.mxu0 0.0
    %3197 = vmatprep.subr.mxu0 0.0
    %3198 = vmatpush1.msra.mxu0 0.0
    %3199 = vmatprep.subr.mxu0 0.0
    %3200 = vmatpush1.msra.mxu0 0.0
    %3201 = vmatprep.subr.mxu0 0.0
    %3202 = vmatpush1.msra.mxu0 0.0
    %3203 = vmatprep.subr.mxu0 0.0
    %3204 = vmatpush1.msra.mxu0 0.0
    %3205 = vmatprep.subr.mxu0 0.0
    %3206 = vmatpush1.msra.mxu0 0.0
    %3207 = vmatprep.subr.mxu0 0.0
    %3208 = vmatpush1.msra.mxu0 0.0
    %3209 = vmatprep.subr.mxu0 0.0
    %3210 = vmatpush1.msra.mxu0 0.0
    %3211 = vmatprep.subr.mxu0 0.0
    %3212 = vmatpush1.msra.mxu0 0.0
    %3213 = vmatprep.subr.mxu0 0.0
    %3214 = vmatpush1.msra.mxu0 0.0
    %3215 = vmatprep.mubr.f32.mxu0 0.0
    %3216 = vmatmul.mubr.f32.gmra.mrb[0].mxu0 %v3149
    %v3217 = vpop.f32.mrb[0].mxu0
    %v3218 = vadd.f32 0.0, %v3217
    %v3219 = vpop.f32.mrb[0].mxu0
    %3220 = vdwg.mxu0
    %v3221 = vadd.f32 %v2194, %v3218
    %v3222 = vxor.u32 %v3221, 2147483648
    %v3223 = vmul.f32 %v3222, 1.442695
    %v3224 = vpow.pop %v3223
    %v3225 = vadd.f32 %v3224, 1.0
    %v3226 = vrcp.pop %v3225
    %v3227 = vmul.f32 1.0, %v3226
    %3228 = vmatprep.subr.mxu0 0.0
    %3229 = vmatpush1.msra.mxu0 %v172
    %3230 = vmatprep.subr.mxu0 0.0
    %3231 = vmatpush1.msra.mxu0 %v173
    %3232 = vmatprep.subr.mxu0 0.0
    %3233 = vmatpush1.msra.mxu0 %v174
    %3234 = vmatprep.subr.mxu0 0.0
    %3235 = vmatpush1.msra.mxu0 %v175
    %3236 = vmatprep.subr.mxu0 0.0
    %3237 = vmatpush1.msra.mxu0 0.0
    %3238 = vmatprep.subr.mxu0 0.0
    %3239 = vmatpush1.msra.mxu0 0.0
    %3240 = vmatprep.subr.mxu0 0.0
    %3241 = vmatpush1.msra.mxu0 0.0
    %3242 = vmatprep.subr.mxu0 0.0
    %3243 = vmatpush1.msra.mxu0 0.0
    %3244 = vmatprep.subr.mxu0 0.0
    %3245 = vmatpush1.msra.mxu0 0.0
    %3246 = vmatprep.subr.mxu0 0.0
    %3247 = vmatpush1.msra.mxu0 0.0
    %3248 = vmatprep.subr.mxu0 0.0
    %3249 = vmatpush1.msra.mxu0 0.0
    %3250 = vmatprep.subr.mxu0 0.0
    %3251 = vmatpush1.msra.mxu0 0.0
    %3252 = vmatprep.subr.mxu0 0.0
    %3253 = vmatpush1.msra.mxu0 0.0
    %3254 = vmatprep.subr.mxu0 0.0
    %3255 = vmatpush1.msra.mxu0 0.0
    %3256 = vmatprep.subr.mxu0 0.0
    %3257 = vmatpush1.msra.mxu0 0.0
    %3258 = vmatprep.subr.mxu0 0.0
    %3259 = vmatpush1.msra.mxu0 0.0
    %3260 = vmatprep.subr.mxu0 0.0
    %3261 = vmatpush1.msra.mxu0 0.0
    %3262 = vmatprep.subr.mxu0 0.0
    %3263 = vmatpush1.msra.mxu0 0.0
    %3264 = vmatprep.subr.mxu0 0.0
    %3265 = vmatpush1.msra.mxu0 0.0
    %3266 = vmatprep.subr.mxu0 0.0
    %3267 = vmatpush1.msra.mxu0 0.0
    %3268 = vmatprep.subr.mxu0 0.0
    %3269 = vmatpush1.msra.mxu0 0.0
    %3270 = vmatprep.subr.mxu0 0.0
    %3271 = vmatpush1.msra.mxu0 0.0
    %3272 = vmatprep.subr.mxu0 0.0
    %3273 = vmatpush1.msra.mxu0 0.0
    %3274 = vmatprep.subr.mxu0 0.0
    %3275 = vmatpush1.msra.mxu0 0.0
    %3276 = vmatprep.subr.mxu0 0.0
    %3277 = vmatpush1.msra.mxu0 0.0
    %3278 = vmatprep.subr.mxu0 0.0
    %3279 = vmatpush1.msra.mxu0 0.0
    %3280 = vmatprep.subr.mxu0 0.0
    %3281 = vmatpush1.msra.mxu0 0.0
    %3282 = vmatprep.subr.mxu0 0.0
    %3283 = vmatpush1.msra.mxu0 0.0
    %3284 = vmatprep.subr.mxu0 0.0
    %3285 = vmatpush1.msra.mxu0 0.0
    %3286 = vmatprep.subr.mxu0 0.0
    %3287 = vmatpush1.msra.mxu0 0.0
    %3288 = vmatprep.subr.mxu0 0.0
    %3289 = vmatpush1.msra.mxu0 0.0
    %3290 = vmatprep.subr.mxu0 0.0
    %3291 = vmatpush1.msra.mxu0 0.0
    %3292 = vmatprep.mubr.f32.mxu0 0.0
    %3293 = vmatmul.mubr.f32.gmra.mrb[0].mxu0 %v3149
    %v3294 = vpop.f32.mrb[0].mxu0
    %v3295 = vadd.f32 0.0, %v3294
    %v3296 = vpop.f32.mrb[0].mxu0
    %3297 = vdwg.mxu0
    %v3298 = vadd.f32 %v2317, %v3295
    %v3299 = vxor.u32 %v3298, 2147483648
    %v3300 = vmul.f32 %v3299, 1.442695
    %v3301 = vpow.pop %v3300
    %v3302 = vadd.f32 %v3301, 1.0
    %v3303 = vrcp.pop %v3302
    %v3304 = vmul.f32 1.0, %v3303
    %3305 = vmatprep.subr.mxu0 0.0
    %3306 = vmatpush1.msra.mxu0 %v177
    %3307 = vmatprep.subr.mxu0 0.0
    %3308 = vmatpush1.msra.mxu0 %v178
    %3309 = vmatprep.subr.mxu0 0.0
    %3310 = vmatpush1.msra.mxu0 %v179
    %3311 = vmatprep.subr.mxu0 0.0
    %3312 = vmatpush1.msra.mxu0 %v180
    %3313 = vmatprep.subr.mxu0 0.0
    %3314 = vmatpush1.msra.mxu0 0.0
    %3315 = vmatprep.subr.mxu0 0.0
    %3316 = vmatpush1.msra.mxu0 0.0
    %3317 = vmatprep.subr.mxu0 0.0
    %3318 = vmatpush1.msra.mxu0 0.0
    %3319 = vmatprep.subr.mxu0 0.0
    %3320 = vmatpush1.msra.mxu0 0.0
    %3321 = vmatprep.subr.mxu0 0.0
    %3322 = vmatpush1.msra.mxu0 0.0
    %3323 = vmatprep.subr.mxu0 0.0
    %3324 = vmatpush1.msra.mxu0 0.0
    %3325 = vmatprep.subr.mxu0 0.0
    %3326 = vmatpush1.msra.mxu0 0.0
    %3327 = vmatprep.subr.mxu0 0.0
    %3328 = vmatpush1.msra.mxu0 0.0
    %3329 = vmatprep.subr.mxu0 0.0
    %3330 = vmatpush1.msra.mxu0 0.0
    %3331 = vmatprep.subr.mxu0 0.0
    %3332 = vmatpush1.msra.mxu0 0.0
    %3333 = vmatprep.subr.mxu0 0.0
    %3334 = vmatpush1.msra.mxu0 0.0
    %3335 = vmatprep.subr.mxu0 0.0
    %3336 = vmatpush1.msra.mxu0 0.0
    %3337 = vmatprep.subr.mxu0 0.0
    %3338 = vmatpush1.msra.mxu0 0.0
    %3339 = vmatprep.subr.mxu0 0.0
    %3340 = vmatpush1.msra.mxu0 0.0
    %3341 = vmatprep.subr.mxu0 0.0
    %3342 = vmatpush1.msra.mxu0 0.0
    %3343 = vmatprep.subr.mxu0 0.0
    %3344 = vmatpush1.msra.mxu0 0.0
    %3345 = vmatprep.subr.mxu0 0.0
    %3346 = vmatpush1.msra.mxu0 0.0
    %3347 = vmatprep.subr.mxu0 0.0
    %3348 = vmatpush1.msra.mxu0 0.0
    %3349 = vmatprep.subr.mxu0 0.0
    %3350 = vmatpush1.msra.mxu0 0.0
    %3351 = vmatprep.subr.mxu0 0.0
    %3352 = vmatpush1.msra.mxu0 0.0
    %3353 = vmatprep.subr.mxu0 0.0
    %3354 = vmatpush1.msra.mxu0 0.0
    %3355 = vmatprep.subr.mxu0 0.0
    %3356 = vmatpush1.msra.mxu0 0.0
    %3357 = vmatprep.subr.mxu0 0.0
    %3358 = vmatpush1.msra.mxu0 0.0
    %3359 = vmatprep.subr.mxu0 0.0
    %3360 = vmatpush1.msra.mxu0 0.0
    %3361 = vmatprep.subr.mxu0 0.0
    %3362 = vmatpush1.msra.mxu0 0.0
    %3363 = vmatprep.subr.mxu0 0.0
    %3364 = vmatpush1.msra.mxu0 0.0
    %3365 = vmatprep.subr.mxu0 0.0
    %3366 = vmatpush1.msra.mxu0 0.0
    %3367 = vmatprep.subr.mxu0 0.0
    %3368 = vmatpush1.msra.mxu0 0.0
    %3369 = vmatprep.mubr.f32.mxu0 0.0
    %3370 = vmatmul.mubr.f32.gmra.mrb[0].mxu0 %v3149
    %v3371 = vpop.f32.mrb[0].mxu0
    %v3372 = vadd.f32 %v228, %v3371
    %v3373 = vpop.f32.mrb[0].mxu0
    %3374 = vdwg.mxu0
    %v3375 = vmul.f32 %v3227, %v3372
    %v3376 = vadd.f32 %v2440, %v3375
    %v3377 = vtanh.pop %v3376
    %v3378 = vsub.f32 1.0, %v3304
    %v3379 = vmul.f32 %v3378, %v3377
    %v3380 = vmul.f32 %v3304, %v3147
    %v3381 = vadd.f32 %v3379, %v3380
    %v3382 = vsel %vm152, %v3381, %v3147
    %v3383 = vpack.c.bf16 %v3382, %v3382
    %v3385 = vsel %vm341, %v3383, 0
    %3387 = vmatprep.subr.bf16.mxu0 0
    %3388 = vmatpush1.bf16.msra.mxu0 %v3385
    %3389 = vmatprep.subr.bf16.mxu0 0
    %3390 = vmatpush1.bf16.msra.mxu0 0
    %3391 = vmatprep.subr.bf16.mxu0 0
    %3392 = vmatpush1.bf16.msra.mxu0 0
    %3393 = vmatprep.subr.bf16.mxu0 0
    %3394 = vmatpush1.bf16.msra.mxu0 0
    %3395 = vmatprep.subr.bf16.mxu0 0
    %3396 = vmatpush1.bf16.msra.mxu0 0
    %3397 = vmatprep.subr.bf16.mxu0 0
    %3398 = vmatpush1.bf16.msra.mxu0 0
    %3399 = vmatprep.subr.bf16.mxu0 0
    %3400 = vmatpush1.bf16.msra.mxu0 0
    %3401 = vmatprep.subr.bf16.mxu0 0
    %3402 = vmatpush1.bf16.msra.mxu0 0
    %3403 = vmatprep.subr.bf16.mxu0 0
    %3404 = vmatpush1.bf16.msra.mxu0 0
    %3405 = vmatprep.subr.bf16.mxu0 0
    %3406 = vmatpush1.bf16.msra.mxu0 0
    %3407 = vmatprep.subr.bf16.mxu0 0
    %3408 = vmatpush1.bf16.msra.mxu0 0
    %3409 = vmatprep.subr.bf16.mxu0 0
    %3410 = vmatpush1.bf16.msra.mxu0 0
    %3411 = vmatprep.subr.bf16.mxu0 0
    %3412 = vmatpush1.bf16.msra.mxu0 0
    %3413 = vmatprep.subr.bf16.mxu0 0
    %3414 = vmatpush1.bf16.msra.mxu0 0
    %3415 = vmatprep.subr.bf16.mxu0 0
    %3416 = vmatpush1.bf16.msra.mxu0 0
    %3417 = vmatprep.subr.bf16.mxu0 0
    %3418 = vmatpush1.bf16.msra.mxu0 0
    %3419 = vmatprep.mubr.bf16.mxu0 0
    %3420 = vmatmul.mubr.bf16.gmra.mrb[0].mxu0 %v1582
    %v3421 = vpop.f32.mrb[0].mxu0
    %v3422 = vadd.f32 0.0, %v3421
    %v3423 = vpop.f32.mrb[0].mxu0
    %v3424 = vpop.f32.mrb[0].mxu0
    %v3425 = vpop.f32.mrb[0].mxu0
    %3426 = vdwg.mxu0
    %v3428 = vsel %vm249, %v3422, 0
    %3430 = vmatprep.subr.mxu0 0.0
    %3431 = vmatpush1.msra.mxu0 %v181
    %3432 = vmatprep.subr.mxu0 0.0
    %3433 = vmatpush1.msra.mxu0 %v182
    %3434 = vmatprep.subr.mxu0 0.0
    %3435 = vmatpush1.msra.mxu0 %v183
    %3436 = vmatprep.subr.mxu0 0.0
    %3437 = vmatpush1.msra.mxu0 %v184
    %3438 = vmatprep.subr.mxu0 0.0
    %3439 = vmatpush1.msra.mxu0 0.0
    %3440 = vmatprep.subr.mxu0 0.0
    %3441 = vmatpush1.msra.mxu0 0.0
    %3442 = vmatprep.subr.mxu0 0.0
    %3443 = vmatpush1.msra.mxu0 0.0
    %3444 = vmatprep.subr.mxu0 0.0
    %3445 = vmatpush1.msra.mxu0 0.0
    %3446 = vmatprep.subr.mxu0 0.0
    %3447 = vmatpush1.msra.mxu0 0.0
    %3448 = vmatprep.subr.mxu0 0.0
    %3449 = vmatpush1.msra.mxu0 0.0
    %3450 = vmatprep.subr.mxu0 0.0
    %3451 = vmatpush1.msra.mxu0 0.0
    %3452 = vmatprep.subr.mxu0 0.0
    %3453 = vmatpush1.msra.mxu0 0.0
    %3454 = vmatprep.subr.mxu0 0.0
    %3455 = vmatpush1.msra.mxu0 0.0
    %3456 = vmatprep.subr.mxu0 0.0
    %3457 = vmatpush1.msra.mxu0 0.0
    %3458 = vmatprep.subr.mxu0 0.0
    %3459 = vmatpush1.msra.mxu0 0.0
    %3460 = vmatprep.subr.mxu0 0.0
    %3461 = vmatpush1.msra.mxu0 0.0
    %3462 = vmatprep.subr.mxu0 0.0
    %3463 = vmatpush1.msra.mxu0 0.0
    %3464 = vmatprep.subr.mxu0 0.0
    %3465 = vmatpush1.msra.mxu0 0.0
    %3466 = vmatprep.subr.mxu0 0.0
    %3467 = vmatpush1.msra.mxu0 0.0
    %3468 = vmatprep.subr.mxu0 0.0
    %3469 = vmatpush1.msra.mxu0 0.0
    %3470 = vmatprep.subr.mxu0 0.0
    %3471 = vmatpush1.msra.mxu0 0.0
    %3472 = vmatprep.subr.mxu0 0.0
    %3473 = vmatpush1.msra.mxu0 0.0
    %3474 = vmatprep.subr.mxu0 0.0
    %3475 = vmatpush1.msra.mxu0 0.0
    %3476 = vmatprep.subr.mxu0 0.0
    %3477 = vmatpush1.msra.mxu0 0.0
    %3478 = vmatprep.subr.mxu0 0.0
    %3479 = vmatpush1.msra.mxu0 0.0
    %3480 = vmatprep.subr.mxu0 0.0
    %3481 = vmatpush1.msra.mxu0 0.0
    %3482 = vmatprep.subr.mxu0 0.0
    %3483 = vmatpush1.msra.mxu0 0.0
    %3484 = vmatprep.subr.mxu0 0.0
    %3485 = vmatpush1.msra.mxu0 0.0
    %3486 = vmatprep.subr.mxu0 0.0
    %3487 = vmatpush1.msra.mxu0 0.0
    %3488 = vmatprep.subr.mxu0 0.0
    %3489 = vmatpush1.msra.mxu0 0.0
    %3490 = vmatprep.subr.mxu0 0.0
    %3491 = vmatpush1.msra.mxu0 0.0
    %3492 = vmatprep.subr.mxu0 0.0
    %3493 = vmatpush1.msra.mxu0 0.0
    %3494 = vmatprep.mubr.f32.mxu0 0.0
    %3495 = vmatmul.mubr.f32.gmra.mrb[0].mxu0 %v3428
    %v3496 = vpop.f32.mrb[0].mxu0
    %v3497 = vadd.f32 %v233, %v3496
    %v3498 = vpop.f32.mrb[0].mxu0
    %3499 = vdwg.mxu0
    %3500 = vmatprep.subr.mxu0 0.0
    %3501 = vmatpush1.msra.mxu0 %v195
    %3502 = vmatprep.subr.mxu0 0.0
    %3503 = vmatpush1.msra.mxu0 %v196
    %3504 = vmatprep.subr.mxu0 0.0
    %3505 = vmatpush1.msra.mxu0 %v197
    %3506 = vmatprep.subr.mxu0 0.0
    %3507 = vmatpush1.msra.mxu0 %v198
    %3508 = vmatprep.subr.mxu0 0.0
    %3509 = vmatpush1.msra.mxu0 0.0
    %3510 = vmatprep.subr.mxu0 0.0
    %3511 = vmatpush1.msra.mxu0 0.0
    %3512 = vmatprep.subr.mxu0 0.0
    %3513 = vmatpush1.msra.mxu0 0.0
    %3514 = vmatprep.subr.mxu0 0.0
    %3515 = vmatpush1.msra.mxu0 0.0
    %3516 = vmatprep.subr.mxu0 0.0
    %3517 = vmatpush1.msra.mxu0 0.0
    %3518 = vmatprep.subr.mxu0 0.0
    %3519 = vmatpush1.msra.mxu0 0.0
    %3520 = vmatprep.subr.mxu0 0.0
    %3521 = vmatpush1.msra.mxu0 0.0
    %3522 = vmatprep.subr.mxu0 0.0
    %3523 = vmatpush1.msra.mxu0 0.0
    %3524 = vmatprep.subr.mxu0 0.0
    %3525 = vmatpush1.msra.mxu0 0.0
    %3526 = vmatprep.subr.mxu0 0.0
    %3527 = vmatpush1.msra.mxu0 0.0
    %3528 = vmatprep.subr.mxu0 0.0
    %3529 = vmatpush1.msra.mxu0 0.0
    %3530 = vmatprep.subr.mxu0 0.0
    %3531 = vmatpush1.msra.mxu0 0.0
    %3532 = vmatprep.subr.mxu0 0.0
    %3533 = vmatpush1.msra.mxu0 0.0
    %3534 = vmatprep.subr.mxu0 0.0
    %3535 = vmatpush1.msra.mxu0 0.0
    %3536 = vmatprep.subr.mxu0 0.0
    %3537 = vmatpush1.msra.mxu0 0.0
    %3538 = vmatprep.subr.mxu0 0.0
    %3539 = vmatpush1.msra.mxu0 0.0
    %3540 = vmatprep.subr.mxu0 0.0
    %3541 = vmatpush1.msra.mxu0 0.0
    %3542 = vmatprep.subr.mxu0 0.0
    %3543 = vmatpush1.msra.mxu0 0.0
    %3544 = vmatprep.subr.mxu0 0.0
    %3545 = vmatpush1.msra.mxu0 0.0
    %3546 = vmatprep.subr.mxu0 0.0
    %3547 = vmatpush1.msra.mxu0 0.0
    %3548 = vmatprep.subr.mxu0 0.0
    %3549 = vmatpush1.msra.mxu0 0.0
    %3550 = vmatprep.subr.mxu0 0.0
    %3551 = vmatpush1.msra.mxu0 0.0
    %3552 = vmatprep.subr.mxu0 0.0
    %3553 = vmatpush1.msra.mxu0 0.0
    %3554 = vmatprep.subr.mxu0 0.0
    %3555 = vmatpush1.msra.mxu0 0.0
    %3556 = vmatprep.subr.mxu0 0.0
    %3557 = vmatpush1.msra.mxu0 0.0
    %3558 = vmatprep.subr.mxu0 0.0
    %3559 = vmatpush1.msra.mxu0 0.0
    %3560 = vmatprep.subr.mxu0 0.0
    %3561 = vmatpush1.msra.mxu0 0.0
    %3562 = vmatprep.subr.mxu0 0.0
    %3563 = vmatpush1.msra.mxu0 0.0
    %3564 = vmatprep.mubr.f32.mxu0 0.0
    %3565 = vmatmul.mubr.f32.gmra.mrb[0].mxu0 %v2072
    %v3566 = vpop.f32.mrb[0].mxu0
    %v3567 = vadd.f32 0.0, %v3566
    %v3568 = vpop.f32.mrb[0].mxu0
    %3569 = vdwg.mxu0
    %v3570 = vadd.f32 %v3497, %v3567
    %v3571 = vxor.u32 %v3570, 2147483648
    %v3572 = vmul.f32 %v3571, 1.442695
    %v3573 = vpow.pop %v3572
    %v3574 = vadd.f32 %v3573, 1.0
    %v3575 = vrcp.pop %v3574
    %v3576 = vmul.f32 1.0, %v3575
    %3577 = vmatprep.subr.mxu0 0.0
    %3578 = vmatpush1.msra.mxu0 %v186
    %3579 = vmatprep.subr.mxu0 0.0
    %3580 = vmatpush1.msra.mxu0 %v187
    %3581 = vmatprep.subr.mxu0 0.0
    %3582 = vmatpush1.msra.mxu0 %v188
    %3583 = vmatprep.subr.mxu0 0.0
    %3584 = vmatpush1.msra.mxu0 %v189
    %3585 = vmatprep.subr.mxu0 0.0
    %3586 = vmatpush1.msra.mxu0 0.0
    %3587 = vmatprep.subr.mxu0 0.0
    %3588 = vmatpush1.msra.mxu0 0.0
    %3589 = vmatprep.subr.mxu0 0.0
    %3590 = vmatpush1.msra.mxu0 0.0
    %3591 = vmatprep.subr.mxu0 0.0
    %3592 = vmatpush1.msra.mxu0 0.0
    %3593 = vmatprep.subr.mxu0 0.0
    %3594 = vmatpush1.msra.mxu0 0.0
    %3595 = vmatprep.subr.mxu0 0.0
    %3596 = vmatpush1.msra.mxu0 0.0
    %3597 = vmatprep.subr.mxu0 0.0
    %3598 = vmatpush1.msra.mxu0 0.0
    %3599 = vmatprep.subr.mxu0 0.0
    %3600 = vmatpush1.msra.mxu0 0.0
    %3601 = vmatprep.subr.mxu0 0.0
    %3602 = vmatpush1.msra.mxu0 0.0
    %3603 = vmatprep.subr.mxu0 0.0
    %3604 = vmatpush1.msra.mxu0 0.0
    %3605 = vmatprep.subr.mxu0 0.0
    %3606 = vmatpush1.msra.mxu0 0.0
    %3607 = vmatprep.subr.mxu0 0.0
    %3608 = vmatpush1.msra.mxu0 0.0
    %3609 = vmatprep.subr.mxu0 0.0
    %3610 = vmatpush1.msra.mxu0 0.0
    %3611 = vmatprep.subr.mxu0 0.0
    %3612 = vmatpush1.msra.mxu0 0.0
    %3613 = vmatprep.subr.mxu0 0.0
    %3614 = vmatpush1.msra.mxu0 0.0
    %3615 = vmatprep.subr.mxu0 0.0
    %3616 = vmatpush1.msra.mxu0 0.0
    %3617 = vmatprep.subr.mxu0 0.0
    %3618 = vmatpush1.msra.mxu0 0.0
    %3619 = vmatprep.subr.mxu0 0.0
    %3620 = vmatpush1.msra.mxu0 0.0
    %3621 = vmatprep.subr.mxu0 0.0
    %3622 = vmatpush1.msra.mxu0 0.0
    %3623 = vmatprep.subr.mxu0 0.0
    %3624 = vmatpush1.msra.mxu0 0.0
    %3625 = vmatprep.subr.mxu0 0.0
    %3626 = vmatpush1.msra.mxu0 0.0
    %3627 = vmatprep.subr.mxu0 0.0
    %3628 = vmatpush1.msra.mxu0 0.0
    %3629 = vmatprep.subr.mxu0 0.0
    %3630 = vmatpush1.msra.mxu0 0.0
    %3631 = vmatprep.subr.mxu0 0.0
    %3632 = vmatpush1.msra.mxu0 0.0
    %3633 = vmatprep.subr.mxu0 0.0
    %3634 = vmatpush1.msra.mxu0 0.0
    %3635 = vmatprep.subr.mxu0 0.0
    %3636 = vmatpush1.msra.mxu0 0.0
    %3637 = vmatprep.subr.mxu0 0.0
    %3638 = vmatpush1.msra.mxu0 0.0
    %3639 = vmatprep.subr.mxu0 0.0
    %3640 = vmatpush1.msra.mxu0 0.0
    %3641 = vmatprep.mubr.f32.mxu0 0.0
    %3642 = vmatmul.mubr.f32.gmra.mrb[0].mxu0 %v3428
    %v3643 = vpop.f32.mrb[0].mxu0
    %v3644 = vadd.f32 %v238, %v3643
    %v3645 = vpop.f32.mrb[0].mxu0
    %3646 = vdwg.mxu0
    %3647 = vmatprep.subr.mxu0 0.0
    %3648 = vmatpush1.msra.mxu0 %v200
    %3649 = vmatprep.subr.mxu0 0.0
    %3650 = vmatpush1.msra.mxu0 %v201
    %3651 = vmatprep.subr.mxu0 0.0
    %3652 = vmatpush1.msra.mxu0 %v202
    %3653 = vmatprep.subr.mxu0 0.0
    %3654 = vmatpush1.msra.mxu0 %v203
    %3655 = vmatprep.subr.mxu0 0.0
    %3656 = vmatpush1.msra.mxu0 0.0
    %3657 = vmatprep.subr.mxu0 0.0
    %3658 = vmatpush1.msra.mxu0 0.0
    %3659 = vmatprep.subr.mxu0 0.0
    %3660 = vmatpush1.msra.mxu0 0.0
    %3661 = vmatprep.subr.mxu0 0.0
    %3662 = vmatpush1.msra.mxu0 0.0
    %3663 = vmatprep.subr.mxu0 0.0
    %3664 = vmatpush1.msra.mxu0 0.0
    %3665 = vmatprep.subr.mxu0 0.0
    %3666 = vmatpush1.msra.mxu0 0.0
    %3667 = vmatprep.subr.mxu0 0.0
    %3668 = vmatpush1.msra.mxu0 0.0
    %3669 = vmatprep.subr.mxu0 0.0
    %3670 = vmatpush1.msra.mxu0 0.0
    %3671 = vmatprep.subr.mxu0 0.0
    %3672 = vmatpush1.msra.mxu0 0.0
    %3673 = vmatprep.subr.mxu0 0.0
    %3674 = vmatpush1.msra.mxu0 0.0
    %3675 = vmatprep.subr.mxu0 0.0
    %3676 = vmatpush1.msra.mxu0 0.0
    %3677 = vmatprep.subr.mxu0 0.0
    %3678 = vmatpush1.msra.mxu0 0.0
    %3679 = vmatprep.subr.mxu0 0.0
    %3680 = vmatpush1.msra.mxu0 0.0
    %3681 = vmatprep.subr.mxu0 0.0
    %3682 = vmatpush1.msra.mxu0 0.0
    %3683 = vmatprep.subr.mxu0 0.0
    %3684 = vmatpush1.msra.mxu0 0.0
    %3685 = vmatprep.subr.mxu0 0.0
    %3686 = vmatpush1.msra.mxu0 0.0
    %3687 = vmatprep.subr.mxu0 0.0
    %3688 = vmatpush1.msra.mxu0 0.0
    %3689 = vmatprep.subr.mxu0 0.0
    %3690 = vmatpush1.msra.mxu0 0.0
    %3691 = vmatprep.subr.mxu0 0.0
    %3692 = vmatpush1.msra.mxu0 0.0
    %3693 = vmatprep.subr.mxu0 0.0
    %3694 = vmatpush1.msra.mxu0 0.0
    %3695 = vmatprep.subr.mxu0 0.0
    %3696 = vmatpush1.msra.mxu0 0.0
    %3697 = vmatprep.subr.mxu0 0.0
    %3698 = vmatpush1.msra.mxu0 0.0
    %3699 = vmatprep.subr.mxu0 0.0
    %3700 = vmatpush1.msra.mxu0 0.0
    %3701 = vmatprep.subr.mxu0 0.0
    %3702 = vmatpush1.msra.mxu0 0.0
    %3703 = vmatprep.subr.mxu0 0.0
    %3704 = vmatpush1.msra.mxu0 0.0
    %3705 = vmatprep.subr.mxu0 0.0
    %3706 = vmatpush1.msra.mxu0 0.0
    %3707 = vmatprep.subr.mxu0 0.0
    %3708 = vmatpush1.msra.mxu0 0.0
    %3709 = vmatprep.subr.mxu0 0.0
    %3710 = vmatpush1.msra.mxu0 0.0
    %3711 = vmatprep.mubr.f32.mxu0 0.0
    %3712 = vmatmul.mubr.f32.gmra.mrb[0].mxu0 %v2072
    %v3713 = vpop.f32.mrb[0].mxu0
    %v3714 = vadd.f32 0.0, %v3713
    %v3715 = vpop.f32.mrb[0].mxu0
    %3716 = vdwg.mxu0
    %v3717 = vadd.f32 %v3644, %v3714
    %v3718 = vxor.u32 %v3717, 2147483648
    %v3719 = vmul.f32 %v3718, 1.442695
    %v3720 = vpow.pop %v3719
    %v3721 = vadd.f32 %v3720, 1.0
    %v3722 = vrcp.pop %v3721
    %v3723 = vmul.f32 1.0, %v3722
    %3724 = vmatprep.subr.mxu0 0.0
    %3725 = vmatpush1.msra.mxu0 %v191
    %3726 = vmatprep.subr.mxu0 0.0
    %3727 = vmatpush1.msra.mxu0 %v192
    %3728 = vmatprep.subr.mxu0 0.0
    %3729 = vmatpush1.msra.mxu0 %v193
    %3730 = vmatprep.subr.mxu0 0.0
    %3731 = vmatpush1.msra.mxu0 %v194
    %3732 = vmatprep.subr.mxu0 0.0
    %3733 = vmatpush1.msra.mxu0 0.0
    %3734 = vmatprep.subr.mxu0 0.0
    %3735 = vmatpush1.msra.mxu0 0.0
    %3736 = vmatprep.subr.mxu0 0.0
    %3737 = vmatpush1.msra.mxu0 0.0
    %3738 = vmatprep.subr.mxu0 0.0
    %3739 = vmatpush1.msra.mxu0 0.0
    %3740 = vmatprep.subr.mxu0 0.0
    %3741 = vmatpush1.msra.mxu0 0.0
    %3742 = vmatprep.subr.mxu0 0.0
    %3743 = vmatpush1.msra.mxu0 0.0
    %3744 = vmatprep.subr.mxu0 0.0
    %3745 = vmatpush1.msra.mxu0 0.0
    %3746 = vmatprep.subr.mxu0 0.0
    %3747 = vmatpush1.msra.mxu0 0.0
    %3748 = vmatprep.subr.mxu0 0.0
    %3749 = vmatpush1.msra.mxu0 0.0
    %3750 = vmatprep.subr.mxu0 0.0
    %3751 = vmatpush1.msra.mxu0 0.0
    %3752 = vmatprep.subr.mxu0 0.0
    %3753 = vmatpush1.msra.mxu0 0.0
    %3754 = vmatprep.subr.mxu0 0.0
    %3755 = vmatpush1.msra.mxu0 0.0
    %3756 = vmatprep.subr.mxu0 0.0
    %3757 = vmatpush1.msra.mxu0 0.0
    %3758 = vmatprep.subr.mxu0 0.0
    %3759 = vmatpush1.msra.mxu0 0.0
    %3760 = vmatprep.subr.mxu0 0.0
    %3761 = vmatpush1.msra.mxu0 0.0
    %3762 = vmatprep.subr.mxu0 0.0
    %3763 = vmatpush1.msra.mxu0 0.0
    %3764 = vmatprep.subr.mxu0 0.0
    %3765 = vmatpush1.msra.mxu0 0.0
    %3766 = vmatprep.subr.mxu0 0.0
    %3767 = vmatpush1.msra.mxu0 0.0
    %3768 = vmatprep.subr.mxu0 0.0
    %3769 = vmatpush1.msra.mxu0 0.0
    %3770 = vmatprep.subr.mxu0 0.0
    %3771 = vmatpush1.msra.mxu0 0.0
    %3772 = vmatprep.subr.mxu0 0.0
    %3773 = vmatpush1.msra.mxu0 0.0
    %3774 = vmatprep.subr.mxu0 0.0
    %3775 = vmatpush1.msra.mxu0 0.0
    %3776 = vmatprep.subr.mxu0 0.0
    %3777 = vmatpush1.msra.mxu0 0.0
    %3778 = vmatprep.subr.mxu0 0.0
    %3779 = vmatpush1.msra.mxu0 0.0
    %3780 = vmatprep.subr.mxu0 0.0
    %3781 = vmatpush1.msra.mxu0 0.0
    %3782 = vmatprep.subr.mxu0 0.0
    %3783 = vmatpush1.msra.mxu0 0.0
    %3784 = vmatprep.subr.mxu0 0.0
    %3785 = vmatpush1.msra.mxu0 0.0
    %3786 = vmatprep.subr.mxu0 0.0
    %3787 = vmatpush1.msra.mxu0 0.0
    %3788 = vmatprep.mubr.f32.mxu0 0.0
    %3789 = vmatmul.mubr.f32.gmra.mrb[0].mxu0 %v3428
    %v3790 = vpop.f32.mrb[0].mxu0
    %v3791 = vadd.f32 %v243, %v3790
    %v3792 = vpop.f32.mrb[0].mxu0
    %3793 = vdwg.mxu0
    %3794 = vmatprep.subr.mxu0 0.0
    %3795 = vmatpush1.msra.mxu0 %v205
    %3796 = vmatprep.subr.mxu0 0.0
    %3797 = vmatpush1.msra.mxu0 %v206
    %3798 = vmatprep.subr.mxu0 0.0
    %3799 = vmatpush1.msra.mxu0 %v207
    %3800 = vmatprep.subr.mxu0 0.0
    %3801 = vmatpush1.msra.mxu0 %v208
    %3802 = vmatprep.subr.mxu0 0.0
    %3803 = vmatpush1.msra.mxu0 0.0
    %3804 = vmatprep.subr.mxu0 0.0
    %3805 = vmatpush1.msra.mxu0 0.0
    %3806 = vmatprep.subr.mxu0 0.0
    %3807 = vmatpush1.msra.mxu0 0.0
    %3808 = vmatprep.subr.mxu0 0.0
    %3809 = vmatpush1.msra.mxu0 0.0
    %3810 = vmatprep.subr.mxu0 0.0
    %3811 = vmatpush1.msra.mxu0 0.0
    %3812 = vmatprep.subr.mxu0 0.0
    %3813 = vmatpush1.msra.mxu0 0.0
    %3814 = vmatprep.subr.mxu0 0.0
    %3815 = vmatpush1.msra.mxu0 0.0
    %3816 = vmatprep.subr.mxu0 0.0
    %3817 = vmatpush1.msra.mxu0 0.0
    %3818 = vmatprep.subr.mxu0 0.0
    %3819 = vmatpush1.msra.mxu0 0.0
    %3820 = vmatprep.subr.mxu0 0.0
    %3821 = vmatpush1.msra.mxu0 0.0
    %3822 = vmatprep.subr.mxu0 0.0
    %3823 = vmatpush1.msra.mxu0 0.0
    %3824 = vmatprep.subr.mxu0 0.0
    %3825 = vmatpush1.msra.mxu0 0.0
    %3826 = vmatprep.subr.mxu0 0.0
    %3827 = vmatpush1.msra.mxu0 0.0
    %3828 = vmatprep.subr.mxu0 0.0
    %3829 = vmatpush1.msra.mxu0 0.0
    %3830 = vmatprep.subr.mxu0 0.0
    %3831 = vmatpush1.msra.mxu0 0.0
    %3832 = vmatprep.subr.mxu0 0.0
    %3833 = vmatpush1.msra.mxu0 0.0
    %3834 = vmatprep.subr.mxu0 0.0
    %3835 = vmatpush1.msra.mxu0 0.0
    %3836 = vmatprep.subr.mxu0 0.0
    %3837 = vmatpush1.msra.mxu0 0.0
    %3838 = vmatprep.subr.mxu0 0.0
    %3839 = vmatpush1.msra.mxu0 0.0
    %3840 = vmatprep.subr.mxu0 0.0
    %3841 = vmatpush1.msra.mxu0 0.0
    %3842 = vmatprep.subr.mxu0 0.0
    %3843 = vmatpush1.msra.mxu0 0.0
    %3844 = vmatprep.subr.mxu0 0.0
    %3845 = vmatpush1.msra.mxu0 0.0
    %3846 = vmatprep.subr.mxu0 0.0
    %3847 = vmatpush1.msra.mxu0 0.0
    %3848 = vmatprep.subr.mxu0 0.0
    %3849 = vmatpush1.msra.mxu0 0.0
    %3850 = vmatprep.subr.mxu0 0.0
    %3851 = vmatpush1.msra.mxu0 0.0
    %3852 = vmatprep.subr.mxu0 0.0
    %3853 = vmatpush1.msra.mxu0 0.0
    %3854 = vmatprep.subr.mxu0 0.0
    %3855 = vmatpush1.msra.mxu0 0.0
    %3856 = vmatprep.subr.mxu0 0.0
    %3857 = vmatpush1.msra.mxu0 0.0
    %3858 = vmatprep.mubr.f32.mxu0 0.0
    %3859 = vmatmul.mubr.f32.gmra.mrb[0].mxu0 %v2072
    %v3860 = vpop.f32.mrb[0].mxu0
    %v3861 = vadd.f32 %v248, %v3860
    %v3862 = vpop.f32.mrb[0].mxu0
    %3863 = vdwg.mxu0
    %v3864 = vmul.f32 %v3576, %v3861
    %v3865 = vadd.f32 %v3791, %v3864
    %v3866 = vtanh.pop %v3865
    %v3867 = vsub.f32 1.0, %v3723
    %v3868 = vmul.f32 %v3867, %v3866
    %v3869 = vmul.f32 %v3723, %v2070
    %v3870 = vadd.f32 %v3868, %v3869
    %v3872 = vsel %vm249, %v3870, 0
    %3874 = vmatprep.subr.mxu0 0.0
    %3875 = vmatpush1.msra.mxu0 %v153
    %3876 = vmatprep.subr.mxu0 0.0
    %3877 = vmatpush1.msra.mxu0 %v154
    %3878 = vmatprep.subr.mxu0 0.0
    %3879 = vmatpush1.msra.mxu0 %v155
    %3880 = vmatprep.subr.mxu0 0.0
    %3881 = vmatpush1.msra.mxu0 %v156
    %3882 = vmatprep.subr.mxu0 0.0
    %3883 = vmatpush1.msra.mxu0 0.0
    %3884 = vmatprep.subr.mxu0 0.0
    %3885 = vmatpush1.msra.mxu0 0.0
    %3886 = vmatprep.subr.mxu0 0.0
    %3887 = vmatpush1.msra.mxu0 0.0
    %3888 = vmatprep.subr.mxu0 0.0
    %3889 = vmatpush1.msra.mxu0 0.0
    %3890 = vmatprep.subr.mxu0 0.0
    %3891 = vmatpush1.msra.mxu0 0.0
    %3892 = vmatprep.subr.mxu0 0.0
    %3893 = vmatpush1.msra.mxu0 0.0
    %3894 = vmatprep.subr.mxu0 0.0
    %3895 = vmatpush1.msra.mxu0 0.0
    %3896 = vmatprep.subr.mxu0 0.0
    %3897 = vmatpush1.msra.mxu0 0.0
    %3898 = vmatprep.subr.mxu0 0.0
    %3899 = vmatpush1.msra.mxu0 0.0
    %3900 = vmatprep.subr.mxu0 0.0
    %3901 = vmatpush1.msra.mxu0 0.0
    %3902 = vmatprep.subr.mxu0 0.0
    %3903 = vmatpush1.msra.mxu0 0.0
    %3904 = vmatprep.subr.mxu0 0.0
    %3905 = vmatpush1.msra.mxu0 0.0
    %3906 = vmatprep.subr.mxu0 0.0
    %3907 = vmatpush1.msra.mxu0 0.0
    %3908 = vmatprep.subr.mxu0 0.0
    %3909 = vmatpush1.msra.mxu0 0.0
    %3910 = vmatprep.subr.mxu0 0.0
    %3911 = vmatpush1.msra.mxu0 0.0
    %3912 = vmatprep.subr.mxu0 0.0
    %3913 = vmatpush1.msra.mxu0 0.0
    %3914 = vmatprep.subr.mxu0 0.0
    %3915 = vmatpush1.msra.mxu0 0.0
    %3916 = vmatprep.subr.mxu0 0.0
    %3917 = vmatpush1.msra.mxu0 0.0
    %3918 = vmatprep.subr.mxu0 0.0
    %3919 = vmatpush1.msra.mxu0 0.0
    %3920 = vmatprep.subr.mxu0 0.0
    %3921 = vmatpush1.msra.mxu0 0.0
    %3922 = vmatprep.subr.mxu0 0.0
    %3923 = vmatpush1.msra.mxu0 0.0
    %3924 = vmatprep.subr.mxu0 0.0
    %3925 = vmatpush1.msra.mxu0 0.0
    %3926 = vmatprep.subr.mxu0 0.0
    %3927 = vmatpush1.msra.mxu0 0.0
    %3928 = vmatprep.subr.mxu0 0.0
    %3929 = vmatpush1.msra.mxu0 0.0
    %3930 = vmatprep.subr.mxu0 0.0
    %3931 = vmatpush1.msra.mxu0 0.0
    %3932 = vmatprep.subr.mxu0 0.0
    %3933 = vmatpush1.msra.mxu0 0.0
    %3934 = vmatprep.subr.mxu0 0.0
    %3935 = vmatpush1.msra.mxu0 0.0
    %3936 = vmatprep.subr.mxu0 0.0
    %3937 = vmatpush1.msra.mxu0 0.0
    %3938 = vmatprep.mubr.f32.mxu0 0.0
    %3939 = vmatmul.mubr.f32.gmra.mrb[0].mxu0 %v3872
    %v3940 = vpop.f32.mrb[0].mxu0
    %v3941 = vadd.f32 0.0, %v3940
    %v3942 = vpop.f32.mrb[0].mxu0
    %3943 = vdwg.mxu0
    %v3944 = vpack.c.bf16 %v3941, %v3941
    %v3946 = vsel %vm341, %v3944, 0
    %3948 = vmatprep.subr.bf16.mxu0 0
    %3949 = vmatpush1.bf16.msra.mxu0 %v3946
    %3950 = vmatprep.subr.bf16.mxu0 0
    %3951 = vmatpush1.bf16.msra.mxu0 0
    %3952 = vmatprep.subr.bf16.mxu0 0
    %3953 = vmatpush1.bf16.msra.mxu0 0
    %3954 = vmatprep.subr.bf16.mxu0 0
    %3955 = vmatpush1.bf16.msra.mxu0 0
    %3956 = vmatprep.subr.bf16.mxu0 0
    %3957 = vmatpush1.bf16.msra.mxu0 0
    %3958 = vmatprep.subr.bf16.mxu0 0
    %3959 = vmatpush1.bf16.msra.mxu0 0
    %3960 = vmatprep.subr.bf16.mxu0 0
    %3961 = vmatpush1.bf16.msra.mxu0 0
    %3962 = vmatprep.subr.bf16.mxu0 0
    %3963 = vmatpush1.bf16.msra.mxu0 0
    %3964 = vmatprep.subr.bf16.mxu0 0
    %3965 = vmatpush1.bf16.msra.mxu0 0
    %3966 = vmatprep.subr.bf16.mxu0 0
    %3967 = vmatpush1.bf16.msra.mxu0 0
    %3968 = vmatprep.subr.bf16.mxu0 0
    %3969 = vmatpush1.bf16.msra.mxu0 0
    %3970 = vmatprep.subr.bf16.mxu0 0
    %3971 = vmatpush1.bf16.msra.mxu0 0
    %3972 = vmatprep.subr.bf16.mxu0 0
    %3973 = vmatpush1.bf16.msra.mxu0 0
    %3974 = vmatprep.subr.bf16.mxu0 0
    %3975 = vmatpush1.bf16.msra.mxu0 0
    %3976 = vmatprep.subr.bf16.mxu0 0
    %3977 = vmatpush1.bf16.msra.mxu0 0
    %3978 = vmatprep.subr.bf16.mxu0 0
    %3979 = vmatpush1.bf16.msra.mxu0 0
    %3980 = vmatprep.mubr.bf16.mxu0 0
    %3981 = vmatmul.mubr.bf16.gmra.mrb[0].mxu0 %v336
    %v3982 = vpop.f32.mrb[0].mxu0
    %v3983 = vadd.f32 %v213, %v3982
    %v3984 = vpop.f32.mrb[0].mxu0
    %v3985 = vpop.f32.mrb[0].mxu0
    %v3986 = vadd.f32 %v213, %v3985
    %v3987 = vpop.f32.mrb[0].mxu0
    %3988 = vmatprep.mubr.bf16.mxu0 0
    %3989 = vmatmul.mubr.bf16.gmra.mrb[0].mxu0 %v339
    %v3990 = vpop.f32.mrb[0].mxu0
    %v3991 = vadd.f32 %v213, %v3990
    %v3992 = vpop.f32.mrb[0].mxu0
    %v3993 = vpop.f32.mrb[0].mxu0
    %v3994 = vadd.f32 %v213, %v3993
    %v3995 = vpop.f32.mrb[0].mxu0
    %3996 = vdwg.mxu0
    %3997 = vmatprep.subr.mxu0 0.0
    %3998 = vmatpush1.msra.mxu0 %v158
    %3999 = vmatprep.subr.mxu0 0.0
    %4000 = vmatpush1.msra.mxu0 %v159
    %4001 = vmatprep.subr.mxu0 0.0
    %4002 = vmatpush1.msra.mxu0 %v160
    %4003 = vmatprep.subr.mxu0 0.0
    %4004 = vmatpush1.msra.mxu0 %v161
    %4005 = vmatprep.subr.mxu0 0.0
    %4006 = vmatpush1.msra.mxu0 0.0
    %4007 = vmatprep.subr.mxu0 0.0
    %4008 = vmatpush1.msra.mxu0 0.0
    %4009 = vmatprep.subr.mxu0 0.0
    %4010 = vmatpush1.msra.mxu0 0.0
    %4011 = vmatprep.subr.mxu0 0.0
    %4012 = vmatpush1.msra.mxu0 0.0
    %4013 = vmatprep.subr.mxu0 0.0
    %4014 = vmatpush1.msra.mxu0 0.0
    %4015 = vmatprep.subr.mxu0 0.0
    %4016 = vmatpush1.msra.mxu0 0.0
    %4017 = vmatprep.subr.mxu0 0.0
    %4018 = vmatpush1.msra.mxu0 0.0
    %4019 = vmatprep.subr.mxu0 0.0
    %4020 = vmatpush1.msra.mxu0 0.0
    %4021 = vmatprep.subr.mxu0 0.0
    %4022 = vmatpush1.msra.mxu0 0.0
    %4023 = vmatprep.subr.mxu0 0.0
    %4024 = vmatpush1.msra.mxu0 0.0
    %4025 = vmatprep.subr.mxu0 0.0
    %4026 = vmatpush1.msra.mxu0 0.0
    %4027 = vmatprep.subr.mxu0 0.0
    %4028 = vmatpush1.msra.mxu0 0.0
    %4029 = vmatprep.subr.mxu0 0.0
    %4030 = vmatpush1.msra.mxu0 0.0
    %4031 = vmatprep.subr.mxu0 0.0
    %4032 = vmatpush1.msra.mxu0 0.0
    %4033 = vmatprep.subr.mxu0 0.0
    %4034 = vmatpush1.msra.mxu0 0.0
    %4035 = vmatprep.subr.mxu0 0.0
    %4036 = vmatpush1.msra.mxu0 0.0
    %4037 = vmatprep.subr.mxu0 0.0
    %4038 = vmatpush1.msra.mxu0 0.0
    %4039 = vmatprep.subr.mxu0 0.0
    %4040 = vmatpush1.msra.mxu0 0.0
    %4041 = vmatprep.subr.mxu0 0.0
    %4042 = vmatpush1.msra.mxu0 0.0
    %4043 = vmatprep.subr.mxu0 0.0
    %4044 = vmatpush1.msra.mxu0 0.0
    %4045 = vmatprep.subr.mxu0 0.0
    %4046 = vmatpush1.msra.mxu0 0.0
    %4047 = vmatprep.subr.mxu0 0.0
    %4048 = vmatpush1.msra.mxu0 0.0
    %4049 = vmatprep.subr.mxu0 0.0
    %4050 = vmatpush1.msra.mxu0 0.0
    %4051 = vmatprep.subr.mxu0 0.0
    %4052 = vmatpush1.msra.mxu0 0.0
    %4053 = vmatprep.subr.mxu0 0.0
    %4054 = vmatpush1.msra.mxu0 0.0
    %4055 = vmatprep.subr.mxu0 0.0
    %4056 = vmatpush1.msra.mxu0 0.0
    %4057 = vmatprep.subr.mxu0 0.0
    %4058 = vmatpush1.msra.mxu0 0.0
    %4059 = vmatprep.subr.mxu0 0.0
    %4060 = vmatpush1.msra.mxu0 0.0
    %4061 = vmatprep.mubr.f32.mxu0 0.0
    %4062 = vmatmul.mubr.f32.gmra.mrb[0].mxu0 %v3872
    %v4063 = vpop.f32.mrb[0].mxu0
    %v4064 = vadd.f32 0.0, %v4063
    %v4065 = vpop.f32.mrb[0].mxu0
    %4066 = vdwg.mxu0
    %v4067 = vpack.c.bf16 %v4064, %v4064
    %v4069 = vsel %vm341, %v4067, 0
    %4071 = vmatprep.subr.bf16.mxu0 0
    %4072 = vmatpush1.bf16.msra.mxu0 %v4069
    %4073 = vmatprep.subr.bf16.mxu0 0
    %4074 = vmatpush1.bf16.msra.mxu0 0
    %4075 = vmatprep.subr.bf16.mxu0 0
    %4076 = vmatpush1.bf16.msra.mxu0 0
    %4077 = vmatprep.subr.bf16.mxu0 0
    %4078 = vmatpush1.bf16.msra.mxu0 0
    %4079 = vmatprep.subr.bf16.mxu0 0
    %4080 = vmatpush1.bf16.msra.mxu0 0
    %4081 = vmatprep.subr.bf16.mxu0 0
    %4082 = vmatpush1.bf16.msra.mxu0 0
    %4083 = vmatprep.subr.bf16.mxu0 0
    %4084 = vmatpush1.bf16.msra.mxu0 0
    %4085 = vmatprep.subr.bf16.mxu0 0
    %4086 = vmatpush1.bf16.msra.mxu0 0
    %4087 = vmatprep.subr.bf16.mxu0 0
    %4088 = vmatpush1.bf16.msra.mxu0 0
    %4089 = vmatprep.subr.bf16.mxu0 0
    %4090 = vmatpush1.bf16.msra.mxu0 0
    %4091 = vmatprep.subr.bf16.mxu0 0
    %4092 = vmatpush1.bf16.msra.mxu0 0
    %4093 = vmatprep.subr.bf16.mxu0 0
    %4094 = vmatpush1.bf16.msra.mxu0 0
    %4095 = vmatprep.subr.bf16.mxu0 0
    %4096 = vmatpush1.bf16.msra.mxu0 0
    %4097 = vmatprep.subr.bf16.mxu0 0
    %4098 = vmatpush1.bf16.msra.mxu0 0
    %4099 = vmatprep.subr.bf16.mxu0 0
    %4100 = vmatpush1.bf16.msra.mxu0 0
    %4101 = vmatprep.subr.bf16.mxu0 0
    %4102 = vmatpush1.bf16.msra.mxu0 0
    %4103 = vmatprep.mubr.bf16.mxu0 0
    %4104 = vmatmul.mubr.bf16.gmra.mrb[0].mxu0 %v336
    %v4105 = vpop.f32.mrb[0].mxu0
    %v4106 = vadd.f32 %v218, %v4105
    %v4107 = vpop.f32.mrb[0].mxu0
    %v4108 = vpop.f32.mrb[0].mxu0
    %v4109 = vadd.f32 %v218, %v4108
    %v4110 = vpop.f32.mrb[0].mxu0
    %4111 = vmatprep.mubr.bf16.mxu0 0
    %4112 = vmatmul.mubr.bf16.gmra.mrb[0].mxu0 %v339
    %v4113 = vpop.f32.mrb[0].mxu0
    %v4114 = vadd.f32 %v218, %v4113
    %v4115 = vpop.f32.mrb[0].mxu0
    %v4116 = vpop.f32.mrb[0].mxu0
    %v4117 = vadd.f32 %v218, %v4116
    %v4118 = vpop.f32.mrb[0].mxu0
    %4119 = vdwg.mxu0
    %4120 = vmatprep.subr.mxu0 0.0
    %4121 = vmatpush1.msra.mxu0 %v163
    %4122 = vmatprep.subr.mxu0 0.0
    %4123 = vmatpush1.msra.mxu0 %v164
    %4124 = vmatprep.subr.mxu0 0.0
    %4125 = vmatpush1.msra.mxu0 %v165
    %4126 = vmatprep.subr.mxu0 0.0
    %4127 = vmatpush1.msra.mxu0 %v166
    %4128 = vmatprep.subr.mxu0 0.0
    %4129 = vmatpush1.msra.mxu0 0.0
    %4130 = vmatprep.subr.mxu0 0.0
    %4131 = vmatpush1.msra.mxu0 0.0
    %4132 = vmatprep.subr.mxu0 0.0
    %4133 = vmatpush1.msra.mxu0 0.0
    %4134 = vmatprep.subr.mxu0 0.0
    %4135 = vmatpush1.msra.mxu0 0.0
    %4136 = vmatprep.subr.mxu0 0.0
    %4137 = vmatpush1.msra.mxu0 0.0
    %4138 = vmatprep.subr.mxu0 0.0
    %4139 = vmatpush1.msra.mxu0 0.0
    %4140 = vmatprep.subr.mxu0 0.0
    %4141 = vmatpush1.msra.mxu0 0.0
    %4142 = vmatprep.subr.mxu0 0.0
    %4143 = vmatpush1.msra.mxu0 0.0
    %4144 = vmatprep.subr.mxu0 0.0
    %4145 = vmatpush1.msra.mxu0 0.0
    %4146 = vmatprep.subr.mxu0 0.0
    %4147 = vmatpush1.msra.mxu0 0.0
    %4148 = vmatprep.subr.mxu0 0.0
    %4149 = vmatpush1.msra.mxu0 0.0
    %4150 = vmatprep.subr.mxu0 0.0
    %4151 = vmatpush1.msra.mxu0 0.0
    %4152 = vmatprep.subr.mxu0 0.0
    %4153 = vmatpush1.msra.mxu0 0.0
    %4154 = vmatprep.subr.mxu0 0.0
    %4155 = vmatpush1.msra.mxu0 0.0
    %4156 = vmatprep.subr.mxu0 0.0
    %4157 = vmatpush1.msra.mxu0 0.0
    %4158 = vmatprep.subr.mxu0 0.0
    %4159 = vmatpush1.msra.mxu0 0.0
    %4160 = vmatprep.subr.mxu0 0.0
    %4161 = vmatpush1.msra.mxu0 0.0
    %4162 = vmatprep.subr.mxu0 0.0
    %4163 = vmatpush1.msra.mxu0 0.0
    %4164 = vmatprep.subr.mxu0 0.0
    %4165 = vmatpush1.msra.mxu0 0.0
    %4166 = vmatprep.subr.mxu0 0.0
    %4167 = vmatpush1.msra.mxu0 0.0
    %4168 = vmatprep.subr.mxu0 0.0
    %4169 = vmatpush1.msra.mxu0 0.0
    %4170 = vmatprep.subr.mxu0 0.0
    %4171 = vmatpush1.msra.mxu0 0.0
    %4172 = vmatprep.subr.mxu0 0.0
    %4173 = vmatpush1.msra.mxu0 0.0
    %4174 = vmatprep.subr.mxu0 0.0
    %4175 = vmatpush1.msra.mxu0 0.0
    %4176 = vmatprep.subr.mxu0 0.0
    %4177 = vmatpush1.msra.mxu0 0.0
    %4178 = vmatprep.subr.mxu0 0.0
    %4179 = vmatpush1.msra.mxu0 0.0
    %4180 = vmatprep.subr.mxu0 0.0
    %4181 = vmatpush1.msra.mxu0 0.0
    %4182 = vmatprep.subr.mxu0 0.0
    %4183 = vmatpush1.msra.mxu0 0.0
    %4184 = vmatprep.mubr.f32.mxu0 0.0
    %4185 = vmatmul.mubr.f32.gmra.mrb[0].mxu0 %v3872
    %v4186 = vpop.f32.mrb[0].mxu0
    %v4187 = vadd.f32 0.0, %v4186
    %v4188 = vpop.f32.mrb[0].mxu0
    %4189 = vdwg.mxu0
    %v4190 = vpack.c.bf16 %v4187, %v4187
    %v4192 = vsel %vm341, %v4190, 0
    %4194 = vmatprep.subr.bf16.mxu0 0
    %4195 = vmatpush1.bf16.msra.mxu0 %v4192
    %4196 = vmatprep.subr.bf16.mxu0 0
    %4197 = vmatpush1.bf16.msra.mxu0 0
    %4198 = vmatprep.subr.bf16.mxu0 0
    %4199 = vmatpush1.bf16.msra.mxu0 0
    %4200 = vmatprep.subr.bf16.mxu0 0
    %4201 = vmatpush1.bf16.msra.mxu0 0
    %4202 = vmatprep.subr.bf16.mxu0 0
    %4203 = vmatpush1.bf16.msra.mxu0 0
    %4204 = vmatprep.subr.bf16.mxu0 0
    %4205 = vmatpush1.bf16.msra.mxu0 0
    %4206 = vmatprep.subr.bf16.mxu0 0
    %4207 = vmatpush1.bf16.msra.mxu0 0
    %4208 = vmatprep.subr.bf16.mxu0 0
    %4209 = vmatpush1.bf16.msra.mxu0 0
    %4210 = vmatprep.subr.bf16.mxu0 0
    %4211 = vmatpush1.bf16.msra.mxu0 0
    %4212 = vmatprep.subr.bf16.mxu0 0
    %4213 = vmatpush1.bf16.msra.mxu0 0
    %4214 = vmatprep.subr.bf16.mxu0 0
    %4215 = vmatpush1.bf16.msra.mxu0 0
    %4216 = vmatprep.subr.bf16.mxu0 0
    %4217 = vmatpush1.bf16.msra.mxu0 0
    %4218 = vmatprep.subr.bf16.mxu0 0
    %4219 = vmatpush1.bf16.msra.mxu0 0
    %4220 = vmatprep.subr.bf16.mxu0 0
    %4221 = vmatpush1.bf16.msra.mxu0 0
    %4222 = vmatprep.subr.bf16.mxu0 0
    %4223 = vmatpush1.bf16.msra.mxu0 0
    %4224 = vmatprep.subr.bf16.mxu0 0
    %4225 = vmatpush1.bf16.msra.mxu0 0
    %4226 = vmatprep.mubr.bf16.mxu0 0
    %4227 = vmatmul.mubr.bf16.gmra.mrb[0].mxu0 %v336
    %v4228 = vpop.f32.mrb[0].mxu0
    %v4229 = vadd.f32 %v223, %v4228
    %v4230 = vpop.f32.mrb[0].mxu0
    %v4231 = vpop.f32.mrb[0].mxu0
    %v4232 = vadd.f32 %v223, %v4231
    %v4233 = vpop.f32.mrb[0].mxu0
    %4234 = vmatprep.mubr.bf16.mxu0 0
    %4235 = vmatmul.mubr.bf16.gmra.mrb[0].mxu0 %v339
    %v4236 = vpop.f32.mrb[0].mxu0
    %v4237 = vadd.f32 %v223, %v4236
    %v4238 = vpop.f32.mrb[0].mxu0
    %v4239 = vpop.f32.mrb[0].mxu0
    %v4240 = vadd.f32 %v223, %v4239
    %v4241 = vpop.f32.mrb[0].mxu0
    %4242 = vdwg.mxu0
    %v4244 = vsel %vm249, %v3382, 0
    %4246 = vmatprep.subr.mxu0 0.0
    %4247 = vmatpush1.msra.mxu0 %v167
    %4248 = vmatprep.subr.mxu0 0.0
    %4249 = vmatpush1.msra.mxu0 %v168
    %4250 = vmatprep.subr.mxu0 0.0
    %4251 = vmatpush1.msra.mxu0 %v169
    %4252 = vmatprep.subr.mxu0 0.0
    %4253 = vmatpush1.msra.mxu0 %v170
    %4254 = vmatprep.subr.mxu0 0.0
    %4255 = vmatpush1.msra.mxu0 0.0
    %4256 = vmatprep.subr.mxu0 0.0
    %4257 = vmatpush1.msra.mxu0 0.0
    %4258 = vmatprep.subr.mxu0 0.0
    %4259 = vmatpush1.msra.mxu0 0.0
    %4260 = vmatprep.subr.mxu0 0.0
    %4261 = vmatpush1.msra.mxu0 0.0
    %4262 = vmatprep.subr.mxu0 0.0
    %4263 = vmatpush1.msra.mxu0 0.0
    %4264 = vmatprep.subr.mxu0 0.0
    %4265 = vmatpush1.msra.mxu0 0.0
    %4266 = vmatprep.subr.mxu0 0.0
    %4267 = vmatpush1.msra.mxu0 0.0
    %4268 = vmatprep.subr.mxu0 0.0
    %4269 = vmatpush1.msra.mxu0 0.0
    %4270 = vmatprep.subr.mxu0 0.0
    %4271 = vmatpush1.msra.mxu0 0.0
    %4272 = vmatprep.subr.mxu0 0.0
    %4273 = vmatpush1.msra.mxu0 0.0
    %4274 = vmatprep.subr.mxu0 0.0
    %4275 = vmatpush1.msra.mxu0 0.0
    %4276 = vmatprep.subr.mxu0 0.0
    %4277 = vmatpush1.msra.mxu0 0.0
    %4278 = vmatprep.subr.mxu0 0.0
    %4279 = vmatpush1.msra.mxu0 0.0
    %4280 = vmatprep.subr.mxu0 0.0
    %4281 = vmatpush1.msra.mxu0 0.0
    %4282 = vmatprep.subr.mxu0 0.0
    %4283 = vmatpush1.msra.mxu0 0.0
    %4284 = vmatprep.subr.mxu0 0.0
    %4285 = vmatpush1.msra.mxu0 0.0
    %4286 = vmatprep.subr.mxu0 0.0
    %4287 = vmatpush1.msra.mxu0 0.0
    %4288 = vmatprep.subr.mxu0 0.0
    %4289 = vmatpush1.msra.mxu0 0.0
    %4290 = vmatprep.subr.mxu0 0.0
    %4291 = vmatpush1.msra.mxu0 0.0
    %4292 = vmatprep.subr.mxu0 0.0
    %4293 = vmatpush1.msra.mxu0 0.0
    %4294 = vmatprep.subr.mxu0 0.0
    %4295 = vmatpush1.msra.mxu0 0.0
    %4296 = vmatprep.subr.mxu0 0.0
    %4297 = vmatpush1.msra.mxu0 0.0
    %4298 = vmatprep.subr.mxu0 0.0
    %4299 = vmatpush1.msra.mxu0 0.0
    %4300 = vmatprep.subr.mxu0 0.0
    %4301 = vmatpush1.msra.mxu0 0.0
    %4302 = vmatprep.subr.mxu0 0.0
    %4303 = vmatpush1.msra.mxu0 0.0
    %4304 = vmatprep.subr.mxu0 0.0
    %4305 = vmatpush1.msra.mxu0 0.0
    %4306 = vmatprep.subr.mxu0 0.0
    %4307 = vmatpush1.msra.mxu0 0.0
    %4308 = vmatprep.subr.mxu0 0.0
    %4309 = vmatpush1.msra.mxu0 0.0
    %4310 = vmatprep.mubr.f32.mxu0 0.0
    %4311 = vmatmul.mubr.f32.gmra.mrb[0].mxu0 %v4244
    %v4312 = vpop.f32.mrb[0].mxu0
    %v4313 = vadd.f32 0.0, %v4312
    %v4314 = vpop.f32.mrb[0].mxu0
    %4315 = vdwg.mxu0
    %v4316 = vadd.f32 %v3983, %v4313
    %v4317 = vxor.u32 %v4316, 2147483648
    %v4318 = vmul.f32 %v4317, 1.442695
    %v4319 = vpow.pop %v4318
    %v4320 = vadd.f32 %v4319, 1.0
    %v4321 = vrcp.pop %v4320
    %v4322 = vmul.f32 1.0, %v4321
    %4323 = vmatprep.subr.mxu0 0.0
    %4324 = vmatpush1.msra.mxu0 %v172
    %4325 = vmatprep.subr.mxu0 0.0
    %4326 = vmatpush1.msra.mxu0 %v173
    %4327 = vmatprep.subr.mxu0 0.0
    %4328 = vmatpush1.msra.mxu0 %v174
    %4329 = vmatprep.subr.mxu0 0.0
    %4330 = vmatpush1.msra.mxu0 %v175
    %4331 = vmatprep.subr.mxu0 0.0
    %4332 = vmatpush1.msra.mxu0 0.0
    %4333 = vmatprep.subr.mxu0 0.0
    %4334 = vmatpush1.msra.mxu0 0.0
    %4335 = vmatprep.subr.mxu0 0.0
    %4336 = vmatpush1.msra.mxu0 0.0
    %4337 = vmatprep.subr.mxu0 0.0
    %4338 = vmatpush1.msra.mxu0 0.0
    %4339 = vmatprep.subr.mxu0 0.0
    %4340 = vmatpush1.msra.mxu0 0.0
    %4341 = vmatprep.subr.mxu0 0.0
    %4342 = vmatpush1.msra.mxu0 0.0
    %4343 = vmatprep.subr.mxu0 0.0
    %4344 = vmatpush1.msra.mxu0 0.0
    %4345 = vmatprep.subr.mxu0 0.0
    %4346 = vmatpush1.msra.mxu0 0.0
    %4347 = vmatprep.subr.mxu0 0.0
    %4348 = vmatpush1.msra.mxu0 0.0
    %4349 = vmatprep.subr.mxu0 0.0
    %4350 = vmatpush1.msra.mxu0 0.0
    %4351 = vmatprep.subr.mxu0 0.0
    %4352 = vmatpush1.msra.mxu0 0.0
    %4353 = vmatprep.subr.mxu0 0.0
    %4354 = vmatpush1.msra.mxu0 0.0
    %4355 = vmatprep.subr.mxu0 0.0
    %4356 = vmatpush1.msra.mxu0 0.0
    %4357 = vmatprep.subr.mxu0 0.0
    %4358 = vmatpush1.msra.mxu0 0.0
    %4359 = vmatprep.subr.mxu0 0.0
    %4360 = vmatpush1.msra.mxu0 0.0
    %4361 = vmatprep.subr.mxu0 0.0
    %4362 = vmatpush1.msra.mxu0 0.0
    %4363 = vmatprep.subr.mxu0 0.0
    %4364 = vmatpush1.msra.mxu0 0.0
    %4365 = vmatprep.subr.mxu0 0.0
    %4366 = vmatpush1.msra.mxu0 0.0
    %4367 = vmatprep.subr.mxu0 0.0
    %4368 = vmatpush1.msra.mxu0 0.0
    %4369 = vmatprep.subr.mxu0 0.0
    %4370 = vmatpush1.msra.mxu0 0.0
    %4371 = vmatprep.subr.mxu0 0.0
    %4372 = vmatpush1.msra.mxu0 0.0
    %4373 = vmatprep.subr.mxu0 0.0
    %4374 = vmatpush1.msra.mxu0 0.0
    %4375 = vmatprep.subr.mxu0 0.0
    %4376 = vmatpush1.msra.mxu0 0.0
    %4377 = vmatprep.subr.mxu0 0.0
    %4378 = vmatpush1.msra.mxu0 0.0
    %4379 = vmatprep.subr.mxu0 0.0
    %4380 = vmatpush1.msra.mxu0 0.0
    %4381 = vmatprep.subr.mxu0 0.0
    %4382 = vmatpush1.msra.mxu0 0.0
    %4383 = vmatprep.subr.mxu0 0.0
    %4384 = vmatpush1.msra.mxu0 0.0
    %4385 = vmatprep.subr.mxu0 0.0
    %4386 = vmatpush1.msra.mxu0 0.0
    %4387 = vmatprep.mubr.f32.mxu0 0.0
    %4388 = vmatmul.mubr.f32.gmra.mrb[0].mxu0 %v4244
    %v4389 = vpop.f32.mrb[0].mxu0
    %v4390 = vadd.f32 0.0, %v4389
    %v4391 = vpop.f32.mrb[0].mxu0
    %4392 = vdwg.mxu0
    %v4393 = vadd.f32 %v4106, %v4390
    %v4394 = vxor.u32 %v4393, 2147483648
    %v4395 = vmul.f32 %v4394, 1.442695
    %v4396 = vpow.pop %v4395
    %v4397 = vadd.f32 %v4396, 1.0
    %v4398 = vrcp.pop %v4397
    %v4399 = vmul.f32 1.0, %v4398
    %4400 = vmatprep.subr.mxu0 0.0
    %4401 = vmatpush1.msra.mxu0 %v177
    %4402 = vmatprep.subr.mxu0 0.0
    %4403 = vmatpush1.msra.mxu0 %v178
    %4404 = vmatprep.subr.mxu0 0.0
    %4405 = vmatpush1.msra.mxu0 %v179
    %4406 = vmatprep.subr.mxu0 0.0
    %4407 = vmatpush1.msra.mxu0 %v180
    %4408 = vmatprep.subr.mxu0 0.0
    %4409 = vmatpush1.msra.mxu0 0.0
    %4410 = vmatprep.subr.mxu0 0.0
    %4411 = vmatpush1.msra.mxu0 0.0
    %4412 = vmatprep.subr.mxu0 0.0
    %4413 = vmatpush1.msra.mxu0 0.0
    %4414 = vmatprep.subr.mxu0 0.0
    %4415 = vmatpush1.msra.mxu0 0.0
    %4416 = vmatprep.subr.mxu0 0.0
    %4417 = vmatpush1.msra.mxu0 0.0
    %4418 = vmatprep.subr.mxu0 0.0
    %4419 = vmatpush1.msra.mxu0 0.0
    %4420 = vmatprep.subr.mxu0 0.0
    %4421 = vmatpush1.msra.mxu0 0.0
    %4422 = vmatprep.subr.mxu0 0.0
    %4423 = vmatpush1.msra.mxu0 0.0
    %4424 = vmatprep.subr.mxu0 0.0
    %4425 = vmatpush1.msra.mxu0 0.0
    %4426 = vmatprep.subr.mxu0 0.0
    %4427 = vmatpush1.msra.mxu0 0.0
    %4428 = vmatprep.subr.mxu0 0.0
    %4429 = vmatpush1.msra.mxu0 0.0
    %4430 = vmatprep.subr.mxu0 0.0
    %4431 = vmatpush1.msra.mxu0 0.0
    %4432 = vmatprep.subr.mxu0 0.0
    %4433 = vmatpush1.msra.mxu0 0.0
    %4434 = vmatprep.subr.mxu0 0.0
    %4435 = vmatpush1.msra.mxu0 0.0
    %4436 = vmatprep.subr.mxu0 0.0
    %4437 = vmatpush1.msra.mxu0 0.0
    %4438 = vmatprep.subr.mxu0 0.0
    %4439 = vmatpush1.msra.mxu0 0.0
    %4440 = vmatprep.subr.mxu0 0.0
    %4441 = vmatpush1.msra.mxu0 0.0
    %4442 = vmatprep.subr.mxu0 0.0
    %4443 = vmatpush1.msra.mxu0 0.0
    %4444 = vmatprep.subr.mxu0 0.0
    %4445 = vmatpush1.msra.mxu0 0.0
    %4446 = vmatprep.subr.mxu0 0.0
    %4447 = vmatpush1.msra.mxu0 0.0
    %4448 = vmatprep.subr.mxu0 0.0
    %4449 = vmatpush1.msra.mxu0 0.0
    %4450 = vmatprep.subr.mxu0 0.0
    %4451 = vmatpush1.msra.mxu0 0.0
    %4452 = vmatprep.subr.mxu0 0.0
    %4453 = vmatpush1.msra.mxu0 0.0
    %4454 = vmatprep.subr.mxu0 0.0
    %4455 = vmatpush1.msra.mxu0 0.0
    %4456 = vmatprep.subr.mxu0 0.0
    %4457 = vmatpush1.msra.mxu0 0.0
    %4458 = vmatprep.subr.mxu0 0.0
    %4459 = vmatpush1.msra.mxu0 0.0
    %4460 = vmatprep.subr.mxu0 0.0
    %4461 = vmatpush1.msra.mxu0 0.0
    %4462 = vmatprep.subr.mxu0 0.0
    %4463 = vmatpush1.msra.mxu0 0.0
    %4464 = vmatprep.mubr.f32.mxu0 0.0
    %4465 = vmatmul.mubr.f32.gmra.mrb[0].mxu0 %v4244
    %v4466 = vpop.f32.mrb[0].mxu0
    %v4467 = vadd.f32 %v228, %v4466
    %v4468 = vpop.f32.mrb[0].mxu0
    %4469 = vdwg.mxu0
    %v4470 = vmul.f32 %v4322, %v4467
    %v4471 = vadd.f32 %v4229, %v4470
    %v4472 = vtanh.pop %v4471
    %v4473 = vsub.f32 1.0, %v4399
    %v4474 = vmul.f32 %v4473, %v4472
    %v4475 = vmul.f32 %v4399, %v3382
    %v4476 = vadd.f32 %v4474, %v4475
    %v4477 = vsel %vm149, %v4476, %v3382
    %v4479 = vsel %vm249, %v4477, 0
    %4481 = vmatprep.subr.mxu0 0.0
    %4482 = vmatpush1.msra.mxu0 %v167
    %4483 = vmatprep.subr.mxu0 0.0
    %4484 = vmatpush1.msra.mxu0 %v168
    %4485 = vmatprep.subr.mxu0 0.0
    %4486 = vmatpush1.msra.mxu0 %v169
    %4487 = vmatprep.subr.mxu0 0.0
    %4488 = vmatpush1.msra.mxu0 %v170
    %4489 = vmatprep.subr.mxu0 0.0
    %4490 = vmatpush1.msra.mxu0 0.0
    %4491 = vmatprep.subr.mxu0 0.0
    %4492 = vmatpush1.msra.mxu0 0.0
    %4493 = vmatprep.subr.mxu0 0.0
    %4494 = vmatpush1.msra.mxu0 0.0
    %4495 = vmatprep.subr.mxu0 0.0
    %4496 = vmatpush1.msra.mxu0 0.0
    %4497 = vmatprep.subr.mxu0 0.0
    %4498 = vmatpush1.msra.mxu0 0.0
    %4499 = vmatprep.subr.mxu0 0.0
    %4500 = vmatpush1.msra.mxu0 0.0
    %4501 = vmatprep.subr.mxu0 0.0
    %4502 = vmatpush1.msra.mxu0 0.0
    %4503 = vmatprep.subr.mxu0 0.0
    %4504 = vmatpush1.msra.mxu0 0.0
    %4505 = vmatprep.subr.mxu0 0.0
    %4506 = vmatpush1.msra.mxu0 0.0
    %4507 = vmatprep.subr.mxu0 0.0
    %4508 = vmatpush1.msra.mxu0 0.0
    %4509 = vmatprep.subr.mxu0 0.0
    %4510 = vmatpush1.msra.mxu0 0.0
    %4511 = vmatprep.subr.mxu0 0.0
    %4512 = vmatpush1.msra.mxu0 0.0
    %4513 = vmatprep.subr.mxu0 0.0
    %4514 = vmatpush1.msra.mxu0 0.0
    %4515 = vmatprep.subr.mxu0 0.0
    %4516 = vmatpush1.msra.mxu0 0.0
    %4517 = vmatprep.subr.mxu0 0.0
    %4518 = vmatpush1.msra.mxu0 0.0
    %4519 = vmatprep.subr.mxu0 0.0
    %4520 = vmatpush1.msra.mxu0 0.0
    %4521 = vmatprep.subr.mxu0 0.0
    %4522 = vmatpush1.msra.mxu0 0.0
    %4523 = vmatprep.subr.mxu0 0.0
    %4524 = vmatpush1.msra.mxu0 0.0
    %4525 = vmatprep.subr.mxu0 0.0
    %4526 = vmatpush1.msra.mxu0 0.0
    %4527 = vmatprep.subr.mxu0 0.0
    %4528 = vmatpush1.msra.mxu0 0.0
    %4529 = vmatprep.subr.mxu0 0.0
    %4530 = vmatpush1.msra.mxu0 0.0
    %4531 = vmatprep.subr.mxu0 0.0
    %4532 = vmatpush1.msra.mxu0 0.0
    %4533 = vmatprep.subr.mxu0 0.0
    %4534 = vmatpush1.msra.mxu0 0.0
    %4535 = vmatprep.subr.mxu0 0.0
    %4536 = vmatpush1.msra.mxu0 0.0
    %4537 = vmatprep.subr.mxu0 0.0
    %4538 = vmatpush1.msra.mxu0 0.0
    %4539 = vmatprep.subr.mxu0 0.0
    %4540 = vmatpush1.msra.mxu0 0.0
    %4541 = vmatprep.subr.mxu0 0.0
    %4542 = vmatpush1.msra.mxu0 0.0
    %4543 = vmatprep.subr.mxu0 0.0
    %4544 = vmatpush1.msra.mxu0 0.0
    %4545 = vmatprep.mubr.f32.mxu0 0.0
    %4546 = vmatmul.mubr.f32.gmra.mrb[0].mxu0 %v4479
    %v4547 = vpop.f32.mrb[0].mxu0
    %v4548 = vadd.f32 0.0, %v4547
    %v4549 = vpop.f32.mrb[0].mxu0
    %4550 = vdwg.mxu0
    %v4551 = vadd.f32 %v3986, %v4548
    %v4552 = vxor.u32 %v4551, 2147483648
    %v4553 = vmul.f32 %v4552, 1.442695
    %v4554 = vpow.pop %v4553
    %v4555 = vadd.f32 %v4554, 1.0
    %v4556 = vrcp.pop %v4555
    %v4557 = vmul.f32 1.0, %v4556
    %4558 = vmatprep.subr.mxu0 0.0
    %4559 = vmatpush1.msra.mxu0 %v172
    %4560 = vmatprep.subr.mxu0 0.0
    %4561 = vmatpush1.msra.mxu0 %v173
    %4562 = vmatprep.subr.mxu0 0.0
    %4563 = vmatpush1.msra.mxu0 %v174
    %4564 = vmatprep.subr.mxu0 0.0
    %4565 = vmatpush1.msra.mxu0 %v175
    %4566 = vmatprep.subr.mxu0 0.0
    %4567 = vmatpush1.msra.mxu0 0.0
    %4568 = vmatprep.subr.mxu0 0.0
    %4569 = vmatpush1.msra.mxu0 0.0
    %4570 = vmatprep.subr.mxu0 0.0
    %4571 = vmatpush1.msra.mxu0 0.0
    %4572 = vmatprep.subr.mxu0 0.0
    %4573 = vmatpush1.msra.mxu0 0.0
    %4574 = vmatprep.subr.mxu0 0.0
    %4575 = vmatpush1.msra.mxu0 0.0
    %4576 = vmatprep.subr.mxu0 0.0
    %4577 = vmatpush1.msra.mxu0 0.0
    %4578 = vmatprep.subr.mxu0 0.0
    %4579 = vmatpush1.msra.mxu0 0.0
    %4580 = vmatprep.subr.mxu0 0.0
    %4581 = vmatpush1.msra.mxu0 0.0
    %4582 = vmatprep.subr.mxu0 0.0
    %4583 = vmatpush1.msra.mxu0 0.0
    %4584 = vmatprep.subr.mxu0 0.0
    %4585 = vmatpush1.msra.mxu0 0.0
    %4586 = vmatprep.subr.mxu0 0.0
    %4587 = vmatpush1.msra.mxu0 0.0
    %4588 = vmatprep.subr.mxu0 0.0
    %4589 = vmatpush1.msra.mxu0 0.0
    %4590 = vmatprep.subr.mxu0 0.0
    %4591 = vmatpush1.msra.mxu0 0.0
    %4592 = vmatprep.subr.mxu0 0.0
    %4593 = vmatpush1.msra.mxu0 0.0
    %4594 = vmatprep.subr.mxu0 0.0
    %4595 = vmatpush1.msra.mxu0 0.0
    %4596 = vmatprep.subr.mxu0 0.0
    %4597 = vmatpush1.msra.mxu0 0.0
    %4598 = vmatprep.subr.mxu0 0.0
    %4599 = vmatpush1.msra.mxu0 0.0
    %4600 = vmatprep.subr.mxu0 0.0
    %4601 = vmatpush1.msra.mxu0 0.0
    %4602 = vmatprep.subr.mxu0 0.0
    %4603 = vmatpush1.msra.mxu0 0.0
    %4604 = vmatprep.subr.mxu0 0.0
    %4605 = vmatpush1.msra.mxu0 0.0
    %4606 = vmatprep.subr.mxu0 0.0
    %4607 = vmatpush1.msra.mxu0 0.0
    %4608 = vmatprep.subr.mxu0 0.0
    %4609 = vmatpush1.msra.mxu0 0.0
    %4610 = vmatprep.subr.mxu0 0.0
    %4611 = vmatpush1.msra.mxu0 0.0
    %4612 = vmatprep.subr.mxu0 0.0
    %4613 = vmatpush1.msra.mxu0 0.0
    %4614 = vmatprep.subr.mxu0 0.0
    %4615 = vmatpush1.msra.mxu0 0.0
    %4616 = vmatprep.subr.mxu0 0.0
    %4617 = vmatpush1.msra.mxu0 0.0
    %4618 = vmatprep.subr.mxu0 0.0
    %4619 = vmatpush1.msra.mxu0 0.0
    %4620 = vmatprep.subr.mxu0 0.0
    %4621 = vmatpush1.msra.mxu0 0.0
    %4622 = vmatprep.mubr.f32.mxu0 0.0
    %4623 = vmatmul.mubr.f32.gmra.mrb[0].mxu0 %v4479
    %v4624 = vpop.f32.mrb[0].mxu0
    %v4625 = vadd.f32 0.0, %v4624
    %v4626 = vpop.f32.mrb[0].mxu0
    %4627 = vdwg.mxu0
    %v4628 = vadd.f32 %v4109, %v4625
    %v4629 = vxor.u32 %v4628, 2147483648
    %v4630 = vmul.f32 %v4629, 1.442695
    %v4631 = vpow.pop %v4630
    %v4632 = vadd.f32 %v4631, 1.0
    %v4633 = vrcp.pop %v4632
    %v4634 = vmul.f32 1.0, %v4633
    %4635 = vmatprep.subr.mxu0 0.0
    %4636 = vmatpush1.msra.mxu0 %v177
    %4637 = vmatprep.subr.mxu0 0.0
    %4638 = vmatpush1.msra.mxu0 %v178
    %4639 = vmatprep.subr.mxu0 0.0
    %4640 = vmatpush1.msra.mxu0 %v179
    %4641 = vmatprep.subr.mxu0 0.0
    %4642 = vmatpush1.msra.mxu0 %v180
    %4643 = vmatprep.subr.mxu0 0.0
    %4644 = vmatpush1.msra.mxu0 0.0
    %4645 = vmatprep.subr.mxu0 0.0
    %4646 = vmatpush1.msra.mxu0 0.0
    %4647 = vmatprep.subr.mxu0 0.0
    %4648 = vmatpush1.msra.mxu0 0.0
    %4649 = vmatprep.subr.mxu0 0.0
    %4650 = vmatpush1.msra.mxu0 0.0
    %4651 = vmatprep.subr.mxu0 0.0
    %4652 = vmatpush1.msra.mxu0 0.0
    %4653 = vmatprep.subr.mxu0 0.0
    %4654 = vmatpush1.msra.mxu0 0.0
    %4655 = vmatprep.subr.mxu0 0.0
    %4656 = vmatpush1.msra.mxu0 0.0
    %4657 = vmatprep.subr.mxu0 0.0
    %4658 = vmatpush1.msra.mxu0 0.0
    %4659 = vmatprep.subr.mxu0 0.0
    %4660 = vmatpush1.msra.mxu0 0.0
    %4661 = vmatprep.subr.mxu0 0.0
    %4662 = vmatpush1.msra.mxu0 0.0
    %4663 = vmatprep.subr.mxu0 0.0
    %4664 = vmatpush1.msra.mxu0 0.0
    %4665 = vmatprep.subr.mxu0 0.0
    %4666 = vmatpush1.msra.mxu0 0.0
    %4667 = vmatprep.subr.mxu0 0.0
    %4668 = vmatpush1.msra.mxu0 0.0
    %4669 = vmatprep.subr.mxu0 0.0
    %4670 = vmatpush1.msra.mxu0 0.0
    %4671 = vmatprep.subr.mxu0 0.0
    %4672 = vmatpush1.msra.mxu0 0.0
    %4673 = vmatprep.subr.mxu0 0.0
    %4674 = vmatpush1.msra.mxu0 0.0
    %4675 = vmatprep.subr.mxu0 0.0
    %4676 = vmatpush1.msra.mxu0 0.0
    %4677 = vmatprep.subr.mxu0 0.0
    %4678 = vmatpush1.msra.mxu0 0.0
    %4679 = vmatprep.subr.mxu0 0.0
    %4680 = vmatpush1.msra.mxu0 0.0
    %4681 = vmatprep.subr.mxu0 0.0
    %4682 = vmatpush1.msra.mxu0 0.0
    %4683 = vmatprep.subr.mxu0 0.0
    %4684 = vmatpush1.msra.mxu0 0.0
    %4685 = vmatprep.subr.mxu0 0.0
    %4686 = vmatpush1.msra.mxu0 0.0
    %4687 = vmatprep.subr.mxu0 0.0
    %4688 = vmatpush1.msra.mxu0 0.0
    %4689 = vmatprep.subr.mxu0 0.0
    %4690 = vmatpush1.msra.mxu0 0.0
    %4691 = vmatprep.subr.mxu0 0.0
    %4692 = vmatpush1.msra.mxu0 0.0
    %4693 = vmatprep.subr.mxu0 0.0
    %4694 = vmatpush1.msra.mxu0 0.0
    %4695 = vmatprep.subr.mxu0 0.0
    %4696 = vmatpush1.msra.mxu0 0.0
    %4697 = vmatprep.subr.mxu0 0.0
    %4698 = vmatpush1.msra.mxu0 0.0
    %4699 = vmatprep.mubr.f32.mxu0 0.0
    %4700 = vmatmul.mubr.f32.gmra.mrb[0].mxu0 %v4479
    %v4701 = vpop.f32.mrb[0].mxu0
    %v4702 = vadd.f32 %v228, %v4701
    %v4703 = vpop.f32.mrb[0].mxu0
    %4704 = vdwg.mxu0
    %v4705 = vmul.f32 %v4557, %v4702
    %v4706 = vadd.f32 %v4232, %v4705
    %v4707 = vtanh.pop %v4706
    %v4708 = vsub.f32 1.0, %v4634
    %v4709 = vmul.f32 %v4708, %v4707
    %v4710 = vmul.f32 %v4634, %v4477
    %v4711 = vadd.f32 %v4709, %v4710
    %v4712 = vsel %vm150, %v4711, %v4477
    %v4714 = vsel %vm249, %v4712, 0
    %4716 = vmatprep.subr.mxu0 0.0
    %4717 = vmatpush1.msra.mxu0 %v167
    %4718 = vmatprep.subr.mxu0 0.0
    %4719 = vmatpush1.msra.mxu0 %v168
    %4720 = vmatprep.subr.mxu0 0.0
    %4721 = vmatpush1.msra.mxu0 %v169
    %4722 = vmatprep.subr.mxu0 0.0
    %4723 = vmatpush1.msra.mxu0 %v170
    %4724 = vmatprep.subr.mxu0 0.0
    %4725 = vmatpush1.msra.mxu0 0.0
    %4726 = vmatprep.subr.mxu0 0.0
    %4727 = vmatpush1.msra.mxu0 0.0
    %4728 = vmatprep.subr.mxu0 0.0
    %4729 = vmatpush1.msra.mxu0 0.0
    %4730 = vmatprep.subr.mxu0 0.0
    %4731 = vmatpush1.msra.mxu0 0.0
    %4732 = vmatprep.subr.mxu0 0.0
    %4733 = vmatpush1.msra.mxu0 0.0
    %4734 = vmatprep.subr.mxu0 0.0
    %4735 = vmatpush1.msra.mxu0 0.0
    %4736 = vmatprep.subr.mxu0 0.0
    %4737 = vmatpush1.msra.mxu0 0.0
    %4738 = vmatprep.subr.mxu0 0.0
    %4739 = vmatpush1.msra.mxu0 0.0
    %4740 = vmatprep.subr.mxu0 0.0
    %4741 = vmatpush1.msra.mxu0 0.0
    %4742 = vmatprep.subr.mxu0 0.0
    %4743 = vmatpush1.msra.mxu0 0.0
    %4744 = vmatprep.subr.mxu0 0.0
    %4745 = vmatpush1.msra.mxu0 0.0
    %4746 = vmatprep.subr.mxu0 0.0
    %4747 = vmatpush1.msra.mxu0 0.0
    %4748 = vmatprep.subr.mxu0 0.0
    %4749 = vmatpush1.msra.mxu0 0.0
    %4750 = vmatprep.subr.mxu0 0.0
    %4751 = vmatpush1.msra.mxu0 0.0
    %4752 = vmatprep.subr.mxu0 0.0
    %4753 = vmatpush1.msra.mxu0 0.0
    %4754 = vmatprep.subr.mxu0 0.0
    %4755 = vmatpush1.msra.mxu0 0.0
    %4756 = vmatprep.subr.mxu0 0.0
    %4757 = vmatpush1.msra.mxu0 0.0
    %4758 = vmatprep.subr.mxu0 0.0
    %4759 = vmatpush1.msra.mxu0 0.0
    %4760 = vmatprep.subr.mxu0 0.0
    %4761 = vmatpush1.msra.mxu0 0.0
    %4762 = vmatprep.subr.mxu0 0.0
    %4763 = vmatpush1.msra.mxu0 0.0
    %4764 = vmatprep.subr.mxu0 0.0
    %4765 = vmatpush1.msra.mxu0 0.0
    %4766 = vmatprep.subr.mxu0 0.0
    %4767 = vmatpush1.msra.mxu0 0.0
    %4768 = vmatprep.subr.mxu0 0.0
    %4769 = vmatpush1.msra.mxu0 0.0
    %4770 = vmatprep.subr.mxu0 0.0
    %4771 = vmatpush1.msra.mxu0 0.0
    %4772 = vmatprep.subr.mxu0 0.0
    %4773 = vmatpush1.msra.mxu0 0.0
    %4774 = vmatprep.subr.mxu0 0.0
    %4775 = vmatpush1.msra.mxu0 0.0
    %4776 = vmatprep.subr.mxu0 0.0
    %4777 = vmatpush1.msra.mxu0 0.0
    %4778 = vmatprep.subr.mxu0 0.0
    %4779 = vmatpush1.msra.mxu0 0.0
    %4780 = vmatprep.mubr.f32.mxu0 0.0
    %4781 = vmatmul.mubr.f32.gmra.mrb[0].mxu0 %v4714
    %v4782 = vpop.f32.mrb[0].mxu0
    %v4783 = vadd.f32 0.0, %v4782
    %v4784 = vpop.f32.mrb[0].mxu0
    %4785 = vdwg.mxu0
    %v4786 = vadd.f32 %v3991, %v4783
    %v4787 = vxor.u32 %v4786, 2147483648
    %v4788 = vmul.f32 %v4787, 1.442695
    %v4789 = vpow.pop %v4788
    %v4790 = vadd.f32 %v4789, 1.0
    %v4791 = vrcp.pop %v4790
    %v4792 = vmul.f32 1.0, %v4791
    %4793 = vmatprep.subr.mxu0 0.0
    %4794 = vmatpush1.msra.mxu0 %v172
    %4795 = vmatprep.subr.mxu0 0.0
    %4796 = vmatpush1.msra.mxu0 %v173
    %4797 = vmatprep.subr.mxu0 0.0
    %4798 = vmatpush1.msra.mxu0 %v174
    %4799 = vmatprep.subr.mxu0 0.0
    %4800 = vmatpush1.msra.mxu0 %v175
    %4801 = vmatprep.subr.mxu0 0.0
    %4802 = vmatpush1.msra.mxu0 0.0
    %4803 = vmatprep.subr.mxu0 0.0
    %4804 = vmatpush1.msra.mxu0 0.0
    %4805 = vmatprep.subr.mxu0 0.0
    %4806 = vmatpush1.msra.mxu0 0.0
    %4807 = vmatprep.subr.mxu0 0.0
    %4808 = vmatpush1.msra.mxu0 0.0
    %4809 = vmatprep.subr.mxu0 0.0
    %4810 = vmatpush1.msra.mxu0 0.0
    %4811 = vmatprep.subr.mxu0 0.0
    %4812 = vmatpush1.msra.mxu0 0.0
    %4813 = vmatprep.subr.mxu0 0.0
    %4814 = vmatpush1.msra.mxu0 0.0
    %4815 = vmatprep.subr.mxu0 0.0
    %4816 = vmatpush1.msra.mxu0 0.0
    %4817 = vmatprep.subr.mxu0 0.0
    %4818 = vmatpush1.msra.mxu0 0.0
    %4819 = vmatprep.subr.mxu0 0.0
    %4820 = vmatpush1.msra.mxu0 0.0
    %4821 = vmatprep.subr.mxu0 0.0
    %4822 = vmatpush1.msra.mxu0 0.0
    %4823 = vmatprep.subr.mxu0 0.0
    %4824 = vmatpush1.msra.mxu0 0.0
    %4825 = vmatprep.subr.mxu0 0.0
    %4826 = vmatpush1.msra.mxu0 0.0
    %4827 = vmatprep.subr.mxu0 0.0
    %4828 = vmatpush1.msra.mxu0 0.0
    %4829 = vmatprep.subr.mxu0 0.0
    %4830 = vmatpush1.msra.mxu0 0.0
    %4831 = vmatprep.subr.mxu0 0.0
    %4832 = vmatpush1.msra.mxu0 0.0
    %4833 = vmatprep.subr.mxu0 0.0
    %4834 = vmatpush1.msra.mxu0 0.0
    %4835 = vmatprep.subr.mxu0 0.0
    %4836 = vmatpush1.msra.mxu0 0.0
    %4837 = vmatprep.subr.mxu0 0.0
    %4838 = vmatpush1.msra.mxu0 0.0
    %4839 = vmatprep.subr.mxu0 0.0
    %4840 = vmatpush1.msra.mxu0 0.0
    %4841 = vmatprep.subr.mxu0 0.0
    %4842 = vmatpush1.msra.mxu0 0.0
    %4843 = vmatprep.subr.mxu0 0.0
    %4844 = vmatpush1.msra.mxu0 0.0
    %4845 = vmatprep.subr.mxu0 0.0
    %4846 = vmatpush1.msra.mxu0 0.0
    %4847 = vmatprep.subr.mxu0 0.0
    %4848 = vmatpush1.msra.mxu0 0.0
    %4849 = vmatprep.subr.mxu0 0.0
    %4850 = vmatpush1.msra.mxu0 0.0
    %4851 = vmatprep.subr.mxu0 0.0
    %4852 = vmatpush1.msra.mxu0 0.0
    %4853 = vmatprep.subr.mxu0 0.0
    %4854 = vmatpush1.msra.mxu0 0.0
    %4855 = vmatprep.subr.mxu0 0.0
    %4856 = vmatpush1.msra.mxu0 0.0
    %4857 = vmatprep.mubr.f32.mxu0 0.0
    %4858 = vmatmul.mubr.f32.gmra.mrb[0].mxu0 %v4714
    %v4859 = vpop.f32.mrb[0].mxu0
    %v4860 = vadd.f32 0.0, %v4859
    %v4861 = vpop.f32.mrb[0].mxu0
    %4862 = vdwg.mxu0
    %v4863 = vadd.f32 %v4114, %v4860
    %v4864 = vxor.u32 %v4863, 2147483648
    %v4865 = vmul.f32 %v4864, 1.442695
    %v4866 = vpow.pop %v4865
    %v4867 = vadd.f32 %v4866, 1.0
    %v4868 = vrcp.pop %v4867
    %v4869 = vmul.f32 1.0, %v4868
    %4870 = vmatprep.subr.mxu0 0.0
    %4871 = vmatpush1.msra.mxu0 %v177
    %4872 = vmatprep.subr.mxu0 0.0
    %4873 = vmatpush1.msra.mxu0 %v178
    %4874 = vmatprep.subr.mxu0 0.0
    %4875 = vmatpush1.msra.mxu0 %v179
    %4876 = vmatprep.subr.mxu0 0.0
    %4877 = vmatpush1.msra.mxu0 %v180
    %4878 = vmatprep.subr.mxu0 0.0
    %4879 = vmatpush1.msra.mxu0 0.0
    %4880 = vmatprep.subr.mxu0 0.0
    %4881 = vmatpush1.msra.mxu0 0.0
    %4882 = vmatprep.subr.mxu0 0.0
    %4883 = vmatpush1.msra.mxu0 0.0
    %4884 = vmatprep.subr.mxu0 0.0
    %4885 = vmatpush1.msra.mxu0 0.0
    %4886 = vmatprep.subr.mxu0 0.0
    %4887 = vmatpush1.msra.mxu0 0.0
    %4888 = vmatprep.subr.mxu0 0.0
    %4889 = vmatpush1.msra.mxu0 0.0
    %4890 = vmatprep.subr.mxu0 0.0
    %4891 = vmatpush1.msra.mxu0 0.0
    %4892 = vmatprep.subr.mxu0 0.0
    %4893 = vmatpush1.msra.mxu0 0.0
    %4894 = vmatprep.subr.mxu0 0.0
    %4895 = vmatpush1.msra.mxu0 0.0
    %4896 = vmatprep.subr.mxu0 0.0
    %4897 = vmatpush1.msra.mxu0 0.0
    %4898 = vmatprep.subr.mxu0 0.0
    %4899 = vmatpush1.msra.mxu0 0.0
    %4900 = vmatprep.subr.mxu0 0.0
    %4901 = vmatpush1.msra.mxu0 0.0
    %4902 = vmatprep.subr.mxu0 0.0
    %4903 = vmatpush1.msra.mxu0 0.0
    %4904 = vmatprep.subr.mxu0 0.0
    %4905 = vmatpush1.msra.mxu0 0.0
    %4906 = vmatprep.subr.mxu0 0.0
    %4907 = vmatpush1.msra.mxu0 0.0
    %4908 = vmatprep.subr.mxu0 0.0
    %4909 = vmatpush1.msra.mxu0 0.0
    %4910 = vmatprep.subr.mxu0 0.0
    %4911 = vmatpush1.msra.mxu0 0.0
    %4912 = vmatprep.subr.mxu0 0.0
    %4913 = vmatpush1.msra.mxu0 0.0
    %4914 = vmatprep.subr.mxu0 0.0
    %4915 = vmatpush1.msra.mxu0 0.0
    %4916 = vmatprep.subr.mxu0 0.0
    %4917 = vmatpush1.msra.mxu0 0.0
    %4918 = vmatprep.subr.mxu0 0.0
    %4919 = vmatpush1.msra.mxu0 0.0
    %4920 = vmatprep.subr.mxu0 0.0
    %4921 = vmatpush1.msra.mxu0 0.0
    %4922 = vmatprep.subr.mxu0 0.0
    %4923 = vmatpush1.msra.mxu0 0.0
    %4924 = vmatprep.subr.mxu0 0.0
    %4925 = vmatpush1.msra.mxu0 0.0
    %4926 = vmatprep.subr.mxu0 0.0
    %4927 = vmatpush1.msra.mxu0 0.0
    %4928 = vmatprep.subr.mxu0 0.0
    %4929 = vmatpush1.msra.mxu0 0.0
    %4930 = vmatprep.subr.mxu0 0.0
    %4931 = vmatpush1.msra.mxu0 0.0
    %4932 = vmatprep.subr.mxu0 0.0
    %4933 = vmatpush1.msra.mxu0 0.0
    %4934 = vmatprep.mubr.f32.mxu0 0.0
    %4935 = vmatmul.mubr.f32.gmra.mrb[0].mxu0 %v4714
    %v4936 = vpop.f32.mrb[0].mxu0
    %v4937 = vadd.f32 %v228, %v4936
    %v4938 = vpop.f32.mrb[0].mxu0
    %4939 = vdwg.mxu0
    %v4940 = vmul.f32 %v4792, %v4937
    %v4941 = vadd.f32 %v4237, %v4940
    %v4942 = vtanh.pop %v4941
    %v4943 = vsub.f32 1.0, %v4869
    %v4944 = vmul.f32 %v4943, %v4942
    %v4945 = vmul.f32 %v4869, %v4712
    %v4946 = vadd.f32 %v4944, %v4945
    %v4947 = vsel %vm151, %v4946, %v4712
    %v4949 = vsel %vm249, %v4947, 0
    %4951 = vmatprep.subr.mxu0 0.0
    %4952 = vmatpush1.msra.mxu0 %v167
    %4953 = vmatprep.subr.mxu0 0.0
    %4954 = vmatpush1.msra.mxu0 %v168
    %4955 = vmatprep.subr.mxu0 0.0
    %4956 = vmatpush1.msra.mxu0 %v169
    %4957 = vmatprep.subr.mxu0 0.0
    %4958 = vmatpush1.msra.mxu0 %v170
    %4959 = vmatprep.subr.mxu0 0.0
    %4960 = vmatpush1.msra.mxu0 0.0
    %4961 = vmatprep.subr.mxu0 0.0
    %4962 = vmatpush1.msra.mxu0 0.0
    %4963 = vmatprep.subr.mxu0 0.0
    %4964 = vmatpush1.msra.mxu0 0.0
    %4965 = vmatprep.subr.mxu0 0.0
    %4966 = vmatpush1.msra.mxu0 0.0
    %4967 = vmatprep.subr.mxu0 0.0
    %4968 = vmatpush1.msra.mxu0 0.0
    %4969 = vmatprep.subr.mxu0 0.0
    %4970 = vmatpush1.msra.mxu0 0.0
    %4971 = vmatprep.subr.mxu0 0.0
    %4972 = vmatpush1.msra.mxu0 0.0
    %4973 = vmatprep.subr.mxu0 0.0
    %4974 = vmatpush1.msra.mxu0 0.0
    %4975 = vmatprep.subr.mxu0 0.0
    %4976 = vmatpush1.msra.mxu0 0.0
    %4977 = vmatprep.subr.mxu0 0.0
    %4978 = vmatpush1.msra.mxu0 0.0
    %4979 = vmatprep.subr.mxu0 0.0
    %4980 = vmatpush1.msra.mxu0 0.0
    %4981 = vmatprep.subr.mxu0 0.0
    %4982 = vmatpush1.msra.mxu0 0.0
    %4983 = vmatprep.subr.mxu0 0.0
    %4984 = vmatpush1.msra.mxu0 0.0
    %4985 = vmatprep.subr.mxu0 0.0
    %4986 = vmatpush1.msra.mxu0 0.0
    %4987 = vmatprep.subr.mxu0 0.0
    %4988 = vmatpush1.msra.mxu0 0.0
    %4989 = vmatprep.subr.mxu0 0.0
    %4990 = vmatpush1.msra.mxu0 0.0
    %4991 = vmatprep.subr.mxu0 0.0
    %4992 = vmatpush1.msra.mxu0 0.0
    %4993 = vmatprep.subr.mxu0 0.0
    %4994 = vmatpush1.msra.mxu0 0.0
    %4995 = vmatprep.subr.mxu0 0.0
    %4996 = vmatpush1.msra.mxu0 0.0
    %4997 = vmatprep.subr.mxu0 0.0
    %4998 = vmatpush1.msra.mxu0 0.0
    %4999 = vmatprep.subr.mxu0 0.0
    %5000 = vmatpush1.msra.mxu0 0.0
    %5001 = vmatprep.subr.mxu0 0.0
    %5002 = vmatpush1.msra.mxu0 0.0
    %5003 = vmatprep.subr.mxu0 0.0
    %5004 = vmatpush1.msra.mxu0 0.0
    %5005 = vmatprep.subr.mxu0 0.0
    %5006 = vmatpush1.msra.mxu0 0.0
    %5007 = vmatprep.subr.mxu0 0.0
    %5008 = vmatpush1.msra.mxu0 0.0
    %5009 = vmatprep.subr.mxu0 0.0
    %5010 = vmatpush1.msra.mxu0 0.0
    %5011 = vmatprep.subr.mxu0 0.0
    %5012 = vmatpush1.msra.mxu0 0.0
    %5013 = vmatprep.subr.mxu0 0.0
    %5014 = vmatpush1.msra.mxu0 0.0
    %5015 = vmatprep.mubr.f32.mxu0 0.0
    %5016 = vmatmul.mubr.f32.gmra.mrb[0].mxu0 %v4949
    %v5017 = vpop.f32.mrb[0].mxu0
    %v5018 = vadd.f32 0.0, %v5017
    %v5019 = vpop.f32.mrb[0].mxu0
    %5020 = vdwg.mxu0
    %v5021 = vadd.f32 %v3994, %v5018
    %v5022 = vxor.u32 %v5021, 2147483648
    %v5023 = vmul.f32 %v5022, 1.442695
    %v5024 = vpow.pop %v5023
    %v5025 = vadd.f32 %v5024, 1.0
    %v5026 = vrcp.pop %v5025
    %v5027 = vmul.f32 1.0, %v5026
    %5028 = vmatprep.subr.mxu0 0.0
    %5029 = vmatpush1.msra.mxu0 %v172
    %5030 = vmatprep.subr.mxu0 0.0
    %5031 = vmatpush1.msra.mxu0 %v173
    %5032 = vmatprep.subr.mxu0 0.0
    %5033 = vmatpush1.msra.mxu0 %v174
    %5034 = vmatprep.subr.mxu0 0.0
    %5035 = vmatpush1.msra.mxu0 %v175
    %5036 = vmatprep.subr.mxu0 0.0
    %5037 = vmatpush1.msra.mxu0 0.0
    %5038 = vmatprep.subr.mxu0 0.0
    %5039 = vmatpush1.msra.mxu0 0.0
    %5040 = vmatprep.subr.mxu0 0.0
    %5041 = vmatpush1.msra.mxu0 0.0
    %5042 = vmatprep.subr.mxu0 0.0
    %5043 = vmatpush1.msra.mxu0 0.0
    %5044 = vmatprep.subr.mxu0 0.0
    %5045 = vmatpush1.msra.mxu0 0.0
    %5046 = vmatprep.subr.mxu0 0.0
    %5047 = vmatpush1.msra.mxu0 0.0
    %5048 = vmatprep.subr.mxu0 0.0
    %5049 = vmatpush1.msra.mxu0 0.0
    %5050 = vmatprep.subr.mxu0 0.0
    %5051 = vmatpush1.msra.mxu0 0.0
    %5052 = vmatprep.subr.mxu0 0.0
    %5053 = vmatpush1.msra.mxu0 0.0
    %5054 = vmatprep.subr.mxu0 0.0
    %5055 = vmatpush1.msra.mxu0 0.0
    %5056 = vmatprep.subr.mxu0 0.0
    %5057 = vmatpush1.msra.mxu0 0.0
    %5058 = vmatprep.subr.mxu0 0.0
    %5059 = vmatpush1.msra.mxu0 0.0
    %5060 = vmatprep.subr.mxu0 0.0
    %5061 = vmatpush1.msra.mxu0 0.0
    %5062 = vmatprep.subr.mxu0 0.0
    %5063 = vmatpush1.msra.mxu0 0.0
    %5064 = vmatprep.subr.mxu0 0.0
    %5065 = vmatpush1.msra.mxu0 0.0
    %5066 = vmatprep.subr.mxu0 0.0
    %5067 = vmatpush1.msra.mxu0 0.0
    %5068 = vmatprep.subr.mxu0 0.0
    %5069 = vmatpush1.msra.mxu0 0.0
    %5070 = vmatprep.subr.mxu0 0.0
    %5071 = vmatpush1.msra.mxu0 0.0
    %5072 = vmatprep.subr.mxu0 0.0
    %5073 = vmatpush1.msra.mxu0 0.0
    %5074 = vmatprep.subr.mxu0 0.0
    %5075 = vmatpush1.msra.mxu0 0.0
    %5076 = vmatprep.subr.mxu0 0.0
    %5077 = vmatpush1.msra.mxu0 0.0
    %5078 = vmatprep.subr.mxu0 0.0
    %5079 = vmatpush1.msra.mxu0 0.0
    %5080 = vmatprep.subr.mxu0 0.0
    %5081 = vmatpush1.msra.mxu0 0.0
    %5082 = vmatprep.subr.mxu0 0.0
    %5083 = vmatpush1.msra.mxu0 0.0
    %5084 = vmatprep.subr.mxu0 0.0
    %5085 = vmatpush1.msra.mxu0 0.0
    %5086 = vmatprep.subr.mxu0 0.0
    %5087 = vmatpush1.msra.mxu0 0.0
    %5088 = vmatprep.subr.mxu0 0.0
    %5089 = vmatpush1.msra.mxu0 0.0
    %5090 = vmatprep.subr.mxu0 0.0
    %5091 = vmatpush1.msra.mxu0 0.0
    %5092 = vmatprep.mubr.f32.mxu0 0.0
    %5093 = vmatmul.mubr.f32.gmra.mrb[0].mxu0 %v4949
    %v5094 = vpop.f32.mrb[0].mxu0
    %v5095 = vadd.f32 0.0, %v5094
    %v5096 = vpop.f32.mrb[0].mxu0
    %5097 = vdwg.mxu0
    %v5098 = vadd.f32 %v4117, %v5095
    %v5099 = vxor.u32 %v5098, 2147483648
    %v5100 = vmul.f32 %v5099, 1.442695
    %v5101 = vpow.pop %v5100
    %v5102 = vadd.f32 %v5101, 1.0
    %v5103 = vrcp.pop %v5102
    %v5104 = vmul.f32 1.0, %v5103
    %5105 = vmatprep.subr.mxu0 0.0
    %5106 = vmatpush1.msra.mxu0 %v177
    %5107 = vmatprep.subr.mxu0 0.0
    %5108 = vmatpush1.msra.mxu0 %v178
    %5109 = vmatprep.subr.mxu0 0.0
    %5110 = vmatpush1.msra.mxu0 %v179
    %5111 = vmatprep.subr.mxu0 0.0
    %5112 = vmatpush1.msra.mxu0 %v180
    %5113 = vmatprep.subr.mxu0 0.0
    %5114 = vmatpush1.msra.mxu0 0.0
    %5115 = vmatprep.subr.mxu0 0.0
    %5116 = vmatpush1.msra.mxu0 0.0
    %5117 = vmatprep.subr.mxu0 0.0
    %5118 = vmatpush1.msra.mxu0 0.0
    %5119 = vmatprep.subr.mxu0 0.0
    %5120 = vmatpush1.msra.mxu0 0.0
    %5121 = vmatprep.subr.mxu0 0.0
    %5122 = vmatpush1.msra.mxu0 0.0
    %5123 = vmatprep.subr.mxu0 0.0
    %5124 = vmatpush1.msra.mxu0 0.0
    %5125 = vmatprep.subr.mxu0 0.0
    %5126 = vmatpush1.msra.mxu0 0.0
    %5127 = vmatprep.subr.mxu0 0.0
    %5128 = vmatpush1.msra.mxu0 0.0
    %5129 = vmatprep.subr.mxu0 0.0
    %5130 = vmatpush1.msra.mxu0 0.0
    %5131 = vmatprep.subr.mxu0 0.0
    %5132 = vmatpush1.msra.mxu0 0.0
    %5133 = vmatprep.subr.mxu0 0.0
    %5134 = vmatpush1.msra.mxu0 0.0
    %5135 = vmatprep.subr.mxu0 0.0
    %5136 = vmatpush1.msra.mxu0 0.0
    %5137 = vmatprep.subr.mxu0 0.0
    %5138 = vmatpush1.msra.mxu0 0.0
    %5139 = vmatprep.subr.mxu0 0.0
    %5140 = vmatpush1.msra.mxu0 0.0
    %5141 = vmatprep.subr.mxu0 0.0
    %5142 = vmatpush1.msra.mxu0 0.0
    %5143 = vmatprep.subr.mxu0 0.0
    %5144 = vmatpush1.msra.mxu0 0.0
    %5145 = vmatprep.subr.mxu0 0.0
    %5146 = vmatpush1.msra.mxu0 0.0
    %5147 = vmatprep.subr.mxu0 0.0
    %5148 = vmatpush1.msra.mxu0 0.0
    %5149 = vmatprep.subr.mxu0 0.0
    %5150 = vmatpush1.msra.mxu0 0.0
    %5151 = vmatprep.subr.mxu0 0.0
    %5152 = vmatpush1.msra.mxu0 0.0
    %5153 = vmatprep.subr.mxu0 0.0
    %5154 = vmatpush1.msra.mxu0 0.0
    %5155 = vmatprep.subr.mxu0 0.0
    %5156 = vmatpush1.msra.mxu0 0.0
    %5157 = vmatprep.subr.mxu0 0.0
    %5158 = vmatpush1.msra.mxu0 0.0
    %5159 = vmatprep.subr.mxu0 0.0
    %5160 = vmatpush1.msra.mxu0 0.0
    %5161 = vmatprep.subr.mxu0 0.0
    %5162 = vmatpush1.msra.mxu0 0.0
    %5163 = vmatprep.subr.mxu0 0.0
    %5164 = vmatpush1.msra.mxu0 0.0
    %5165 = vmatprep.subr.mxu0 0.0
    %5166 = vmatpush1.msra.mxu0 0.0
    %5167 = vmatprep.subr.mxu0 0.0
    %5168 = vmatpush1.msra.mxu0 0.0
    %5169 = vmatprep.mubr.f32.mxu0 0.0
    %5170 = vmatmul.mubr.f32.gmra.mrb[0].mxu0 %v4949
    %v5171 = vpop.f32.mrb[0].mxu0
    %v5172 = vadd.f32 %v228, %v5171
    %v5173 = vpop.f32.mrb[0].mxu0
    %5174 = vdwg.mxu0
    %v5175 = vmul.f32 %v5027, %v5172
    %v5176 = vadd.f32 %v4240, %v5175
    %v5177 = vtanh.pop %v5176
    %v5178 = vsub.f32 1.0, %v5104
    %v5179 = vmul.f32 %v5178, %v5177
    %v5180 = vmul.f32 %v5104, %v4947
    %v5181 = vadd.f32 %v5179, %v5180
    %v5182 = vsel %vm152, %v5181, %v4947
    %v5183 = vld [vmem:[%s11] sm:$0xff]
    %v5184 = vld [vmem:[%s11 + $0x8] sm:$0xff]
    %v5185 = vld [vmem:[%s12] sm:$0xff]
    %v5186 = vld [vmem:[%s12 + $0x8] sm:$0xff]
    %5188 = vset.pattern.permute.xlu0 0
    %5189 = vperm.xlu0 %5188, %v5185
    %v5190 = vpop.permute.xlu0 %5189
    %5193 = vset.pattern.permute.xlu0 0
    %5194 = vperm.xlu0 %5193, %v5186
    %v5195 = vpop.permute.xlu0 %5194
    %v5198 = vsel %vm249, %v5183, 0
    %v5201 = vsel %vm249, %v5184, 0
    %v5204 = vsel %vm249, %v5182, 0
    %5206 = vmatprep.subr.mxu0 0.0
    %5207 = vmatpush1.xpose.msra.mxu0 %v5204
    %5208 = vmatprep.subr.mxu0 0.0
    %5209 = vmatpush1.xpose.msra.mxu0 0.0
    %5210 = vmatprep.subr.mxu0 0.0
    %5211 = vmatpush1.xpose.msra.mxu0 0.0
    %5212 = vmatprep.subr.mxu0 0.0
    %5213 = vmatpush1.xpose.msra.mxu0 0.0
    %5214 = vmatprep.subr.mxu0 0.0
    %5215 = vmatpush1.xpose.msra.mxu0 0.0
    %5216 = vmatprep.subr.mxu0 0.0
    %5217 = vmatpush1.xpose.msra.mxu0 0.0
    %5218 = vmatprep.subr.mxu0 0.0
    %5219 = vmatpush1.xpose.msra.mxu0 0.0
    %5220 = vmatprep.subr.mxu0 0.0
    %5221 = vmatpush1.xpose.msra.mxu0 0.0
    %5222 = vmatprep.subr.mxu0 0.0
    %5223 = vmatpush1.xpose.msra.mxu0 0.0
    %5224 = vmatprep.subr.mxu0 0.0
    %5225 = vmatpush1.xpose.msra.mxu0 0.0
    %5226 = vmatprep.subr.mxu0 0.0
    %5227 = vmatpush1.xpose.msra.mxu0 0.0
    %5228 = vmatprep.subr.mxu0 0.0
    %5229 = vmatpush1.xpose.msra.mxu0 0.0
    %5230 = vmatprep.subr.mxu0 0.0
    %5231 = vmatpush1.xpose.msra.mxu0 0.0
    %5232 = vmatprep.subr.mxu0 0.0
    %5233 = vmatpush1.xpose.msra.mxu0 0.0
    %5234 = vmatprep.subr.mxu0 0.0
    %5235 = vmatpush1.xpose.msra.mxu0 0.0
    %5236 = vmatprep.subr.mxu0 0.0
    %5237 = vmatpush1.xpose.msra.mxu0 0.0
    %5238 = vmatprep.subr.mxu0 0.0
    %5239 = vmatpush1.xpose.msra.mxu0 0.0
    %5240 = vmatprep.subr.mxu0 0.0
    %5241 = vmatpush1.xpose.msra.mxu0 0.0
    %5242 = vmatprep.subr.mxu0 0.0
    %5243 = vmatpush1.xpose.msra.mxu0 0.0
    %5244 = vmatprep.subr.mxu0 0.0
    %5245 = vmatpush1.xpose.msra.mxu0 0.0
    %5246 = vmatprep.subr.mxu0 0.0
    %5247 = vmatpush1.xpose.msra.mxu0 0.0
    %5248 = vmatprep.subr.mxu0 0.0
    %5249 = vmatpush1.xpose.msra.mxu0 0.0
    %5250 = vmatprep.subr.mxu0 0.0
    %5251 = vmatpush1.xpose.msra.mxu0 0.0
    %5252 = vmatprep.subr.mxu0 0.0
    %5253 = vmatpush1.xpose.msra.mxu0 0.0
    %5254 = vmatprep.subr.mxu0 0.0
    %5255 = vmatpush1.xpose.msra.mxu0 0.0
    %5256 = vmatprep.subr.mxu0 0.0
    %5257 = vmatpush1.xpose.msra.mxu0 0.0
    %5258 = vmatprep.subr.mxu0 0.0
    %5259 = vmatpush1.xpose.msra.mxu0 0.0
    %5260 = vmatprep.subr.mxu0 0.0
    %5261 = vmatpush1.xpose.msra.mxu0 0.0
    %5262 = vmatprep.subr.mxu0 0.0
    %5263 = vmatpush1.xpose.msra.mxu0 0.0
    %5264 = vmatprep.subr.mxu0 0.0
    %5265 = vmatpush1.xpose.msra.mxu0 0.0
    %5266 = vmatprep.subr.mxu0 0.0
    %5267 = vmatpush1.xpose.msra.mxu0 0.0
    %5268 = vmatprep.subr.mxu0 0.0
    %5269 = vmatpush1.xpose.msra.mxu0 0.0
    %5270 = vmatprep.mubr.f32.mxu0 0.0
    %5271 = vmatmul.mubr.f32.gmra.mrb[0].mxu0 %v5198
    %v5272 = vpop.f32.mrb[0].mxu0
    %v5273 = vadd.f32 %v5190, %v5272
    %v5274 = vpop.f32.mrb[0].mxu0
    %5275 = vmatprep.mubr.f32.mxu0 0.0
    %5276 = vmatmul.mubr.f32.gmra.mrb[0].mxu0 %v5201
    %v5277 = vpop.f32.mrb[0].mxu0
    %v5278 = vadd.f32 %v5195, %v5277
    %v5279 = vpop.f32.mrb[0].mxu0
    %5280 = vdwg.mxu0
    %v5281 = vmax.f32 %v5273, 0.0
    %v5282 = vmax.f32 %v5278, 0.0
    %v5283 = vld [vmem:[%s13] sm:$0xff]
    %v5284 = vld [vmem:[%s13 + $0x8] sm:$0xff]
    %v5285 = vld [vmem:[%s14] sm:$0xff]
    %v5286 = vld [vmem:[%s14 + $0x8] sm:$0xff]
    %5288 = vset.pattern.permute.xlu0 0
    %5289 = vperm.xlu0 %5288, %v5285
    %v5290 = vpop.permute.xlu0 %5289
    %5293 = vset.pattern.permute.xlu0 0
    %5294 = vperm.xlu0 %5293, %v5286
    %v5295 = vpop.permute.xlu0 %5294
    %vm5297 = vcmask 130048
    %v5299 = vsel %vm5297, %v5283, 0
    %v5302 = vsel %vm5297, %v5284, 0
    %5304 = vmatprep.subr.mxu0 0.0
    %5305 = vmatpush1.msra.mxu0 %v5281
    %5306 = vmatprep.subr.mxu0 0.0
    %5307 = vmatpush1.msra.mxu0 %v5282
    %5308 = vmatprep.subr.mxu0 0.0
    %5309 = vmatpush1.msra.mxu0 0.0
    %5310 = vmatprep.subr.mxu0 0.0
    %5311 = vmatpush1.msra.mxu0 0.0
    %5312 = vmatprep.subr.mxu0 0.0
    %5313 = vmatpush1.msra.mxu0 0.0
    %5314 = vmatprep.subr.mxu0 0.0
    %5315 = vmatpush1.msra.mxu0 0.0
    %5316 = vmatprep.subr.mxu0 0.0
    %5317 = vmatpush1.msra.mxu0 0.0
    %5318 = vmatprep.subr.mxu0 0.0
    %5319 = vmatpush1.msra.mxu0 0.0
    %5320 = vmatprep.subr.mxu0 0.0
    %5321 = vmatpush1.msra.mxu0 0.0
    %5322 = vmatprep.subr.mxu0 0.0
    %5323 = vmatpush1.msra.mxu0 0.0
    %5324 = vmatprep.subr.mxu0 0.0
    %5325 = vmatpush1.msra.mxu0 0.0
    %5326 = vmatprep.subr.mxu0 0.0
    %5327 = vmatpush1.msra.mxu0 0.0
    %5328 = vmatprep.subr.mxu0 0.0
    %5329 = vmatpush1.msra.mxu0 0.0
    %5330 = vmatprep.subr.mxu0 0.0
    %5331 = vmatpush1.msra.mxu0 0.0
    %5332 = vmatprep.subr.mxu0 0.0
    %5333 = vmatpush1.msra.mxu0 0.0
    %5334 = vmatprep.subr.mxu0 0.0
    %5335 = vmatpush1.msra.mxu0 0.0
    %5336 = vmatprep.subr.mxu0 0.0
    %5337 = vmatpush1.msra.mxu0 0.0
    %5338 = vmatprep.subr.mxu0 0.0
    %5339 = vmatpush1.msra.mxu0 0.0
    %5340 = vmatprep.subr.mxu0 0.0
    %5341 = vmatpush1.msra.mxu0 0.0
    %5342 = vmatprep.subr.mxu0 0.0
    %5343 = vmatpush1.msra.mxu0 0.0
    %5344 = vmatprep.subr.mxu0 0.0
    %5345 = vmatpush1.msra.mxu0 0.0
    %5346 = vmatprep.subr.mxu0 0.0
    %5347 = vmatpush1.msra.mxu0 0.0
    %5348 = vmatprep.subr.mxu0 0.0
    %5349 = vmatpush1.msra.mxu0 0.0
    %5350 = vmatprep.subr.mxu0 0.0
    %5351 = vmatpush1.msra.mxu0 0.0
    %5352 = vmatprep.subr.mxu0 0.0
    %5353 = vmatpush1.msra.mxu0 0.0
    %5354 = vmatprep.subr.mxu0 0.0
    %5355 = vmatpush1.msra.mxu0 0.0
    %5356 = vmatprep.subr.mxu0 0.0
    %5357 = vmatpush1.msra.mxu0 0.0
    %5358 = vmatprep.subr.mxu0 0.0
    %5359 = vmatpush1.msra.mxu0 0.0
    %5360 = vmatprep.subr.mxu0 0.0
    %5361 = vmatpush1.msra.mxu0 0.0
    %5362 = vmatprep.subr.mxu0 0.0
    %5363 = vmatpush1.msra.mxu0 0.0
    %5364 = vmatprep.subr.mxu0 0.0
    %5365 = vmatpush1.msra.mxu0 0.0
    %5366 = vmatprep.subr.mxu0 0.0
    %5367 = vmatpush1.msra.mxu0 0.0
    %5368 = vmatprep.mubr.f32.mxu0 0.0
    %5369 = vmatmul.mubr.f32.gmra.mrb[0].mxu0 %v5299
    %v5370 = vpop.f32.mrb[0].mxu0
    %v5371 = vadd.f32 %v5290, %v5370
    %v5372 = vpop.f32.mrb[0].mxu0
    %5373 = vmatprep.mubr.f32.mxu0 0.0
    %5374 = vmatmul.mubr.f32.gmra.mrb[0].mxu0 %v5302
    %v5375 = vpop.f32.mrb[0].mxu0
    %v5376 = vadd.f32 %v5295, %v5375
    %v5377 = vpop.f32.mrb[0].mxu0
    %5378 = vdwg.mxu0
    %v5379 = vmax.f32 %v5371, 0.0
    %v5380 = vmax.f32 %v5376, 0.0
    %v5381 = vld [vmem:[%s15] sm:$0x1]
    %v5382 = vld [vmem:[#allocation2] sm:$0x1]
    %5384 = vset.pattern.permute.xlu0 0
    %5385 = vperm.xlu0 %5384, %v5382
    %v5386 = vpop.permute.xlu0 %5385
    %v5388 = vlaneseq
    %v5389 = vshrl.u32 %v5388, 7
    %v5390 = vsub.s32 0, %v5389
    %v5391 = vrot.slane %v5386, %v5390
    %v5393 = vsel %vm5297, %v5381, 0
    %5395 = vmatprep.subr.mxu0 0.0
    %5396 = vmatpush1.msra.mxu0 %v5379
    %5397 = vmatprep.subr.mxu0 0.0
    %5398 = vmatpush1.msra.mxu0 %v5380
    %5399 = vmatprep.subr.mxu0 0.0
    %5400 = vmatpush1.msra.mxu0 0.0
    %5401 = vmatprep.subr.mxu0 0.0
    %5402 = vmatpush1.msra.mxu0 0.0
    %5403 = vmatprep.subr.mxu0 0.0
    %5404 = vmatpush1.msra.mxu0 0.0
    %5405 = vmatprep.subr.mxu0 0.0
    %5406 = vmatpush1.msra.mxu0 0.0
    %5407 = vmatprep.subr.mxu0 0.0
    %5408 = vmatpush1.msra.mxu0 0.0
    %5409 = vmatprep.subr.mxu0 0.0
    %5410 = vmatpush1.msra.mxu0 0.0
    %5411 = vmatprep.subr.mxu0 0.0
    %5412 = vmatpush1.msra.mxu0 0.0
    %5413 = vmatprep.subr.mxu0 0.0
    %5414 = vmatpush1.msra.mxu0 0.0
    %5415 = vmatprep.subr.mxu0 0.0
    %5416 = vmatpush1.msra.mxu0 0.0
    %5417 = vmatprep.subr.mxu0 0.0
    %5418 = vmatpush1.msra.mxu0 0.0
    %5419 = vmatprep.subr.mxu0 0.0
    %5420 = vmatpush1.msra.mxu0 0.0
    %5421 = vmatprep.subr.mxu0 0.0
    %5422 = vmatpush1.msra.mxu0 0.0
    %5423 = vmatprep.subr.mxu0 0.0
    %5424 = vmatpush1.msra.mxu0 0.0
    %5425 = vmatprep.subr.mxu0 0.0
    %5426 = vmatpush1.msra.mxu0 0.0
    %5427 = vmatprep.subr.mxu0 0.0
    %5428 = vmatpush1.msra.mxu0 0.0
    %5429 = vmatprep.subr.mxu0 0.0
    %5430 = vmatpush1.msra.mxu0 0.0
    %5431 = vmatprep.subr.mxu0 0.0
    %5432 = vmatpush1.msra.mxu0 0.0
    %5433 = vmatprep.subr.mxu0 0.0
    %5434 = vmatpush1.msra.mxu0 0.0
    %5435 = vmatprep.subr.mxu0 0.0
    %5436 = vmatpush1.msra.mxu0 0.0
    %5437 = vmatprep.subr.mxu0 0.0
    %5438 = vmatpush1.msra.mxu0 0.0
    %5439 = vmatprep.subr.mxu0 0.0
    %5440 = vmatpush1.msra.mxu0 0.0
    %5441 = vmatprep.subr.mxu0 0.0
    %5442 = vmatpush1.msra.mxu0 0.0
    %5443 = vmatprep.subr.mxu0 0.0
    %5444 = vmatpush1.msra.mxu0 0.0
    %5445 = vmatprep.subr.mxu0 0.0
    %5446 = vmatpush1.msra.mxu0 0.0
    %5447 = vmatprep.subr.mxu0 0.0
    %5448 = vmatpush1.msra.mxu0 0.0
    %5449 = vmatprep.subr.mxu0 0.0
    %5450 = vmatpush1.msra.mxu0 0.0
    %5451 = vmatprep.subr.mxu0 0.0
    %5452 = vmatpush1.msra.mxu0 0.0
    %5453 = vmatprep.subr.mxu0 0.0
    %5454 = vmatpush1.msra.mxu0 0.0
    %5455 = vmatprep.subr.mxu0 0.0
    %5456 = vmatpush1.msra.mxu0 0.0
    %5457 = vmatprep.subr.mxu0 0.0
    %5458 = vmatpush1.msra.mxu0 0.0
    %5459 = vmatprep.mubr.f32.mxu0 0.0
    %5460 = vmatmul.mubr.f32.gmra.mrb[0].mxu0 %v5393
    %v5461 = vpop.f32.mrb[0].mxu0
    %v5462 = vadd.f32 %v5391, %v5461
    %v5463 = vpop.f32.mrb[0].mxu0
    %5464 = vdwg.mxu0
    %vm5465 = vcmask 57344
    %5466 = vst.msk [vmem:[#allocation14] sm:$0x1] %vm5465, %v5462
    // Predicated region
    $region94: #{tpu_custom_call.1} parent=1 // pred_check
      _
    $region95: #{tpu_custom_call.1} parent=1 // pred_check_branch
      %5468 = sbr.rel (0) target = $region97
    $region96: #{tpu_custom_call.1} parent=1 // pred_region
      %s5470 = ssub.s32 16, 16
      %5471 = vsyncadd [#allocation5], %s5470
      %s5473 = sshll.u32 [#allocation14], 4
      %s5474 = int_to_ptr.vmem [resolvable:$true] %s5473
      %5476 = dma.vmem_to_hbm [thread:$0]  %s5474, 16, %s17, [#allocation5]
    $region97: #{tpu_custom_call.1} parent=1 // pred_fallthru
      _
    // Predicated region
    $region98: #{tpu_custom_call.1} parent=1 // pred_check
      _
    $region99: #{tpu_custom_call.1} parent=1 // pred_check_branch
      %5478 = sbr.rel (0) target = $region101
    $region100: #{tpu_custom_call.1} parent=1 // pred_region
      %5479 = dma.done [#allocation5], 16
    $region101: #{tpu_custom_call.1} parent=1 // pred_fallthru
      _
    %5480 = vsyncpa [#allocation4], 1
    %5481 = vsyncpa [#allocation7], 1
    %5482 = vsyncpa [#allocation10], 1
    %5483 = vsyncpa [#allocation13], 1
    %5484 = vsyncpa [#allocation5], 1

</llo_original>
